<compile_context>
chip_gen: v5e
topology: v5e:2x2
jax: 0.10.0
libtpu: 0.0.40
codegen_flags: <defaults>
</compile_context>

<pallas_src>
import functools

import jax
import jax.numpy as jnp
from jax.experimental import pallas as pl
from jax.experimental.pallas import tpu as pltpu

# ----- fixed module dimensions (from the PyTorch __init__) -----
CHAR_EMB_DIM = 30          # CharacterEmbedding._char_emb_dim
CV_DIM = 50                # CharacterEmbedding._cv_dim (num_filters, single ngram size 3)
NGRAM = 3                  # ngram_filter_sizes = (3,)
HIDDEN = 64                # CellEmbedder hidden_size (hard-coded 64 in TRMCellEmbedder)
WV_DIM = 50                # pretrained word-vector dim (synthetic)
OUTPUT_DIM = 2 * HIDDEN    # CellEmbedder._output_dim = 128 (bidirectional h_n)
D_IN = WV_DIM + CV_DIM     # 100
FPAD = 128                 # char filter dim padded 50 -> 128 (lane-dense)


def _round_up(x, m):
    return (x + m - 1) // m * m


def _tile_rows(n, tile):
    """Row (sublane-axis) tile: multiple of 8; prefer >=2 grid steps when cheap (v7x 2 TCs)."""
    if n >= 2 * tile:
        t = tile
    elif n >= 16:
        t = _round_up((n + 1) // 2, 8)     # two tiles -> both TensorCores busy on v7x
    else:
        t = _round_up(max(n, 1), 8)
    return t, _round_up(n, t)


# --------------------------------------------------------------------------
# Kernel 1: char branch.
#   Per word: embedding lookup (padding_idx=0) + Conv1d(k=3, no bias) + ReLU + max over
#   conv positions, fused into one one-hot matmul per char position:
#     mcat = [table@W0 | table@W1 | table@W2]  padded to 128 lanes per tap  (V, 3*128)
#     y_l  = onehot(char[:, l]) @ mcat                                      (TN, 3*128)
#     conv_t = sum_k y_{t+k}[:, k*128:(k+1)*128]; relu; max over t          (TN, 128)
#   (row 0 of the table is zero -> padding chars contribute 0; padded lanes stay 0.)
# --------------------------------------------------------------------------
def _char_kernel(idx_ref, mcat_ref, out_ref, *, lo, fp):
    tn, lc = idx_ref.shape
    v, kf = mcat_ref.shape
    k = kf // fp

    idx = idx_ref[...]                                         # (TN, Lc) int32
    mcat = mcat_ref[...]                                       # (V, K*128) bf16
    iota_v = jax.lax.broadcasted_iota(jnp.int32, (tn, v), 1)

    ys = []
    for l in range(lc):
        oh = (idx[:, l:l + 1] == iota_v).astype(jnp.bfloat16)  # one-hot is exact in bf16
        ys.append(jnp.dot(oh, mcat, preferred_element_type=jnp.float32))   # (TN, K*128)

    res = None
    for t in range(lo):
        c = ys[t][:, 0:fp]
        for kk in range(1, k):
            c = c + ys[t + kk][:, kk * fp:(kk + 1) * fp]       # aligned 128-lane slices
        c = jnp.maximum(c, 0.0)                                # ReLU
        res = c if res is None else jnp.maximum(res, c)        # max over conv positions
    out_ref[...] = res                                         # (TN, 128) lane-dense store


def char_features(char_idx, mcat, *, tn=256):
    """char_idx: (Nw, Lc) int32 (word order preserved); mcat: (V, K*128) bf16 -> (Nw, 128)."""
    n, lc = char_idx.shape
    fp = mcat.shape[1] // NGRAM
    lo = lc - NGRAM + 1
    t, n_pad = _tile_rows(n, tn)
    if n_pad != n:
        char_idx = jnp.pad(char_idx, ((0, n_pad - n), (0, 0)))

    out = pl.pallas_call(
        functools.partial(_char_kernel, lo=lo, fp=fp),
        out_shape=jax.ShapeDtypeStruct((n_pad, fp), jnp.float32),
        grid=(n_pad // t,),
        in_specs=[
            pl.BlockSpec((t, lc), lambda i: (i, 0)),
            pl.BlockSpec(mcat.shape, lambda i: (0, 0)),        # fused weight stays resident
        ],
        out_specs=pl.BlockSpec((t, fp), lambda i: (i, 0)),
        compiler_params=pltpu.CompilerParams(dimension_semantics=("parallel",)),
    )(char_idx, mcat)
    return out[:n]


# --------------------------------------------------------------------------
# Kernel 2: bidirectional LSTM, final hidden state of both directions, fused.
#   Inputs are time-major word features (S,N,50) and padded char features (S,N,128).
#   Weights are pre-fused in the wrapper into the gate-interleaved layout
#   [i_f|i_b][f_f|f_b][g_f|g_b][o_f|o_b] (each gate slice = one aligned 128-lane vreg):
#     wfw/wfc/wbw/wbc : (50|128, 512)  input weights, zero in the other direction's slots
#     whh_blk         : (128, 512)     block-diagonal recurrent weights
#     b_blk           : (1, 512)       b_ih + b_hh, both directions
#   The input projection (+bias) for all timesteps is hoisted into VMEM scratch; the serial
#   recurrence is a single (TN,128)x(128,512) matmul + 128-lane gate nonlinearities per step.
# --------------------------------------------------------------------------
def _bilstm_kernel(we_ref, cf_ref, wfw_ref, wfc_ref, wbw_ref, wbc_ref,
                   whh_ref, b_ref, out_ref, xg_sc):
    s, tn, _ = we_ref.shape
    h2, g8 = whh_ref.shape

    bias = jnp.broadcast_to(b_ref[...], (tn, g8))              # hoisted once

    # ---- hoisted input projection: both directions, bias folded, off the serial path ----
    for t in range(s):
        xg_sc[t] = (
            jnp.dot(we_ref[t], wfw_ref[...], preferred_element_type=jnp.float32)
            + jnp.dot(cf_ref[t], wfc_ref[...], preferred_element_type=jnp.float32)
            + jnp.dot(we_ref[s - 1 - t], wbw_ref[...], preferred_element_type=jnp.float32)
            + jnp.dot(cf_ref[s - 1 - t], wbc_ref[...], preferred_element_type=jnp.float32)
            + bias)

    whh = whh_ref[...]
    h = jnp.zeros((tn, h2), jnp.float32)                       # [h_fwd | h_bwd]
    c = jnp.zeros((tn, h2), jnp.float32)                       # [c_fwd | c_bwd]

    for t in range(s):                                          # statically unrolled
        g = xg_sc[t] + jnp.dot(h, whh, preferred_element_type=jnp.float32)   # (TN, 512)
        i_g = jax.nn.sigmoid(g[:, 0 * h2:1 * h2])
        f_g = jax.nn.sigmoid(g[:, 1 * h2:2 * h2])
        g_g = jnp.tanh(g[:, 2 * h2:3 * h2])
        o_g = jax.nn.sigmoid(g[:, 3 * h2:4 * h2])
        c = f_g * c + i_g * g_g
        h = o_g * jnp.tanh(c)

    out_ref[...] = h                                            # (TN, 128) = [h_fwd | h_bwd]


def bilstm_final_hidden(we_t, cf_t, wfw, wfc, wbw, wbc, whh, bias, *, tn=256):
    s, n, wv = we_t.shape
    fp = cf_t.shape[2]
    h2, g8 = whh.shape
    t, n_pad = _tile_rows(n, tn)
    if n_pad != n:
        we_t = jnp.pad(we_t, ((0, 0), (0, n_pad - n), (0, 0)))
        cf_t = jnp.pad(cf_t, ((0, 0), (0, n_pad - n), (0, 0)))

    out = pl.pallas_call(
        _bilstm_kernel,
        out_shape=jax.ShapeDtypeStruct((n_pad, h2), jnp.float32),
        grid=(n_pad // t,),
        in_specs=[
            pl.BlockSpec((s, t, wv), lambda i: (0, i, 0)),
            pl.BlockSpec((s, t, fp), lambda i: (0, i, 0)),
            pl.BlockSpec(wfw.shape, lambda i: (0, 0)),
            pl.BlockSpec(wfc.shape, lambda i: (0, 0)),
            pl.BlockSpec(wbw.shape, lambda i: (0, 0)),
            pl.BlockSpec(wbc.shape, lambda i: (0, 0)),
            pl.BlockSpec(whh.shape, lambda i: (0, 0)),
            pl.BlockSpec(bias.shape, lambda i: (0, 0)),
        ],
        out_specs=pl.BlockSpec((t, h2), lambda i: (i, 0)),
        scratch_shapes=[pltpu.VMEM((s, t, g8), jnp.float32)],
        compiler_params=pltpu.CompilerParams(dimension_semantics=("parallel",)),
    )(we_t, cf_t, wfw, wfc, wbw, wbc, whh, bias)
    return out[:n]


# --------------------------------------------------------------------------
# Kernel 3: Linear projection (bert_embedder_projection):  y = x @ W + b, tiled over rows.
# --------------------------------------------------------------------------
def _linear_kernel(x_ref, w_ref, b_ref, o_ref):
    o_ref[...] = (jnp.dot(x_ref[...], w_ref[...],
                          preferred_element_type=jnp.float32) + b_ref[...])


def linear(x, w, b, *, tm=512):
    m, kdim = x.shape
    n = w.shape[1]
    t, m_pad = _tile_rows(m, tm)
    if m_pad != m:
        x = jnp.pad(x, ((0, m_pad - m), (0, 0)))

    out = pl.pallas_call(
        _linear_kernel,
        out_shape=jax.ShapeDtypeStruct((m_pad, n), jnp.float32),
        grid=(m_pad // t,),
        in_specs=[
            pl.BlockSpec((t, kdim), lambda i: (i, 0)),
            pl.BlockSpec((kdim, n), lambda i: (0, 0)),
            pl.BlockSpec((1, n), lambda i: (0, 0)),
        ],
        out_specs=pl.BlockSpec((t, n), lambda i: (i, 0)),
        compiler_params=pltpu.CompilerParams(dimension_semantics=("parallel",)),
    )(x, w, b.reshape(1, n))
    return out[:m]


# --------------------------------------------------------------------------
# Parameter init (deterministic, synthetic — shapes implied by the module __init__)
# --------------------------------------------------------------------------
def init_params(key, char_vocab, word_vocab, bert_dim):
    ks = jax.random.split(key, 11)

    def u(k, shape, scale=0.1):
        return jax.random.uniform(k, shape, jnp.float32, -scale, scale)

    return dict(
        # nn.Embedding(padding_idx=0) -> row 0 is zero
        char_table=u(ks[0], (char_vocab, CHAR_EMB_DIM)).at[0].set(0.0),
        word_table=u(ks[1], (word_vocab, WV_DIM)).at[0].set(0.0),
        # torch Conv1d weight is (F, C, K); stored here as (K, C, F) (transpose (2,1,0))
        conv_w=u(ks[2], (NGRAM, CHAR_EMB_DIM, CV_DIM)),
        # BiLSTM weights, gate order (i,f,g,o) along columns; rows 0..49 word, 50..99 char.
        # torch weight_ih_l0 (4H,D) -> transpose -> (D,4H); b = b_ih + b_hh summed.
        wih_f=u(ks[3], (D_IN, 4 * HIDDEN)),
        whh_f=u(ks[4], (HIDDEN, 4 * HIDDEN)),
        b_f=u(ks[5], (1, 4 * HIDDEN)),
        wih_b=u(ks[6], (D_IN, 4 * HIDDEN)),
        whh_b=u(ks[7], (HIDDEN, 4 * HIDDEN)),
        b_b=u(ks[8], (1, 4 * HIDDEN)),
        # bert_embedder_projection: Linear(bert_dim -> 128)
        proj_w=u(ks[9], (bert_dim, OUTPUT_DIM)),
        proj_b=u(ks[10], (OUTPUT_DIM,)),
    )


# --------------------------------------------------------------------------
# Forward pass (glue in plain JAX, hot paths in the Pallas kernels above)
# --------------------------------------------------------------------------
def trm_cell_embedder_forward(params, word_input, char_input, trm_outs):
    b, hh, ww, s, lc = char_input.shape
    ncell = b * hh * ww
    nw = ncell * s
    hd, h2, g8 = HIDDEN, 2 * HIDDEN, 8 * HIDDEN

    # ---- fuse char table with conv filters; pad filter dim 50->128 per tap; bf16 for MXU ----
    # (bf16 quantizes the fused char weights by ~1e-3 rel; one-hot stays exact, f32 accum.)
    taps = [jnp.pad(params["char_table"] @ params["conv_w"][k],
                    ((0, 0), (0, FPAD - CV_DIM))) for k in range(NGRAM)]
    mcat = jnp.concatenate(taps, axis=1).astype(jnp.bfloat16)            # (V, 3*128)

    # ---- BiLSTM weight fusion: gate-interleaved columns, block-diagonal recurrence ----
    def gate_interleave(w4h, side):          # place each gate's H columns at [g*2H + side*H]
        out = jnp.zeros((w4h.shape[0], g8), w4h.dtype)
        for g in range(4):
            out = out.at[:, g * h2 + side * hd:g * h2 + (side + 1) * hd].set(
                w4h[:, g * hd:(g + 1) * hd])
        return out

    def split_word_char(wih):                # (100,4H) -> word (50,4H), char padded (128,4H)
        return wih[:WV_DIM], jnp.pad(wih[WV_DIM:], ((0, FPAD - CV_DIM), (0, 0)))

    wfw, wfc = split_word_char(params["wih_f"])
    wbw, wbc = split_word_char(params["wih_b"])
    wfw_e, wfc_e = gate_interleave(wfw, 0), gate_interleave(wfc, 0)
    wbw_e, wbc_e = gate_interleave(wbw, 1), gate_interleave(wbc, 1)
    whh_blk = jnp.concatenate([gate_interleave(params["whh_f"], 0),
                               gate_interleave(params["whh_b"], 1)], axis=0)   # (128, 512)
    b_blk = gate_interleave(params["b_f"], 0) + gate_interleave(params["b_b"], 1)  # (1, 512)

    # ---- WordEmbedding: transpose the small int32 indices, gather in time-major layout ----
    wi_t = word_input.reshape(ncell, s).T                                  # (S, Ncell)
    we_t = jnp.take(params["word_table"], wi_t, axis=0)                    # (S, Ncell, 50)

    # ---- CharacterEmbedding: fused in-kernel lookup + conv + relu + position-max ----
    ci_t = char_input.reshape(ncell, s, lc).transpose(1, 0, 2).reshape(nw, lc)
    cf_t = char_features(ci_t, mcat).reshape(s, ncell, FPAD)               # (S, Ncell, 128)

    # ---- BiLSTM over (word | padded char) features -> final fwd/bwd hidden states ----
    h_n = bilstm_final_hidden(we_t, cf_t, wfw_e, wfc_e, wbw_e, wbc_e,
                              whh_blk, b_blk)                              # (Ncell, 128)
    cell_outs = jnp.transpose(h_n.reshape(b, hh, ww, OUTPUT_DIM), (0, 3, 1, 2))  # NCHW

    # ---- bert_embedder_projection on trm_outs, then permute(0,3,1,2) ----
    trm = linear(trm_outs.reshape(ncell, -1), params["proj_w"], params["proj_b"])
    trm = jnp.transpose(trm.reshape(b, hh, ww, OUTPUT_DIM), (0, 3, 1, 2))  # (B,128,H,W)

    # torch.cat((cell_outs, trm_outs), dim=1)
    # TODO(synk): the accompanying table_bert_output of the tuple return (external BERT) is
    #             not reproduced; returning only the fused cell/trm embedding map.
    return jnp.concatenate([cell_outs, trm], axis=1)                       # (B,256,H,W)


if __name__ == "__main__":
    key = jax.random.PRNGKey(0)
    kp, kw, kc, kt = jax.random.split(key, 4)

    B, Hh, Ww, S, Lc = 2, 2, 2, 8, 8
    CHAR_VOCAB, WORD_VOCAB, BERT_DIM = 20, 30, 32

    params = init_params(kp, CHAR_VOCAB, WORD_VOCAB, BERT_DIM)

    word_input = jax.random.randint(kw, (B, Hh, Ww, S), 0, WORD_VOCAB, dtype=jnp.int32)
    char_input = jax.random.randint(kc, (B, Hh, Ww, S, Lc), 0, CHAR_VOCAB, dtype=jnp.int32)
    trm_outs = jax.random.normal(kt, (B, Hh, Ww, BERT_DIM), dtype=jnp.float32)

    fwd = jax.jit(trm_cell_embedder_forward)
    out = jax.block_until_ready(fwd(params, word_input, char_input, trm_outs))

    assert out.shape == (B, 2 * OUTPUT_DIM, Hh, Ww), out.shape
    assert out.dtype == jnp.float32
    print("KERNEL_OK")
</pallas_src>

<mosaic_0001>
module attributes {stable_mosaic.version = 11 : i64} {
  func.func @_linear_kernel(%arg0: i32, %arg1: memref<8x32xf32, #tpu.memory_space<vmem>>, %arg2: memref<32x128xf32, #tpu.memory_space<vmem>>, %arg3: memref<1x128xf32, #tpu.memory_space<vmem>>, %arg4: memref<8x128xf32, #tpu.memory_space<vmem>>) attributes {dimension_semantics = [#tpu.dimension_semantics<parallel>], iteration_bounds = array<i64: 1>, scalar_prefetch = 0 : i64, scratch_operands = 0 : i64, tpu.core_type = #tpu.core_type<tc>, window_params = [{transform_indices = @transform_0, window_bounds = array<i64: 8, 32>}, {pipeline_mode = #tpu.pipeline_mode<synchronous>, transform_indices = @transform_1, window_bounds = array<i64: 32, 128>}, {pipeline_mode = #tpu.pipeline_mode<synchronous>, transform_indices = @transform_2, window_bounds = array<i64: 1, 128>}, {transform_indices = @transform_3, window_bounds = array<i64: 8, 128>}]} {
    %c0 = arith.constant 0 : index
    %c0_0 = arith.constant 0 : index
    %0 = vector.load %arg1[%c0, %c0_0] : memref<8x32xf32, #tpu.memory_space<vmem>>, vector<8x32xf32>
    %c0_1 = arith.constant 0 : index
    %c0_2 = arith.constant 0 : index
    %1 = vector.load %arg2[%c0_1, %c0_2] : memref<32x128xf32, #tpu.memory_space<vmem>>, vector<32x128xf32>
    %cst = arith.constant dense<0.000000e+00> : vector<8x128xf32>
    %2 = tpu.matmul %0, %1, %cst {dimension_numbers = #tpu.dot_dimension_numbers<[1], [0], [0], [1], [0, 0, 1, 1], [], []>} : vector<8x32xf32>, vector<32x128xf32>, vector<8x128xf32> -> vector<8x128xf32>
    %c0_3 = arith.constant 0 : index
    %c0_4 = arith.constant 0 : index
    %3 = vector.load %arg3[%c0_3, %c0_4] : memref<1x128xf32, #tpu.memory_space<vmem>>, vector<1x128xf32>
    %4 = vector.broadcast %3 : vector<1x128xf32> to vector<8x128xf32>
    %5 = arith.addf %2, %4 : vector<8x128xf32>
    %c0_5 = arith.constant 0 : index
    %c0_6 = arith.constant 0 : index
    %6 = vector.load %arg4[%c0_5, %c0_6] : memref<8x128xf32, #tpu.memory_space<vmem>>, vector<8x128xf32>
    tpu.vector_store %arg4[%c0_5, %c0_6], %5 {strides = array<i32>} : memref<8x128xf32, #tpu.memory_space<vmem>>, vector<8x128xf32>,
    return
  }
  func.func @transform_0(%arg0: i32) -> (i32, i32) {
    %c0_i32 = arith.constant 0 : i32
    %c0_i32_0 = arith.constant 0 : i32
    return %arg0, %c0_i32 : i32, i32
  }
  func.func @transform_1(%arg0: i32) -> (i32, i32) {
    %c0_i32 = arith.constant 0 : i32
    %c0_i32_0 = arith.constant 0 : i32
    %c0_i32_1 = arith.constant 0 : i32
    return %c0_i32, %c0_i32_0 : i32, i32
  }
  func.func @transform_2(%arg0: i32) -> (i32, i32) {
    %c0_i32 = arith.constant 0 : i32
    %c0_i32_0 = arith.constant 0 : i32
    %c0_i32_1 = arith.constant 0 : i32
    return %c0_i32, %c0_i32_0 : i32, i32
  }
  func.func @transform_3(%arg0: i32) -> (i32, i32) {
    %c0_i32 = arith.constant 0 : i32
    %c0_i32_0 = arith.constant 0 : i32
    return %arg0, %c0_i32 : i32, i32
  }
}

module attributes {stable_mosaic.version = 11 : i64} {
  func.func @_char_kernel(%arg0: i32, %arg1: memref<32x8xi32, #tpu.memory_space<vmem>>, %arg2: memref<20x384xbf16, #tpu.memory_space<vmem>>, %arg3: memref<32x128xf32, #tpu.memory_space<vmem>>) attributes {dimension_semantics = [#tpu.dimension_semantics<parallel>], iteration_bounds = array<i64: 2>, scalar_prefetch = 0 : i64, scratch_operands = 0 : i64, tpu.core_type = #tpu.core_type<tc>, window_params = [{transform_indices = @transform_0, window_bounds = array<i64: 32, 8>}, {pipeline_mode = #tpu.pipeline_mode<synchronous>, transform_indices = @transform_1, window_bounds = array<i64: 20, 384>}, {transform_indices = @transform_2, window_bounds = array<i64: 32, 128>}]} {
    %c0 = arith.constant 0 : index
    %c0_0 = arith.constant 0 : index
    %0 = vector.load %arg1[%c0, %c0_0] : memref<32x8xi32, #tpu.memory_space<vmem>>, vector<32x8xi32>
    %c0_1 = arith.constant 0 : index
    %c0_2 = arith.constant 0 : index
    %1 = vector.load %arg2[%c0_1, %c0_2] : memref<20x384xbf16, #tpu.memory_space<vmem>>, vector<20x384xbf16>
    %2 = tpu.iota {dimensions = array<i32: 1>} : vector<32x20xi32>
    %3 = vector.extract_strided_slice %0 {offsets = [0, 0], sizes = [32, 1], strides = [1, 1]} : vector<32x8xi32> to vector<32x1xi32>
    %4 = vector.broadcast %3 : vector<32x1xi32> to vector<32x20xi32>
    %5 = arith.cmpi eq, %4, %2 : vector<32x20xi32>
    %6 = arith.extui %5 : vector<32x20xi1> to vector<32x20xi32>
    %7 = arith.sitofp %6 : vector<32x20xi32> to vector<32x20xf32>
    %8 = arith.truncf %7 : vector<32x20xf32> to vector<32x20xbf16>
    %cst = arith.constant dense<0.000000e+00> : vector<32x384xf32>
    %9 = tpu.matmul %8, %1, %cst {dimension_numbers = #tpu.dot_dimension_numbers<[1], [0], [0], [1], [0, 0, 1, 1], [], []>} : vector<32x20xbf16>, vector<20x384xbf16>, vector<32x384xf32> -> vector<32x384xf32>
    %10 = vector.extract_strided_slice %0 {offsets = [0, 1], sizes = [32, 1], strides = [1, 1]} : vector<32x8xi32> to vector<32x1xi32>
    %11 = vector.broadcast %10 : vector<32x1xi32> to vector<32x20xi32>
    %12 = arith.cmpi eq, %11, %2 : vector<32x20xi32>
    %13 = arith.extui %12 : vector<32x20xi1> to vector<32x20xi32>
    %14 = arith.sitofp %13 : vector<32x20xi32> to vector<32x20xf32>
    %15 = arith.truncf %14 : vector<32x20xf32> to vector<32x20xbf16>
    %cst_3 = arith.constant dense<0.000000e+00> : vector<32x384xf32>
    %16 = tpu.matmul %15, %1, %cst_3 {dimension_numbers = #tpu.dot_dimension_numbers<[1], [0], [0], [1], [0, 0, 1, 1], [], []>} : vector<32x20xbf16>, vector<20x384xbf16>, vector<32x384xf32> -> vector<32x384xf32>
    %17 = vector.extract_strided_slice %0 {offsets = [0, 2], sizes = [32, 1], strides = [1, 1]} : vector<32x8xi32> to vector<32x1xi32>
    %18 = vector.broadcast %17 : vector<32x1xi32> to vector<32x20xi32>
    %19 = arith.cmpi eq, %18, %2 : vector<32x20xi32>
    %20 = arith.extui %19 : vector<32x20xi1> to vector<32x20xi32>
    %21 = arith.sitofp %20 : vector<32x20xi32> to vector<32x20xf32>
    %22 = arith.truncf %21 : vector<32x20xf32> to vector<32x20xbf16>
    %cst_4 = arith.constant dense<0.000000e+00> : vector<32x384xf32>
    %23 = tpu.matmul %22, %1, %cst_4 {dimension_numbers = #tpu.dot_dimension_numbers<[1], [0], [0], [1], [0, 0, 1, 1], [], []>} : vector<32x20xbf16>, vector<20x384xbf16>, vector<32x384xf32> -> vector<32x384xf32>
    %24 = vector.extract_strided_slice %0 {offsets = [0, 3], sizes = [32, 1], strides = [1, 1]} : vector<32x8xi32> to vector<32x1xi32>
    %25 = vector.broadcast %24 : vector<32x1xi32> to vector<32x20xi32>
    %26 = arith.cmpi eq, %25, %2 : vector<32x20xi32>
    %27 = arith.extui %26 : vector<32x20xi1> to vector<32x20xi32>
    %28 = arith.sitofp %27 : vector<32x20xi32> to vector<32x20xf32>
    %29 = arith.truncf %28 : vector<32x20xf32> to vector<32x20xbf16>
    %cst_5 = arith.constant dense<0.000000e+00> : vector<32x384xf32>
    %30 = tpu.matmul %29, %1, %cst_5 {dimension_numbers = #tpu.dot_dimension_numbers<[1], [0], [0], [1], [0, 0, 1, 1], [], []>} : vector<32x20xbf16>, vector<20x384xbf16>, vector<32x384xf32> -> vector<32x384xf32>
    %31 = vector.extract_strided_slice %0 {offsets = [0, 4], sizes = [32, 1], strides = [1, 1]} : vector<32x8xi32> to vector<32x1xi32>
    %32 = vector.broadcast %31 : vector<32x1xi32> to vector<32x20xi32>
    %33 = arith.cmpi eq, %32, %2 : vector<32x20xi32>
    %34 = arith.extui %33 : vector<32x20xi1> to vector<32x20xi32>
    %35 = arith.sitofp %34 : vector<32x20xi32> to vector<32x20xf32>
    %36 = arith.truncf %35 : vector<32x20xf32> to vector<32x20xbf16>
    %cst_6 = arith.constant dense<0.000000e+00> : vector<32x384xf32>
    %37 = tpu.matmul %36, %1, %cst_6 {dimension_numbers = #tpu.dot_dimension_numbers<[1], [0], [0], [1], [0, 0, 1, 1], [], []>} : vector<32x20xbf16>, vector<20x384xbf16>, vector<32x384xf32> -> vector<32x384xf32>
    %38 = vector.extract_strided_slice %0 {offsets = [0, 5], sizes = [32, 1], strides = [1, 1]} : vector<32x8xi32> to vector<32x1xi32>
    %39 = vector.broadcast %38 : vector<32x1xi32> to vector<32x20xi32>
    %40 = arith.cmpi eq, %39, %2 : vector<32x20xi32>
    %41 = arith.extui %40 : vector<32x20xi1> to vector<32x20xi32>
    %42 = arith.sitofp %41 : vector<32x20xi32> to vector<32x20xf32>
    %43 = arith.truncf %42 : vector<32x20xf32> to vector<32x20xbf16>
    %cst_7 = arith.constant dense<0.000000e+00> : vector<32x384xf32>
    %44 = tpu.matmul %43, %1, %cst_7 {dimension_numbers = #tpu.dot_dimension_numbers<[1], [0], [0], [1], [0, 0, 1, 1], [], []>} : vector<32x20xbf16>, vector<20x384xbf16>, vector<32x384xf32> -> vector<32x384xf32>
    %45 = vector.extract_strided_slice %0 {offsets = [0, 6], sizes = [32, 1], strides = [1, 1]} : vector<32x8xi32> to vector<32x1xi32>
    %46 = vector.broadcast %45 : vector<32x1xi32> to vector<32x20xi32>
    %47 = arith.cmpi eq, %46, %2 : vector<32x20xi32>
    %48 = arith.extui %47 : vector<32x20xi1> to vector<32x20xi32>
    %49 = arith.sitofp %48 : vector<32x20xi32> to vector<32x20xf32>
    %50 = arith.truncf %49 : vector<32x20xf32> to vector<32x20xbf16>
    %cst_8 = arith.constant dense<0.000000e+00> : vector<32x384xf32>
    %51 = tpu.matmul %50, %1, %cst_8 {dimension_numbers = #tpu.dot_dimension_numbers<[1], [0], [0], [1], [0, 0, 1, 1], [], []>} : vector<32x20xbf16>, vector<20x384xbf16>, vector<32x384xf32> -> vector<32x384xf32>
    %52 = vector.extract_strided_slice %0 {offsets = [0, 7], sizes = [32, 1], strides = [1, 1]} : vector<32x8xi32> to vector<32x1xi32>
    %53 = vector.broadcast %52 : vector<32x1xi32> to vector<32x20xi32>
    %54 = arith.cmpi eq, %53, %2 : vector<32x20xi32>
    %55 = arith.extui %54 : vector<32x20xi1> to vector<32x20xi32>
    %56 = arith.sitofp %55 : vector<32x20xi32> to vector<32x20xf32>
    %57 = arith.truncf %56 : vector<32x20xf32> to vector<32x20xbf16>
    %cst_9 = arith.constant dense<0.000000e+00> : vector<32x384xf32>
    %58 = tpu.matmul %57, %1, %cst_9 {dimension_numbers = #tpu.dot_dimension_numbers<[1], [0], [0], [1], [0, 0, 1, 1], [], []>} : vector<32x20xbf16>, vector<20x384xbf16>, vector<32x384xf32> -> vector<32x384xf32>
    %59 = vector.extract_strided_slice %9 {offsets = [0, 0], sizes = [32, 128], strides = [1, 1]} : vector<32x384xf32> to vector<32x128xf32>
    %60 = vector.extract_strided_slice %16 {offsets = [0, 128], sizes = [32, 128], strides = [1, 1]} : vector<32x384xf32> to vector<32x128xf32>
    %61 = arith.addf %59, %60 : vector<32x128xf32>
    %62 = vector.extract_strided_slice %23 {offsets = [0, 256], sizes = [32, 128], strides = [1, 1]} : vector<32x384xf32> to vector<32x128xf32>
    %63 = arith.addf %61, %62 : vector<32x128xf32>
    %cst_10 = arith.constant 0.000000e+00 : f32
    %64 = vector.broadcast %cst_10 : f32 to vector<32x128xf32>
    %65 = arith.maximumf %63, %64 : vector<32x128xf32>
    %66 = vector.extract_strided_slice %16 {offsets = [0, 0], sizes = [32, 128], strides = [1, 1]} : vector<32x384xf32> to vector<32x128xf32>
    %67 = vector.extract_strided_slice %23 {offsets = [0, 128], sizes = [32, 128], strides = [1, 1]} : vector<32x384xf32> to vector<32x128xf32>
    %68 = arith.addf %66, %67 : vector<32x128xf32>
    %69 = vector.extract_strided_slice %30 {offsets = [0, 256], sizes = [32, 128], strides = [1, 1]} : vector<32x384xf32> to vector<32x128xf32>
    %70 = arith.addf %68, %69 : vector<32x128xf32>
    %cst_11 = arith.constant 0.000000e+00 : f32
    %71 = vector.broadcast %cst_11 : f32 to vector<32x128xf32>
    %72 = arith.maximumf %70, %71 : vector<32x128xf32>
    %73 = arith.maximumf %65, %72 : vector<32x128xf32>
    %74 = vector.extract_strided_slice %23 {offsets = [0, 0], sizes = [32, 128], strides = [1, 1]} : vector<32x384xf32> to vector<32x128xf32>
    %75 = vector.extract_strided_slice %30 {offsets = [0, 128], sizes = [32, 128], strides = [1, 1]} : vector<32x384xf32> to vector<32x128xf32>
    %76 = arith.addf %74, %75 : vector<32x128xf32>
    %77 = vector.extract_strided_slice %37 {offsets = [0, 256], sizes = [32, 128], strides = [1, 1]} : vector<32x384xf32> to vector<32x128xf32>
    %78 = arith.addf %76, %77 : vector<32x128xf32>
    %cst_12 = arith.constant 0.000000e+00 : f32
    %79 = vector.broadcast %cst_12 : f32 to vector<32x128xf32>
    %80 = arith.maximumf %78, %79 : vector<32x128xf32>
    %81 = arith.maximumf %73, %80 : vector<32x128xf32>
    %82 = vector.extract_strided_slice %30 {offsets = [0, 0], sizes = [32, 128], strides = [1, 1]} : vector<32x384xf32> to vector<32x128xf32>
    %83 = vector.extract_strided_slice %37 {offsets = [0, 128], sizes = [32, 128], strides = [1, 1]} : vector<32x384xf32> to vector<32x128xf32>
    %84 = arith.addf %82, %83 : vector<32x128xf32>
    %85 = vector.extract_strided_slice %44 {offsets = [0, 256], sizes = [32, 128], strides = [1, 1]} : vector<32x384xf32> to vector<32x128xf32>
    %86 = arith.addf %84, %85 : vector<32x128xf32>
    %cst_13 = arith.constant 0.000000e+00 : f32
    %87 = vector.broadcast %cst_13 : f32 to vector<32x128xf32>
    %88 = arith.maximumf %86, %87 : vector<32x128xf32>
    %89 = arith.maximumf %81, %88 : vector<32x128xf32>
    %90 = vector.extract_strided_slice %37 {offsets = [0, 0], sizes = [32, 128], strides = [1, 1]} : vector<32x384xf32> to vector<32x128xf32>
    %91 = vector.extract_strided_slice %44 {offsets = [0, 128], sizes = [32, 128], strides = [1, 1]} : vector<32x384xf32> to vector<32x128xf32>
    %92 = arith.addf %90, %91 : vector<32x128xf32>
    %93 = vector.extract_strided_slice %51 {offsets = [0, 256], sizes = [32, 128], strides = [1, 1]} : vector<32x384xf32> to vector<32x128xf32>
    %94 = arith.addf %92, %93 : vector<32x128xf32>
    %cst_14 = arith.constant 0.000000e+00 : f32
    %95 = vector.broadcast %cst_14 : f32 to vector<32x128xf32>
    %96 = arith.maximumf %94, %95 : vector<32x128xf32>
    %97 = arith.maximumf %89, %96 : vector<32x128xf32>
    %98 = vector.extract_strided_slice %44 {offsets = [0, 0], sizes = [32, 128], strides = [1, 1]} : vector<32x384xf32> to vector<32x128xf32>
    %99 = vector.extract_strided_slice %51 {offsets = [0, 128], sizes = [32, 128], strides = [1, 1]} : vector<32x384xf32> to vector<32x128xf32>
    %100 = arith.addf %98, %99 : vector<32x128xf32>
    %101 = vector.extract_strided_slice %58 {offsets = [0, 256], sizes = [32, 128], strides = [1, 1]} : vector<32x384xf32> to vector<32x128xf32>
    %102 = arith.addf %100, %101 : vector<32x128xf32>
    %cst_15 = arith.constant 0.000000e+00 : f32
    %103 = vector.broadcast %cst_15 : f32 to vector<32x128xf32>
    %104 = arith.maximumf %102, %103 : vector<32x128xf32>
    %105 = arith.maximumf %97, %104 : vector<32x128xf32>
    %c0_16 = arith.constant 0 : index
    %c0_17 = arith.constant 0 : index
    %106 = vector.load %arg3[%c0_16, %c0_17] : memref<32x128xf32, #tpu.memory_space<vmem>>, vector<32x128xf32>
    tpu.vector_store %arg3[%c0_16, %c0_17], %105 {strides = array<i32>} : memref<32x128xf32, #tpu.memory_space<vmem>>, vector<32x128xf32>,
    return
  }
  func.func @transform_0(%arg0: i32) -> (i32, i32) {
    %c0_i32 = arith.constant 0 : i32
    %c0_i32_0 = arith.constant 0 : i32
    return %arg0, %c0_i32 : i32, i32
  }
  func.func @transform_1(%arg0: i32) -> (i32, i32) {
    %c0_i32 = arith.constant 0 : i32
    %c0_i32_0 = arith.constant 0 : i32
    %c0_i32_1 = arith.constant 0 : i32
    return %c0_i32, %c0_i32_0 : i32, i32
  }
  func.func @transform_2(%arg0: i32) -> (i32, i32) {
    %c0_i32 = arith.constant 0 : i32
    %c0_i32_0 = arith.constant 0 : i32
    return %arg0, %c0_i32 : i32, i32
  }
}

module attributes {stable_mosaic.version = 11 : i64} {
  func.func @_bilstm_kernel(%arg0: i32, %arg1: memref<8x8x50xf32, #tpu.memory_space<vmem>>, %arg2: memref<8x8x128xf32, #tpu.memory_space<vmem>>, %arg3: memref<50x512xf32, #tpu.memory_space<vmem>>, %arg4: memref<128x512xf32, #tpu.memory_space<vmem>>, %arg5: memref<50x512xf32, #tpu.memory_space<vmem>>, %arg6: memref<128x512xf32, #tpu.memory_space<vmem>>, %arg7: memref<128x512xf32, #tpu.memory_space<vmem>>, %arg8: memref<1x512xf32, #tpu.memory_space<vmem>>, %arg9: memref<8x128xf32, #tpu.memory_space<vmem>>, %arg10: memref<8x8x512xf32, #tpu.memory_space<vmem>>) attributes {dimension_semantics = [#tpu.dimension_semantics<parallel>], iteration_bounds = array<i64: 1>, scalar_prefetch = 0 : i64, scratch_operands = 1 : i64, tpu.core_type = #tpu.core_type<tc>, window_params = [{transform_indices = @transform_0, window_bounds = array<i64: 8, 8, 50>}, {transform_indices = @transform_1, window_bounds = array<i64: 8, 8, 128>}, {pipeline_mode = #tpu.pipeline_mode<synchronous>, transform_indices = @transform_2, window_bounds = array<i64: 50, 512>}, {pipeline_mode = #tpu.pipeline_mode<synchronous>, transform_indices = @transform_3, window_bounds = array<i64: 128, 512>}, {pipeline_mode = #tpu.pipeline_mode<synchronous>, transform_indices = @transform_4, window_bounds = array<i64: 50, 512>}, {pipeline_mode = #tpu.pipeline_mode<synchronous>, transform_indices = @transform_5, window_bounds = array<i64: 128, 512>}, {pipeline_mode = #tpu.pipeline_mode<synchronous>, transform_indices = @transform_6, window_bounds = array<i64: 128, 512>}, {pipeline_mode = #tpu.pipeline_mode<synchronous>, transform_indices = @transform_7, window_bounds = array<i64: 1, 512>}, {transform_indices = @transform_8, window_bounds = array<i64: 8, 128>}]} {
    %c0 = arith.constant 0 : index
    %c0_0 = arith.constant 0 : index
    %0 = vector.load %arg8[%c0, %c0_0] : memref<1x512xf32, #tpu.memory_space<vmem>>, vector<1x512xf32>
    %1 = vector.shape_cast %0 : vector<1x512xf32> to vector<1x512xf32>
    %2 = vector.broadcast %1 : vector<1x512xf32> to vector<8x512xf32>
    %c0_1 = arith.constant 0 : index
    %c0_2 = arith.constant 0 : index
    %c0_3 = arith.constant 0 : index
    %3 = vector.load %arg1[%c0_1, %c0_2, %c0_3] : memref<8x8x50xf32, #tpu.memory_space<vmem>>, vector<1x8x50xf32>
    %4 = vector.shape_cast %3 : vector<1x8x50xf32> to vector<8x50xf32>
    %c0_4 = arith.constant 0 : index
    %c0_5 = arith.constant 0 : index
    %5 = vector.load %arg3[%c0_4, %c0_5] : memref<50x512xf32, #tpu.memory_space<vmem>>, vector<50x512xf32>
    %cst = arith.constant dense<0.000000e+00> : vector<8x512xf32>
    %6 = tpu.matmul %4, %5, %cst {dimension_numbers = #tpu.dot_dimension_numbers<[1], [0], [0], [1], [0, 0, 1, 1], [], []>} : vector<8x50xf32>, vector<50x512xf32>, vector<8x512xf32> -> vector<8x512xf32>
    %c0_6 = arith.constant 0 : index
    %c0_7 = arith.constant 0 : index
    %c0_8 = arith.constant 0 : index
    %7 = vector.load %arg2[%c0_6, %c0_7, %c0_8] : memref<8x8x128xf32, #tpu.memory_space<vmem>>, vector<1x8x128xf32>
    %8 = vector.shape_cast %7 : vector<1x8x128xf32> to vector<8x128xf32>
    %c0_9 = arith.constant 0 : index
    %c0_10 = arith.constant 0 : index
    %9 = vector.load %arg4[%c0_9, %c0_10] : memref<128x512xf32, #tpu.memory_space<vmem>>, vector<128x512xf32>
    %cst_11 = arith.constant dense<0.000000e+00> : vector<8x512xf32>
    %10 = tpu.matmul %8, %9, %cst_11 {dimension_numbers = #tpu.dot_dimension_numbers<[1], [0], [0], [1], [0, 0, 1, 1], [], []>} : vector<8x128xf32>, vector<128x512xf32>, vector<8x512xf32> -> vector<8x512xf32>
    %11 = arith.addf %6, %10 : vector<8x512xf32>
    %c7 = arith.constant 7 : index
    %c0_12 = arith.constant 0 : index
    %c0_13 = arith.constant 0 : index
    %12 = vector.load %arg1[%c7, %c0_12, %c0_13] : memref<8x8x50xf32, #tpu.memory_space<vmem>>, vector<1x8x50xf32>
    %13 = vector.shape_cast %12 : vector<1x8x50xf32> to vector<8x50xf32>
    %c0_14 = arith.constant 0 : index
    %c0_15 = arith.constant 0 : index
    %14 = vector.load %arg5[%c0_14, %c0_15] : memref<50x512xf32, #tpu.memory_space<vmem>>, vector<50x512xf32>
    %cst_16 = arith.constant dense<0.000000e+00> : vector<8x512xf32>
    %15 = tpu.matmul %13, %14, %cst_16 {dimension_numbers = #tpu.dot_dimension_numbers<[1], [0], [0], [1], [0, 0, 1, 1], [], []>} : vector<8x50xf32>, vector<50x512xf32>, vector<8x512xf32> -> vector<8x512xf32>
    %16 = arith.addf %11, %15 : vector<8x512xf32>
    %c7_17 = arith.constant 7 : index
    %c0_18 = arith.constant 0 : index
    %c0_19 = arith.constant 0 : index
    %17 = vector.load %arg2[%c7_17, %c0_18, %c0_19] : memref<8x8x128xf32, #tpu.memory_space<vmem>>, vector<1x8x128xf32>
    %18 = vector.shape_cast %17 : vector<1x8x128xf32> to vector<8x128xf32>
    %c0_20 = arith.constant 0 : index
    %c0_21 = arith.constant 0 : index
    %19 = vector.load %arg6[%c0_20, %c0_21] : memref<128x512xf32, #tpu.memory_space<vmem>>, vector<128x512xf32>
    %cst_22 = arith.constant dense<0.000000e+00> : vector<8x512xf32>
    %20 = tpu.matmul %18, %19, %cst_22 {dimension_numbers = #tpu.dot_dimension_numbers<[1], [0], [0], [1], [0, 0, 1, 1], [], []>} : vector<8x128xf32>, vector<128x512xf32>, vector<8x512xf32> -> vector<8x512xf32>
    %21 = arith.addf %16, %20 : vector<8x512xf32>
    %22 = arith.addf %21, %2 : vector<8x512xf32>
    %c0_23 = arith.constant 0 : index
    %c0_24 = arith.constant 0 : index
    %c0_25 = arith.constant 0 : index
    %23 = vector.load %arg10[%c0_23, %c0_24, %c0_25] : memref<8x8x512xf32, #tpu.memory_space<vmem>>, vector<1x8x512xf32>
    %24 = vector.shape_cast %23 : vector<1x8x512xf32> to vector<8x512xf32>
    %25 = vector.shape_cast %22 : vector<8x512xf32> to vector<1x8x512xf32>
    tpu.vector_store %arg10[%c0_23, %c0_24, %c0_25], %25 {strides = array<i32>} : memref<8x8x512xf32, #tpu.memory_space<vmem>>, vector<1x8x512xf32>,
    %c1 = arith.constant 1 : index
    %c0_26 = arith.constant 0 : index
    %c0_27 = arith.constant 0 : index
    %26 = vector.load %arg1[%c1, %c0_26, %c0_27] : memref<8x8x50xf32, #tpu.memory_space<vmem>>, vector<1x8x50xf32>
    %27 = vector.shape_cast %26 : vector<1x8x50xf32> to vector<8x50xf32>
    %c0_28 = arith.constant 0 : index
    %c0_29 = arith.constant 0 : index
    %28 = vector.load %arg3[%c0_28, %c0_29] : memref<50x512xf32, #tpu.memory_space<vmem>>, vector<50x512xf32>
    %cst_30 = arith.constant dense<0.000000e+00> : vector<8x512xf32>
    %29 = tpu.matmul %27, %28, %cst_30 {dimension_numbers = #tpu.dot_dimension_numbers<[1], [0], [0], [1], [0, 0, 1, 1], [], []>} : vector<8x50xf32>, vector<50x512xf32>, vector<8x512xf32> -> vector<8x512xf32>
    %c1_31 = arith.constant 1 : index
    %c0_32 = arith.constant 0 : index
    %c0_33 = arith.constant 0 : index
    %30 = vector.load %arg2[%c1_31, %c0_32, %c0_33] : memref<8x8x128xf32, #tpu.memory_space<vmem>>, vector<1x8x128xf32>
    %31 = vector.shape_cast %30 : vector<1x8x128xf32> to vector<8x128xf32>
    %c0_34 = arith.constant 0 : index
    %c0_35 = arith.constant 0 : index
    %32 = vector.load %arg4[%c0_34, %c0_35] : memref<128x512xf32, #tpu.memory_space<vmem>>, vector<128x512xf32>
    %cst_36 = arith.constant dense<0.000000e+00> : vector<8x512xf32>
    %33 = tpu.matmul %31, %32, %cst_36 {dimension_numbers = #tpu.dot_dimension_numbers<[1], [0], [0], [1], [0, 0, 1, 1], [], []>} : vector<8x128xf32>, vector<128x512xf32>, vector<8x512xf32> -> vector<8x512xf32>
    %34 = arith.addf %29, %33 : vector<8x512xf32>
    %c6 = arith.constant 6 : index
    %c0_37 = arith.constant 0 : index
    %c0_38 = arith.constant 0 : index
    %35 = vector.load %arg1[%c6, %c0_37, %c0_38] : memref<8x8x50xf32, #tpu.memory_space<vmem>>, vector<1x8x50xf32>
    %36 = vector.shape_cast %35 : vector<1x8x50xf32> to vector<8x50xf32>
    %c0_39 = arith.constant 0 : index
    %c0_40 = arith.constant 0 : index
    %37 = vector.load %arg5[%c0_39, %c0_40] : memref<50x512xf32, #tpu.memory_space<vmem>>, vector<50x512xf32>
    %cst_41 = arith.constant dense<0.000000e+00> : vector<8x512xf32>
    %38 = tpu.matmul %36, %37, %cst_41 {dimension_numbers = #tpu.dot_dimension_numbers<[1], [0], [0], [1], [0, 0, 1, 1], [], []>} : vector<8x50xf32>, vector<50x512xf32>, vector<8x512xf32> -> vector<8x512xf32>
    %39 = arith.addf %34, %38 : vector<8x512xf32>
    %c6_42 = arith.constant 6 : index
    %c0_43 = arith.constant 0 : index
    %c0_44 = arith.constant 0 : index
    %40 = vector.load %arg2[%c6_42, %c0_43, %c0_44] : memref<8x8x128xf32, #tpu.memory_space<vmem>>, vector<1x8x128xf32>
    %41 = vector.shape_cast %40 : vector<1x8x128xf32> to vector<8x128xf32>
    %c0_45 = arith.constant 0 : index
    %c0_46 = arith.constant 0 : index
    %42 = vector.load %arg6[%c0_45, %c0_46] : memref<128x512xf32, #tpu.memory_space<vmem>>, vector<128x512xf32>
    %cst_47 = arith.constant dense<0.000000e+00> : vector<8x512xf32>
    %43 = tpu.matmul %41, %42, %cst_47 {dimension_numbers = #tpu.dot_dimension_numbers<[1], [0], [0], [1], [0, 0, 1, 1], [], []>} : vector<8x128xf32>, vector<128x512xf32>, vector<8x512xf32> -> vector<8x512xf32>
    %44 = arith.addf %39, %43 : vector<8x512xf32>
    %45 = arith.addf %44, %2 : vector<8x512xf32>
    %c1_48 = arith.constant 1 : index
    %c0_49 = arith.constant 0 : index
    %c0_50 = arith.constant 0 : index
    %46 = vector.load %arg10[%c1_48, %c0_49, %c0_50] : memref<8x8x512xf32, #tpu.memory_space<vmem>>, vector<1x8x512xf32>
    %47 = vector.shape_cast %46 : vector<1x8x512xf32> to vector<8x512xf32>
    %48 = vector.shape_cast %45 : vector<8x512xf32> to vector<1x8x512xf32>
    tpu.vector_store %arg10[%c1_48, %c0_49, %c0_50], %48 {strides = array<i32>} : memref<8x8x512xf32, #tpu.memory_space<vmem>>, vector<1x8x512xf32>,
    %c2 = arith.constant 2 : index
    %c0_51 = arith.constant 0 : index
    %c0_52 = arith.constant 0 : index
    %49 = vector.load %arg1[%c2, %c0_51, %c0_52] : memref<8x8x50xf32, #tpu.memory_space<vmem>>, vector<1x8x50xf32>
    %50 = vector.shape_cast %49 : vector<1x8x50xf32> to vector<8x50xf32>
    %c0_53 = arith.constant 0 : index
    %c0_54 = arith.constant 0 : index
    %51 = vector.load %arg3[%c0_53, %c0_54] : memref<50x512xf32, #tpu.memory_space<vmem>>, vector<50x512xf32>
    %cst_55 = arith.constant dense<0.000000e+00> : vector<8x512xf32>
    %52 = tpu.matmul %50, %51, %cst_55 {dimension_numbers = #tpu.dot_dimension_numbers<[1], [0], [0], [1], [0, 0, 1, 1], [], []>} : vector<8x50xf32>, vector<50x512xf32>, vector<8x512xf32> -> vector<8x512xf32>
    %c2_56 = arith.constant 2 : index
    %c0_57 = arith.constant 0 : index
    %c0_58 = arith.constant 0 : index
    %53 = vector.load %arg2[%c2_56, %c0_57, %c0_58] : memref<8x8x128xf32, #tpu.memory_space<vmem>>, vector<1x8x128xf32>
    %54 = vector.shape_cast %53 : vector<1x8x128xf32> to vector<8x128xf32>
    %c0_59 = arith.constant 0 : index
    %c0_60 = arith.constant 0 : index
    %55 = vector.load %arg4[%c0_59, %c0_60] : memref<128x512xf32, #tpu.memory_space<vmem>>, vector<128x512xf32>
    %cst_61 = arith.constant dense<0.000000e+00> : vector<8x512xf32>
    %56 = tpu.matmul %54, %55, %cst_61 {dimension_numbers = #tpu.dot_dimension_numbers<[1], [0], [0], [1], [0, 0, 1, 1], [], []>} : vector<8x128xf32>, vector<128x512xf32>, vector<8x512xf32> -> vector<8x512xf32>
    %57 = arith.addf %52, %56 : vector<8x512xf32>
    %c5 = arith.constant 5 : index
    %c0_62 = arith.constant 0 : index
    %c0_63 = arith.constant 0 : index
    %58 = vector.load %arg1[%c5, %c0_62, %c0_63] : memref<8x8x50xf32, #tpu.memory_space<vmem>>, vector<1x8x50xf32>
    %59 = vector.shape_cast %58 : vector<1x8x50xf32> to vector<8x50xf32>
    %c0_64 = arith.constant 0 : index
    %c0_65 = arith.constant 0 : index
    %60 = vector.load %arg5[%c0_64, %c0_65] : memref<50x512xf32, #tpu.memory_space<vmem>>, vector<50x512xf32>
    %cst_66 = arith.constant dense<0.000000e+00> : vector<8x512xf32>
    %61 = tpu.matmul %59, %60, %cst_66 {dimension_numbers = #tpu.dot_dimension_numbers<[1], [0], [0], [1], [0, 0, 1, 1], [], []>} : vector<8x50xf32>, vector<50x512xf32>, vector<8x512xf32> -> vector<8x512xf32>
    %62 = arith.addf %57, %61 : vector<8x512xf32>
    %c5_67 = arith.constant 5 : index
    %c0_68 = arith.constant 0 : index
    %c0_69 = arith.constant 0 : index
    %63 = vector.load %arg2[%c5_67, %c0_68, %c0_69] : memref<8x8x128xf32, #tpu.memory_space<vmem>>, vector<1x8x128xf32>
    %64 = vector.shape_cast %63 : vector<1x8x128xf32> to vector<8x128xf32>
    %c0_70 = arith.constant 0 : index
    %c0_71 = arith.constant 0 : index
    %65 = vector.load %arg6[%c0_70, %c0_71] : memref<128x512xf32, #tpu.memory_space<vmem>>, vector<128x512xf32>
    %cst_72 = arith.constant dense<0.000000e+00> : vector<8x512xf32>
    %66 = tpu.matmul %64, %65, %cst_72 {dimension_numbers = #tpu.dot_dimension_numbers<[1], [0], [0], [1], [0, 0, 1, 1], [], []>} : vector<8x128xf32>, vector<128x512xf32>, vector<8x512xf32> -> vector<8x512xf32>
    %67 = arith.addf %62, %66 : vector<8x512xf32>
    %68 = arith.addf %67, %2 : vector<8x512xf32>
    %c2_73 = arith.constant 2 : index
    %c0_74 = arith.constant 0 : index
    %c0_75 = arith.constant 0 : index
    %69 = vector.load %arg10[%c2_73, %c0_74, %c0_75] : memref<8x8x512xf32, #tpu.memory_space<vmem>>, vector<1x8x512xf32>
    %70 = vector.shape_cast %69 : vector<1x8x512xf32> to vector<8x512xf32>
    %71 = vector.shape_cast %68 : vector<8x512xf32> to vector<1x8x512xf32>
    tpu.vector_store %arg10[%c2_73, %c0_74, %c0_75], %71 {strides = array<i32>} : memref<8x8x512xf32, #tpu.memory_space<vmem>>, vector<1x8x512xf32>,
    %c3 = arith.constant 3 : index
    %c0_76 = arith.constant 0 : index
    %c0_77 = arith.constant 0 : index
    %72 = vector.load %arg1[%c3, %c0_76, %c0_77] : memref<8x8x50xf32, #tpu.memory_space<vmem>>, vector<1x8x50xf32>
    %73 = vector.shape_cast %72 : vector<1x8x50xf32> to vector<8x50xf32>
    %c0_78 = arith.constant 0 : index
    %c0_79 = arith.constant 0 : index
    %74 = vector.load %arg3[%c0_78, %c0_79] : memref<50x512xf32, #tpu.memory_space<vmem>>, vector<50x512xf32>
    %cst_80 = arith.constant dense<0.000000e+00> : vector<8x512xf32>
    %75 = tpu.matmul %73, %74, %cst_80 {dimension_numbers = #tpu.dot_dimension_numbers<[1], [0], [0], [1], [0, 0, 1, 1], [], []>} : vector<8x50xf32>, vector<50x512xf32>, vector<8x512xf32> -> vector<8x512xf32>
    %c3_81 = arith.constant 3 : index
    %c0_82 = arith.constant 0 : index
    %c0_83 = arith.constant 0 : index
    %76 = vector.load %arg2[%c3_81, %c0_82, %c0_83] : memref<8x8x128xf32, #tpu.memory_space<vmem>>, vector<1x8x128xf32>
    %77 = vector.shape_cast %76 : vector<1x8x128xf32> to vector<8x128xf32>
    %c0_84 = arith.constant 0 : index
    %c0_85 = arith.constant 0 : index
    %78 = vector.load %arg4[%c0_84, %c0_85] : memref<128x512xf32, #tpu.memory_space<vmem>>, vector<128x512xf32>
    %cst_86 = arith.constant dense<0.000000e+00> : vector<8x512xf32>
    %79 = tpu.matmul %77, %78, %cst_86 {dimension_numbers = #tpu.dot_dimension_numbers<[1], [0], [0], [1], [0, 0, 1, 1], [], []>} : vector<8x128xf32>, vector<128x512xf32>, vector<8x512xf32> -> vector<8x512xf32>
    %80 = arith.addf %75, %79 : vector<8x512xf32>
    %c4 = arith.constant 4 : index
    %c0_87 = arith.constant 0 : index
    %c0_88 = arith.constant 0 : index
    %81 = vector.load %arg1[%c4, %c0_87, %c0_88] : memref<8x8x50xf32, #tpu.memory_space<vmem>>, vector<1x8x50xf32>
    %82 = vector.shape_cast %81 : vector<1x8x50xf32> to vector<8x50xf32>
    %c0_89 = arith.constant 0 : index
    %c0_90 = arith.constant 0 : index
    %83 = vector.load %arg5[%c0_89, %c0_90] : memref<50x512xf32, #tpu.memory_space<vmem>>, vector<50x512xf32>
    %cst_91 = arith.constant dense<0.000000e+00> : vector<8x512xf32>
    %84 = tpu.matmul %82, %83, %cst_91 {dimension_numbers = #tpu.dot_dimension_numbers<[1], [0], [0], [1], [0, 0, 1, 1], [], []>} : vector<8x50xf32>, vector<50x512xf32>, vector<8x512xf32> -> vector<8x512xf32>
    %85 = arith.addf %80, %84 : vector<8x512xf32>
    %c4_92 = arith.constant 4 : index
    %c0_93 = arith.constant 0 : index
    %c0_94 = arith.constant 0 : index
    %86 = vector.load %arg2[%c4_92, %c0_93, %c0_94] : memref<8x8x128xf32, #tpu.memory_space<vmem>>, vector<1x8x128xf32>
    %87 = vector.shape_cast %86 : vector<1x8x128xf32> to vector<8x128xf32>
    %c0_95 = arith.constant 0 : index
    %c0_96 = arith.constant 0 : index
    %88 = vector.load %arg6[%c0_95, %c0_96] : memref<128x512xf32, #tpu.memory_space<vmem>>, vector<128x512xf32>
    %cst_97 = arith.constant dense<0.000000e+00> : vector<8x512xf32>
    %89 = tpu.matmul %87, %88, %cst_97 {dimension_numbers = #tpu.dot_dimension_numbers<[1], [0], [0], [1], [0, 0, 1, 1], [], []>} : vector<8x128xf32>, vector<128x512xf32>, vector<8x512xf32> -> vector<8x512xf32>
    %90 = arith.addf %85, %89 : vector<8x512xf32>
    %91 = arith.addf %90, %2 : vector<8x512xf32>
    %c3_98 = arith.constant 3 : index
    %c0_99 = arith.constant 0 : index
    %c0_100 = arith.constant 0 : index
    %92 = vector.load %arg10[%c3_98, %c0_99, %c0_100] : memref<8x8x512xf32, #tpu.memory_space<vmem>>, vector<1x8x512xf32>
    %93 = vector.shape_cast %92 : vector<1x8x512xf32> to vector<8x512xf32>
    %94 = vector.shape_cast %91 : vector<8x512xf32> to vector<1x8x512xf32>
    tpu.vector_store %arg10[%c3_98, %c0_99, %c0_100], %94 {strides = array<i32>} : memref<8x8x512xf32, #tpu.memory_space<vmem>>, vector<1x8x512xf32>,
    %c4_101 = arith.constant 4 : index
    %c0_102 = arith.constant 0 : index
    %c0_103 = arith.constant 0 : index
    %95 = vector.load %arg1[%c4_101, %c0_102, %c0_103] : memref<8x8x50xf32, #tpu.memory_space<vmem>>, vector<1x8x50xf32>
    %96 = vector.shape_cast %95 : vector<1x8x50xf32> to vector<8x50xf32>
    %c0_104 = arith.constant 0 : index
    %c0_105 = arith.constant 0 : index
    %97 = vector.load %arg3[%c0_104, %c0_105] : memref<50x512xf32, #tpu.memory_space<vmem>>, vector<50x512xf32>
    %cst_106 = arith.constant dense<0.000000e+00> : vector<8x512xf32>
    %98 = tpu.matmul %96, %97, %cst_106 {dimension_numbers = #tpu.dot_dimension_numbers<[1], [0], [0], [1], [0, 0, 1, 1], [], []>} : vector<8x50xf32>, vector<50x512xf32>, vector<8x512xf32> -> vector<8x512xf32>
    %c4_107 = arith.constant 4 : index
    %c0_108 = arith.constant 0 : index
    %c0_109 = arith.constant 0 : index
    %99 = vector.load %arg2[%c4_107, %c0_108, %c0_109] : memref<8x8x128xf32, #tpu.memory_space<vmem>>, vector<1x8x128xf32>
    %100 = vector.shape_cast %99 : vector<1x8x128xf32> to vector<8x128xf32>
    %c0_110 = arith.constant 0 : index
    %c0_111 = arith.constant 0 : index
    %101 = vector.load %arg4[%c0_110, %c0_111] : memref<128x512xf32, #tpu.memory_space<vmem>>, vector<128x512xf32>
    %cst_112 = arith.constant dense<0.000000e+00> : vector<8x512xf32>
    %102 = tpu.matmul %100, %101, %cst_112 {dimension_numbers = #tpu.dot_dimension_numbers<[1], [0], [0], [1], [0, 0, 1, 1], [], []>} : vector<8x128xf32>, vector<128x512xf32>, vector<8x512xf32> -> vector<8x512xf32>
    %103 = arith.addf %98, %102 : vector<8x512xf32>
    %c3_113 = arith.constant 3 : index
    %c0_114 = arith.constant 0 : index
    %c0_115 = arith.constant 0 : index
    %104 = vector.load %arg1[%c3_113, %c0_114, %c0_115] : memref<8x8x50xf32, #tpu.memory_space<vmem>>, vector<1x8x50xf32>
    %105 = vector.shape_cast %104 : vector<1x8x50xf32> to vector<8x50xf32>
    %c0_116 = arith.constant 0 : index
    %c0_117 = arith.constant 0 : index
    %106 = vector.load %arg5[%c0_116, %c0_117] : memref<50x512xf32, #tpu.memory_space<vmem>>, vector<50x512xf32>
    %cst_118 = arith.constant dense<0.000000e+00> : vector<8x512xf32>
    %107 = tpu.matmul %105, %106, %cst_118 {dimension_numbers = #tpu.dot_dimension_numbers<[1], [0], [0], [1], [0, 0, 1, 1], [], []>} : vector<8x50xf32>, vector<50x512xf32>, vector<8x512xf32> -> vector<8x512xf32>
    %108 = arith.addf %103, %107 : vector<8x512xf32>
    %c3_119 = arith.constant 3 : index
    %c0_120 = arith.constant 0 : index
    %c0_121 = arith.constant 0 : index
    %109 = vector.load %arg2[%c3_119, %c0_120, %c0_121] : memref<8x8x128xf32, #tpu.memory_space<vmem>>, vector<1x8x128xf32>
    %110 = vector.shape_cast %109 : vector<1x8x128xf32> to vector<8x128xf32>
    %c0_122 = arith.constant 0 : index
    %c0_123 = arith.constant 0 : index
    %111 = vector.load %arg6[%c0_122, %c0_123] : memref<128x512xf32, #tpu.memory_space<vmem>>, vector<128x512xf32>
    %cst_124 = arith.constant dense<0.000000e+00> : vector<8x512xf32>
    %112 = tpu.matmul %110, %111, %cst_124 {dimension_numbers = #tpu.dot_dimension_numbers<[1], [0], [0], [1], [0, 0, 1, 1], [], []>} : vector<8x128xf32>, vector<128x512xf32>, vector<8x512xf32> -> vector<8x512xf32>
    %113 = arith.addf %108, %112 : vector<8x512xf32>
    %114 = arith.addf %113, %2 : vector<8x512xf32>
    %c4_125 = arith.constant 4 : index
    %c0_126 = arith.constant 0 : index
    %c0_127 = arith.constant 0 : index
    %115 = vector.load %arg10[%c4_125, %c0_126, %c0_127] : memref<8x8x512xf32, #tpu.memory_space<vmem>>, vector<1x8x512xf32>
    %116 = vector.shape_cast %115 : vector<1x8x512xf32> to vector<8x512xf32>
    %117 = vector.shape_cast %114 : vector<8x512xf32> to vector<1x8x512xf32>
    tpu.vector_store %arg10[%c4_125, %c0_126, %c0_127], %117 {strides = array<i32>} : memref<8x8x512xf32, #tpu.memory_space<vmem>>, vector<1x8x512xf32>,
    %c5_128 = arith.constant 5 : index
    %c0_129 = arith.constant 0 : index
    %c0_130 = arith.constant 0 : index
    %118 = vector.load %arg1[%c5_128, %c0_129, %c0_130] : memref<8x8x50xf32, #tpu.memory_space<vmem>>, vector<1x8x50xf32>
    %119 = vector.shape_cast %118 : vector<1x8x50xf32> to vector<8x50xf32>
    %c0_131 = arith.constant 0 : index
    %c0_132 = arith.constant 0 : index
    %120 = vector.load %arg3[%c0_131, %c0_132] : memref<50x512xf32, #tpu.memory_space<vmem>>, vector<50x512xf32>
    %cst_133 = arith.constant dense<0.000000e+00> : vector<8x512xf32>
    %121 = tpu.matmul %119, %120, %cst_133 {dimension_numbers = #tpu.dot_dimension_numbers<[1], [0], [0], [1], [0, 0, 1, 1], [], []>} : vector<8x50xf32>, vector<50x512xf32>, vector<8x512xf32> -> vector<8x512xf32>
    %c5_134 = arith.constant 5 : index
    %c0_135 = arith.constant 0 : index
    %c0_136 = arith.constant 0 : index
    %122 = vector.load %arg2[%c5_134, %c0_135, %c0_136] : memref<8x8x128xf32, #tpu.memory_space<vmem>>, vector<1x8x128xf32>
    %123 = vector.shape_cast %122 : vector<1x8x128xf32> to vector<8x128xf32>
    %c0_137 = arith.constant 0 : index
    %c0_138 = arith.constant 0 : index
    %124 = vector.load %arg4[%c0_137, %c0_138] : memref<128x512xf32, #tpu.memory_space<vmem>>, vector<128x512xf32>
    %cst_139 = arith.constant dense<0.000000e+00> : vector<8x512xf32>
    %125 = tpu.matmul %123, %124, %cst_139 {dimension_numbers = #tpu.dot_dimension_numbers<[1], [0], [0], [1], [0, 0, 1, 1], [], []>} : vector<8x128xf32>, vector<128x512xf32>, vector<8x512xf32> -> vector<8x512xf32>
    %126 = arith.addf %121, %125 : vector<8x512xf32>
    %c2_140 = arith.constant 2 : index
    %c0_141 = arith.constant 0 : index
    %c0_142 = arith.constant 0 : index
    %127 = vector.load %arg1[%c2_140, %c0_141, %c0_142] : memref<8x8x50xf32, #tpu.memory_space<vmem>>, vector<1x8x50xf32>
    %128 = vector.shape_cast %127 : vector<1x8x50xf32> to vector<8x50xf32>
    %c0_143 = arith.constant 0 : index
    %c0_144 = arith.constant 0 : index
    %129 = vector.load %arg5[%c0_143, %c0_144] : memref<50x512xf32, #tpu.memory_space<vmem>>, vector<50x512xf32>
    %cst_145 = arith.constant dense<0.000000e+00> : vector<8x512xf32>
    %130 = tpu.matmul %128, %129, %cst_145 {dimension_numbers = #tpu.dot_dimension_numbers<[1], [0], [0], [1], [0, 0, 1, 1], [], []>} : vector<8x50xf32>, vector<50x512xf32>, vector<8x512xf32> -> vector<8x512xf32>
    %131 = arith.addf %126, %130 : vector<8x512xf32>
    %c2_146 = arith.constant 2 : index
    %c0_147 = arith.constant 0 : index
    %c0_148 = arith.constant 0 : index
    %132 = vector.load %arg2[%c2_146, %c0_147, %c0_148] : memref<8x8x128xf32, #tpu.memory_space<vmem>>, vector<1x8x128xf32>
    %133 = vector.shape_cast %132 : vector<1x8x128xf32> to vector<8x128xf32>
    %c0_149 = arith.constant 0 : index
    %c0_150 = arith.constant 0 : index
    %134 = vector.load %arg6[%c0_149, %c0_150] : memref<128x512xf32, #tpu.memory_space<vmem>>, vector<128x512xf32>
    %cst_151 = arith.constant dense<0.000000e+00> : vector<8x512xf32>
    %135 = tpu.matmul %133, %134, %cst_151 {dimension_numbers = #tpu.dot_dimension_numbers<[1], [0], [0], [1], [0, 0, 1, 1], [], []>} : vector<8x128xf32>, vector<128x512xf32>, vector<8x512xf32> -> vector<8x512xf32>
    %136 = arith.addf %131, %135 : vector<8x512xf32>
    %137 = arith.addf %136, %2 : vector<8x512xf32>
    %c5_152 = arith.constant 5 : index
    %c0_153 = arith.constant 0 : index
    %c0_154 = arith.constant 0 : index
    %138 = vector.load %arg10[%c5_152, %c0_153, %c0_154] : memref<8x8x512xf32, #tpu.memory_space<vmem>>, vector<1x8x512xf32>
    %139 = vector.shape_cast %138 : vector<1x8x512xf32> to vector<8x512xf32>
    %140 = vector.shape_cast %137 : vector<8x512xf32> to vector<1x8x512xf32>
    tpu.vector_store %arg10[%c5_152, %c0_153, %c0_154], %140 {strides = array<i32>} : memref<8x8x512xf32, #tpu.memory_space<vmem>>, vector<1x8x512xf32>,
    %c6_155 = arith.constant 6 : index
    %c0_156 = arith.constant 0 : index
    %c0_157 = arith.constant 0 : index
    %141 = vector.load %arg1[%c6_155, %c0_156, %c0_157] : memref<8x8x50xf32, #tpu.memory_space<vmem>>, vector<1x8x50xf32>
    %142 = vector.shape_cast %141 : vector<1x8x50xf32> to vector<8x50xf32>
    %c0_158 = arith.constant 0 : index
    %c0_159 = arith.constant 0 : index
    %143 = vector.load %arg3[%c0_158, %c0_159] : memref<50x512xf32, #tpu.memory_space<vmem>>, vector<50x512xf32>
    %cst_160 = arith.constant dense<0.000000e+00> : vector<8x512xf32>
    %144 = tpu.matmul %142, %143, %cst_160 {dimension_numbers = #tpu.dot_dimension_numbers<[1], [0], [0], [1], [0, 0, 1, 1], [], []>} : vector<8x50xf32>, vector<50x512xf32>, vector<8x512xf32> -> vector<8x512xf32>
    %c6_161 = arith.constant 6 : index
    %c0_162 = arith.constant 0 : index
    %c0_163 = arith.constant 0 : index
    %145 = vector.load %arg2[%c6_161, %c0_162, %c0_163] : memref<8x8x128xf32, #tpu.memory_space<vmem>>, vector<1x8x128xf32>
    %146 = vector.shape_cast %145 : vector<1x8x128xf32> to vector<8x128xf32>
    %c0_164 = arith.constant 0 : index
    %c0_165 = arith.constant 0 : index
    %147 = vector.load %arg4[%c0_164, %c0_165] : memref<128x512xf32, #tpu.memory_space<vmem>>, vector<128x512xf32>
    %cst_166 = arith.constant dense<0.000000e+00> : vector<8x512xf32>
    %148 = tpu.matmul %146, %147, %cst_166 {dimension_numbers = #tpu.dot_dimension_numbers<[1], [0], [0], [1], [0, 0, 1, 1], [], []>} : vector<8x128xf32>, vector<128x512xf32>, vector<8x512xf32> -> vector<8x512xf32>
    %149 = arith.addf %144, %148 : vector<8x512xf32>
    %c1_167 = arith.constant 1 : index
    %c0_168 = arith.constant 0 : index
    %c0_169 = arith.constant 0 : index
    %150 = vector.load %arg1[%c1_167, %c0_168, %c0_169] : memref<8x8x50xf32, #tpu.memory_space<vmem>>, vector<1x8x50xf32>
    %151 = vector.shape_cast %150 : vector<1x8x50xf32> to vector<8x50xf32>
    %c0_170 = arith.constant 0 : index
    %c0_171 = arith.constant 0 : index
    %152 = vector.load %arg5[%c0_170, %c0_171] : memref<50x512xf32, #tpu.memory_space<vmem>>, vector<50x512xf32>
    %cst_172 = arith.constant dense<0.000000e+00> : vector<8x512xf32>
    %153 = tpu.matmul %151, %152, %cst_172 {dimension_numbers = #tpu.dot_dimension_numbers<[1], [0], [0], [1], [0, 0, 1, 1], [], []>} : vector<8x50xf32>, vector<50x512xf32>, vector<8x512xf32> -> vector<8x512xf32>
    %154 = arith.addf %149, %153 : vector<8x512xf32>
    %c1_173 = arith.constant 1 : index
    %c0_174 = arith.constant 0 : index
    %c0_175 = arith.constant 0 : index
    %155 = vector.load %arg2[%c1_173, %c0_174, %c0_175] : memref<8x8x128xf32, #tpu.memory_space<vmem>>, vector<1x8x128xf32>
    %156 = vector.shape_cast %155 : vector<1x8x128xf32> to vector<8x128xf32>
    %c0_176 = arith.constant 0 : index
    %c0_177 = arith.constant 0 : index
    %157 = vector.load %arg6[%c0_176, %c0_177] : memref<128x512xf32, #tpu.memory_space<vmem>>, vector<128x512xf32>
    %cst_178 = arith.constant dense<0.000000e+00> : vector<8x512xf32>
    %158 = tpu.matmul %156, %157, %cst_178 {dimension_numbers = #tpu.dot_dimension_numbers<[1], [0], [0], [1], [0, 0, 1, 1], [], []>} : vector<8x128xf32>, vector<128x512xf32>, vector<8x512xf32> -> vector<8x512xf32>
    %159 = arith.addf %154, %158 : vector<8x512xf32>
    %160 = arith.addf %159, %2 : vector<8x512xf32>
    %c6_179 = arith.constant 6 : index
    %c0_180 = arith.constant 0 : index
    %c0_181 = arith.constant 0 : index
    %161 = vector.load %arg10[%c6_179, %c0_180, %c0_181] : memref<8x8x512xf32, #tpu.memory_space<vmem>>, vector<1x8x512xf32>
    %162 = vector.shape_cast %161 : vector<1x8x512xf32> to vector<8x512xf32>
    %163 = vector.shape_cast %160 : vector<8x512xf32> to vector<1x8x512xf32>
    tpu.vector_store %arg10[%c6_179, %c0_180, %c0_181], %163 {strides = array<i32>} : memref<8x8x512xf32, #tpu.memory_space<vmem>>, vector<1x8x512xf32>,
    %c7_182 = arith.constant 7 : index
    %c0_183 = arith.constant 0 : index
    %c0_184 = arith.constant 0 : index
    %164 = vector.load %arg1[%c7_182, %c0_183, %c0_184] : memref<8x8x50xf32, #tpu.memory_space<vmem>>, vector<1x8x50xf32>
    %165 = vector.shape_cast %164 : vector<1x8x50xf32> to vector<8x50xf32>
    %c0_185 = arith.constant 0 : index
    %c0_186 = arith.constant 0 : index
    %166 = vector.load %arg3[%c0_185, %c0_186] : memref<50x512xf32, #tpu.memory_space<vmem>>, vector<50x512xf32>
    %cst_187 = arith.constant dense<0.000000e+00> : vector<8x512xf32>
    %167 = tpu.matmul %165, %166, %cst_187 {dimension_numbers = #tpu.dot_dimension_numbers<[1], [0], [0], [1], [0, 0, 1, 1], [], []>} : vector<8x50xf32>, vector<50x512xf32>, vector<8x512xf32> -> vector<8x512xf32>
    %c7_188 = arith.constant 7 : index
    %c0_189 = arith.constant 0 : index
    %c0_190 = arith.constant 0 : index
    %168 = vector.load %arg2[%c7_188, %c0_189, %c0_190] : memref<8x8x128xf32, #tpu.memory_space<vmem>>, vector<1x8x128xf32>
    %169 = vector.shape_cast %168 : vector<1x8x128xf32> to vector<8x128xf32>
    %c0_191 = arith.constant 0 : index
    %c0_192 = arith.constant 0 : index
    %170 = vector.load %arg4[%c0_191, %c0_192] : memref<128x512xf32, #tpu.memory_space<vmem>>, vector<128x512xf32>
    %cst_193 = arith.constant dense<0.000000e+00> : vector<8x512xf32>
    %171 = tpu.matmul %169, %170, %cst_193 {dimension_numbers = #tpu.dot_dimension_numbers<[1], [0], [0], [1], [0, 0, 1, 1], [], []>} : vector<8x128xf32>, vector<128x512xf32>, vector<8x512xf32> -> vector<8x512xf32>
    %172 = arith.addf %167, %171 : vector<8x512xf32>
    %c0_194 = arith.constant 0 : index
    %c0_195 = arith.constant 0 : index
    %c0_196 = arith.constant 0 : index
    %173 = vector.load %arg1[%c0_194, %c0_195, %c0_196] : memref<8x8x50xf32, #tpu.memory_space<vmem>>, vector<1x8x50xf32>
    %174 = vector.shape_cast %173 : vector<1x8x50xf32> to vector<8x50xf32>
    %c0_197 = arith.constant 0 : index
    %c0_198 = arith.constant 0 : index
    %175 = vector.load %arg5[%c0_197, %c0_198] : memref<50x512xf32, #tpu.memory_space<vmem>>, vector<50x512xf32>
    %cst_199 = arith.constant dense<0.000000e+00> : vector<8x512xf32>
    %176 = tpu.matmul %174, %175, %cst_199 {dimension_numbers = #tpu.dot_dimension_numbers<[1], [0], [0], [1], [0, 0, 1, 1], [], []>} : vector<8x50xf32>, vector<50x512xf32>, vector<8x512xf32> -> vector<8x512xf32>
    %177 = arith.addf %172, %176 : vector<8x512xf32>
    %c0_200 = arith.constant 0 : index
    %c0_201 = arith.constant 0 : index
    %c0_202 = arith.constant 0 : index
    %178 = vector.load %arg2[%c0_200, %c0_201, %c0_202] : memref<8x8x128xf32, #tpu.memory_space<vmem>>, vector<1x8x128xf32>
    %179 = vector.shape_cast %178 : vector<1x8x128xf32> to vector<8x128xf32>
    %c0_203 = arith.constant 0 : index
    %c0_204 = arith.constant 0 : index
    %180 = vector.load %arg6[%c0_203, %c0_204] : memref<128x512xf32, #tpu.memory_space<vmem>>, vector<128x512xf32>
    %cst_205 = arith.constant dense<0.000000e+00> : vector<8x512xf32>
    %181 = tpu.matmul %179, %180, %cst_205 {dimension_numbers = #tpu.dot_dimension_numbers<[1], [0], [0], [1], [0, 0, 1, 1], [], []>} : vector<8x128xf32>, vector<128x512xf32>, vector<8x512xf32> -> vector<8x512xf32>
    %182 = arith.addf %177, %181 : vector<8x512xf32>
    %183 = arith.addf %182, %2 : vector<8x512xf32>
    %c7_206 = arith.constant 7 : index
    %c0_207 = arith.constant 0 : index
    %c0_208 = arith.constant 0 : index
    %184 = vector.load %arg10[%c7_206, %c0_207, %c0_208] : memref<8x8x512xf32, #tpu.memory_space<vmem>>, vector<1x8x512xf32>
    %185 = vector.shape_cast %184 : vector<1x8x512xf32> to vector<8x512xf32>
    %186 = vector.shape_cast %183 : vector<8x512xf32> to vector<1x8x512xf32>
    tpu.vector_store %arg10[%c7_206, %c0_207, %c0_208], %186 {strides = array<i32>} : memref<8x8x512xf32, #tpu.memory_space<vmem>>, vector<1x8x512xf32>,
    %c0_209 = arith.constant 0 : index
    %c0_210 = arith.constant 0 : index
    %187 = vector.load %arg7[%c0_209, %c0_210] : memref<128x512xf32, #tpu.memory_space<vmem>>, vector<128x512xf32>
    %cst_211 = arith.constant 0.000000e+00 : f32
    %188 = vector.broadcast %cst_211 : f32 to vector<8x128xf32>
    %cst_212 = arith.constant 0.000000e+00 : f32
    %189 = vector.broadcast %cst_212 : f32 to vector<8x128xf32>
    %c0_213 = arith.constant 0 : index
    %c0_214 = arith.constant 0 : index
    %c0_215 = arith.constant 0 : index
    %190 = vector.load %arg10[%c0_213, %c0_214, %c0_215] : memref<8x8x512xf32, #tpu.memory_space<vmem>>, vector<1x8x512xf32>
    %191 = vector.shape_cast %190 : vector<1x8x512xf32> to vector<8x512xf32>
    %cst_216 = arith.constant dense<0.000000e+00> : vector<8x512xf32>
    %192 = tpu.matmul %188, %187, %cst_216 {dimension_numbers = #tpu.dot_dimension_numbers<[1], [0], [0], [1], [0, 0, 1, 1], [], []>} : vector<8x128xf32>, vector<128x512xf32>, vector<8x512xf32> -> vector<8x512xf32>
    %193 = arith.addf %191, %192 : vector<8x512xf32>
    %194 = vector.extract_strided_slice %193 {offsets = [0, 0], sizes = [8, 128], strides = [1, 1]} : vector<8x512xf32> to vector<8x128xf32>
    %195 = arith.negf %194 : vector<8x128xf32>
    %196 = math.exp %195 : vector<8x128xf32>
    %cst_217 = arith.constant 1.000000e+00 : f32
    %197 = vector.broadcast %cst_217 : f32 to vector<8x128xf32>
    %198 = arith.addf %197, %196 : vector<8x128xf32>
    %199 = arith.divf %197, %198 : vector<8x128xf32>
    %200 = vector.extract_strided_slice %193 {offsets = [0, 128], sizes = [8, 128], strides = [1, 1]} : vector<8x512xf32> to vector<8x128xf32>
    %201 = arith.negf %200 : vector<8x128xf32>
    %202 = math.exp %201 : vector<8x128xf32>
    %cst_218 = arith.constant 1.000000e+00 : f32
    %203 = vector.broadcast %cst_218 : f32 to vector<8x128xf32>
    %204 = arith.addf %203, %202 : vector<8x128xf32>
    %205 = arith.divf %203, %204 : vector<8x128xf32>
    %206 = vector.extract_strided_slice %193 {offsets = [0, 256], sizes = [8, 128], strides = [1, 1]} : vector<8x512xf32> to vector<8x128xf32>
    %207 = math.tanh %206 : vector<8x128xf32>
    %208 = vector.extract_strided_slice %193 {offsets = [0, 384], sizes = [8, 128], strides = [1, 1]} : vector<8x512xf32> to vector<8x128xf32>
    %209 = arith.negf %208 : vector<8x128xf32>
    %210 = math.exp %209 : vector<8x128xf32>
    %cst_219 = arith.constant 1.000000e+00 : f32
    %211 = vector.broadcast %cst_219 : f32 to vector<8x128xf32>
    %212 = arith.addf %211, %210 : vector<8x128xf32>
    %213 = arith.divf %211, %212 : vector<8x128xf32>
    %214 = arith.mulf %205, %189 : vector<8x128xf32>
    %215 = arith.mulf %199, %207 : vector<8x128xf32>
    %216 = arith.addf %214, %215 : vector<8x128xf32>
    %217 = math.tanh %216 : vector<8x128xf32>
    %218 = arith.mulf %213, %217 : vector<8x128xf32>
    %c1_220 = arith.constant 1 : index
    %c0_221 = arith.constant 0 : index
    %c0_222 = arith.constant 0 : index
    %219 = vector.load %arg10[%c1_220, %c0_221, %c0_222] : memref<8x8x512xf32, #tpu.memory_space<vmem>>, vector<1x8x512xf32>
    %220 = vector.shape_cast %219 : vector<1x8x512xf32> to vector<8x512xf32>
    %cst_223 = arith.constant dense<0.000000e+00> : vector<8x512xf32>
    %221 = tpu.matmul %218, %187, %cst_223 {dimension_numbers = #tpu.dot_dimension_numbers<[1], [0], [0], [1], [0, 0, 1, 1], [], []>} : vector<8x128xf32>, vector<128x512xf32>, vector<8x512xf32> -> vector<8x512xf32>
    %222 = arith.addf %220, %221 : vector<8x512xf32>
    %223 = vector.extract_strided_slice %222 {offsets = [0, 0], sizes = [8, 128], strides = [1, 1]} : vector<8x512xf32> to vector<8x128xf32>
    %224 = arith.negf %223 : vector<8x128xf32>
    %225 = math.exp %224 : vector<8x128xf32>
    %cst_224 = arith.constant 1.000000e+00 : f32
    %226 = vector.broadcast %cst_224 : f32 to vector<8x128xf32>
    %227 = arith.addf %226, %225 : vector<8x128xf32>
    %228 = arith.divf %226, %227 : vector<8x128xf32>
    %229 = vector.extract_strided_slice %222 {offsets = [0, 128], sizes = [8, 128], strides = [1, 1]} : vector<8x512xf32> to vector<8x128xf32>
    %230 = arith.negf %229 : vector<8x128xf32>
    %231 = math.exp %230 : vector<8x128xf32>
    %cst_225 = arith.constant 1.000000e+00 : f32
    %232 = vector.broadcast %cst_225 : f32 to vector<8x128xf32>
    %233 = arith.addf %232, %231 : vector<8x128xf32>
    %234 = arith.divf %232, %233 : vector<8x128xf32>
    %235 = vector.extract_strided_slice %222 {offsets = [0, 256], sizes = [8, 128], strides = [1, 1]} : vector<8x512xf32> to vector<8x128xf32>
    %236 = math.tanh %235 : vector<8x128xf32>
    %237 = vector.extract_strided_slice %222 {offsets = [0, 384], sizes = [8, 128], strides = [1, 1]} : vector<8x512xf32> to vector<8x128xf32>
    %238 = arith.negf %237 : vector<8x128xf32>
    %239 = math.exp %238 : vector<8x128xf32>
    %cst_226 = arith.constant 1.000000e+00 : f32
    %240 = vector.broadcast %cst_226 : f32 to vector<8x128xf32>
    %241 = arith.addf %240, %239 : vector<8x128xf32>
    %242 = arith.divf %240, %241 : vector<8x128xf32>
    %243 = arith.mulf %234, %216 : vector<8x128xf32>
    %244 = arith.mulf %228, %236 : vector<8x128xf32>
    %245 = arith.addf %243, %244 : vector<8x128xf32>
    %246 = math.tanh %245 : vector<8x128xf32>
    %247 = arith.mulf %242, %246 : vector<8x128xf32>
    %c2_227 = arith.constant 2 : index
    %c0_228 = arith.constant 0 : index
    %c0_229 = arith.constant 0 : index
    %248 = vector.load %arg10[%c2_227, %c0_228, %c0_229] : memref<8x8x512xf32, #tpu.memory_space<vmem>>, vector<1x8x512xf32>
    %249 = vector.shape_cast %248 : vector<1x8x512xf32> to vector<8x512xf32>
    %cst_230 = arith.constant dense<0.000000e+00> : vector<8x512xf32>
    %250 = tpu.matmul %247, %187, %cst_230 {dimension_numbers = #tpu.dot_dimension_numbers<[1], [0], [0], [1], [0, 0, 1, 1], [], []>} : vector<8x128xf32>, vector<128x512xf32>, vector<8x512xf32> -> vector<8x512xf32>
    %251 = arith.addf %249, %250 : vector<8x512xf32>
    %252 = vector.extract_strided_slice %251 {offsets = [0, 0], sizes = [8, 128], strides = [1, 1]} : vector<8x512xf32> to vector<8x128xf32>
    %253 = arith.negf %252 : vector<8x128xf32>
    %254 = math.exp %253 : vector<8x128xf32>
    %cst_231 = arith.constant 1.000000e+00 : f32
    %255 = vector.broadcast %cst_231 : f32 to vector<8x128xf32>
    %256 = arith.addf %255, %254 : vector<8x128xf32>
    %257 = arith.divf %255, %256 : vector<8x128xf32>
    %258 = vector.extract_strided_slice %251 {offsets = [0, 128], sizes = [8, 128], strides = [1, 1]} : vector<8x512xf32> to vector<8x128xf32>
    %259 = arith.negf %258 : vector<8x128xf32>
    %260 = math.exp %259 : vector<8x128xf32>
    %cst_232 = arith.constant 1.000000e+00 : f32
    %261 = vector.broadcast %cst_232 : f32 to vector<8x128xf32>
    %262 = arith.addf %261, %260 : vector<8x128xf32>
    %263 = arith.divf %261, %262 : vector<8x128xf32>
    %264 = vector.extract_strided_slice %251 {offsets = [0, 256], sizes = [8, 128], strides = [1, 1]} : vector<8x512xf32> to vector<8x128xf32>
    %265 = math.tanh %264 : vector<8x128xf32>
    %266 = vector.extract_strided_slice %251 {offsets = [0, 384], sizes = [8, 128], strides = [1, 1]} : vector<8x512xf32> to vector<8x128xf32>
    %267 = arith.negf %266 : vector<8x128xf32>
    %268 = math.exp %267 : vector<8x128xf32>
    %cst_233 = arith.constant 1.000000e+00 : f32
    %269 = vector.broadcast %cst_233 : f32 to vector<8x128xf32>
    %270 = arith.addf %269, %268 : vector<8x128xf32>
    %271 = arith.divf %269, %270 : vector<8x128xf32>
    %272 = arith.mulf %263, %245 : vector<8x128xf32>
    %273 = arith.mulf %257, %265 : vector<8x128xf32>
    %274 = arith.addf %272, %273 : vector<8x128xf32>
    %275 = math.tanh %274 : vector<8x128xf32>
    %276 = arith.mulf %271, %275 : vector<8x128xf32>
    %c3_234 = arith.constant 3 : index
    %c0_235 = arith.constant 0 : index
    %c0_236 = arith.constant 0 : index
    %277 = vector.load %arg10[%c3_234, %c0_235, %c0_236] : memref<8x8x512xf32, #tpu.memory_space<vmem>>, vector<1x8x512xf32>
    %278 = vector.shape_cast %277 : vector<1x8x512xf32> to vector<8x512xf32>
    %cst_237 = arith.constant dense<0.000000e+00> : vector<8x512xf32>
    %279 = tpu.matmul %276, %187, %cst_237 {dimension_numbers = #tpu.dot_dimension_numbers<[1], [0], [0], [1], [0, 0, 1, 1], [], []>} : vector<8x128xf32>, vector<128x512xf32>, vector<8x512xf32> -> vector<8x512xf32>
    %280 = arith.addf %278, %279 : vector<8x512xf32>
    %281 = vector.extract_strided_slice %280 {offsets = [0, 0], sizes = [8, 128], strides = [1, 1]} : vector<8x512xf32> to vector<8x128xf32>
    %282 = arith.negf %281 : vector<8x128xf32>
    %283 = math.exp %282 : vector<8x128xf32>
    %cst_238 = arith.constant 1.000000e+00 : f32
    %284 = vector.broadcast %cst_238 : f32 to vector<8x128xf32>
    %285 = arith.addf %284, %283 : vector<8x128xf32>
    %286 = arith.divf %284, %285 : vector<8x128xf32>
    %287 = vector.extract_strided_slice %280 {offsets = [0, 128], sizes = [8, 128], strides = [1, 1]} : vector<8x512xf32> to vector<8x128xf32>
    %288 = arith.negf %287 : vector<8x128xf32>
    %289 = math.exp %288 : vector<8x128xf32>
    %cst_239 = arith.constant 1.000000e+00 : f32
    %290 = vector.broadcast %cst_239 : f32 to vector<8x128xf32>
    %291 = arith.addf %290, %289 : vector<8x128xf32>
    %292 = arith.divf %290, %291 : vector<8x128xf32>
    %293 = vector.extract_strided_slice %280 {offsets = [0, 256], sizes = [8, 128], strides = [1, 1]} : vector<8x512xf32> to vector<8x128xf32>
    %294 = math.tanh %293 : vector<8x128xf32>
    %295 = vector.extract_strided_slice %280 {offsets = [0, 384], sizes = [8, 128], strides = [1, 1]} : vector<8x512xf32> to vector<8x128xf32>
    %296 = arith.negf %295 : vector<8x128xf32>
    %297 = math.exp %296 : vector<8x128xf32>
    %cst_240 = arith.constant 1.000000e+00 : f32
    %298 = vector.broadcast %cst_240 : f32 to vector<8x128xf32>
    %299 = arith.addf %298, %297 : vector<8x128xf32>
    %300 = arith.divf %298, %299 : vector<8x128xf32>
    %301 = arith.mulf %292, %274 : vector<8x128xf32>
    %302 = arith.mulf %286, %294 : vector<8x128xf32>
    %303 = arith.addf %301, %302 : vector<8x128xf32>
    %304 = math.tanh %303 : vector<8x128xf32>
    %305 = arith.mulf %300, %304 : vector<8x128xf32>
    %c4_241 = arith.constant 4 : index
    %c0_242 = arith.constant 0 : index
    %c0_243 = arith.constant 0 : index
    %306 = vector.load %arg10[%c4_241, %c0_242, %c0_243] : memref<8x8x512xf32, #tpu.memory_space<vmem>>, vector<1x8x512xf32>
    %307 = vector.shape_cast %306 : vector<1x8x512xf32> to vector<8x512xf32>
    %cst_244 = arith.constant dense<0.000000e+00> : vector<8x512xf32>
    %308 = tpu.matmul %305, %187, %cst_244 {dimension_numbers = #tpu.dot_dimension_numbers<[1], [0], [0], [1], [0, 0, 1, 1], [], []>} : vector<8x128xf32>, vector<128x512xf32>, vector<8x512xf32> -> vector<8x512xf32>
    %309 = arith.addf %307, %308 : vector<8x512xf32>
    %310 = vector.extract_strided_slice %309 {offsets = [0, 0], sizes = [8, 128], strides = [1, 1]} : vector<8x512xf32> to vector<8x128xf32>
    %311 = arith.negf %310 : vector<8x128xf32>
    %312 = math.exp %311 : vector<8x128xf32>
    %cst_245 = arith.constant 1.000000e+00 : f32
    %313 = vector.broadcast %cst_245 : f32 to vector<8x128xf32>
    %314 = arith.addf %313, %312 : vector<8x128xf32>
    %315 = arith.divf %313, %314 : vector<8x128xf32>
    %316 = vector.extract_strided_slice %309 {offsets = [0, 128], sizes = [8, 128], strides = [1, 1]} : vector<8x512xf32> to vector<8x128xf32>
    %317 = arith.negf %316 : vector<8x128xf32>
    %318 = math.exp %317 : vector<8x128xf32>
    %cst_246 = arith.constant 1.000000e+00 : f32
    %319 = vector.broadcast %cst_246 : f32 to vector<8x128xf32>
    %320 = arith.addf %319, %318 : vector<8x128xf32>
    %321 = arith.divf %319, %320 : vector<8x128xf32>
    %322 = vector.extract_strided_slice %309 {offsets = [0, 256], sizes = [8, 128], strides = [1, 1]} : vector<8x512xf32> to vector<8x128xf32>
    %323 = math.tanh %322 : vector<8x128xf32>
    %324 = vector.extract_strided_slice %309 {offsets = [0, 384], sizes = [8, 128], strides = [1, 1]} : vector<8x512xf32> to vector<8x128xf32>
    %325 = arith.negf %324 : vector<8x128xf32>
    %326 = math.exp %325 : vector<8x128xf32>
    %cst_247 = arith.constant 1.000000e+00 : f32
    %327 = vector.broadcast %cst_247 : f32 to vector<8x128xf32>
    %328 = arith.addf %327, %326 : vector<8x128xf32>
    %329 = arith.divf %327, %328 : vector<8x128xf32>
    %330 = arith.mulf %321, %303 : vector<8x128xf32>
    %331 = arith.mulf %315, %323 : vector<8x128xf32>
    %332 = arith.addf %330, %331 : vector<8x128xf32>
    %333 = math.tanh %332 : vector<8x128xf32>
    %334 = arith.mulf %329, %333 : vector<8x128xf32>
    %c5_248 = arith.constant 5 : index
    %c0_249 = arith.constant 0 : index
    %c0_250 = arith.constant 0 : index
    %335 = vector.load %arg10[%c5_248, %c0_249, %c0_250] : memref<8x8x512xf32, #tpu.memory_space<vmem>>, vector<1x8x512xf32>
    %336 = vector.shape_cast %335 : vector<1x8x512xf32> to vector<8x512xf32>
    %cst_251 = arith.constant dense<0.000000e+00> : vector<8x512xf32>
    %337 = tpu.matmul %334, %187, %cst_251 {dimension_numbers = #tpu.dot_dimension_numbers<[1], [0], [0], [1], [0, 0, 1, 1], [], []>} : vector<8x128xf32>, vector<128x512xf32>, vector<8x512xf32> -> vector<8x512xf32>
    %338 = arith.addf %336, %337 : vector<8x512xf32>
    %339 = vector.extract_strided_slice %338 {offsets = [0, 0], sizes = [8, 128], strides = [1, 1]} : vector<8x512xf32> to vector<8x128xf32>
    %340 = arith.negf %339 : vector<8x128xf32>
    %341 = math.exp %340 : vector<8x128xf32>
    %cst_252 = arith.constant 1.000000e+00 : f32
    %342 = vector.broadcast %cst_252 : f32 to vector<8x128xf32>
    %343 = arith.addf %342, %341 : vector<8x128xf32>
    %344 = arith.divf %342, %343 : vector<8x128xf32>
    %345 = vector.extract_strided_slice %338 {offsets = [0, 128], sizes = [8, 128], strides = [1, 1]} : vector<8x512xf32> to vector<8x128xf32>
    %346 = arith.negf %345 : vector<8x128xf32>
    %347 = math.exp %346 : vector<8x128xf32>
    %cst_253 = arith.constant 1.000000e+00 : f32
    %348 = vector.broadcast %cst_253 : f32 to vector<8x128xf32>
    %349 = arith.addf %348, %347 : vector<8x128xf32>
    %350 = arith.divf %348, %349 : vector<8x128xf32>
    %351 = vector.extract_strided_slice %338 {offsets = [0, 256], sizes = [8, 128], strides = [1, 1]} : vector<8x512xf32> to vector<8x128xf32>
    %352 = math.tanh %351 : vector<8x128xf32>
    %353 = vector.extract_strided_slice %338 {offsets = [0, 384], sizes = [8, 128], strides = [1, 1]} : vector<8x512xf32> to vector<8x128xf32>
    %354 = arith.negf %353 : vector<8x128xf32>
    %355 = math.exp %354 : vector<8x128xf32>
    %cst_254 = arith.constant 1.000000e+00 : f32
    %356 = vector.broadcast %cst_254 : f32 to vector<8x128xf32>
    %357 = arith.addf %356, %355 : vector<8x128xf32>
    %358 = arith.divf %356, %357 : vector<8x128xf32>
    %359 = arith.mulf %350, %332 : vector<8x128xf32>
    %360 = arith.mulf %344, %352 : vector<8x128xf32>
    %361 = arith.addf %359, %360 : vector<8x128xf32>
    %362 = math.tanh %361 : vector<8x128xf32>
    %363 = arith.mulf %358, %362 : vector<8x128xf32>
    %c6_255 = arith.constant 6 : index
    %c0_256 = arith.constant 0 : index
    %c0_257 = arith.constant 0 : index
    %364 = vector.load %arg10[%c6_255, %c0_256, %c0_257] : memref<8x8x512xf32, #tpu.memory_space<vmem>>, vector<1x8x512xf32>
    %365 = vector.shape_cast %364 : vector<1x8x512xf32> to vector<8x512xf32>
    %cst_258 = arith.constant dense<0.000000e+00> : vector<8x512xf32>
    %366 = tpu.matmul %363, %187, %cst_258 {dimension_numbers = #tpu.dot_dimension_numbers<[1], [0], [0], [1], [0, 0, 1, 1], [], []>} : vector<8x128xf32>, vector<128x512xf32>, vector<8x512xf32> -> vector<8x512xf32>
    %367 = arith.addf %365, %366 : vector<8x512xf32>
    %368 = vector.extract_strided_slice %367 {offsets = [0, 0], sizes = [8, 128], strides = [1, 1]} : vector<8x512xf32> to vector<8x128xf32>
    %369 = arith.negf %368 : vector<8x128xf32>
    %370 = math.exp %369 : vector<8x128xf32>
    %cst_259 = arith.constant 1.000000e+00 : f32
    %371 = vector.broadcast %cst_259 : f32 to vector<8x128xf32>
    %372 = arith.addf %371, %370 : vector<8x128xf32>
    %373 = arith.divf %371, %372 : vector<8x128xf32>
    %374 = vector.extract_strided_slice %367 {offsets = [0, 128], sizes = [8, 128], strides = [1, 1]} : vector<8x512xf32> to vector<8x128xf32>
    %375 = arith.negf %374 : vector<8x128xf32>
    %376 = math.exp %375 : vector<8x128xf32>
    %cst_260 = arith.constant 1.000000e+00 : f32
    %377 = vector.broadcast %cst_260 : f32 to vector<8x128xf32>
    %378 = arith.addf %377, %376 : vector<8x128xf32>
    %379 = arith.divf %377, %378 : vector<8x128xf32>
    %380 = vector.extract_strided_slice %367 {offsets = [0, 256], sizes = [8, 128], strides = [1, 1]} : vector<8x512xf32> to vector<8x128xf32>
    %381 = math.tanh %380 : vector<8x128xf32>
    %382 = vector.extract_strided_slice %367 {offsets = [0, 384], sizes = [8, 128], strides = [1, 1]} : vector<8x512xf32> to vector<8x128xf32>
    %383 = arith.negf %382 : vector<8x128xf32>
    %384 = math.exp %383 : vector<8x128xf32>
    %cst_261 = arith.constant 1.000000e+00 : f32
    %385 = vector.broadcast %cst_261 : f32 to vector<8x128xf32>
    %386 = arith.addf %385, %384 : vector<8x128xf32>
    %387 = arith.divf %385, %386 : vector<8x128xf32>
    %388 = arith.mulf %379, %361 : vector<8x128xf32>
    %389 = arith.mulf %373, %381 : vector<8x128xf32>
    %390 = arith.addf %388, %389 : vector<8x128xf32>
    %391 = math.tanh %390 : vector<8x128xf32>
    %392 = arith.mulf %387, %391 : vector<8x128xf32>
    %c7_262 = arith.constant 7 : index
    %c0_263 = arith.constant 0 : index
    %c0_264 = arith.constant 0 : index
    %393 = vector.load %arg10[%c7_262, %c0_263, %c0_264] : memref<8x8x512xf32, #tpu.memory_space<vmem>>, vector<1x8x512xf32>
    %394 = vector.shape_cast %393 : vector<1x8x512xf32> to vector<8x512xf32>
    %cst_265 = arith.constant dense<0.000000e+00> : vector<8x512xf32>
    %395 = tpu.matmul %392, %187, %cst_265 {dimension_numbers = #tpu.dot_dimension_numbers<[1], [0], [0], [1], [0, 0, 1, 1], [], []>} : vector<8x128xf32>, vector<128x512xf32>, vector<8x512xf32> -> vector<8x512xf32>
    %396 = arith.addf %394, %395 : vector<8x512xf32>
    %397 = vector.extract_strided_slice %396 {offsets = [0, 0], sizes = [8, 128], strides = [1, 1]} : vector<8x512xf32> to vector<8x128xf32>
    %398 = arith.negf %397 : vector<8x128xf32>
    %399 = math.exp %398 : vector<8x128xf32>
    %cst_266 = arith.constant 1.000000e+00 : f32
    %400 = vector.broadcast %cst_266 : f32 to vector<8x128xf32>
    %401 = arith.addf %400, %399 : vector<8x128xf32>
    %402 = arith.divf %400, %401 : vector<8x128xf32>
    %403 = vector.extract_strided_slice %396 {offsets = [0, 128], sizes = [8, 128], strides = [1, 1]} : vector<8x512xf32> to vector<8x128xf32>
    %404 = arith.negf %403 : vector<8x128xf32>
    %405 = math.exp %404 : vector<8x128xf32>
    %cst_267 = arith.constant 1.000000e+00 : f32
    %406 = vector.broadcast %cst_267 : f32 to vector<8x128xf32>
    %407 = arith.addf %406, %405 : vector<8x128xf32>
    %408 = arith.divf %406, %407 : vector<8x128xf32>
    %409 = vector.extract_strided_slice %396 {offsets = [0, 256], sizes = [8, 128], strides = [1, 1]} : vector<8x512xf32> to vector<8x128xf32>
    %410 = math.tanh %409 : vector<8x128xf32>
    %411 = vector.extract_strided_slice %396 {offsets = [0, 384], sizes = [8, 128], strides = [1, 1]} : vector<8x512xf32> to vector<8x128xf32>
    %412 = arith.negf %411 : vector<8x128xf32>
    %413 = math.exp %412 : vector<8x128xf32>
    %cst_268 = arith.constant 1.000000e+00 : f32
    %414 = vector.broadcast %cst_268 : f32 to vector<8x128xf32>
    %415 = arith.addf %414, %413 : vector<8x128xf32>
    %416 = arith.divf %414, %415 : vector<8x128xf32>
    %417 = arith.mulf %408, %390 : vector<8x128xf32>
    %418 = arith.mulf %402, %410 : vector<8x128xf32>
    %419 = arith.addf %417, %418 : vector<8x128xf32>
    %420 = math.tanh %419 : vector<8x128xf32>
    %421 = arith.mulf %416, %420 : vector<8x128xf32>
    %c0_269 = arith.constant 0 : index
    %c0_270 = arith.constant 0 : index
    %422 = vector.load %arg9[%c0_269, %c0_270] : memref<8x128xf32, #tpu.memory_space<vmem>>, vector<8x128xf32>
    tpu.vector_store %arg9[%c0_269, %c0_270], %421 {strides = array<i32>} : memref<8x128xf32, #tpu.memory_space<vmem>>, vector<8x128xf32>,
    return
  }
  func.func @transform_0(%arg0: i32) -> (i32, i32, i32) {
    %c0_i32 = arith.constant 0 : i32
    %c0_i32_0 = arith.constant 0 : i32
    %c0_i32_1 = arith.constant 0 : i32
    return %c0_i32, %arg0, %c0_i32_0 : i32, i32, i32
  }
  func.func @transform_1(%arg0: i32) -> (i32, i32, i32) {
    %c0_i32 = arith.constant 0 : i32
    %c0_i32_0 = arith.constant 0 : i32
    %c0_i32_1 = arith.constant 0 : i32
    return %c0_i32, %arg0, %c0_i32_0 : i32, i32, i32
  }
  func.func @transform_2(%arg0: i32) -> (i32, i32) {
    %c0_i32 = arith.constant 0 : i32
    %c0_i32_0 = arith.constant 0 : i32
    %c0_i32_1 = arith.constant 0 : i32
    return %c0_i32, %c0_i32_0 : i32, i32
  }
  func.func @transform_3(%arg0: i32) -> (i32, i32) {
    %c0_i32 = arith.constant 0 : i32
    %c0_i32_0 = arith.constant 0 : i32
    %c0_i32_1 = arith.constant 0 : i32
    return %c0_i32, %c0_i32_0 : i32, i32
  }
  func.func @transform_4(%arg0: i32) -> (i32, i32) {
    %c0_i32 = arith.constant 0 : i32
    %c0_i32_0 = arith.constant 0 : i32
    %c0_i32_1 = arith.constant 0 : i32
    return %c0_i32, %c0_i32_0 : i32, i32
  }
  func.func @transform_5(%arg0: i32) -> (i32, i32) {
    %c0_i32 = arith.constant 0 : i32
    %c0_i32_0 = arith.constant 0 : i32
    %c0_i32_1 = arith.constant 0 : i32
    return %c0_i32, %c0_i32_0 : i32, i32
  }
  func.func @transform_6(%arg0: i32) -> (i32, i32) {
    %c0_i32 = arith.constant 0 : i32
    %c0_i32_0 = arith.constant 0 : i32
    %c0_i32_1 = arith.constant 0 : i32
    return %c0_i32, %c0_i32_0 : i32, i32
  }
  func.func @transform_7(%arg0: i32) -> (i32, i32) {
    %c0_i32 = arith.constant 0 : i32
    %c0_i32_0 = arith.constant 0 : i32
    %c0_i32_1 = arith.constant 0 : i32
    return %c0_i32, %c0_i32_0 : i32, i32
  }
  func.func @transform_8(%arg0: i32) -> (i32, i32) {
    %c0_i32 = arith.constant 0 : i32
    %c0_i32_0 = arith.constant 0 : i32
    return %arg0, %c0_i32 : i32, i32
  }
}

</mosaic_0001>

<llo_original>
// kernel: trm_cell_embedder_forward.5
$region0: #{trm_cell_embedder_forward.5}
  #allocation0 [shape = 'u32[]', space=smem, size = 0x4, offset = 0x4, fixed_abs, tag = 'smem constant byte address 0x4 - core index']
  #allocation1 [shape = 'u32[72,128]{1,0:T(1,128)}', space=vmem, size = 0x9000, scoped, tag = 'internal scratch']
  %s0 = inlined_call_operand.vmem [shape: f32[8,32], index: 0, kind: input, shape index: {}]
  %s1 = inlined_call_operand.hbm [shape: f32[32,128], index: 1, kind: input, shape index: {}]
  %s2 = inlined_call_operand.vmem [shape: f32[1,128], index: 2, kind: input, shape index: {}]
  %s3 = inlined_call_operand.vmem [shape: f32[8,128], index: 3, kind: output, shape index: {}]
  %s4 = sld [smem:[#allocation0]]
  $region26: #{trm_cell_embedder_forward.5} parent=0
    _
  %s6 = ssub.s32 1, %s4
  %s7 = scalar_select 0, %s6, %s4
  $region1: #{trm_cell_embedder_forward.5} parent=0
    #allocation2 [shape = 'u8[16384]{0}', space=vmem, size = 0x4000, scoped, tag = 'input window, operand 1, single buffered']
    #allocation3 [shape = 's32[1]{0}', space=sflag, size = 0x4, scoped, tag = 'scoped memory for trm_cell_embedder_forward.5']
    %8 = vsyncpa [#allocation3], 0
    // Predicated region
    $region2: #{trm_cell_embedder_forward.5} parent=1 // pred_check
      _
    $region3: #{trm_cell_embedder_forward.5} parent=1 // pred_check_branch
      %10 = sbr.rel (0) target = $region5
    $region4: #{trm_cell_embedder_forward.5} parent=1 // pred_region
      _
    $region5: #{trm_cell_embedder_forward.5} parent=1 // pred_fallthru
      _
    // Predicated region
    $region6: #{trm_cell_embedder_forward.5} parent=1 // pred_check
      _
    $region7: #{trm_cell_embedder_forward.5} parent=1 // pred_check_branch
      %12 = sbr.rel (0) target = $region9
    $region8: #{trm_cell_embedder_forward.5} parent=1 // pred_region
      %14 = vsyncadd [#allocation3], 0
      %s15 = sshll.u32 %s1, 4
      %s16 = int_to_ptr.hbm [resolvable:$true] %s15
      %s17 = sshll.u32 [#allocation2], 4
      %s18 = int_to_ptr.vmem [resolvable:$true] %s17
      %23 = dma.hbm_to_vmem [thread:$0]  %s16, 512, %s18, [#allocation3], 128, 128, 8
    $region9: #{trm_cell_embedder_forward.5} parent=1 // pred_fallthru
      _
    // Predicated region
    $region10: #{trm_cell_embedder_forward.5} parent=1 // pred_check
      _
    $region11: #{trm_cell_embedder_forward.5} parent=1 // pred_check_branch
      %25 = sbr.rel (0) target = $region13
    $region12: #{trm_cell_embedder_forward.5} parent=1 // pred_region
      _
    $region13: #{trm_cell_embedder_forward.5} parent=1 // pred_fallthru
      _
    // Predicated region
    $region14: #{trm_cell_embedder_forward.5} parent=1 // pred_check
      _
    $region15: #{trm_cell_embedder_forward.5} parent=1 // pred_check_branch
      %27 = sbr.rel (0) target = $region17
    $region16: #{trm_cell_embedder_forward.5} parent=1 // pred_region
      %29 = dma.done [#allocation3], 512
    $region17: #{trm_cell_embedder_forward.5} parent=1 // pred_fallthru
      _
    %v30 = vld [vmem:[%s0] sm:$0xff]
    %v31 = vld [vmem:[#allocation2] sm:$0xff]
    %v32 = vld [vmem:[#allocation2 + $0x8] sm:$0xff]
    %v33 = vld [vmem:[#allocation2 + $0x10] sm:$0xff]
    %v34 = vld [vmem:[#allocation2 + $0x18] sm:$0xff]
    %v35 = vld [vmem:[%s2] sm:$0x1]
    %v37 = vperm.slane %v35, 0
    %vm39 = vcmask 261120
    %v41 = vsel %vm39, %v30, 0
    %43 = vmatpush.msra.mxu0 0.0
    %44 = vmatpush.msra.mxu0 0.0
    %45 = vmatpush.msra.mxu0 0.0
    %46 = vmatpush.msra.mxu0 0.0
    %47 = vmatpush.msra.mxu0 0.0
    %48 = vmatpush.msra.mxu0 0.0
    %49 = vmatpush.msra.mxu0 0.0
    %50 = vmatpush.msra.mxu0 0.0
    %51 = vmatpush.msra.mxu0 0.0
    %52 = vmatpush.msra.mxu0 0.0
    %53 = vmatpush.msra.mxu0 0.0
    %54 = vmatpush.msra.mxu0 0.0
    %55 = vmatpush.msra.mxu0 %v34
    %56 = vmatpush.msra.mxu0 %v33
    %57 = vmatpush.msra.mxu0 %v32
    %58 = vmatpush.msra.mxu0 %v31
    %59 = vmatmul.f32.gmra.mxu0 %v41
    %v60 = vpop.f32.mrf.mxu0
    %v61 = vadd.f32 %v37, %v60
    %62 = vdwg.mxu0
    %63 = vst [vmem:[%s3] sm:$0xff] %v61
    // Predicated region
    $region18: #{trm_cell_embedder_forward.5} parent=1 // pred_check
      _
    $region19: #{trm_cell_embedder_forward.5} parent=1 // pred_check_branch
      %65 = sbr.rel (0) target = $region21
    $region20: #{trm_cell_embedder_forward.5} parent=1 // pred_region
      _
    $region21: #{trm_cell_embedder_forward.5} parent=1 // pred_fallthru
      _
    // Predicated region
    $region22: #{trm_cell_embedder_forward.5} parent=1 // pred_check
      _
    $region23: #{trm_cell_embedder_forward.5} parent=1 // pred_check_branch
      %67 = sbr.rel (0) target = $region25
    $region24: #{trm_cell_embedder_forward.5} parent=1 // pred_region
      _
    $region25: #{trm_cell_embedder_forward.5} parent=1 // pred_fallthru
      _
    %68 = vsyncpa [#allocation3], 1

// kernel: trm_cell_embedder_forward.3
$region0: #{trm_cell_embedder_forward.3}
  #allocation0 [shape = 'u32[]', space=smem, size = 0x4, offset = 0x4, fixed_abs, tag = 'smem constant byte address 0x4 - core index']
  #allocation1 [shape = 'u32[72,128]{1,0:T(1,128)}', space=vmem, size = 0x9000, scoped, tag = 'internal scratch']
  %s0 = inlined_call_operand.vmem [shape: s32[64,8], index: 0, kind: input, shape index: {}]
  %s1 = inlined_call_operand.vmem [shape: bf16[20,384], index: 1, kind: input, shape index: {}]
  %s2 = inlined_call_operand.vmem [shape: f32[64,128], index: 2, kind: output, shape index: {}]
  %s3 = sld [smem:[#allocation0]]
  $region41: #{trm_cell_embedder_forward.3} parent=0
    _
  %s5 = ssub.s32 1, %s3
  %s6 = scalar_select 0, %s5, %s3
  loop: start=0, step=1, limit=4
  $region2: #{trm_cell_embedder_forward.3} parent=0 // loop_pre_header
    _
  $region3: #{trm_cell_embedder_forward.3} parent=0 // loop_header
    %s8 = sphi 0, %s12
    %p9 = scmp.ge.s32.totalorder %s8, 4
    %s18 = sphi 0, %s20
    %s21 = sphi 0, %s18
    %s22 = sphi 0, %s21
    %s38 = sphi 0, %s22
    %s42 = sphi 0, %s42
    %s44 = sphi 0, %s42
    %s45 = sphi 0, %s44
    %s59 = sphi 0, %s45
    %s65 = sphi 0, %s67
    %s68 = sphi 0, %s65
    %s69 = sphi 0, %s68
    %s85 = sphi 0, %s69
  $region4: #{trm_cell_embedder_forward.3} parent=0 // loop_header_branch
    %11 = sbr.rel (%p9) target = $region8
  $region5: #{trm_cell_embedder_forward.3} parent=0 // loop_body
    %s13 = ssub.s32 %s8, 1
    %s14 = ssub.s32 %s8, 2
    %s15 = sadd.s32 %s8, 1
    %s16 = ssub.s32 %s8, %s15
    %p17 = scmp.eq.s32.totalorder %s16, 0
    %s19 = sadd.s32 %s18, 1
    %s20 = scalar_select %p17, %s18, %s19
    %p23 = pneg %p17
    %p24 = scmp.eq.s32.totalorder %s8, 1
    %p25 = por %p23, %p24
    %p26 = scmp.ne.s32.totalorder %s18, %s21
    %p27 = scmp.eq.s32.totalorder %s8, 0
    %p28 = por %p26, %p27
    %p29 = scmp.ne.s32.totalorder %s18, %s21
    %p30 = scmp.eq.s32.totalorder %s13, 1
    %p31 = por %p29, %p30
    %p32 = scmp.ne.s32.totalorder %s21, %s22
    %p33 = scmp.eq.s32.totalorder %s13, 0
    %p34 = por %p32, %p33
    %p35 = scmp.ne.s32.totalorder %s21, %s22
    %p36 = scmp.eq.s32.totalorder %s14, 1
    %p37 = por %p35, %p36
    %p39 = scmp.ne.s32.totalorder %s22, %s38
    %p40 = scmp.eq.s32.totalorder %s14, 0
    %p41 = por %p39, %p40
    %s43 = sadd.s32 %s42, 1
    %p46 = scmp.eq.s32.totalorder %s8, 1
    %p47 = scmp.ne.s32.totalorder %s42, %s44
    %p48 = scmp.eq.s32.totalorder %s8, 0
    %p49 = por %p47, %p48
    %p50 = scmp.ne.s32.totalorder %s42, %s44
    %p51 = scmp.eq.s32.totalorder %s13, 1
    %p52 = por %p50, %p51
    %p53 = scmp.ne.s32.totalorder %s44, %s45
    %p54 = scmp.eq.s32.totalorder %s13, 0
    %p55 = por %p53, %p54
    %p56 = scmp.ne.s32.totalorder %s44, %s45
    %p57 = scmp.eq.s32.totalorder %s14, 1
    %p58 = por %p56, %p57
    %p60 = scmp.ne.s32.totalorder %s45, %s59
    %p61 = scmp.eq.s32.totalorder %s14, 0
    %p62 = por %p60, %p61
    %s63 = ssub.s32 %s8, %s15
    %p64 = scmp.eq.s32.totalorder %s63, 0
    %s66 = sadd.s32 %s65, 1
    %s67 = scalar_select %p64, %s65, %s66
    %p70 = pneg %p64
    %p71 = scmp.eq.s32.totalorder %s8, 1
    %p72 = por %p70, %p71
    %p73 = scmp.ne.s32.totalorder %s65, %s68
    %p74 = scmp.eq.s32.totalorder %s8, 0
    %p75 = por %p73, %p74
    %p76 = scmp.ne.s32.totalorder %s65, %s68
    %p77 = scmp.eq.s32.totalorder %s13, 1
    %p78 = por %p76, %p77
    %p79 = scmp.ne.s32.totalorder %s68, %s69
    %p80 = scmp.eq.s32.totalorder %s13, 0
    %p81 = por %p79, %p80
    %p82 = scmp.ne.s32.totalorder %s68, %s69
    %p83 = scmp.eq.s32.totalorder %s14, 1
    %p84 = por %p82, %p83
    %p86 = scmp.ne.s32.totalorder %s69, %s85
    %p87 = scmp.eq.s32.totalorder %s14, 0
    %p88 = por %p86, %p87
    %p89 = scmp.le.s32.totalorder 1, %s8
    %p90 = scmp.lt.s32.totalorder %s8, 3
    %p91 = pnand %p89, %p90
    %p92 = pneg %p91
    // Predicated region
    $region9: #{trm_cell_embedder_forward.3} parent=5 // pred_check
      _
    $region10: #{trm_cell_embedder_forward.3} parent=5 // pred_check_branch
      %94 = sbr.rel (%p91) target = $region12
    $region11: #{trm_cell_embedder_forward.3} parent=5 // pred_region
      %s95 = ssub.s32 %s8, 1
      // Predicated region
      $region13: #{trm_cell_embedder_forward.3} parent=11 // pred_check
        %p96 = pneg %p55
      $region14: #{trm_cell_embedder_forward.3} parent=11 // pred_check_branch
        %98 = sbr.rel (%p96) target = $region16
      $region15: #{trm_cell_embedder_forward.3} parent=11 // pred_region
        _
      $region16: #{trm_cell_embedder_forward.3} parent=11 // pred_fallthru
        _
    $region12: #{trm_cell_embedder_forward.3} parent=5 // pred_fallthru
      _
    %p99 = scmp.lt.s32.totalorder %s8, 2
    // Predicated region
    $region17: #{trm_cell_embedder_forward.3} parent=5 // pred_check
      %p100 = pneg %p99
    $region18: #{trm_cell_embedder_forward.3} parent=5 // pred_check_branch
      %102 = sbr.rel (%p100) target = $region20
    $region19: #{trm_cell_embedder_forward.3} parent=5 // pred_region
      // Predicated region
      $region21: #{trm_cell_embedder_forward.3} parent=19 // pred_check
        %p103 = pneg %p28
      $region22: #{trm_cell_embedder_forward.3} parent=19 // pred_check_branch
        %105 = sbr.rel (%p103) target = $region24
      $region23: #{trm_cell_embedder_forward.3} parent=19 // pred_region
        %s106 = smul.u32 4, %s8
        %p107 = scmp.lt.s32.totalorder %s106, 7
        %s108 = scalar_select %p107, %s106, 7
        %s109 = smul.addr %s108, 8
        %s110 = scalar_lea.vmem %s0, %s109
        %s111 = smul.u32 4, %s8
      $region24: #{trm_cell_embedder_forward.3} parent=19 // pred_fallthru
        _
    $region20: #{trm_cell_embedder_forward.3} parent=5 // pred_fallthru
      _
    %p112 = scmp.le.s32.totalorder 1, %s8
    %p113 = scmp.lt.s32.totalorder %s8, 3
    %p114 = pnand %p112, %p113
    %p115 = pneg %p114
    // Predicated region
    $region25: #{trm_cell_embedder_forward.3} parent=5 // pred_check
      _
    $region26: #{trm_cell_embedder_forward.3} parent=5 // pred_check_branch
      %117 = sbr.rel (%p114) target = $region28
    $region27: #{trm_cell_embedder_forward.3} parent=5 // pred_region
      %s118 = ssub.s32 %s8, 1
      %s119 = smul.u32 4, %s13
      %p120 = scmp.lt.s32.totalorder %s119, 7
      %s121 = scalar_select %p120, %s119, 7
      %s122 = smul.addr %s121, 8
      %s123 = scalar_lea.vmem %s0, %s122
      %p124 = pneg %p34
      %p125 = pneg %p31
      %p126 = pneg %p55
      %p127 = pneg %p52
      %p128 = pneg %p81
      %p129 = pneg %p78
      %s130 = smul.u32 4, %s13
      %p131 = scmp.lt.s32.totalorder %s130, 7
      %s132 = scalar_select %p131, %s130, 7
      %s133 = smul.addr %s132, 8
      %s134 = scalar_lea.vmem %s2, %s133
      %s135 = smul.u32 4, %s13
      %p136 = scmp.lt.s32.totalorder %s135, 7
      %s137 = scalar_select %p136, %s135, 7
      %s138 = smul.addr %s137, 8
      %s139 = scalar_lea.vmem %s0, %s138
      %s140 = smul.u32 4, %s13
      %s141 = smul.u32 4, %s13
      %p142 = scmp.lt.s32.totalorder %s141, 7
      %s143 = scalar_select %p142, %s141, 7
      %s144 = smul.addr %s143, 8
      %s145 = scalar_lea.vmem %s2, %s144
      %s146 = smul.u32 4, %s13
      %v148 = vld [vmem:[%s139] sm:$0xff]
      %v149 = vld [vmem:[%s139 + $0x8] sm:$0xff]
      %v150 = vld [vmem:[%s139 + $0x10] sm:$0xff]
      %v151 = vld [vmem:[%s139 + $0x18] sm:$0xff]
      %v152 = vld [vmem:[%s1] sm:$0xff]
      %v153 = vld [vmem:[%s1 + $0x8] sm:$0xf]
      %v154 = vld [vmem:[%s1 + $0xc] sm:$0xff]
      %v155 = vld [vmem:[%s1 + $0x14] sm:$0xf]
      %v156 = vld [vmem:[%s1 + $0x18] sm:$0x33]
      %v157 = vld [vmem:[%s1 + $0x20] sm:$0x3]
      %v158 = vlaneseq
      %v159 = vand.u32 %v158, 127
      %160 = vset.pattern.permute.xlu0 0
      %161 = vperm.xlu0 %160, %v148
      %v162 = vpop.permute.xlu0 %161
      %163 = vset.pattern.permute.xlu0 0
      %164 = vperm.xlu0 %163, %v149
      %v165 = vpop.permute.xlu0 %164
      %166 = vset.pattern.permute.xlu0 0
      %167 = vperm.xlu0 %166, %v150
      %v168 = vpop.permute.xlu0 %167
      %169 = vset.pattern.permute.xlu0 0
      %170 = vperm.xlu0 %169, %v151
      %v171 = vpop.permute.xlu0 %170
      %vm172 = vcmp.eq.s32.totalorder %v162, %v159
      %vm173 = vcmp.eq.s32.totalorder %v165, %v159
      %vm174 = vcmp.eq.s32.totalorder %v168, %v159
      %vm175 = vcmp.eq.s32.totalorder %v171, %v159
      %v176 = vsel %vm172, 1, 0
      %v177 = vsel %vm173, 1, 0
      %v178 = vsel %vm174, 1, 0
      %v179 = vsel %vm175, 1, 0
      %v180 = vcvt.s32.f32 %v176
      %v181 = vcvt.s32.f32 %v177
      %v182 = vcvt.s32.f32 %v178
      %v183 = vcvt.s32.f32 %v179
      %v184 = vpack.c.bf16 %v181, %v180
      %v185 = vpack.c.bf16 %v183, %v182
      %v189 = vunpack.c.l.b16 %v152
      %v190 = vunpack.c.l.b16 %v154
      %v191 = vunpack.c.l.b16 %v156
      %v192 = vpack.c.b16 %v190, %v189
      %v193 = vpack.c.b16 %v191, %v191
      %vm195 = vcmask 162816
      %v197 = vsel %vm195, %v184, 0
      %v200 = vsel %vm195, %v185, 0
      %vm202 = vcmask 1041408
      %v204 = vsel %vm202, %v193, 0
      %206 = vmatpush.bf16.msra.mxu0 0
      %207 = vmatpush.bf16.msra.mxu0 0
      %208 = vmatpush.bf16.msra.mxu0 0
      %209 = vmatpush.bf16.msra.mxu0 0
      %210 = vmatpush.bf16.msra.mxu0 0
      %211 = vmatpush.bf16.msra.mxu0 0
      %212 = vmatpush.bf16.msra.mxu0 %v204
      %213 = vmatpush.bf16.msra.mxu0 %v192
      %214 = vmatmul.bf16.gmra.mxu0 %v197
      %v215 = vpop.f32.mrf.mxu0
      %v216 = vadd.f32 0.0, %v215
      %v217 = vpop.f32.mrf.mxu0
      %v218 = vadd.f32 0.0, %v217
      %219 = vmatmul.bf16.gmra.mxu0 %v200
      %v220 = vpop.f32.mrf.mxu0
      %v221 = vadd.f32 0.0, %v220
      %v222 = vpop.f32.mrf.mxu0
      %v223 = vadd.f32 0.0, %v222
      %224 = vdwg.mxu0
      %225 = vset.pattern.permute.xlu0 1
      %226 = vperm.xlu0 %225, %v148
      %v227 = vpop.permute.xlu0 %226
      %228 = vset.pattern.permute.xlu0 1
      %229 = vperm.xlu0 %228, %v149
      %v230 = vpop.permute.xlu0 %229
      %231 = vset.pattern.permute.xlu0 1
      %232 = vperm.xlu0 %231, %v150
      %v233 = vpop.permute.xlu0 %232
      %234 = vset.pattern.permute.xlu0 1
      %235 = vperm.xlu0 %234, %v151
      %v236 = vpop.permute.xlu0 %235
      %vm237 = vcmp.eq.s32.totalorder %v227, %v159
      %vm238 = vcmp.eq.s32.totalorder %v230, %v159
      %vm239 = vcmp.eq.s32.totalorder %v233, %v159
      %vm240 = vcmp.eq.s32.totalorder %v236, %v159
      %v241 = vsel %vm237, 1, 0
      %v242 = vsel %vm238, 1, 0
      %v243 = vsel %vm239, 1, 0
      %v244 = vsel %vm240, 1, 0
      %v245 = vcvt.s32.f32 %v241
      %v246 = vcvt.s32.f32 %v242
      %v247 = vcvt.s32.f32 %v243
      %v248 = vcvt.s32.f32 %v244
      %v249 = vpack.c.bf16 %v246, %v245
      %v250 = vpack.c.bf16 %v248, %v247
      %v251 = vunpack.c.h.b16 %v152
      %v252 = vunpack.c.h.b16 %v154
      %v253 = vunpack.c.h.b16 %v156
      %v254 = vpack.c.b16 %v252, %v251
      %v255 = vpack.c.b16 %v253, %v253
      %v258 = vsel %vm195, %v249, 0
      %v261 = vsel %vm195, %v250, 0
      %v264 = vsel %vm202, %v255, 0
      %266 = vmatpush.bf16.msra.mxu0 0
      %267 = vmatpush.bf16.msra.mxu0 0
      %268 = vmatpush.bf16.msra.mxu0 0
      %269 = vmatpush.bf16.msra.mxu0 0
      %270 = vmatpush.bf16.msra.mxu0 0
      %271 = vmatpush.bf16.msra.mxu0 0
      %272 = vmatpush.bf16.msra.mxu0 %v204
      %273 = vmatpush.bf16.msra.mxu0 %v192
      %274 = vmatmul.bf16.gmra.mxu0 %v258
      %v275 = vpop.f32.mrf.mxu0
      %v276 = vadd.f32 0.0, %v275
      %v277 = vpop.f32.mrf.mxu0
      %v278 = vadd.f32 0.0, %v277
      %279 = vmatmul.bf16.gmra.mxu0 %v261
      %v280 = vpop.f32.mrf.mxu0
      %v281 = vadd.f32 0.0, %v280
      %v282 = vpop.f32.mrf.mxu0
      %v283 = vadd.f32 0.0, %v282
      %284 = vdwg.mxu0
      %285 = vmatpush.bf16.msra.mxu0 0
      %286 = vmatpush.bf16.msra.mxu0 0
      %287 = vmatpush.bf16.msra.mxu0 0
      %288 = vmatpush.bf16.msra.mxu0 0
      %289 = vmatpush.bf16.msra.mxu0 0
      %290 = vmatpush.bf16.msra.mxu0 0
      %291 = vmatpush.bf16.msra.mxu0 %v264
      %292 = vmatpush.bf16.msra.mxu0 %v254
      %293 = vmatmul.bf16.gmra.mxu0 %v258
      %v294 = vpop.f32.mrf.mxu0
      %v295 = vadd.f32 0.0, %v294
      %v296 = vpop.f32.mrf.mxu0
      %v297 = vadd.f32 0.0, %v296
      %298 = vmatmul.bf16.gmra.mxu0 %v261
      %v299 = vpop.f32.mrf.mxu0
      %v300 = vadd.f32 0.0, %v299
      %v301 = vpop.f32.mrf.mxu0
      %v302 = vadd.f32 0.0, %v301
      %303 = vdwg.mxu0
      %304 = vset.pattern.permute.xlu0 2
      %305 = vperm.xlu0 %304, %v148
      %v306 = vpop.permute.xlu0 %305
      %307 = vset.pattern.permute.xlu0 2
      %308 = vperm.xlu0 %307, %v149
      %v309 = vpop.permute.xlu0 %308
      %310 = vset.pattern.permute.xlu0 2
      %311 = vperm.xlu0 %310, %v150
      %v312 = vpop.permute.xlu0 %311
      %313 = vset.pattern.permute.xlu0 2
      %314 = vperm.xlu0 %313, %v151
      %v315 = vpop.permute.xlu0 %314
      %vm316 = vcmp.eq.s32.totalorder %v306, %v159
      %vm317 = vcmp.eq.s32.totalorder %v309, %v159
      %vm318 = vcmp.eq.s32.totalorder %v312, %v159
      %vm319 = vcmp.eq.s32.totalorder %v315, %v159
      %v320 = vsel %vm316, 1, 0
      %v321 = vsel %vm317, 1, 0
      %v322 = vsel %vm318, 1, 0
      %v323 = vsel %vm319, 1, 0
      %v324 = vcvt.s32.f32 %v320
      %v325 = vcvt.s32.f32 %v321
      %v326 = vcvt.s32.f32 %v322
      %v327 = vcvt.s32.f32 %v323
      %v328 = vpack.c.bf16 %v325, %v324
      %v329 = vpack.c.bf16 %v327, %v326
      %v333 = vunpack.c.l.b16 %v153
      %v334 = vunpack.c.l.b16 %v155
      %v335 = vunpack.c.l.b16 %v157
      %v336 = vpack.c.b16 %v334, %v333
      %v337 = vpack.c.b16 %v335, %v335
      %v340 = vsel %vm195, %v328, 0
      %v343 = vsel %vm195, %v329, 0
      %v346 = vsel %vm202, %v337, 0
      %348 = vmatpush.bf16.msra.mxu0 0
      %349 = vmatpush.bf16.msra.mxu0 0
      %350 = vmatpush.bf16.msra.mxu0 0
      %351 = vmatpush.bf16.msra.mxu0 0
      %352 = vmatpush.bf16.msra.mxu0 0
      %353 = vmatpush.bf16.msra.mxu0 0
      %354 = vmatpush.bf16.msra.mxu0 %v204
      %355 = vmatpush.bf16.msra.mxu0 %v192
      %356 = vmatmul.bf16.gmra.mxu0 %v340
      %v357 = vpop.f32.mrf.mxu0
      %v358 = vadd.f32 0.0, %v357
      %v359 = vpop.f32.mrf.mxu0
      %v360 = vadd.f32 0.0, %v359
      %361 = vmatmul.bf16.gmra.mxu0 %v343
      %v362 = vpop.f32.mrf.mxu0
      %v363 = vadd.f32 0.0, %v362
      %v364 = vpop.f32.mrf.mxu0
      %v365 = vadd.f32 0.0, %v364
      %366 = vdwg.mxu0
      %367 = vmatpush.bf16.msra.mxu0 0
      %368 = vmatpush.bf16.msra.mxu0 0
      %369 = vmatpush.bf16.msra.mxu0 0
      %370 = vmatpush.bf16.msra.mxu0 0
      %371 = vmatpush.bf16.msra.mxu0 0
      %372 = vmatpush.bf16.msra.mxu0 0
      %373 = vmatpush.bf16.msra.mxu0 %v264
      %374 = vmatpush.bf16.msra.mxu0 %v254
      %375 = vmatmul.bf16.gmra.mxu0 %v340
      %v376 = vpop.f32.mrf.mxu0
      %v377 = vadd.f32 0.0, %v376
      %v378 = vpop.f32.mrf.mxu0
      %v379 = vadd.f32 0.0, %v378
      %380 = vmatmul.bf16.gmra.mxu0 %v343
      %v381 = vpop.f32.mrf.mxu0
      %v382 = vadd.f32 0.0, %v381
      %v383 = vpop.f32.mrf.mxu0
      %v384 = vadd.f32 0.0, %v383
      %385 = vdwg.mxu0
      %386 = vmatpush.bf16.msra.mxu0 0
      %387 = vmatpush.bf16.msra.mxu0 0
      %388 = vmatpush.bf16.msra.mxu0 0
      %389 = vmatpush.bf16.msra.mxu0 0
      %390 = vmatpush.bf16.msra.mxu0 0
      %391 = vmatpush.bf16.msra.mxu0 0
      %392 = vmatpush.bf16.msra.mxu0 %v346
      %393 = vmatpush.bf16.msra.mxu0 %v336
      %394 = vmatmul.bf16.gmra.mxu0 %v340
      %v395 = vpop.f32.mrf.mxu0
      %v396 = vadd.f32 0.0, %v395
      %v397 = vpop.f32.mrf.mxu0
      %v398 = vadd.f32 0.0, %v397
      %399 = vmatmul.bf16.gmra.mxu0 %v343
      %v400 = vpop.f32.mrf.mxu0
      %v401 = vadd.f32 0.0, %v400
      %v402 = vpop.f32.mrf.mxu0
      %v403 = vadd.f32 0.0, %v402
      %404 = vdwg.mxu0
      %405 = vset.pattern.permute.xlu0 3
      %406 = vperm.xlu0 %405, %v148
      %v407 = vpop.permute.xlu0 %406
      %408 = vset.pattern.permute.xlu0 3
      %409 = vperm.xlu0 %408, %v149
      %v410 = vpop.permute.xlu0 %409
      %411 = vset.pattern.permute.xlu0 3
      %412 = vperm.xlu0 %411, %v150
      %v413 = vpop.permute.xlu0 %412
      %414 = vset.pattern.permute.xlu0 3
      %415 = vperm.xlu0 %414, %v151
      %v416 = vpop.permute.xlu0 %415
      %vm417 = vcmp.eq.s32.totalorder %v407, %v159
      %vm418 = vcmp.eq.s32.totalorder %v410, %v159
      %vm419 = vcmp.eq.s32.totalorder %v413, %v159
      %vm420 = vcmp.eq.s32.totalorder %v416, %v159
      %v421 = vsel %vm417, 1, 0
      %v422 = vsel %vm418, 1, 0
      %v423 = vsel %vm419, 1, 0
      %v424 = vsel %vm420, 1, 0
      %v425 = vcvt.s32.f32 %v421
      %v426 = vcvt.s32.f32 %v422
      %v427 = vcvt.s32.f32 %v423
      %v428 = vcvt.s32.f32 %v424
      %v429 = vpack.c.bf16 %v426, %v425
      %v430 = vpack.c.bf16 %v428, %v427
      %v432 = vsel %vm195, %v429, 0
      %v435 = vsel %vm195, %v430, 0
      %437 = vmatpush.bf16.msra.mxu0 0
      %438 = vmatpush.bf16.msra.mxu0 0
      %439 = vmatpush.bf16.msra.mxu0 0
      %440 = vmatpush.bf16.msra.mxu0 0
      %441 = vmatpush.bf16.msra.mxu0 0
      %442 = vmatpush.bf16.msra.mxu0 0
      %443 = vmatpush.bf16.msra.mxu0 %v204
      %444 = vmatpush.bf16.msra.mxu0 %v192
      %445 = vmatmul.bf16.gmra.mxu0 %v432
      %v446 = vpop.f32.mrf.mxu0
      %v447 = vadd.f32 0.0, %v446
      %v448 = vpop.f32.mrf.mxu0
      %v449 = vadd.f32 0.0, %v448
      %450 = vmatmul.bf16.gmra.mxu0 %v435
      %v451 = vpop.f32.mrf.mxu0
      %v452 = vadd.f32 0.0, %v451
      %v453 = vpop.f32.mrf.mxu0
      %v454 = vadd.f32 0.0, %v453
      %455 = vdwg.mxu0
      %456 = vmatpush.bf16.msra.mxu0 0
      %457 = vmatpush.bf16.msra.mxu0 0
      %458 = vmatpush.bf16.msra.mxu0 0
      %459 = vmatpush.bf16.msra.mxu0 0
      %460 = vmatpush.bf16.msra.mxu0 0
      %461 = vmatpush.bf16.msra.mxu0 0
      %462 = vmatpush.bf16.msra.mxu0 %v264
      %463 = vmatpush.bf16.msra.mxu0 %v254
      %464 = vmatmul.bf16.gmra.mxu0 %v432
      %v465 = vpop.f32.mrf.mxu0
      %v466 = vadd.f32 0.0, %v465
      %v467 = vpop.f32.mrf.mxu0
      %v468 = vadd.f32 0.0, %v467
      %469 = vmatmul.bf16.gmra.mxu0 %v435
      %v470 = vpop.f32.mrf.mxu0
      %v471 = vadd.f32 0.0, %v470
      %v472 = vpop.f32.mrf.mxu0
      %v473 = vadd.f32 0.0, %v472
      %474 = vdwg.mxu0
      %475 = vmatpush.bf16.msra.mxu0 0
      %476 = vmatpush.bf16.msra.mxu0 0
      %477 = vmatpush.bf16.msra.mxu0 0
      %478 = vmatpush.bf16.msra.mxu0 0
      %479 = vmatpush.bf16.msra.mxu0 0
      %480 = vmatpush.bf16.msra.mxu0 0
      %481 = vmatpush.bf16.msra.mxu0 %v346
      %482 = vmatpush.bf16.msra.mxu0 %v336
      %483 = vmatmul.bf16.gmra.mxu0 %v432
      %v484 = vpop.f32.mrf.mxu0
      %v485 = vadd.f32 0.0, %v484
      %v486 = vpop.f32.mrf.mxu0
      %v487 = vadd.f32 0.0, %v486
      %488 = vmatmul.bf16.gmra.mxu0 %v435
      %v489 = vpop.f32.mrf.mxu0
      %v490 = vadd.f32 0.0, %v489
      %v491 = vpop.f32.mrf.mxu0
      %v492 = vadd.f32 0.0, %v491
      %493 = vdwg.mxu0
      %494 = vset.pattern.permute.xlu0 4
      %495 = vperm.xlu0 %494, %v148
      %v496 = vpop.permute.xlu0 %495
      %497 = vset.pattern.permute.xlu0 4
      %498 = vperm.xlu0 %497, %v149
      %v499 = vpop.permute.xlu0 %498
      %500 = vset.pattern.permute.xlu0 4
      %501 = vperm.xlu0 %500, %v150
      %v502 = vpop.permute.xlu0 %501
      %503 = vset.pattern.permute.xlu0 4
      %504 = vperm.xlu0 %503, %v151
      %v505 = vpop.permute.xlu0 %504
      %vm506 = vcmp.eq.s32.totalorder %v496, %v159
      %vm507 = vcmp.eq.s32.totalorder %v499, %v159
      %vm508 = vcmp.eq.s32.totalorder %v502, %v159
      %vm509 = vcmp.eq.s32.totalorder %v505, %v159
      %v510 = vsel %vm506, 1, 0
      %v511 = vsel %vm507, 1, 0
      %v512 = vsel %vm508, 1, 0
      %v513 = vsel %vm509, 1, 0
      %v514 = vcvt.s32.f32 %v510
      %v515 = vcvt.s32.f32 %v511
      %v516 = vcvt.s32.f32 %v512
      %v517 = vcvt.s32.f32 %v513
      %v518 = vpack.c.bf16 %v515, %v514
      %v519 = vpack.c.bf16 %v517, %v516
      %v521 = vsel %vm195, %v518, 0
      %v524 = vsel %vm195, %v519, 0
      %526 = vmatpush.bf16.msra.mxu0 0
      %527 = vmatpush.bf16.msra.mxu0 0
      %528 = vmatpush.bf16.msra.mxu0 0
      %529 = vmatpush.bf16.msra.mxu0 0
      %530 = vmatpush.bf16.msra.mxu0 0
      %531 = vmatpush.bf16.msra.mxu0 0
      %532 = vmatpush.bf16.msra.mxu0 %v204
      %533 = vmatpush.bf16.msra.mxu0 %v192
      %534 = vmatmul.bf16.gmra.mxu0 %v521
      %v535 = vpop.f32.mrf.mxu0
      %v536 = vadd.f32 0.0, %v535
      %v537 = vpop.f32.mrf.mxu0
      %v538 = vadd.f32 0.0, %v537
      %539 = vmatmul.bf16.gmra.mxu0 %v524
      %v540 = vpop.f32.mrf.mxu0
      %v541 = vadd.f32 0.0, %v540
      %v542 = vpop.f32.mrf.mxu0
      %v543 = vadd.f32 0.0, %v542
      %544 = vdwg.mxu0
      %545 = vmatpush.bf16.msra.mxu0 0
      %546 = vmatpush.bf16.msra.mxu0 0
      %547 = vmatpush.bf16.msra.mxu0 0
      %548 = vmatpush.bf16.msra.mxu0 0
      %549 = vmatpush.bf16.msra.mxu0 0
      %550 = vmatpush.bf16.msra.mxu0 0
      %551 = vmatpush.bf16.msra.mxu0 %v264
      %552 = vmatpush.bf16.msra.mxu0 %v254
      %553 = vmatmul.bf16.gmra.mxu0 %v521
      %v554 = vpop.f32.mrf.mxu0
      %v555 = vadd.f32 0.0, %v554
      %v556 = vpop.f32.mrf.mxu0
      %v557 = vadd.f32 0.0, %v556
      %558 = vmatmul.bf16.gmra.mxu0 %v524
      %v559 = vpop.f32.mrf.mxu0
      %v560 = vadd.f32 0.0, %v559
      %v561 = vpop.f32.mrf.mxu0
      %v562 = vadd.f32 0.0, %v561
      %563 = vdwg.mxu0
      %564 = vmatpush.bf16.msra.mxu0 0
      %565 = vmatpush.bf16.msra.mxu0 0
      %566 = vmatpush.bf16.msra.mxu0 0
      %567 = vmatpush.bf16.msra.mxu0 0
      %568 = vmatpush.bf16.msra.mxu0 0
      %569 = vmatpush.bf16.msra.mxu0 0
      %570 = vmatpush.bf16.msra.mxu0 %v346
      %571 = vmatpush.bf16.msra.mxu0 %v336
      %572 = vmatmul.bf16.gmra.mxu0 %v521
      %v573 = vpop.f32.mrf.mxu0
      %v574 = vadd.f32 0.0, %v573
      %v575 = vpop.f32.mrf.mxu0
      %v576 = vadd.f32 0.0, %v575
      %577 = vmatmul.bf16.gmra.mxu0 %v524
      %v578 = vpop.f32.mrf.mxu0
      %v579 = vadd.f32 0.0, %v578
      %v580 = vpop.f32.mrf.mxu0
      %v581 = vadd.f32 0.0, %v580
      %582 = vdwg.mxu0
      %583 = vset.pattern.permute.xlu0 5
      %584 = vperm.xlu0 %583, %v148
      %v585 = vpop.permute.xlu0 %584
      %586 = vset.pattern.permute.xlu0 5
      %587 = vperm.xlu0 %586, %v149
      %v588 = vpop.permute.xlu0 %587
      %589 = vset.pattern.permute.xlu0 5
      %590 = vperm.xlu0 %589, %v150
      %v591 = vpop.permute.xlu0 %590
      %592 = vset.pattern.permute.xlu0 5
      %593 = vperm.xlu0 %592, %v151
      %v594 = vpop.permute.xlu0 %593
      %vm595 = vcmp.eq.s32.totalorder %v585, %v159
      %vm596 = vcmp.eq.s32.totalorder %v588, %v159
      %vm597 = vcmp.eq.s32.totalorder %v591, %v159
      %vm598 = vcmp.eq.s32.totalorder %v594, %v159
      %v599 = vsel %vm595, 1, 0
      %v600 = vsel %vm596, 1, 0
      %v601 = vsel %vm597, 1, 0
      %v602 = vsel %vm598, 1, 0
      %v603 = vcvt.s32.f32 %v599
      %v604 = vcvt.s32.f32 %v600
      %v605 = vcvt.s32.f32 %v601
      %v606 = vcvt.s32.f32 %v602
      %v607 = vpack.c.bf16 %v604, %v603
      %v608 = vpack.c.bf16 %v606, %v605
      %v610 = vsel %vm195, %v607, 0
      %v613 = vsel %vm195, %v608, 0
      %615 = vmatpush.bf16.msra.mxu0 0
      %616 = vmatpush.bf16.msra.mxu0 0
      %617 = vmatpush.bf16.msra.mxu0 0
      %618 = vmatpush.bf16.msra.mxu0 0
      %619 = vmatpush.bf16.msra.mxu0 0
      %620 = vmatpush.bf16.msra.mxu0 0
      %621 = vmatpush.bf16.msra.mxu0 %v204
      %622 = vmatpush.bf16.msra.mxu0 %v192
      %623 = vmatmul.bf16.gmra.mxu0 %v610
      %v624 = vpop.f32.mrf.mxu0
      %v625 = vadd.f32 0.0, %v624
      %v626 = vpop.f32.mrf.mxu0
      %v627 = vadd.f32 0.0, %v626
      %628 = vmatmul.bf16.gmra.mxu0 %v613
      %v629 = vpop.f32.mrf.mxu0
      %v630 = vadd.f32 0.0, %v629
      %v631 = vpop.f32.mrf.mxu0
      %v632 = vadd.f32 0.0, %v631
      %633 = vdwg.mxu0
      %634 = vmatpush.bf16.msra.mxu0 0
      %635 = vmatpush.bf16.msra.mxu0 0
      %636 = vmatpush.bf16.msra.mxu0 0
      %637 = vmatpush.bf16.msra.mxu0 0
      %638 = vmatpush.bf16.msra.mxu0 0
      %639 = vmatpush.bf16.msra.mxu0 0
      %640 = vmatpush.bf16.msra.mxu0 %v264
      %641 = vmatpush.bf16.msra.mxu0 %v254
      %642 = vmatmul.bf16.gmra.mxu0 %v610
      %v643 = vpop.f32.mrf.mxu0
      %v644 = vadd.f32 0.0, %v643
      %v645 = vpop.f32.mrf.mxu0
      %v646 = vadd.f32 0.0, %v645
      %647 = vmatmul.bf16.gmra.mxu0 %v613
      %v648 = vpop.f32.mrf.mxu0
      %v649 = vadd.f32 0.0, %v648
      %v650 = vpop.f32.mrf.mxu0
      %v651 = vadd.f32 0.0, %v650
      %652 = vdwg.mxu0
      %653 = vmatpush.bf16.msra.mxu0 0
      %654 = vmatpush.bf16.msra.mxu0 0
      %655 = vmatpush.bf16.msra.mxu0 0
      %656 = vmatpush.bf16.msra.mxu0 0
      %657 = vmatpush.bf16.msra.mxu0 0
      %658 = vmatpush.bf16.msra.mxu0 0
      %659 = vmatpush.bf16.msra.mxu0 %v346
      %660 = vmatpush.bf16.msra.mxu0 %v336
      %661 = vmatmul.bf16.gmra.mxu0 %v610
      %v662 = vpop.f32.mrf.mxu0
      %v663 = vadd.f32 0.0, %v662
      %v664 = vpop.f32.mrf.mxu0
      %v665 = vadd.f32 0.0, %v664
      %666 = vmatmul.bf16.gmra.mxu0 %v613
      %v667 = vpop.f32.mrf.mxu0
      %v668 = vadd.f32 0.0, %v667
      %v669 = vpop.f32.mrf.mxu0
      %v670 = vadd.f32 0.0, %v669
      %671 = vdwg.mxu0
      %672 = vset.pattern.permute.xlu0 6
      %673 = vperm.xlu0 %672, %v148
      %v674 = vpop.permute.xlu0 %673
      %675 = vset.pattern.permute.xlu0 6
      %676 = vperm.xlu0 %675, %v149
      %v677 = vpop.permute.xlu0 %676
      %678 = vset.pattern.permute.xlu0 6
      %679 = vperm.xlu0 %678, %v150
      %v680 = vpop.permute.xlu0 %679
      %681 = vset.pattern.permute.xlu0 6
      %682 = vperm.xlu0 %681, %v151
      %v683 = vpop.permute.xlu0 %682
      %vm684 = vcmp.eq.s32.totalorder %v674, %v159
      %vm685 = vcmp.eq.s32.totalorder %v677, %v159
      %vm686 = vcmp.eq.s32.totalorder %v680, %v159
      %vm687 = vcmp.eq.s32.totalorder %v683, %v159
      %v688 = vsel %vm684, 1, 0
      %v689 = vsel %vm685, 1, 0
      %v690 = vsel %vm686, 1, 0
      %v691 = vsel %vm687, 1, 0
      %v692 = vcvt.s32.f32 %v688
      %v693 = vcvt.s32.f32 %v689
      %v694 = vcvt.s32.f32 %v690
      %v695 = vcvt.s32.f32 %v691
      %v696 = vpack.c.bf16 %v693, %v692
      %v697 = vpack.c.bf16 %v695, %v694
      %v699 = vsel %vm195, %v696, 0
      %v702 = vsel %vm195, %v697, 0
      %704 = vmatpush.bf16.msra.mxu0 0
      %705 = vmatpush.bf16.msra.mxu0 0
      %706 = vmatpush.bf16.msra.mxu0 0
      %707 = vmatpush.bf16.msra.mxu0 0
      %708 = vmatpush.bf16.msra.mxu0 0
      %709 = vmatpush.bf16.msra.mxu0 0
      %710 = vmatpush.bf16.msra.mxu0 %v264
      %711 = vmatpush.bf16.msra.mxu0 %v254
      %712 = vmatmul.bf16.gmra.mxu0 %v699
      %v713 = vpop.f32.mrf.mxu0
      %v714 = vadd.f32 0.0, %v713
      %v715 = vpop.f32.mrf.mxu0
      %v716 = vadd.f32 0.0, %v715
      %717 = vmatmul.bf16.gmra.mxu0 %v702
      %v718 = vpop.f32.mrf.mxu0
      %v719 = vadd.f32 0.0, %v718
      %v720 = vpop.f32.mrf.mxu0
      %v721 = vadd.f32 0.0, %v720
      %722 = vdwg.mxu0
      %723 = vmatpush.bf16.msra.mxu0 0
      %724 = vmatpush.bf16.msra.mxu0 0
      %725 = vmatpush.bf16.msra.mxu0 0
      %726 = vmatpush.bf16.msra.mxu0 0
      %727 = vmatpush.bf16.msra.mxu0 0
      %728 = vmatpush.bf16.msra.mxu0 0
      %729 = vmatpush.bf16.msra.mxu0 %v346
      %730 = vmatpush.bf16.msra.mxu0 %v336
      %731 = vmatmul.bf16.gmra.mxu0 %v699
      %v732 = vpop.f32.mrf.mxu0
      %v733 = vadd.f32 0.0, %v732
      %v734 = vpop.f32.mrf.mxu0
      %v735 = vadd.f32 0.0, %v734
      %736 = vmatmul.bf16.gmra.mxu0 %v702
      %v737 = vpop.f32.mrf.mxu0
      %v738 = vadd.f32 0.0, %v737
      %v739 = vpop.f32.mrf.mxu0
      %v740 = vadd.f32 0.0, %v739
      %741 = vdwg.mxu0
      %742 = vset.pattern.permute.xlu0 7
      %743 = vperm.xlu0 %742, %v148
      %v744 = vpop.permute.xlu0 %743
      %745 = vset.pattern.permute.xlu0 7
      %746 = vperm.xlu0 %745, %v149
      %v747 = vpop.permute.xlu0 %746
      %748 = vset.pattern.permute.xlu0 7
      %749 = vperm.xlu0 %748, %v150
      %v750 = vpop.permute.xlu0 %749
      %751 = vset.pattern.permute.xlu0 7
      %752 = vperm.xlu0 %751, %v151
      %v753 = vpop.permute.xlu0 %752
      %vm754 = vcmp.eq.s32.totalorder %v744, %v159
      %vm755 = vcmp.eq.s32.totalorder %v747, %v159
      %vm756 = vcmp.eq.s32.totalorder %v750, %v159
      %vm757 = vcmp.eq.s32.totalorder %v753, %v159
      %v758 = vsel %vm754, 1, 0
      %v759 = vsel %vm755, 1, 0
      %v760 = vsel %vm756, 1, 0
      %v761 = vsel %vm757, 1, 0
      %v762 = vcvt.s32.f32 %v758
      %v763 = vcvt.s32.f32 %v759
      %v764 = vcvt.s32.f32 %v760
      %v765 = vcvt.s32.f32 %v761
      %v766 = vpack.c.bf16 %v763, %v762
      %v767 = vpack.c.bf16 %v765, %v764
      %v769 = vsel %vm195, %v766, 0
      %v772 = vsel %vm195, %v767, 0
      %774 = vmatpush.bf16.msra.mxu0 0
      %775 = vmatpush.bf16.msra.mxu0 0
      %776 = vmatpush.bf16.msra.mxu0 0
      %777 = vmatpush.bf16.msra.mxu0 0
      %778 = vmatpush.bf16.msra.mxu0 0
      %779 = vmatpush.bf16.msra.mxu0 0
      %780 = vmatpush.bf16.msra.mxu0 %v346
      %781 = vmatpush.bf16.msra.mxu0 %v336
      %782 = vmatmul.bf16.gmra.mxu0 %v769
      %v783 = vpop.f32.mrf.mxu0
      %v784 = vadd.f32 0.0, %v783
      %v785 = vpop.f32.mrf.mxu0
      %v786 = vadd.f32 0.0, %v785
      %787 = vmatmul.bf16.gmra.mxu0 %v772
      %v788 = vpop.f32.mrf.mxu0
      %v789 = vadd.f32 0.0, %v788
      %v790 = vpop.f32.mrf.mxu0
      %v791 = vadd.f32 0.0, %v790
      %792 = vdwg.mxu0
      %v793 = vadd.f32 %v216, %v295
      %v794 = vadd.f32 %v218, %v297
      %v795 = vadd.f32 %v221, %v300
      %v796 = vadd.f32 %v223, %v302
      %v797 = vadd.f32 %v793, %v396
      %v798 = vadd.f32 %v794, %v398
      %v799 = vadd.f32 %v795, %v401
      %v800 = vadd.f32 %v796, %v403
      %v801 = vmax.f32 %v797, 0.0
      %v802 = vmax.f32 %v798, 0.0
      %v803 = vmax.f32 %v799, 0.0
      %v804 = vmax.f32 %v800, 0.0
      %v805 = vadd.f32 %v276, %v377
      %v806 = vadd.f32 %v278, %v379
      %v807 = vadd.f32 %v281, %v382
      %v808 = vadd.f32 %v283, %v384
      %v809 = vadd.f32 %v805, %v485
      %v810 = vadd.f32 %v806, %v487
      %v811 = vadd.f32 %v807, %v490
      %v812 = vadd.f32 %v808, %v492
      %v813 = vmax.f32 %v809, 0.0
      %v814 = vmax.f32 %v810, 0.0
      %v815 = vmax.f32 %v811, 0.0
      %v816 = vmax.f32 %v812, 0.0
      %v817 = vmax.f32 %v801, %v813
      %v818 = vmax.f32 %v802, %v814
      %v819 = vmax.f32 %v803, %v815
      %v820 = vmax.f32 %v804, %v816
      %v821 = vadd.f32 %v358, %v466
      %v822 = vadd.f32 %v360, %v468
      %v823 = vadd.f32 %v363, %v471
      %v824 = vadd.f32 %v365, %v473
      %v825 = vadd.f32 %v821, %v574
      %v826 = vadd.f32 %v822, %v576
      %v827 = vadd.f32 %v823, %v579
      %v828 = vadd.f32 %v824, %v581
      %v829 = vmax.f32 %v825, 0.0
      %v830 = vmax.f32 %v826, 0.0
      %v831 = vmax.f32 %v827, 0.0
      %v832 = vmax.f32 %v828, 0.0
      %v833 = vmax.f32 %v817, %v829
      %v834 = vmax.f32 %v818, %v830
      %v835 = vmax.f32 %v819, %v831
      %v836 = vmax.f32 %v820, %v832
      %v837 = vadd.f32 %v447, %v555
      %v838 = vadd.f32 %v449, %v557
      %v839 = vadd.f32 %v452, %v560
      %v840 = vadd.f32 %v454, %v562
      %v841 = vadd.f32 %v837, %v663
      %v842 = vadd.f32 %v838, %v665
      %v843 = vadd.f32 %v839, %v668
      %v844 = vadd.f32 %v840, %v670
      %v845 = vmax.f32 %v841, 0.0
      %v846 = vmax.f32 %v842, 0.0
      %v847 = vmax.f32 %v843, 0.0
      %v848 = vmax.f32 %v844, 0.0
      %v849 = vmax.f32 %v833, %v845
      %v850 = vmax.f32 %v834, %v846
      %v851 = vmax.f32 %v835, %v847
      %v852 = vmax.f32 %v836, %v848
      %v853 = vadd.f32 %v536, %v644
      %v854 = vadd.f32 %v538, %v646
      %v855 = vadd.f32 %v541, %v649
      %v856 = vadd.f32 %v543, %v651
      %v857 = vadd.f32 %v853, %v733
      %v858 = vadd.f32 %v854, %v735
      %v859 = vadd.f32 %v855, %v738
      %v860 = vadd.f32 %v856, %v740
      %v861 = vmax.f32 %v857, 0.0
      %v862 = vmax.f32 %v858, 0.0
      %v863 = vmax.f32 %v859, 0.0
      %v864 = vmax.f32 %v860, 0.0
      %v865 = vmax.f32 %v849, %v861
      %v866 = vmax.f32 %v850, %v862
      %v867 = vmax.f32 %v851, %v863
      %v868 = vmax.f32 %v852, %v864
      %v869 = vadd.f32 %v625, %v714
      %v870 = vadd.f32 %v627, %v716
      %v871 = vadd.f32 %v630, %v719
      %v872 = vadd.f32 %v632, %v721
      %v873 = vadd.f32 %v869, %v784
      %v874 = vadd.f32 %v870, %v786
      %v875 = vadd.f32 %v871, %v789
      %v876 = vadd.f32 %v872, %v791
      %v877 = vmax.f32 %v873, 0.0
      %v878 = vmax.f32 %v874, 0.0
      %v879 = vmax.f32 %v875, 0.0
      %v880 = vmax.f32 %v876, 0.0
      %v881 = vmax.f32 %v865, %v877
      %v882 = vmax.f32 %v866, %v878
      %v883 = vmax.f32 %v867, %v879
      %v884 = vmax.f32 %v868, %v880
      %885 = vst [vmem:[%s145] sm:$0xff] %v881
      %886 = vst [vmem:[%s145 + $0x8] sm:$0xff] %v882
      %887 = vst [vmem:[%s145 + $0x10] sm:$0xff] %v883
      %888 = vst [vmem:[%s145 + $0x18] sm:$0xff] %v884
      %s889 = smul.u32 4, %s13
      %p890 = scmp.lt.s32.totalorder %s889, 7
      %s891 = scalar_select %p890, %s889, 7
      %s892 = smul.addr %s891, 8
      %s893 = scalar_lea.vmem %s2, %s892
      // Predicated region
      $region29: #{trm_cell_embedder_forward.3} parent=27 // pred_check
        %p894 = pneg %p78
      $region30: #{trm_cell_embedder_forward.3} parent=27 // pred_check_branch
        %896 = sbr.rel (%p894) target = $region32
      $region31: #{trm_cell_embedder_forward.3} parent=27 // pred_region
        %s897 = smul.u32 4, %s13
      $region32: #{trm_cell_embedder_forward.3} parent=27 // pred_fallthru
        _
    $region28: #{trm_cell_embedder_forward.3} parent=5 // pred_fallthru
      _
    %p898 = scmp.le.s32.totalorder 2, %s8
    // Predicated region
    $region33: #{trm_cell_embedder_forward.3} parent=5 // pred_check
      %p899 = pneg %p898
    $region34: #{trm_cell_embedder_forward.3} parent=5 // pred_check_branch
      %901 = sbr.rel (%p899) target = $region36
    $region35: #{trm_cell_embedder_forward.3} parent=5 // pred_region
      %s902 = ssub.s32 %s8, 2
      // Predicated region
      $region37: #{trm_cell_embedder_forward.3} parent=35 // pred_check
        %p903 = pneg %p84
      $region38: #{trm_cell_embedder_forward.3} parent=35 // pred_check_branch
        %905 = sbr.rel (%p903) target = $region40
      $region39: #{trm_cell_embedder_forward.3} parent=35 // pred_region
        %s906 = smul.u32 4, %s14
        %p907 = scmp.lt.s32.totalorder %s906, 7
        %s908 = scalar_select %p907, %s906, 7
        %s909 = smul.addr %s908, 8
        %s910 = scalar_lea.vmem %s2, %s909
      $region40: #{trm_cell_embedder_forward.3} parent=35 // pred_fallthru
        _
    $region36: #{trm_cell_embedder_forward.3} parent=5 // pred_fallthru
      _
  $region6: #{trm_cell_embedder_forward.3} parent=0 // loop_footer
    %s12 = sadd.s32 1, %s8
  $region7: #{trm_cell_embedder_forward.3} parent=0 // loop_footer_branch
    %7 = sbr.rel target = $region3
  $region8: #{trm_cell_embedder_forward.3} parent=0 // loop_exit
    _

// kernel: trm_cell_embedder_forward.4
$region0: #{trm_cell_embedder_forward.4}
  #allocation0 [shape = 'u32[]', space=smem, size = 0x4, offset = 0x4, fixed_abs, tag = 'smem constant byte address 0x4 - core index']
  #allocation1 [shape = 'u32[72,128]{1,0:T(1,128)}', space=vmem, size = 0x9000, scoped, tag = 'internal scratch']
  #allocation2 [shape = 'f32[8,8,512]{2,1,0:T(8,128)}', space=vmem, size = 0x20000, scoped, tag = 'scratch operand']
  %s0 = inlined_call_operand.vmem [shape: f32[8,8,50], index: 0, kind: input, shape index: {}]
  %s1 = inlined_call_operand.vmem [shape: f32[8,8,128], index: 1, kind: input, shape index: {}]
  %s2 = inlined_call_operand.vmem [shape: f32[50,512], index: 2, kind: input, shape index: {}]
  %s3 = inlined_call_operand.vmem [shape: f32[128,512], index: 3, kind: input, shape index: {}]
  %s4 = inlined_call_operand.vmem [shape: f32[50,512], index: 4, kind: input, shape index: {}]
  %s5 = inlined_call_operand.vmem [shape: f32[128,512], index: 5, kind: input, shape index: {}]
  %s6 = inlined_call_operand.vmem [shape: f32[128,512], index: 6, kind: input, shape index: {}]
  %s7 = inlined_call_operand.vmem [shape: f32[1,512], index: 7, kind: input, shape index: {}]
  %s8 = inlined_call_operand.vmem [shape: f32[8,128], index: 8, kind: output, shape index: {}]
  %s9 = sld [smem:[#allocation0]]
  $region42: #{trm_cell_embedder_forward.4} parent=0
    _
  %s11 = ssub.s32 1, %s9
  %s12 = scalar_select 0, %s11, %s9
  // Predicated region
  $region2: #{trm_cell_embedder_forward.4} parent=0 // pred_check
    _
  $region3: #{trm_cell_embedder_forward.4} parent=0 // pred_check_branch
    %14 = sbr.rel (0) target = $region5
  $region4: #{trm_cell_embedder_forward.4} parent=0 // pred_region
    _
  $region5: #{trm_cell_embedder_forward.4} parent=0 // pred_fallthru
    _
  // Predicated region
  $region6: #{trm_cell_embedder_forward.4} parent=0 // pred_check
    _
  $region7: #{trm_cell_embedder_forward.4} parent=0 // pred_check_branch
    %16 = sbr.rel (0) target = $region9
  $region8: #{trm_cell_embedder_forward.4} parent=0 // pred_region
    _
  $region9: #{trm_cell_embedder_forward.4} parent=0 // pred_fallthru
    _
  // Predicated region
  $region10: #{trm_cell_embedder_forward.4} parent=0 // pred_check
    _
  $region11: #{trm_cell_embedder_forward.4} parent=0 // pred_check_branch
    %18 = sbr.rel (0) target = $region13
  $region12: #{trm_cell_embedder_forward.4} parent=0 // pred_region
    _
  $region13: #{trm_cell_embedder_forward.4} parent=0 // pred_fallthru
    _
  // Predicated region
  $region14: #{trm_cell_embedder_forward.4} parent=0 // pred_check
    _
  $region15: #{trm_cell_embedder_forward.4} parent=0 // pred_check_branch
    %20 = sbr.rel (0) target = $region17
  $region16: #{trm_cell_embedder_forward.4} parent=0 // pred_region
    _
  $region17: #{trm_cell_embedder_forward.4} parent=0 // pred_fallthru
    _
  // Predicated region
  $region18: #{trm_cell_embedder_forward.4} parent=0 // pred_check
    _
  $region19: #{trm_cell_embedder_forward.4} parent=0 // pred_check_branch
    %22 = sbr.rel (0) target = $region21
  $region20: #{trm_cell_embedder_forward.4} parent=0 // pred_region
    _
  $region21: #{trm_cell_embedder_forward.4} parent=0 // pred_fallthru
    _
  // Predicated region
  $region22: #{trm_cell_embedder_forward.4} parent=0 // pred_check
    _
  $region23: #{trm_cell_embedder_forward.4} parent=0 // pred_check_branch
    %24 = sbr.rel (0) target = $region25
  $region24: #{trm_cell_embedder_forward.4} parent=0 // pred_region
    _
  $region25: #{trm_cell_embedder_forward.4} parent=0 // pred_fallthru
    _
  // Predicated region
  $region26: #{trm_cell_embedder_forward.4} parent=0 // pred_check
    _
  $region27: #{trm_cell_embedder_forward.4} parent=0 // pred_check_branch
    %26 = sbr.rel (0) target = $region29
  $region28: #{trm_cell_embedder_forward.4} parent=0 // pred_region
    _
  $region29: #{trm_cell_embedder_forward.4} parent=0 // pred_fallthru
    _
  // Predicated region
  $region30: #{trm_cell_embedder_forward.4} parent=0 // pred_check
    _
  $region31: #{trm_cell_embedder_forward.4} parent=0 // pred_check_branch
    %28 = sbr.rel (0) target = $region33
  $region32: #{trm_cell_embedder_forward.4} parent=0 // pred_region
    _
  $region33: #{trm_cell_embedder_forward.4} parent=0 // pred_fallthru
    _
  %v29 = vld [vmem:[%s7] sm:$0xf]
  %v31 = vperm.slane %v29, 0
  %v32 = vperm.slane %v29, 1
  %v33 = vperm.slane %v29, 2
  %v34 = vperm.slane %v29, 3
  %v39 = vld [vmem:[%s0] sm:$0xff]
  %v40 = vld [vmem:[%s2] sm:$0xff]
  %v41 = vld [vmem:[%s2 + $0x8] sm:$0xff]
  %v42 = vld [vmem:[%s2 + $0x10] sm:$0xff]
  %v43 = vld [vmem:[%s2 + $0x18] sm:$0xff]
  %v44 = vld [vmem:[%s2 + $0x20] sm:$0xff]
  %v45 = vld [vmem:[%s2 + $0x28] sm:$0xff]
  %v46 = vld [vmem:[%s2 + $0x30] sm:$0xff]
  %v47 = vld [vmem:[%s2 + $0x38] sm:$0xff]
  %v48 = vld [vmem:[%s2 + $0x40] sm:$0xff]
  %v49 = vld [vmem:[%s2 + $0x48] sm:$0xff]
  %v50 = vld [vmem:[%s2 + $0x50] sm:$0xff]
  %v51 = vld [vmem:[%s2 + $0x58] sm:$0xff]
  %v52 = vld [vmem:[%s2 + $0x60] sm:$0xff]
  %v53 = vld [vmem:[%s2 + $0x68] sm:$0xff]
  %v54 = vld [vmem:[%s2 + $0x70] sm:$0xff]
  %v55 = vld [vmem:[%s2 + $0x78] sm:$0xff]
  %v56 = vld [vmem:[%s2 + $0x80] sm:$0xff]
  %v57 = vld [vmem:[%s2 + $0x88] sm:$0xff]
  %v58 = vld [vmem:[%s2 + $0x90] sm:$0xff]
  %v59 = vld [vmem:[%s2 + $0x98] sm:$0xff]
  %v60 = vld [vmem:[%s2 + $0xa0] sm:$0xff]
  %v61 = vld [vmem:[%s2 + $0xa8] sm:$0xff]
  %v62 = vld [vmem:[%s2 + $0xb0] sm:$0xff]
  %v63 = vld [vmem:[%s2 + $0xb8] sm:$0xff]
  %v64 = vld [vmem:[%s2 + $0xc0] sm:$0x3]
  %v65 = vld [vmem:[%s2 + $0xc8] sm:$0x3]
  %v66 = vld [vmem:[%s2 + $0xd0] sm:$0x3]
  %v67 = vld [vmem:[%s2 + $0xd8] sm:$0x3]
  %v68 = vld [vmem:[%s1] sm:$0xff]
  %v69 = vld [vmem:[%s3] sm:$0xff]
  %v70 = vld [vmem:[%s3 + $0x8] sm:$0xff]
  %v71 = vld [vmem:[%s3 + $0x10] sm:$0xff]
  %v72 = vld [vmem:[%s3 + $0x18] sm:$0xff]
  %v73 = vld [vmem:[%s3 + $0x20] sm:$0xff]
  %v74 = vld [vmem:[%s3 + $0x28] sm:$0xff]
  %v75 = vld [vmem:[%s3 + $0x30] sm:$0xff]
  %v76 = vld [vmem:[%s3 + $0x38] sm:$0xff]
  %v77 = vld [vmem:[%s3 + $0x40] sm:$0xff]
  %v78 = vld [vmem:[%s3 + $0x48] sm:$0xff]
  %v79 = vld [vmem:[%s3 + $0x50] sm:$0xff]
  %v80 = vld [vmem:[%s3 + $0x58] sm:$0xff]
  %v81 = vld [vmem:[%s3 + $0x60] sm:$0xff]
  %v82 = vld [vmem:[%s3 + $0x68] sm:$0xff]
  %v83 = vld [vmem:[%s3 + $0x70] sm:$0xff]
  %v84 = vld [vmem:[%s3 + $0x78] sm:$0xff]
  %v85 = vld [vmem:[%s3 + $0x80] sm:$0xff]
  %v86 = vld [vmem:[%s3 + $0x88] sm:$0xff]
  %v87 = vld [vmem:[%s3 + $0x90] sm:$0xff]
  %v88 = vld [vmem:[%s3 + $0x98] sm:$0xff]
  %v89 = vld [vmem:[%s3 + $0xa0] sm:$0xff]
  %v90 = vld [vmem:[%s3 + $0xa8] sm:$0xff]
  %v91 = vld [vmem:[%s3 + $0xb0] sm:$0xff]
  %v92 = vld [vmem:[%s3 + $0xb8] sm:$0xff]
  %v93 = vld [vmem:[%s3 + $0xc0] sm:$0xff]
  %v94 = vld [vmem:[%s3 + $0xc8] sm:$0xff]
  %v95 = vld [vmem:[%s3 + $0xd0] sm:$0xff]
  %v96 = vld [vmem:[%s3 + $0xd8] sm:$0xff]
  %v97 = vld [vmem:[%s3 + $0xe0] sm:$0xff]
  %v98 = vld [vmem:[%s3 + $0xe8] sm:$0xff]
  %v99 = vld [vmem:[%s3 + $0xf0] sm:$0xff]
  %v100 = vld [vmem:[%s3 + $0xf8] sm:$0xff]
  %v101 = vld [vmem:[%s3 + $0x100] sm:$0xff]
  %v102 = vld [vmem:[%s3 + $0x108] sm:$0xff]
  %v103 = vld [vmem:[%s3 + $0x110] sm:$0xff]
  %v104 = vld [vmem:[%s3 + $0x118] sm:$0xff]
  %v105 = vld [vmem:[%s3 + $0x120] sm:$0xff]
  %v106 = vld [vmem:[%s3 + $0x128] sm:$0xff]
  %v107 = vld [vmem:[%s3 + $0x130] sm:$0xff]
  %v108 = vld [vmem:[%s3 + $0x138] sm:$0xff]
  %v109 = vld [vmem:[%s3 + $0x140] sm:$0xff]
  %v110 = vld [vmem:[%s3 + $0x148] sm:$0xff]
  %v111 = vld [vmem:[%s3 + $0x150] sm:$0xff]
  %v112 = vld [vmem:[%s3 + $0x158] sm:$0xff]
  %v113 = vld [vmem:[%s3 + $0x160] sm:$0xff]
  %v114 = vld [vmem:[%s3 + $0x168] sm:$0xff]
  %v115 = vld [vmem:[%s3 + $0x170] sm:$0xff]
  %v116 = vld [vmem:[%s3 + $0x178] sm:$0xff]
  %v117 = vld [vmem:[%s3 + $0x180] sm:$0xff]
  %v118 = vld [vmem:[%s3 + $0x188] sm:$0xff]
  %v119 = vld [vmem:[%s3 + $0x190] sm:$0xff]
  %v120 = vld [vmem:[%s3 + $0x198] sm:$0xff]
  %v121 = vld [vmem:[%s3 + $0x1a0] sm:$0xff]
  %v122 = vld [vmem:[%s3 + $0x1a8] sm:$0xff]
  %v123 = vld [vmem:[%s3 + $0x1b0] sm:$0xff]
  %v124 = vld [vmem:[%s3 + $0x1b8] sm:$0xff]
  %v125 = vld [vmem:[%s3 + $0x1c0] sm:$0xff]
  %v126 = vld [vmem:[%s3 + $0x1c8] sm:$0xff]
  %v127 = vld [vmem:[%s3 + $0x1d0] sm:$0xff]
  %v128 = vld [vmem:[%s3 + $0x1d8] sm:$0xff]
  %v129 = vld [vmem:[%s3 + $0x1e0] sm:$0xff]
  %v130 = vld [vmem:[%s3 + $0x1e8] sm:$0xff]
  %v131 = vld [vmem:[%s3 + $0x1f0] sm:$0xff]
  %v132 = vld [vmem:[%s3 + $0x1f8] sm:$0xff]
  %133 = vmatpush.msra.mxu0 %v129
  %134 = vmatpush.msra.mxu0 %v125
  %135 = vmatpush.msra.mxu0 %v121
  %136 = vmatpush.msra.mxu0 %v117
  %137 = vmatpush.msra.mxu0 %v113
  %138 = vmatpush.msra.mxu0 %v109
  %139 = vmatpush.msra.mxu0 %v105
  %140 = vmatpush.msra.mxu0 %v101
  %141 = vmatpush.msra.mxu0 %v97
  %142 = vmatpush.msra.mxu0 %v93
  %143 = vmatpush.msra.mxu0 %v89
  %144 = vmatpush.msra.mxu0 %v85
  %145 = vmatpush.msra.mxu0 %v81
  %146 = vmatpush.msra.mxu0 %v77
  %147 = vmatpush.msra.mxu0 %v73
  %148 = vmatpush.msra.mxu0 %v69
  %149 = vmatmul.f32.gmra.mxu0 %v68
  %v150 = vpop.f32.mrf.mxu0
  %v151 = vadd.f32 0.0, %v150
  %152 = vdwg.mxu0
  %153 = vmatpush.msra.mxu0 %v130
  %154 = vmatpush.msra.mxu0 %v126
  %155 = vmatpush.msra.mxu0 %v122
  %156 = vmatpush.msra.mxu0 %v118
  %157 = vmatpush.msra.mxu0 %v114
  %158 = vmatpush.msra.mxu0 %v110
  %159 = vmatpush.msra.mxu0 %v106
  %160 = vmatpush.msra.mxu0 %v102
  %161 = vmatpush.msra.mxu0 %v98
  %162 = vmatpush.msra.mxu0 %v94
  %163 = vmatpush.msra.mxu0 %v90
  %164 = vmatpush.msra.mxu0 %v86
  %165 = vmatpush.msra.mxu0 %v82
  %166 = vmatpush.msra.mxu0 %v78
  %167 = vmatpush.msra.mxu0 %v74
  %168 = vmatpush.msra.mxu0 %v70
  %169 = vmatmul.f32.gmra.mxu0 %v68
  %v170 = vpop.f32.mrf.mxu0
  %v171 = vadd.f32 0.0, %v170
  %172 = vdwg.mxu0
  %173 = vmatpush.msra.mxu0 %v131
  %174 = vmatpush.msra.mxu0 %v127
  %175 = vmatpush.msra.mxu0 %v123
  %176 = vmatpush.msra.mxu0 %v119
  %177 = vmatpush.msra.mxu0 %v115
  %178 = vmatpush.msra.mxu0 %v111
  %179 = vmatpush.msra.mxu0 %v107
  %180 = vmatpush.msra.mxu0 %v103
  %181 = vmatpush.msra.mxu0 %v99
  %182 = vmatpush.msra.mxu0 %v95
  %183 = vmatpush.msra.mxu0 %v91
  %184 = vmatpush.msra.mxu0 %v87
  %185 = vmatpush.msra.mxu0 %v83
  %186 = vmatpush.msra.mxu0 %v79
  %187 = vmatpush.msra.mxu0 %v75
  %188 = vmatpush.msra.mxu0 %v71
  %189 = vmatmul.f32.gmra.mxu0 %v68
  %v190 = vpop.f32.mrf.mxu0
  %v191 = vadd.f32 0.0, %v190
  %192 = vdwg.mxu0
  %193 = vmatpush.msra.mxu0 %v132
  %194 = vmatpush.msra.mxu0 %v128
  %195 = vmatpush.msra.mxu0 %v124
  %196 = vmatpush.msra.mxu0 %v120
  %197 = vmatpush.msra.mxu0 %v116
  %198 = vmatpush.msra.mxu0 %v112
  %199 = vmatpush.msra.mxu0 %v108
  %200 = vmatpush.msra.mxu0 %v104
  %201 = vmatpush.msra.mxu0 %v100
  %202 = vmatpush.msra.mxu0 %v96
  %203 = vmatpush.msra.mxu0 %v92
  %204 = vmatpush.msra.mxu0 %v88
  %205 = vmatpush.msra.mxu0 %v84
  %206 = vmatpush.msra.mxu0 %v80
  %207 = vmatpush.msra.mxu0 %v76
  %208 = vmatpush.msra.mxu0 %v72
  %209 = vmatmul.f32.gmra.mxu0 %v68
  %v210 = vpop.f32.mrf.mxu0
  %v211 = vadd.f32 0.0, %v210
  %212 = vdwg.mxu0
  %vm213 = vcmask 408576
  %v215 = vsel %vm213, %v39, 0
  %vm217 = vcmask 1041408
  %v219 = vsel %vm217, %v64, 0
  %v222 = vsel %vm217, %v65, 0
  %v225 = vsel %vm217, %v66, 0
  %v228 = vsel %vm217, %v67, 0
  %230 = vmatpush.msra.mxu0 0.0
  %231 = vmatpush.msra.mxu0 0.0
  %232 = vmatpush.msra.mxu0 0.0
  %233 = vmatpush.msra.mxu0 0.0
  %234 = vmatpush.msra.mxu0 0.0
  %235 = vmatpush.msra.mxu0 0.0
  %236 = vmatpush.msra.mxu0 0.0
  %237 = vmatpush.msra.mxu0 0.0
  %238 = vmatpush.msra.mxu0 0.0
  %239 = vmatpush.msra.mxu0 %v219
  %240 = vmatpush.msra.mxu0 %v60
  %241 = vmatpush.msra.mxu0 %v56
  %242 = vmatpush.msra.mxu0 %v52
  %243 = vmatpush.msra.mxu0 %v48
  %244 = vmatpush.msra.mxu0 %v44
  %245 = vmatpush.msra.mxu0 %v40
  %246 = vmatmul.f32.gmra.mxu0 %v215
  %v247 = vpop.f32.mrf.mxu0
  %v248 = vadd.f32 %v151, %v247
  %249 = vdwg.mxu0
  %250 = vmatpush.msra.mxu0 0.0
  %251 = vmatpush.msra.mxu0 0.0
  %252 = vmatpush.msra.mxu0 0.0
  %253 = vmatpush.msra.mxu0 0.0
  %254 = vmatpush.msra.mxu0 0.0
  %255 = vmatpush.msra.mxu0 0.0
  %256 = vmatpush.msra.mxu0 0.0
  %257 = vmatpush.msra.mxu0 0.0
  %258 = vmatpush.msra.mxu0 0.0
  %259 = vmatpush.msra.mxu0 %v222
  %260 = vmatpush.msra.mxu0 %v61
  %261 = vmatpush.msra.mxu0 %v57
  %262 = vmatpush.msra.mxu0 %v53
  %263 = vmatpush.msra.mxu0 %v49
  %264 = vmatpush.msra.mxu0 %v45
  %265 = vmatpush.msra.mxu0 %v41
  %266 = vmatmul.f32.gmra.mxu0 %v215
  %v267 = vpop.f32.mrf.mxu0
  %v268 = vadd.f32 %v171, %v267
  %269 = vdwg.mxu0
  %270 = vmatpush.msra.mxu0 0.0
  %271 = vmatpush.msra.mxu0 0.0
  %272 = vmatpush.msra.mxu0 0.0
  %273 = vmatpush.msra.mxu0 0.0
  %274 = vmatpush.msra.mxu0 0.0
  %275 = vmatpush.msra.mxu0 0.0
  %276 = vmatpush.msra.mxu0 0.0
  %277 = vmatpush.msra.mxu0 0.0
  %278 = vmatpush.msra.mxu0 0.0
  %279 = vmatpush.msra.mxu0 %v225
  %280 = vmatpush.msra.mxu0 %v62
  %281 = vmatpush.msra.mxu0 %v58
  %282 = vmatpush.msra.mxu0 %v54
  %283 = vmatpush.msra.mxu0 %v50
  %284 = vmatpush.msra.mxu0 %v46
  %285 = vmatpush.msra.mxu0 %v42
  %286 = vmatmul.f32.gmra.mxu0 %v215
  %v287 = vpop.f32.mrf.mxu0
  %v288 = vadd.f32 %v191, %v287
  %289 = vdwg.mxu0
  %290 = vmatpush.msra.mxu0 0.0
  %291 = vmatpush.msra.mxu0 0.0
  %292 = vmatpush.msra.mxu0 0.0
  %293 = vmatpush.msra.mxu0 0.0
  %294 = vmatpush.msra.mxu0 0.0
  %295 = vmatpush.msra.mxu0 0.0
  %296 = vmatpush.msra.mxu0 0.0
  %297 = vmatpush.msra.mxu0 0.0
  %298 = vmatpush.msra.mxu0 0.0
  %299 = vmatpush.msra.mxu0 %v228
  %300 = vmatpush.msra.mxu0 %v63
  %301 = vmatpush.msra.mxu0 %v59
  %302 = vmatpush.msra.mxu0 %v55
  %303 = vmatpush.msra.mxu0 %v51
  %304 = vmatpush.msra.mxu0 %v47
  %305 = vmatpush.msra.mxu0 %v43
  %306 = vmatmul.f32.gmra.mxu0 %v215
  %v307 = vpop.f32.mrf.mxu0
  %v308 = vadd.f32 %v211, %v307
  %309 = vdwg.mxu0
  %s310 = scalar_lea.vmem %s0, 56
  %v311 = vld [vmem:[%s310] sm:$0xff]
  %v312 = vld [vmem:[%s4] sm:$0xff]
  %v313 = vld [vmem:[%s4 + $0x8] sm:$0xff]
  %v314 = vld [vmem:[%s4 + $0x10] sm:$0xff]
  %v315 = vld [vmem:[%s4 + $0x18] sm:$0xff]
  %v316 = vld [vmem:[%s4 + $0x20] sm:$0xff]
  %v317 = vld [vmem:[%s4 + $0x28] sm:$0xff]
  %v318 = vld [vmem:[%s4 + $0x30] sm:$0xff]
  %v319 = vld [vmem:[%s4 + $0x38] sm:$0xff]
  %v320 = vld [vmem:[%s4 + $0x40] sm:$0xff]
  %v321 = vld [vmem:[%s4 + $0x48] sm:$0xff]
  %v322 = vld [vmem:[%s4 + $0x50] sm:$0xff]
  %v323 = vld [vmem:[%s4 + $0x58] sm:$0xff]
  %v324 = vld [vmem:[%s4 + $0x60] sm:$0xff]
  %v325 = vld [vmem:[%s4 + $0x68] sm:$0xff]
  %v326 = vld [vmem:[%s4 + $0x70] sm:$0xff]
  %v327 = vld [vmem:[%s4 + $0x78] sm:$0xff]
  %v328 = vld [vmem:[%s4 + $0x80] sm:$0xff]
  %v329 = vld [vmem:[%s4 + $0x88] sm:$0xff]
  %v330 = vld [vmem:[%s4 + $0x90] sm:$0xff]
  %v331 = vld [vmem:[%s4 + $0x98] sm:$0xff]
  %v332 = vld [vmem:[%s4 + $0xa0] sm:$0xff]
  %v333 = vld [vmem:[%s4 + $0xa8] sm:$0xff]
  %v334 = vld [vmem:[%s4 + $0xb0] sm:$0xff]
  %v335 = vld [vmem:[%s4 + $0xb8] sm:$0xff]
  %v336 = vld [vmem:[%s4 + $0xc0] sm:$0x3]
  %v337 = vld [vmem:[%s4 + $0xc8] sm:$0x3]
  %v338 = vld [vmem:[%s4 + $0xd0] sm:$0x3]
  %v339 = vld [vmem:[%s4 + $0xd8] sm:$0x3]
  %v341 = vsel %vm213, %v311, 0
  %v344 = vsel %vm217, %v336, 0
  %v347 = vsel %vm217, %v337, 0
  %v350 = vsel %vm217, %v338, 0
  %v353 = vsel %vm217, %v339, 0
  %355 = vmatpush.msra.mxu0 0.0
  %356 = vmatpush.msra.mxu0 0.0
  %357 = vmatpush.msra.mxu0 0.0
  %358 = vmatpush.msra.mxu0 0.0
  %359 = vmatpush.msra.mxu0 0.0
  %360 = vmatpush.msra.mxu0 0.0
  %361 = vmatpush.msra.mxu0 0.0
  %362 = vmatpush.msra.mxu0 0.0
  %363 = vmatpush.msra.mxu0 0.0
  %364 = vmatpush.msra.mxu0 %v344
  %365 = vmatpush.msra.mxu0 %v332
  %366 = vmatpush.msra.mxu0 %v328
  %367 = vmatpush.msra.mxu0 %v324
  %368 = vmatpush.msra.mxu0 %v320
  %369 = vmatpush.msra.mxu0 %v316
  %370 = vmatpush.msra.mxu0 %v312
  %371 = vmatmul.f32.gmra.mxu0 %v341
  %v372 = vpop.f32.mrf.mxu0
  %v373 = vadd.f32 0.0, %v372
  %374 = vdwg.mxu0
  %375 = vmatpush.msra.mxu0 0.0
  %376 = vmatpush.msra.mxu0 0.0
  %377 = vmatpush.msra.mxu0 0.0
  %378 = vmatpush.msra.mxu0 0.0
  %379 = vmatpush.msra.mxu0 0.0
  %380 = vmatpush.msra.mxu0 0.0
  %381 = vmatpush.msra.mxu0 0.0
  %382 = vmatpush.msra.mxu0 0.0
  %383 = vmatpush.msra.mxu0 0.0
  %384 = vmatpush.msra.mxu0 %v347
  %385 = vmatpush.msra.mxu0 %v333
  %386 = vmatpush.msra.mxu0 %v329
  %387 = vmatpush.msra.mxu0 %v325
  %388 = vmatpush.msra.mxu0 %v321
  %389 = vmatpush.msra.mxu0 %v317
  %390 = vmatpush.msra.mxu0 %v313
  %391 = vmatmul.f32.gmra.mxu0 %v341
  %v392 = vpop.f32.mrf.mxu0
  %v393 = vadd.f32 0.0, %v392
  %394 = vdwg.mxu0
  %395 = vmatpush.msra.mxu0 0.0
  %396 = vmatpush.msra.mxu0 0.0
  %397 = vmatpush.msra.mxu0 0.0
  %398 = vmatpush.msra.mxu0 0.0
  %399 = vmatpush.msra.mxu0 0.0
  %400 = vmatpush.msra.mxu0 0.0
  %401 = vmatpush.msra.mxu0 0.0
  %402 = vmatpush.msra.mxu0 0.0
  %403 = vmatpush.msra.mxu0 0.0
  %404 = vmatpush.msra.mxu0 %v350
  %405 = vmatpush.msra.mxu0 %v334
  %406 = vmatpush.msra.mxu0 %v330
  %407 = vmatpush.msra.mxu0 %v326
  %408 = vmatpush.msra.mxu0 %v322
  %409 = vmatpush.msra.mxu0 %v318
  %410 = vmatpush.msra.mxu0 %v314
  %411 = vmatmul.f32.gmra.mxu0 %v341
  %v412 = vpop.f32.mrf.mxu0
  %v413 = vadd.f32 0.0, %v412
  %414 = vdwg.mxu0
  %415 = vmatpush.msra.mxu0 0.0
  %416 = vmatpush.msra.mxu0 0.0
  %417 = vmatpush.msra.mxu0 0.0
  %418 = vmatpush.msra.mxu0 0.0
  %419 = vmatpush.msra.mxu0 0.0
  %420 = vmatpush.msra.mxu0 0.0
  %421 = vmatpush.msra.mxu0 0.0
  %422 = vmatpush.msra.mxu0 0.0
  %423 = vmatpush.msra.mxu0 0.0
  %424 = vmatpush.msra.mxu0 %v353
  %425 = vmatpush.msra.mxu0 %v335
  %426 = vmatpush.msra.mxu0 %v331
  %427 = vmatpush.msra.mxu0 %v327
  %428 = vmatpush.msra.mxu0 %v323
  %429 = vmatpush.msra.mxu0 %v319
  %430 = vmatpush.msra.mxu0 %v315
  %431 = vmatmul.f32.gmra.mxu0 %v341
  %v432 = vpop.f32.mrf.mxu0
  %v433 = vadd.f32 0.0, %v432
  %434 = vdwg.mxu0
  %v435 = vadd.f32 %v248, %v373
  %v436 = vadd.f32 %v268, %v393
  %v437 = vadd.f32 %v288, %v413
  %v438 = vadd.f32 %v308, %v433
  %s439 = scalar_lea.vmem %s1, 56
  %v440 = vld [vmem:[%s439] sm:$0xff]
  %v441 = vld [vmem:[%s5] sm:$0xff]
  %v442 = vld [vmem:[%s5 + $0x8] sm:$0xff]
  %v443 = vld [vmem:[%s5 + $0x10] sm:$0xff]
  %v444 = vld [vmem:[%s5 + $0x18] sm:$0xff]
  %v445 = vld [vmem:[%s5 + $0x20] sm:$0xff]
  %v446 = vld [vmem:[%s5 + $0x28] sm:$0xff]
  %v447 = vld [vmem:[%s5 + $0x30] sm:$0xff]
  %v448 = vld [vmem:[%s5 + $0x38] sm:$0xff]
  %v449 = vld [vmem:[%s5 + $0x40] sm:$0xff]
  %v450 = vld [vmem:[%s5 + $0x48] sm:$0xff]
  %v451 = vld [vmem:[%s5 + $0x50] sm:$0xff]
  %v452 = vld [vmem:[%s5 + $0x58] sm:$0xff]
  %v453 = vld [vmem:[%s5 + $0x60] sm:$0xff]
  %v454 = vld [vmem:[%s5 + $0x68] sm:$0xff]
  %v455 = vld [vmem:[%s5 + $0x70] sm:$0xff]
  %v456 = vld [vmem:[%s5 + $0x78] sm:$0xff]
  %v457 = vld [vmem:[%s5 + $0x80] sm:$0xff]
  %v458 = vld [vmem:[%s5 + $0x88] sm:$0xff]
  %v459 = vld [vmem:[%s5 + $0x90] sm:$0xff]
  %v460 = vld [vmem:[%s5 + $0x98] sm:$0xff]
  %v461 = vld [vmem:[%s5 + $0xa0] sm:$0xff]
  %v462 = vld [vmem:[%s5 + $0xa8] sm:$0xff]
  %v463 = vld [vmem:[%s5 + $0xb0] sm:$0xff]
  %v464 = vld [vmem:[%s5 + $0xb8] sm:$0xff]
  %v465 = vld [vmem:[%s5 + $0xc0] sm:$0xff]
  %v466 = vld [vmem:[%s5 + $0xc8] sm:$0xff]
  %v467 = vld [vmem:[%s5 + $0xd0] sm:$0xff]
  %v468 = vld [vmem:[%s5 + $0xd8] sm:$0xff]
  %v469 = vld [vmem:[%s5 + $0xe0] sm:$0xff]
  %v470 = vld [vmem:[%s5 + $0xe8] sm:$0xff]
  %v471 = vld [vmem:[%s5 + $0xf0] sm:$0xff]
  %v472 = vld [vmem:[%s5 + $0xf8] sm:$0xff]
  %v473 = vld [vmem:[%s5 + $0x100] sm:$0xff]
  %v474 = vld [vmem:[%s5 + $0x108] sm:$0xff]
  %v475 = vld [vmem:[%s5 + $0x110] sm:$0xff]
  %v476 = vld [vmem:[%s5 + $0x118] sm:$0xff]
  %v477 = vld [vmem:[%s5 + $0x120] sm:$0xff]
  %v478 = vld [vmem:[%s5 + $0x128] sm:$0xff]
  %v479 = vld [vmem:[%s5 + $0x130] sm:$0xff]
  %v480 = vld [vmem:[%s5 + $0x138] sm:$0xff]
  %v481 = vld [vmem:[%s5 + $0x140] sm:$0xff]
  %v482 = vld [vmem:[%s5 + $0x148] sm:$0xff]
  %v483 = vld [vmem:[%s5 + $0x150] sm:$0xff]
  %v484 = vld [vmem:[%s5 + $0x158] sm:$0xff]
  %v485 = vld [vmem:[%s5 + $0x160] sm:$0xff]
  %v486 = vld [vmem:[%s5 + $0x168] sm:$0xff]
  %v487 = vld [vmem:[%s5 + $0x170] sm:$0xff]
  %v488 = vld [vmem:[%s5 + $0x178] sm:$0xff]
  %v489 = vld [vmem:[%s5 + $0x180] sm:$0xff]
  %v490 = vld [vmem:[%s5 + $0x188] sm:$0xff]
  %v491 = vld [vmem:[%s5 + $0x190] sm:$0xff]
  %v492 = vld [vmem:[%s5 + $0x198] sm:$0xff]
  %v493 = vld [vmem:[%s5 + $0x1a0] sm:$0xff]
  %v494 = vld [vmem:[%s5 + $0x1a8] sm:$0xff]
  %v495 = vld [vmem:[%s5 + $0x1b0] sm:$0xff]
  %v496 = vld [vmem:[%s5 + $0x1b8] sm:$0xff]
  %v497 = vld [vmem:[%s5 + $0x1c0] sm:$0xff]
  %v498 = vld [vmem:[%s5 + $0x1c8] sm:$0xff]
  %v499 = vld [vmem:[%s5 + $0x1d0] sm:$0xff]
  %v500 = vld [vmem:[%s5 + $0x1d8] sm:$0xff]
  %v501 = vld [vmem:[%s5 + $0x1e0] sm:$0xff]
  %v502 = vld [vmem:[%s5 + $0x1e8] sm:$0xff]
  %v503 = vld [vmem:[%s5 + $0x1f0] sm:$0xff]
  %v504 = vld [vmem:[%s5 + $0x1f8] sm:$0xff]
  %505 = vmatpush.msra.mxu0 %v501
  %506 = vmatpush.msra.mxu0 %v497
  %507 = vmatpush.msra.mxu0 %v493
  %508 = vmatpush.msra.mxu0 %v489
  %509 = vmatpush.msra.mxu0 %v485
  %510 = vmatpush.msra.mxu0 %v481
  %511 = vmatpush.msra.mxu0 %v477
  %512 = vmatpush.msra.mxu0 %v473
  %513 = vmatpush.msra.mxu0 %v469
  %514 = vmatpush.msra.mxu0 %v465
  %515 = vmatpush.msra.mxu0 %v461
  %516 = vmatpush.msra.mxu0 %v457
  %517 = vmatpush.msra.mxu0 %v453
  %518 = vmatpush.msra.mxu0 %v449
  %519 = vmatpush.msra.mxu0 %v445
  %520 = vmatpush.msra.mxu0 %v441
  %521 = vmatmul.f32.gmra.mxu0 %v440
  %v522 = vpop.f32.mrf.mxu0
  %v523 = vadd.f32 0.0, %v522
  %524 = vdwg.mxu0
  %525 = vmatpush.msra.mxu0 %v502
  %526 = vmatpush.msra.mxu0 %v498
  %527 = vmatpush.msra.mxu0 %v494
  %528 = vmatpush.msra.mxu0 %v490
  %529 = vmatpush.msra.mxu0 %v486
  %530 = vmatpush.msra.mxu0 %v482
  %531 = vmatpush.msra.mxu0 %v478
  %532 = vmatpush.msra.mxu0 %v474
  %533 = vmatpush.msra.mxu0 %v470
  %534 = vmatpush.msra.mxu0 %v466
  %535 = vmatpush.msra.mxu0 %v462
  %536 = vmatpush.msra.mxu0 %v458
  %537 = vmatpush.msra.mxu0 %v454
  %538 = vmatpush.msra.mxu0 %v450
  %539 = vmatpush.msra.mxu0 %v446
  %540 = vmatpush.msra.mxu0 %v442
  %541 = vmatmul.f32.gmra.mxu0 %v440
  %v542 = vpop.f32.mrf.mxu0
  %v543 = vadd.f32 0.0, %v542
  %544 = vdwg.mxu0
  %545 = vmatpush.msra.mxu0 %v503
  %546 = vmatpush.msra.mxu0 %v499
  %547 = vmatpush.msra.mxu0 %v495
  %548 = vmatpush.msra.mxu0 %v491
  %549 = vmatpush.msra.mxu0 %v487
  %550 = vmatpush.msra.mxu0 %v483
  %551 = vmatpush.msra.mxu0 %v479
  %552 = vmatpush.msra.mxu0 %v475
  %553 = vmatpush.msra.mxu0 %v471
  %554 = vmatpush.msra.mxu0 %v467
  %555 = vmatpush.msra.mxu0 %v463
  %556 = vmatpush.msra.mxu0 %v459
  %557 = vmatpush.msra.mxu0 %v455
  %558 = vmatpush.msra.mxu0 %v451
  %559 = vmatpush.msra.mxu0 %v447
  %560 = vmatpush.msra.mxu0 %v443
  %561 = vmatmul.f32.gmra.mxu0 %v440
  %v562 = vpop.f32.mrf.mxu0
  %v563 = vadd.f32 0.0, %v562
  %564 = vdwg.mxu0
  %565 = vmatpush.msra.mxu0 %v504
  %566 = vmatpush.msra.mxu0 %v500
  %567 = vmatpush.msra.mxu0 %v496
  %568 = vmatpush.msra.mxu0 %v492
  %569 = vmatpush.msra.mxu0 %v488
  %570 = vmatpush.msra.mxu0 %v484
  %571 = vmatpush.msra.mxu0 %v480
  %572 = vmatpush.msra.mxu0 %v476
  %573 = vmatpush.msra.mxu0 %v472
  %574 = vmatpush.msra.mxu0 %v468
  %575 = vmatpush.msra.mxu0 %v464
  %576 = vmatpush.msra.mxu0 %v460
  %577 = vmatpush.msra.mxu0 %v456
  %578 = vmatpush.msra.mxu0 %v452
  %579 = vmatpush.msra.mxu0 %v448
  %580 = vmatpush.msra.mxu0 %v444
  %581 = vmatmul.f32.gmra.mxu0 %v440
  %v582 = vpop.f32.mrf.mxu0
  %v583 = vadd.f32 0.0, %v582
  %584 = vdwg.mxu0
  %v585 = vadd.f32 %v435, %v523
  %v586 = vadd.f32 %v436, %v543
  %v587 = vadd.f32 %v437, %v563
  %v588 = vadd.f32 %v438, %v583
  %v589 = vadd.f32 %v585, %v31
  %v590 = vadd.f32 %v586, %v32
  %v591 = vadd.f32 %v587, %v33
  %v592 = vadd.f32 %v588, %v34
  %593 = vst [vmem:[#allocation2] sm:$0xff] %v589
  %594 = vst [vmem:[#allocation2 + $0x8] sm:$0xff] %v590
  %595 = vst [vmem:[#allocation2 + $0x10] sm:$0xff] %v591
  %596 = vst [vmem:[#allocation2 + $0x18] sm:$0xff] %v592
  %s597 = scalar_lea.vmem %s0, 8
  %v598 = vld [vmem:[%s597] sm:$0xff]
  %v599 = vld [vmem:[%s2] sm:$0xff]
  %v600 = vld [vmem:[%s2 + $0x8] sm:$0xff]
  %v601 = vld [vmem:[%s2 + $0x10] sm:$0xff]
  %v602 = vld [vmem:[%s2 + $0x18] sm:$0xff]
  %v603 = vld [vmem:[%s2 + $0x20] sm:$0xff]
  %v604 = vld [vmem:[%s2 + $0x28] sm:$0xff]
  %v605 = vld [vmem:[%s2 + $0x30] sm:$0xff]
  %v606 = vld [vmem:[%s2 + $0x38] sm:$0xff]
  %v607 = vld [vmem:[%s2 + $0x40] sm:$0xff]
  %v608 = vld [vmem:[%s2 + $0x48] sm:$0xff]
  %v609 = vld [vmem:[%s2 + $0x50] sm:$0xff]
  %v610 = vld [vmem:[%s2 + $0x58] sm:$0xff]
  %v611 = vld [vmem:[%s2 + $0x60] sm:$0xff]
  %v612 = vld [vmem:[%s2 + $0x68] sm:$0xff]
  %v613 = vld [vmem:[%s2 + $0x70] sm:$0xff]
  %v614 = vld [vmem:[%s2 + $0x78] sm:$0xff]
  %v615 = vld [vmem:[%s2 + $0x80] sm:$0xff]
  %v616 = vld [vmem:[%s2 + $0x88] sm:$0xff]
  %v617 = vld [vmem:[%s2 + $0x90] sm:$0xff]
  %v618 = vld [vmem:[%s2 + $0x98] sm:$0xff]
  %v619 = vld [vmem:[%s2 + $0xa0] sm:$0xff]
  %v620 = vld [vmem:[%s2 + $0xa8] sm:$0xff]
  %v621 = vld [vmem:[%s2 + $0xb0] sm:$0xff]
  %v622 = vld [vmem:[%s2 + $0xb8] sm:$0xff]
  %v623 = vld [vmem:[%s2 + $0xc0] sm:$0x3]
  %v624 = vld [vmem:[%s2 + $0xc8] sm:$0x3]
  %v625 = vld [vmem:[%s2 + $0xd0] sm:$0x3]
  %v626 = vld [vmem:[%s2 + $0xd8] sm:$0x3]
  %s627 = scalar_lea.vmem %s1, 8
  %v628 = vld [vmem:[%s627] sm:$0xff]
  %v629 = vld [vmem:[%s3] sm:$0xff]
  %v630 = vld [vmem:[%s3 + $0x8] sm:$0xff]
  %v631 = vld [vmem:[%s3 + $0x10] sm:$0xff]
  %v632 = vld [vmem:[%s3 + $0x18] sm:$0xff]
  %v633 = vld [vmem:[%s3 + $0x20] sm:$0xff]
  %v634 = vld [vmem:[%s3 + $0x28] sm:$0xff]
  %v635 = vld [vmem:[%s3 + $0x30] sm:$0xff]
  %v636 = vld [vmem:[%s3 + $0x38] sm:$0xff]
  %v637 = vld [vmem:[%s3 + $0x40] sm:$0xff]
  %v638 = vld [vmem:[%s3 + $0x48] sm:$0xff]
  %v639 = vld [vmem:[%s3 + $0x50] sm:$0xff]
  %v640 = vld [vmem:[%s3 + $0x58] sm:$0xff]
  %v641 = vld [vmem:[%s3 + $0x60] sm:$0xff]
  %v642 = vld [vmem:[%s3 + $0x68] sm:$0xff]
  %v643 = vld [vmem:[%s3 + $0x70] sm:$0xff]
  %v644 = vld [vmem:[%s3 + $0x78] sm:$0xff]
  %v645 = vld [vmem:[%s3 + $0x80] sm:$0xff]
  %v646 = vld [vmem:[%s3 + $0x88] sm:$0xff]
  %v647 = vld [vmem:[%s3 + $0x90] sm:$0xff]
  %v648 = vld [vmem:[%s3 + $0x98] sm:$0xff]
  %v649 = vld [vmem:[%s3 + $0xa0] sm:$0xff]
  %v650 = vld [vmem:[%s3 + $0xa8] sm:$0xff]
  %v651 = vld [vmem:[%s3 + $0xb0] sm:$0xff]
  %v652 = vld [vmem:[%s3 + $0xb8] sm:$0xff]
  %v653 = vld [vmem:[%s3 + $0xc0] sm:$0xff]
  %v654 = vld [vmem:[%s3 + $0xc8] sm:$0xff]
  %v655 = vld [vmem:[%s3 + $0xd0] sm:$0xff]
  %v656 = vld [vmem:[%s3 + $0xd8] sm:$0xff]
  %v657 = vld [vmem:[%s3 + $0xe0] sm:$0xff]
  %v658 = vld [vmem:[%s3 + $0xe8] sm:$0xff]
  %v659 = vld [vmem:[%s3 + $0xf0] sm:$0xff]
  %v660 = vld [vmem:[%s3 + $0xf8] sm:$0xff]
  %v661 = vld [vmem:[%s3 + $0x100] sm:$0xff]
  %v662 = vld [vmem:[%s3 + $0x108] sm:$0xff]
  %v663 = vld [vmem:[%s3 + $0x110] sm:$0xff]
  %v664 = vld [vmem:[%s3 + $0x118] sm:$0xff]
  %v665 = vld [vmem:[%s3 + $0x120] sm:$0xff]
  %v666 = vld [vmem:[%s3 + $0x128] sm:$0xff]
  %v667 = vld [vmem:[%s3 + $0x130] sm:$0xff]
  %v668 = vld [vmem:[%s3 + $0x138] sm:$0xff]
  %v669 = vld [vmem:[%s3 + $0x140] sm:$0xff]
  %v670 = vld [vmem:[%s3 + $0x148] sm:$0xff]
  %v671 = vld [vmem:[%s3 + $0x150] sm:$0xff]
  %v672 = vld [vmem:[%s3 + $0x158] sm:$0xff]
  %v673 = vld [vmem:[%s3 + $0x160] sm:$0xff]
  %v674 = vld [vmem:[%s3 + $0x168] sm:$0xff]
  %v675 = vld [vmem:[%s3 + $0x170] sm:$0xff]
  %v676 = vld [vmem:[%s3 + $0x178] sm:$0xff]
  %v677 = vld [vmem:[%s3 + $0x180] sm:$0xff]
  %v678 = vld [vmem:[%s3 + $0x188] sm:$0xff]
  %v679 = vld [vmem:[%s3 + $0x190] sm:$0xff]
  %v680 = vld [vmem:[%s3 + $0x198] sm:$0xff]
  %v681 = vld [vmem:[%s3 + $0x1a0] sm:$0xff]
  %v682 = vld [vmem:[%s3 + $0x1a8] sm:$0xff]
  %v683 = vld [vmem:[%s3 + $0x1b0] sm:$0xff]
  %v684 = vld [vmem:[%s3 + $0x1b8] sm:$0xff]
  %v685 = vld [vmem:[%s3 + $0x1c0] sm:$0xff]
  %v686 = vld [vmem:[%s3 + $0x1c8] sm:$0xff]
  %v687 = vld [vmem:[%s3 + $0x1d0] sm:$0xff]
  %v688 = vld [vmem:[%s3 + $0x1d8] sm:$0xff]
  %v689 = vld [vmem:[%s3 + $0x1e0] sm:$0xff]
  %v690 = vld [vmem:[%s3 + $0x1e8] sm:$0xff]
  %v691 = vld [vmem:[%s3 + $0x1f0] sm:$0xff]
  %v692 = vld [vmem:[%s3 + $0x1f8] sm:$0xff]
  %693 = vmatpush.msra.mxu0 %v689
  %694 = vmatpush.msra.mxu0 %v685
  %695 = vmatpush.msra.mxu0 %v681
  %696 = vmatpush.msra.mxu0 %v677
  %697 = vmatpush.msra.mxu0 %v673
  %698 = vmatpush.msra.mxu0 %v669
  %699 = vmatpush.msra.mxu0 %v665
  %700 = vmatpush.msra.mxu0 %v661
  %701 = vmatpush.msra.mxu0 %v657
  %702 = vmatpush.msra.mxu0 %v653
  %703 = vmatpush.msra.mxu0 %v649
  %704 = vmatpush.msra.mxu0 %v645
  %705 = vmatpush.msra.mxu0 %v641
  %706 = vmatpush.msra.mxu0 %v637
  %707 = vmatpush.msra.mxu0 %v633
  %708 = vmatpush.msra.mxu0 %v629
  %709 = vmatmul.f32.gmra.mxu0 %v628
  %v710 = vpop.f32.mrf.mxu0
  %v711 = vadd.f32 0.0, %v710
  %712 = vdwg.mxu0
  %713 = vmatpush.msra.mxu0 %v690
  %714 = vmatpush.msra.mxu0 %v686
  %715 = vmatpush.msra.mxu0 %v682
  %716 = vmatpush.msra.mxu0 %v678
  %717 = vmatpush.msra.mxu0 %v674
  %718 = vmatpush.msra.mxu0 %v670
  %719 = vmatpush.msra.mxu0 %v666
  %720 = vmatpush.msra.mxu0 %v662
  %721 = vmatpush.msra.mxu0 %v658
  %722 = vmatpush.msra.mxu0 %v654
  %723 = vmatpush.msra.mxu0 %v650
  %724 = vmatpush.msra.mxu0 %v646
  %725 = vmatpush.msra.mxu0 %v642
  %726 = vmatpush.msra.mxu0 %v638
  %727 = vmatpush.msra.mxu0 %v634
  %728 = vmatpush.msra.mxu0 %v630
  %729 = vmatmul.f32.gmra.mxu0 %v628
  %v730 = vpop.f32.mrf.mxu0
  %v731 = vadd.f32 0.0, %v730
  %732 = vdwg.mxu0
  %733 = vmatpush.msra.mxu0 %v691
  %734 = vmatpush.msra.mxu0 %v687
  %735 = vmatpush.msra.mxu0 %v683
  %736 = vmatpush.msra.mxu0 %v679
  %737 = vmatpush.msra.mxu0 %v675
  %738 = vmatpush.msra.mxu0 %v671
  %739 = vmatpush.msra.mxu0 %v667
  %740 = vmatpush.msra.mxu0 %v663
  %741 = vmatpush.msra.mxu0 %v659
  %742 = vmatpush.msra.mxu0 %v655
  %743 = vmatpush.msra.mxu0 %v651
  %744 = vmatpush.msra.mxu0 %v647
  %745 = vmatpush.msra.mxu0 %v643
  %746 = vmatpush.msra.mxu0 %v639
  %747 = vmatpush.msra.mxu0 %v635
  %748 = vmatpush.msra.mxu0 %v631
  %749 = vmatmul.f32.gmra.mxu0 %v628
  %v750 = vpop.f32.mrf.mxu0
  %v751 = vadd.f32 0.0, %v750
  %752 = vdwg.mxu0
  %753 = vmatpush.msra.mxu0 %v692
  %754 = vmatpush.msra.mxu0 %v688
  %755 = vmatpush.msra.mxu0 %v684
  %756 = vmatpush.msra.mxu0 %v680
  %757 = vmatpush.msra.mxu0 %v676
  %758 = vmatpush.msra.mxu0 %v672
  %759 = vmatpush.msra.mxu0 %v668
  %760 = vmatpush.msra.mxu0 %v664
  %761 = vmatpush.msra.mxu0 %v660
  %762 = vmatpush.msra.mxu0 %v656
  %763 = vmatpush.msra.mxu0 %v652
  %764 = vmatpush.msra.mxu0 %v648
  %765 = vmatpush.msra.mxu0 %v644
  %766 = vmatpush.msra.mxu0 %v640
  %767 = vmatpush.msra.mxu0 %v636
  %768 = vmatpush.msra.mxu0 %v632
  %769 = vmatmul.f32.gmra.mxu0 %v628
  %v770 = vpop.f32.mrf.mxu0
  %v771 = vadd.f32 0.0, %v770
  %772 = vdwg.mxu0
  %v774 = vsel %vm213, %v598, 0
  %v777 = vsel %vm217, %v623, 0
  %v780 = vsel %vm217, %v624, 0
  %v783 = vsel %vm217, %v625, 0
  %v786 = vsel %vm217, %v626, 0
  %788 = vmatpush.msra.mxu0 0.0
  %789 = vmatpush.msra.mxu0 0.0
  %790 = vmatpush.msra.mxu0 0.0
  %791 = vmatpush.msra.mxu0 0.0
  %792 = vmatpush.msra.mxu0 0.0
  %793 = vmatpush.msra.mxu0 0.0
  %794 = vmatpush.msra.mxu0 0.0
  %795 = vmatpush.msra.mxu0 0.0
  %796 = vmatpush.msra.mxu0 0.0
  %797 = vmatpush.msra.mxu0 %v777
  %798 = vmatpush.msra.mxu0 %v619
  %799 = vmatpush.msra.mxu0 %v615
  %800 = vmatpush.msra.mxu0 %v611
  %801 = vmatpush.msra.mxu0 %v607
  %802 = vmatpush.msra.mxu0 %v603
  %803 = vmatpush.msra.mxu0 %v599
  %804 = vmatmul.f32.gmra.mxu0 %v774
  %v805 = vpop.f32.mrf.mxu0
  %v806 = vadd.f32 %v711, %v805
  %807 = vdwg.mxu0
  %808 = vmatpush.msra.mxu0 0.0
  %809 = vmatpush.msra.mxu0 0.0
  %810 = vmatpush.msra.mxu0 0.0
  %811 = vmatpush.msra.mxu0 0.0
  %812 = vmatpush.msra.mxu0 0.0
  %813 = vmatpush.msra.mxu0 0.0
  %814 = vmatpush.msra.mxu0 0.0
  %815 = vmatpush.msra.mxu0 0.0
  %816 = vmatpush.msra.mxu0 0.0
  %817 = vmatpush.msra.mxu0 %v780
  %818 = vmatpush.msra.mxu0 %v620
  %819 = vmatpush.msra.mxu0 %v616
  %820 = vmatpush.msra.mxu0 %v612
  %821 = vmatpush.msra.mxu0 %v608
  %822 = vmatpush.msra.mxu0 %v604
  %823 = vmatpush.msra.mxu0 %v600
  %824 = vmatmul.f32.gmra.mxu0 %v774
  %v825 = vpop.f32.mrf.mxu0
  %v826 = vadd.f32 %v731, %v825
  %827 = vdwg.mxu0
  %828 = vmatpush.msra.mxu0 0.0
  %829 = vmatpush.msra.mxu0 0.0
  %830 = vmatpush.msra.mxu0 0.0
  %831 = vmatpush.msra.mxu0 0.0
  %832 = vmatpush.msra.mxu0 0.0
  %833 = vmatpush.msra.mxu0 0.0
  %834 = vmatpush.msra.mxu0 0.0
  %835 = vmatpush.msra.mxu0 0.0
  %836 = vmatpush.msra.mxu0 0.0
  %837 = vmatpush.msra.mxu0 %v783
  %838 = vmatpush.msra.mxu0 %v621
  %839 = vmatpush.msra.mxu0 %v617
  %840 = vmatpush.msra.mxu0 %v613
  %841 = vmatpush.msra.mxu0 %v609
  %842 = vmatpush.msra.mxu0 %v605
  %843 = vmatpush.msra.mxu0 %v601
  %844 = vmatmul.f32.gmra.mxu0 %v774
  %v845 = vpop.f32.mrf.mxu0
  %v846 = vadd.f32 %v751, %v845
  %847 = vdwg.mxu0
  %848 = vmatpush.msra.mxu0 0.0
  %849 = vmatpush.msra.mxu0 0.0
  %850 = vmatpush.msra.mxu0 0.0
  %851 = vmatpush.msra.mxu0 0.0
  %852 = vmatpush.msra.mxu0 0.0
  %853 = vmatpush.msra.mxu0 0.0
  %854 = vmatpush.msra.mxu0 0.0
  %855 = vmatpush.msra.mxu0 0.0
  %856 = vmatpush.msra.mxu0 0.0
  %857 = vmatpush.msra.mxu0 %v786
  %858 = vmatpush.msra.mxu0 %v622
  %859 = vmatpush.msra.mxu0 %v618
  %860 = vmatpush.msra.mxu0 %v614
  %861 = vmatpush.msra.mxu0 %v610
  %862 = vmatpush.msra.mxu0 %v606
  %863 = vmatpush.msra.mxu0 %v602
  %864 = vmatmul.f32.gmra.mxu0 %v774
  %v865 = vpop.f32.mrf.mxu0
  %v866 = vadd.f32 %v771, %v865
  %867 = vdwg.mxu0
  %s868 = scalar_lea.vmem %s0, 48
  %v869 = vld [vmem:[%s868] sm:$0xff]
  %v870 = vld [vmem:[%s4] sm:$0xff]
  %v871 = vld [vmem:[%s4 + $0x8] sm:$0xff]
  %v872 = vld [vmem:[%s4 + $0x10] sm:$0xff]
  %v873 = vld [vmem:[%s4 + $0x18] sm:$0xff]
  %v874 = vld [vmem:[%s4 + $0x20] sm:$0xff]
  %v875 = vld [vmem:[%s4 + $0x28] sm:$0xff]
  %v876 = vld [vmem:[%s4 + $0x30] sm:$0xff]
  %v877 = vld [vmem:[%s4 + $0x38] sm:$0xff]
  %v878 = vld [vmem:[%s4 + $0x40] sm:$0xff]
  %v879 = vld [vmem:[%s4 + $0x48] sm:$0xff]
  %v880 = vld [vmem:[%s4 + $0x50] sm:$0xff]
  %v881 = vld [vmem:[%s4 + $0x58] sm:$0xff]
  %v882 = vld [vmem:[%s4 + $0x60] sm:$0xff]
  %v883 = vld [vmem:[%s4 + $0x68] sm:$0xff]
  %v884 = vld [vmem:[%s4 + $0x70] sm:$0xff]
  %v885 = vld [vmem:[%s4 + $0x78] sm:$0xff]
  %v886 = vld [vmem:[%s4 + $0x80] sm:$0xff]
  %v887 = vld [vmem:[%s4 + $0x88] sm:$0xff]
  %v888 = vld [vmem:[%s4 + $0x90] sm:$0xff]
  %v889 = vld [vmem:[%s4 + $0x98] sm:$0xff]
  %v890 = vld [vmem:[%s4 + $0xa0] sm:$0xff]
  %v891 = vld [vmem:[%s4 + $0xa8] sm:$0xff]
  %v892 = vld [vmem:[%s4 + $0xb0] sm:$0xff]
  %v893 = vld [vmem:[%s4 + $0xb8] sm:$0xff]
  %v894 = vld [vmem:[%s4 + $0xc0] sm:$0x3]
  %v895 = vld [vmem:[%s4 + $0xc8] sm:$0x3]
  %v896 = vld [vmem:[%s4 + $0xd0] sm:$0x3]
  %v897 = vld [vmem:[%s4 + $0xd8] sm:$0x3]
  %v899 = vsel %vm213, %v869, 0
  %v902 = vsel %vm217, %v894, 0
  %v905 = vsel %vm217, %v895, 0
  %v908 = vsel %vm217, %v896, 0
  %v911 = vsel %vm217, %v897, 0
  %913 = vmatpush.msra.mxu0 0.0
  %914 = vmatpush.msra.mxu0 0.0
  %915 = vmatpush.msra.mxu0 0.0
  %916 = vmatpush.msra.mxu0 0.0
  %917 = vmatpush.msra.mxu0 0.0
  %918 = vmatpush.msra.mxu0 0.0
  %919 = vmatpush.msra.mxu0 0.0
  %920 = vmatpush.msra.mxu0 0.0
  %921 = vmatpush.msra.mxu0 0.0
  %922 = vmatpush.msra.mxu0 %v902
  %923 = vmatpush.msra.mxu0 %v890
  %924 = vmatpush.msra.mxu0 %v886
  %925 = vmatpush.msra.mxu0 %v882
  %926 = vmatpush.msra.mxu0 %v878
  %927 = vmatpush.msra.mxu0 %v874
  %928 = vmatpush.msra.mxu0 %v870
  %929 = vmatmul.f32.gmra.mxu0 %v899
  %v930 = vpop.f32.mrf.mxu0
  %v931 = vadd.f32 0.0, %v930
  %932 = vdwg.mxu0
  %933 = vmatpush.msra.mxu0 0.0
  %934 = vmatpush.msra.mxu0 0.0
  %935 = vmatpush.msra.mxu0 0.0
  %936 = vmatpush.msra.mxu0 0.0
  %937 = vmatpush.msra.mxu0 0.0
  %938 = vmatpush.msra.mxu0 0.0
  %939 = vmatpush.msra.mxu0 0.0
  %940 = vmatpush.msra.mxu0 0.0
  %941 = vmatpush.msra.mxu0 0.0
  %942 = vmatpush.msra.mxu0 %v905
  %943 = vmatpush.msra.mxu0 %v891
  %944 = vmatpush.msra.mxu0 %v887
  %945 = vmatpush.msra.mxu0 %v883
  %946 = vmatpush.msra.mxu0 %v879
  %947 = vmatpush.msra.mxu0 %v875
  %948 = vmatpush.msra.mxu0 %v871
  %949 = vmatmul.f32.gmra.mxu0 %v899
  %v950 = vpop.f32.mrf.mxu0
  %v951 = vadd.f32 0.0, %v950
  %952 = vdwg.mxu0
  %953 = vmatpush.msra.mxu0 0.0
  %954 = vmatpush.msra.mxu0 0.0
  %955 = vmatpush.msra.mxu0 0.0
  %956 = vmatpush.msra.mxu0 0.0
  %957 = vmatpush.msra.mxu0 0.0
  %958 = vmatpush.msra.mxu0 0.0
  %959 = vmatpush.msra.mxu0 0.0
  %960 = vmatpush.msra.mxu0 0.0
  %961 = vmatpush.msra.mxu0 0.0
  %962 = vmatpush.msra.mxu0 %v908
  %963 = vmatpush.msra.mxu0 %v892
  %964 = vmatpush.msra.mxu0 %v888
  %965 = vmatpush.msra.mxu0 %v884
  %966 = vmatpush.msra.mxu0 %v880
  %967 = vmatpush.msra.mxu0 %v876
  %968 = vmatpush.msra.mxu0 %v872
  %969 = vmatmul.f32.gmra.mxu0 %v899
  %v970 = vpop.f32.mrf.mxu0
  %v971 = vadd.f32 0.0, %v970
  %972 = vdwg.mxu0
  %973 = vmatpush.msra.mxu0 0.0
  %974 = vmatpush.msra.mxu0 0.0
  %975 = vmatpush.msra.mxu0 0.0
  %976 = vmatpush.msra.mxu0 0.0
  %977 = vmatpush.msra.mxu0 0.0
  %978 = vmatpush.msra.mxu0 0.0
  %979 = vmatpush.msra.mxu0 0.0
  %980 = vmatpush.msra.mxu0 0.0
  %981 = vmatpush.msra.mxu0 0.0
  %982 = vmatpush.msra.mxu0 %v911
  %983 = vmatpush.msra.mxu0 %v893
  %984 = vmatpush.msra.mxu0 %v889
  %985 = vmatpush.msra.mxu0 %v885
  %986 = vmatpush.msra.mxu0 %v881
  %987 = vmatpush.msra.mxu0 %v877
  %988 = vmatpush.msra.mxu0 %v873
  %989 = vmatmul.f32.gmra.mxu0 %v899
  %v990 = vpop.f32.mrf.mxu0
  %v991 = vadd.f32 0.0, %v990
  %992 = vdwg.mxu0
  %v993 = vadd.f32 %v806, %v931
  %v994 = vadd.f32 %v826, %v951
  %v995 = vadd.f32 %v846, %v971
  %v996 = vadd.f32 %v866, %v991
  %s997 = scalar_lea.vmem %s1, 48
  %v998 = vld [vmem:[%s997] sm:$0xff]
  %v999 = vld [vmem:[%s5] sm:$0xff]
  %v1000 = vld [vmem:[%s5 + $0x8] sm:$0xff]
  %v1001 = vld [vmem:[%s5 + $0x10] sm:$0xff]
  %v1002 = vld [vmem:[%s5 + $0x18] sm:$0xff]
  %v1003 = vld [vmem:[%s5 + $0x20] sm:$0xff]
  %v1004 = vld [vmem:[%s5 + $0x28] sm:$0xff]
  %v1005 = vld [vmem:[%s5 + $0x30] sm:$0xff]
  %v1006 = vld [vmem:[%s5 + $0x38] sm:$0xff]
  %v1007 = vld [vmem:[%s5 + $0x40] sm:$0xff]
  %v1008 = vld [vmem:[%s5 + $0x48] sm:$0xff]
  %v1009 = vld [vmem:[%s5 + $0x50] sm:$0xff]
  %v1010 = vld [vmem:[%s5 + $0x58] sm:$0xff]
  %v1011 = vld [vmem:[%s5 + $0x60] sm:$0xff]
  %v1012 = vld [vmem:[%s5 + $0x68] sm:$0xff]
  %v1013 = vld [vmem:[%s5 + $0x70] sm:$0xff]
  %v1014 = vld [vmem:[%s5 + $0x78] sm:$0xff]
  %v1015 = vld [vmem:[%s5 + $0x80] sm:$0xff]
  %v1016 = vld [vmem:[%s5 + $0x88] sm:$0xff]
  %v1017 = vld [vmem:[%s5 + $0x90] sm:$0xff]
  %v1018 = vld [vmem:[%s5 + $0x98] sm:$0xff]
  %v1019 = vld [vmem:[%s5 + $0xa0] sm:$0xff]
  %v1020 = vld [vmem:[%s5 + $0xa8] sm:$0xff]
  %v1021 = vld [vmem:[%s5 + $0xb0] sm:$0xff]
  %v1022 = vld [vmem:[%s5 + $0xb8] sm:$0xff]
  %v1023 = vld [vmem:[%s5 + $0xc0] sm:$0xff]
  %v1024 = vld [vmem:[%s5 + $0xc8] sm:$0xff]
  %v1025 = vld [vmem:[%s5 + $0xd0] sm:$0xff]
  %v1026 = vld [vmem:[%s5 + $0xd8] sm:$0xff]
  %v1027 = vld [vmem:[%s5 + $0xe0] sm:$0xff]
  %v1028 = vld [vmem:[%s5 + $0xe8] sm:$0xff]
  %v1029 = vld [vmem:[%s5 + $0xf0] sm:$0xff]
  %v1030 = vld [vmem:[%s5 + $0xf8] sm:$0xff]
  %v1031 = vld [vmem:[%s5 + $0x100] sm:$0xff]
  %v1032 = vld [vmem:[%s5 + $0x108] sm:$0xff]
  %v1033 = vld [vmem:[%s5 + $0x110] sm:$0xff]
  %v1034 = vld [vmem:[%s5 + $0x118] sm:$0xff]
  %v1035 = vld [vmem:[%s5 + $0x120] sm:$0xff]
  %v1036 = vld [vmem:[%s5 + $0x128] sm:$0xff]
  %v1037 = vld [vmem:[%s5 + $0x130] sm:$0xff]
  %v1038 = vld [vmem:[%s5 + $0x138] sm:$0xff]
  %v1039 = vld [vmem:[%s5 + $0x140] sm:$0xff]
  %v1040 = vld [vmem:[%s5 + $0x148] sm:$0xff]
  %v1041 = vld [vmem:[%s5 + $0x150] sm:$0xff]
  %v1042 = vld [vmem:[%s5 + $0x158] sm:$0xff]
  %v1043 = vld [vmem:[%s5 + $0x160] sm:$0xff]
  %v1044 = vld [vmem:[%s5 + $0x168] sm:$0xff]
  %v1045 = vld [vmem:[%s5 + $0x170] sm:$0xff]
  %v1046 = vld [vmem:[%s5 + $0x178] sm:$0xff]
  %v1047 = vld [vmem:[%s5 + $0x180] sm:$0xff]
  %v1048 = vld [vmem:[%s5 + $0x188] sm:$0xff]
  %v1049 = vld [vmem:[%s5 + $0x190] sm:$0xff]
  %v1050 = vld [vmem:[%s5 + $0x198] sm:$0xff]
  %v1051 = vld [vmem:[%s5 + $0x1a0] sm:$0xff]
  %v1052 = vld [vmem:[%s5 + $0x1a8] sm:$0xff]
  %v1053 = vld [vmem:[%s5 + $0x1b0] sm:$0xff]
  %v1054 = vld [vmem:[%s5 + $0x1b8] sm:$0xff]
  %v1055 = vld [vmem:[%s5 + $0x1c0] sm:$0xff]
  %v1056 = vld [vmem:[%s5 + $0x1c8] sm:$0xff]
  %v1057 = vld [vmem:[%s5 + $0x1d0] sm:$0xff]
  %v1058 = vld [vmem:[%s5 + $0x1d8] sm:$0xff]
  %v1059 = vld [vmem:[%s5 + $0x1e0] sm:$0xff]
  %v1060 = vld [vmem:[%s5 + $0x1e8] sm:$0xff]
  %v1061 = vld [vmem:[%s5 + $0x1f0] sm:$0xff]
  %v1062 = vld [vmem:[%s5 + $0x1f8] sm:$0xff]
  %1063 = vmatpush.msra.mxu0 %v1059
  %1064 = vmatpush.msra.mxu0 %v1055
  %1065 = vmatpush.msra.mxu0 %v1051
  %1066 = vmatpush.msra.mxu0 %v1047
  %1067 = vmatpush.msra.mxu0 %v1043
  %1068 = vmatpush.msra.mxu0 %v1039
  %1069 = vmatpush.msra.mxu0 %v1035
  %1070 = vmatpush.msra.mxu0 %v1031
  %1071 = vmatpush.msra.mxu0 %v1027
  %1072 = vmatpush.msra.mxu0 %v1023
  %1073 = vmatpush.msra.mxu0 %v1019
  %1074 = vmatpush.msra.mxu0 %v1015
  %1075 = vmatpush.msra.mxu0 %v1011
  %1076 = vmatpush.msra.mxu0 %v1007
  %1077 = vmatpush.msra.mxu0 %v1003
  %1078 = vmatpush.msra.mxu0 %v999
  %1079 = vmatmul.f32.gmra.mxu0 %v998
  %v1080 = vpop.f32.mrf.mxu0
  %v1081 = vadd.f32 0.0, %v1080
  %1082 = vdwg.mxu0
  %1083 = vmatpush.msra.mxu0 %v1060
  %1084 = vmatpush.msra.mxu0 %v1056
  %1085 = vmatpush.msra.mxu0 %v1052
  %1086 = vmatpush.msra.mxu0 %v1048
  %1087 = vmatpush.msra.mxu0 %v1044
  %1088 = vmatpush.msra.mxu0 %v1040
  %1089 = vmatpush.msra.mxu0 %v1036
  %1090 = vmatpush.msra.mxu0 %v1032
  %1091 = vmatpush.msra.mxu0 %v1028
  %1092 = vmatpush.msra.mxu0 %v1024
  %1093 = vmatpush.msra.mxu0 %v1020
  %1094 = vmatpush.msra.mxu0 %v1016
  %1095 = vmatpush.msra.mxu0 %v1012
  %1096 = vmatpush.msra.mxu0 %v1008
  %1097 = vmatpush.msra.mxu0 %v1004
  %1098 = vmatpush.msra.mxu0 %v1000
  %1099 = vmatmul.f32.gmra.mxu0 %v998
  %v1100 = vpop.f32.mrf.mxu0
  %v1101 = vadd.f32 0.0, %v1100
  %1102 = vdwg.mxu0
  %1103 = vmatpush.msra.mxu0 %v1061
  %1104 = vmatpush.msra.mxu0 %v1057
  %1105 = vmatpush.msra.mxu0 %v1053
  %1106 = vmatpush.msra.mxu0 %v1049
  %1107 = vmatpush.msra.mxu0 %v1045
  %1108 = vmatpush.msra.mxu0 %v1041
  %1109 = vmatpush.msra.mxu0 %v1037
  %1110 = vmatpush.msra.mxu0 %v1033
  %1111 = vmatpush.msra.mxu0 %v1029
  %1112 = vmatpush.msra.mxu0 %v1025
  %1113 = vmatpush.msra.mxu0 %v1021
  %1114 = vmatpush.msra.mxu0 %v1017
  %1115 = vmatpush.msra.mxu0 %v1013
  %1116 = vmatpush.msra.mxu0 %v1009
  %1117 = vmatpush.msra.mxu0 %v1005
  %1118 = vmatpush.msra.mxu0 %v1001
  %1119 = vmatmul.f32.gmra.mxu0 %v998
  %v1120 = vpop.f32.mrf.mxu0
  %v1121 = vadd.f32 0.0, %v1120
  %1122 = vdwg.mxu0
  %1123 = vmatpush.msra.mxu0 %v1062
  %1124 = vmatpush.msra.mxu0 %v1058
  %1125 = vmatpush.msra.mxu0 %v1054
  %1126 = vmatpush.msra.mxu0 %v1050
  %1127 = vmatpush.msra.mxu0 %v1046
  %1128 = vmatpush.msra.mxu0 %v1042
  %1129 = vmatpush.msra.mxu0 %v1038
  %1130 = vmatpush.msra.mxu0 %v1034
  %1131 = vmatpush.msra.mxu0 %v1030
  %1132 = vmatpush.msra.mxu0 %v1026
  %1133 = vmatpush.msra.mxu0 %v1022
  %1134 = vmatpush.msra.mxu0 %v1018
  %1135 = vmatpush.msra.mxu0 %v1014
  %1136 = vmatpush.msra.mxu0 %v1010
  %1137 = vmatpush.msra.mxu0 %v1006
  %1138 = vmatpush.msra.mxu0 %v1002
  %1139 = vmatmul.f32.gmra.mxu0 %v998
  %v1140 = vpop.f32.mrf.mxu0
  %v1141 = vadd.f32 0.0, %v1140
  %1142 = vdwg.mxu0
  %v1143 = vadd.f32 %v993, %v1081
  %v1144 = vadd.f32 %v994, %v1101
  %v1145 = vadd.f32 %v995, %v1121
  %v1146 = vadd.f32 %v996, %v1141
  %v1147 = vadd.f32 %v1143, %v31
  %v1148 = vadd.f32 %v1144, %v32
  %v1149 = vadd.f32 %v1145, %v33
  %v1150 = vadd.f32 %v1146, %v34
  %s1151 = scalar_lea.vmem [#allocation2], 32
  %1152 = vst [vmem:[%s1151] sm:$0xff] %v1147
  %1153 = vst [vmem:[%s1151 + $0x8] sm:$0xff] %v1148
  %1154 = vst [vmem:[%s1151 + $0x10] sm:$0xff] %v1149
  %1155 = vst [vmem:[%s1151 + $0x18] sm:$0xff] %v1150
  %s1156 = scalar_lea.vmem %s0, 16
  %v1157 = vld [vmem:[%s1156] sm:$0xff]
  %v1158 = vld [vmem:[%s2] sm:$0xff]
  %v1159 = vld [vmem:[%s2 + $0x8] sm:$0xff]
  %v1160 = vld [vmem:[%s2 + $0x10] sm:$0xff]
  %v1161 = vld [vmem:[%s2 + $0x18] sm:$0xff]
  %v1162 = vld [vmem:[%s2 + $0x20] sm:$0xff]
  %v1163 = vld [vmem:[%s2 + $0x28] sm:$0xff]
  %v1164 = vld [vmem:[%s2 + $0x30] sm:$0xff]
  %v1165 = vld [vmem:[%s2 + $0x38] sm:$0xff]
  %v1166 = vld [vmem:[%s2 + $0x40] sm:$0xff]
  %v1167 = vld [vmem:[%s2 + $0x48] sm:$0xff]
  %v1168 = vld [vmem:[%s2 + $0x50] sm:$0xff]
  %v1169 = vld [vmem:[%s2 + $0x58] sm:$0xff]
  %v1170 = vld [vmem:[%s2 + $0x60] sm:$0xff]
  %v1171 = vld [vmem:[%s2 + $0x68] sm:$0xff]
  %v1172 = vld [vmem:[%s2 + $0x70] sm:$0xff]
  %v1173 = vld [vmem:[%s2 + $0x78] sm:$0xff]
  %v1174 = vld [vmem:[%s2 + $0x80] sm:$0xff]
  %v1175 = vld [vmem:[%s2 + $0x88] sm:$0xff]
  %v1176 = vld [vmem:[%s2 + $0x90] sm:$0xff]
  %v1177 = vld [vmem:[%s2 + $0x98] sm:$0xff]
  %v1178 = vld [vmem:[%s2 + $0xa0] sm:$0xff]
  %v1179 = vld [vmem:[%s2 + $0xa8] sm:$0xff]
  %v1180 = vld [vmem:[%s2 + $0xb0] sm:$0xff]
  %v1181 = vld [vmem:[%s2 + $0xb8] sm:$0xff]
  %v1182 = vld [vmem:[%s2 + $0xc0] sm:$0x3]
  %v1183 = vld [vmem:[%s2 + $0xc8] sm:$0x3]
  %v1184 = vld [vmem:[%s2 + $0xd0] sm:$0x3]
  %v1185 = vld [vmem:[%s2 + $0xd8] sm:$0x3]
  %s1186 = scalar_lea.vmem %s1, 16
  %v1187 = vld [vmem:[%s1186] sm:$0xff]
  %v1188 = vld [vmem:[%s3] sm:$0xff]
  %v1189 = vld [vmem:[%s3 + $0x8] sm:$0xff]
  %v1190 = vld [vmem:[%s3 + $0x10] sm:$0xff]
  %v1191 = vld [vmem:[%s3 + $0x18] sm:$0xff]
  %v1192 = vld [vmem:[%s3 + $0x20] sm:$0xff]
  %v1193 = vld [vmem:[%s3 + $0x28] sm:$0xff]
  %v1194 = vld [vmem:[%s3 + $0x30] sm:$0xff]
  %v1195 = vld [vmem:[%s3 + $0x38] sm:$0xff]
  %v1196 = vld [vmem:[%s3 + $0x40] sm:$0xff]
  %v1197 = vld [vmem:[%s3 + $0x48] sm:$0xff]
  %v1198 = vld [vmem:[%s3 + $0x50] sm:$0xff]
  %v1199 = vld [vmem:[%s3 + $0x58] sm:$0xff]
  %v1200 = vld [vmem:[%s3 + $0x60] sm:$0xff]
  %v1201 = vld [vmem:[%s3 + $0x68] sm:$0xff]
  %v1202 = vld [vmem:[%s3 + $0x70] sm:$0xff]
  %v1203 = vld [vmem:[%s3 + $0x78] sm:$0xff]
  %v1204 = vld [vmem:[%s3 + $0x80] sm:$0xff]
  %v1205 = vld [vmem:[%s3 + $0x88] sm:$0xff]
  %v1206 = vld [vmem:[%s3 + $0x90] sm:$0xff]
  %v1207 = vld [vmem:[%s3 + $0x98] sm:$0xff]
  %v1208 = vld [vmem:[%s3 + $0xa0] sm:$0xff]
  %v1209 = vld [vmem:[%s3 + $0xa8] sm:$0xff]
  %v1210 = vld [vmem:[%s3 + $0xb0] sm:$0xff]
  %v1211 = vld [vmem:[%s3 + $0xb8] sm:$0xff]
  %v1212 = vld [vmem:[%s3 + $0xc0] sm:$0xff]
  %v1213 = vld [vmem:[%s3 + $0xc8] sm:$0xff]
  %v1214 = vld [vmem:[%s3 + $0xd0] sm:$0xff]
  %v1215 = vld [vmem:[%s3 + $0xd8] sm:$0xff]
  %v1216 = vld [vmem:[%s3 + $0xe0] sm:$0xff]
  %v1217 = vld [vmem:[%s3 + $0xe8] sm:$0xff]
  %v1218 = vld [vmem:[%s3 + $0xf0] sm:$0xff]
  %v1219 = vld [vmem:[%s3 + $0xf8] sm:$0xff]
  %v1220 = vld [vmem:[%s3 + $0x100] sm:$0xff]
  %v1221 = vld [vmem:[%s3 + $0x108] sm:$0xff]
  %v1222 = vld [vmem:[%s3 + $0x110] sm:$0xff]
  %v1223 = vld [vmem:[%s3 + $0x118] sm:$0xff]
  %v1224 = vld [vmem:[%s3 + $0x120] sm:$0xff]
  %v1225 = vld [vmem:[%s3 + $0x128] sm:$0xff]
  %v1226 = vld [vmem:[%s3 + $0x130] sm:$0xff]
  %v1227 = vld [vmem:[%s3 + $0x138] sm:$0xff]
  %v1228 = vld [vmem:[%s3 + $0x140] sm:$0xff]
  %v1229 = vld [vmem:[%s3 + $0x148] sm:$0xff]
  %v1230 = vld [vmem:[%s3 + $0x150] sm:$0xff]
  %v1231 = vld [vmem:[%s3 + $0x158] sm:$0xff]
  %v1232 = vld [vmem:[%s3 + $0x160] sm:$0xff]
  %v1233 = vld [vmem:[%s3 + $0x168] sm:$0xff]
  %v1234 = vld [vmem:[%s3 + $0x170] sm:$0xff]
  %v1235 = vld [vmem:[%s3 + $0x178] sm:$0xff]
  %v1236 = vld [vmem:[%s3 + $0x180] sm:$0xff]
  %v1237 = vld [vmem:[%s3 + $0x188] sm:$0xff]
  %v1238 = vld [vmem:[%s3 + $0x190] sm:$0xff]
  %v1239 = vld [vmem:[%s3 + $0x198] sm:$0xff]
  %v1240 = vld [vmem:[%s3 + $0x1a0] sm:$0xff]
  %v1241 = vld [vmem:[%s3 + $0x1a8] sm:$0xff]
  %v1242 = vld [vmem:[%s3 + $0x1b0] sm:$0xff]
  %v1243 = vld [vmem:[%s3 + $0x1b8] sm:$0xff]
  %v1244 = vld [vmem:[%s3 + $0x1c0] sm:$0xff]
  %v1245 = vld [vmem:[%s3 + $0x1c8] sm:$0xff]
  %v1246 = vld [vmem:[%s3 + $0x1d0] sm:$0xff]
  %v1247 = vld [vmem:[%s3 + $0x1d8] sm:$0xff]
  %v1248 = vld [vmem:[%s3 + $0x1e0] sm:$0xff]
  %v1249 = vld [vmem:[%s3 + $0x1e8] sm:$0xff]
  %v1250 = vld [vmem:[%s3 + $0x1f0] sm:$0xff]
  %v1251 = vld [vmem:[%s3 + $0x1f8] sm:$0xff]
  %1252 = vmatpush.msra.mxu0 %v1248
  %1253 = vmatpush.msra.mxu0 %v1244
  %1254 = vmatpush.msra.mxu0 %v1240
  %1255 = vmatpush.msra.mxu0 %v1236
  %1256 = vmatpush.msra.mxu0 %v1232
  %1257 = vmatpush.msra.mxu0 %v1228
  %1258 = vmatpush.msra.mxu0 %v1224
  %1259 = vmatpush.msra.mxu0 %v1220
  %1260 = vmatpush.msra.mxu0 %v1216
  %1261 = vmatpush.msra.mxu0 %v1212
  %1262 = vmatpush.msra.mxu0 %v1208
  %1263 = vmatpush.msra.mxu0 %v1204
  %1264 = vmatpush.msra.mxu0 %v1200
  %1265 = vmatpush.msra.mxu0 %v1196
  %1266 = vmatpush.msra.mxu0 %v1192
  %1267 = vmatpush.msra.mxu0 %v1188
  %1268 = vmatmul.f32.gmra.mxu0 %v1187
  %v1269 = vpop.f32.mrf.mxu0
  %v1270 = vadd.f32 0.0, %v1269
  %1271 = vdwg.mxu0
  %1272 = vmatpush.msra.mxu0 %v1249
  %1273 = vmatpush.msra.mxu0 %v1245
  %1274 = vmatpush.msra.mxu0 %v1241
  %1275 = vmatpush.msra.mxu0 %v1237
  %1276 = vmatpush.msra.mxu0 %v1233
  %1277 = vmatpush.msra.mxu0 %v1229
  %1278 = vmatpush.msra.mxu0 %v1225
  %1279 = vmatpush.msra.mxu0 %v1221
  %1280 = vmatpush.msra.mxu0 %v1217
  %1281 = vmatpush.msra.mxu0 %v1213
  %1282 = vmatpush.msra.mxu0 %v1209
  %1283 = vmatpush.msra.mxu0 %v1205
  %1284 = vmatpush.msra.mxu0 %v1201
  %1285 = vmatpush.msra.mxu0 %v1197
  %1286 = vmatpush.msra.mxu0 %v1193
  %1287 = vmatpush.msra.mxu0 %v1189
  %1288 = vmatmul.f32.gmra.mxu0 %v1187
  %v1289 = vpop.f32.mrf.mxu0
  %v1290 = vadd.f32 0.0, %v1289
  %1291 = vdwg.mxu0
  %1292 = vmatpush.msra.mxu0 %v1250
  %1293 = vmatpush.msra.mxu0 %v1246
  %1294 = vmatpush.msra.mxu0 %v1242
  %1295 = vmatpush.msra.mxu0 %v1238
  %1296 = vmatpush.msra.mxu0 %v1234
  %1297 = vmatpush.msra.mxu0 %v1230
  %1298 = vmatpush.msra.mxu0 %v1226
  %1299 = vmatpush.msra.mxu0 %v1222
  %1300 = vmatpush.msra.mxu0 %v1218
  %1301 = vmatpush.msra.mxu0 %v1214
  %1302 = vmatpush.msra.mxu0 %v1210
  %1303 = vmatpush.msra.mxu0 %v1206
  %1304 = vmatpush.msra.mxu0 %v1202
  %1305 = vmatpush.msra.mxu0 %v1198
  %1306 = vmatpush.msra.mxu0 %v1194
  %1307 = vmatpush.msra.mxu0 %v1190
  %1308 = vmatmul.f32.gmra.mxu0 %v1187
  %v1309 = vpop.f32.mrf.mxu0
  %v1310 = vadd.f32 0.0, %v1309
  %1311 = vdwg.mxu0
  %1312 = vmatpush.msra.mxu0 %v1251
  %1313 = vmatpush.msra.mxu0 %v1247
  %1314 = vmatpush.msra.mxu0 %v1243
  %1315 = vmatpush.msra.mxu0 %v1239
  %1316 = vmatpush.msra.mxu0 %v1235
  %1317 = vmatpush.msra.mxu0 %v1231
  %1318 = vmatpush.msra.mxu0 %v1227
  %1319 = vmatpush.msra.mxu0 %v1223
  %1320 = vmatpush.msra.mxu0 %v1219
  %1321 = vmatpush.msra.mxu0 %v1215
  %1322 = vmatpush.msra.mxu0 %v1211
  %1323 = vmatpush.msra.mxu0 %v1207
  %1324 = vmatpush.msra.mxu0 %v1203
  %1325 = vmatpush.msra.mxu0 %v1199
  %1326 = vmatpush.msra.mxu0 %v1195
  %1327 = vmatpush.msra.mxu0 %v1191
  %1328 = vmatmul.f32.gmra.mxu0 %v1187
  %v1329 = vpop.f32.mrf.mxu0
  %v1330 = vadd.f32 0.0, %v1329
  %1331 = vdwg.mxu0
  %v1333 = vsel %vm213, %v1157, 0
  %v1336 = vsel %vm217, %v1182, 0
  %v1339 = vsel %vm217, %v1183, 0
  %v1342 = vsel %vm217, %v1184, 0
  %v1345 = vsel %vm217, %v1185, 0
  %1347 = vmatpush.msra.mxu0 0.0
  %1348 = vmatpush.msra.mxu0 0.0
  %1349 = vmatpush.msra.mxu0 0.0
  %1350 = vmatpush.msra.mxu0 0.0
  %1351 = vmatpush.msra.mxu0 0.0
  %1352 = vmatpush.msra.mxu0 0.0
  %1353 = vmatpush.msra.mxu0 0.0
  %1354 = vmatpush.msra.mxu0 0.0
  %1355 = vmatpush.msra.mxu0 0.0
  %1356 = vmatpush.msra.mxu0 %v1336
  %1357 = vmatpush.msra.mxu0 %v1178
  %1358 = vmatpush.msra.mxu0 %v1174
  %1359 = vmatpush.msra.mxu0 %v1170
  %1360 = vmatpush.msra.mxu0 %v1166
  %1361 = vmatpush.msra.mxu0 %v1162
  %1362 = vmatpush.msra.mxu0 %v1158
  %1363 = vmatmul.f32.gmra.mxu0 %v1333
  %v1364 = vpop.f32.mrf.mxu0
  %v1365 = vadd.f32 %v1270, %v1364
  %1366 = vdwg.mxu0
  %1367 = vmatpush.msra.mxu0 0.0
  %1368 = vmatpush.msra.mxu0 0.0
  %1369 = vmatpush.msra.mxu0 0.0
  %1370 = vmatpush.msra.mxu0 0.0
  %1371 = vmatpush.msra.mxu0 0.0
  %1372 = vmatpush.msra.mxu0 0.0
  %1373 = vmatpush.msra.mxu0 0.0
  %1374 = vmatpush.msra.mxu0 0.0
  %1375 = vmatpush.msra.mxu0 0.0
  %1376 = vmatpush.msra.mxu0 %v1339
  %1377 = vmatpush.msra.mxu0 %v1179
  %1378 = vmatpush.msra.mxu0 %v1175
  %1379 = vmatpush.msra.mxu0 %v1171
  %1380 = vmatpush.msra.mxu0 %v1167
  %1381 = vmatpush.msra.mxu0 %v1163
  %1382 = vmatpush.msra.mxu0 %v1159
  %1383 = vmatmul.f32.gmra.mxu0 %v1333
  %v1384 = vpop.f32.mrf.mxu0
  %v1385 = vadd.f32 %v1290, %v1384
  %1386 = vdwg.mxu0
  %1387 = vmatpush.msra.mxu0 0.0
  %1388 = vmatpush.msra.mxu0 0.0
  %1389 = vmatpush.msra.mxu0 0.0
  %1390 = vmatpush.msra.mxu0 0.0
  %1391 = vmatpush.msra.mxu0 0.0
  %1392 = vmatpush.msra.mxu0 0.0
  %1393 = vmatpush.msra.mxu0 0.0
  %1394 = vmatpush.msra.mxu0 0.0
  %1395 = vmatpush.msra.mxu0 0.0
  %1396 = vmatpush.msra.mxu0 %v1342
  %1397 = vmatpush.msra.mxu0 %v1180
  %1398 = vmatpush.msra.mxu0 %v1176
  %1399 = vmatpush.msra.mxu0 %v1172
  %1400 = vmatpush.msra.mxu0 %v1168
  %1401 = vmatpush.msra.mxu0 %v1164
  %1402 = vmatpush.msra.mxu0 %v1160
  %1403 = vmatmul.f32.gmra.mxu0 %v1333
  %v1404 = vpop.f32.mrf.mxu0
  %v1405 = vadd.f32 %v1310, %v1404
  %1406 = vdwg.mxu0
  %1407 = vmatpush.msra.mxu0 0.0
  %1408 = vmatpush.msra.mxu0 0.0
  %1409 = vmatpush.msra.mxu0 0.0
  %1410 = vmatpush.msra.mxu0 0.0
  %1411 = vmatpush.msra.mxu0 0.0
  %1412 = vmatpush.msra.mxu0 0.0
  %1413 = vmatpush.msra.mxu0 0.0
  %1414 = vmatpush.msra.mxu0 0.0
  %1415 = vmatpush.msra.mxu0 0.0
  %1416 = vmatpush.msra.mxu0 %v1345
  %1417 = vmatpush.msra.mxu0 %v1181
  %1418 = vmatpush.msra.mxu0 %v1177
  %1419 = vmatpush.msra.mxu0 %v1173
  %1420 = vmatpush.msra.mxu0 %v1169
  %1421 = vmatpush.msra.mxu0 %v1165
  %1422 = vmatpush.msra.mxu0 %v1161
  %1423 = vmatmul.f32.gmra.mxu0 %v1333
  %v1424 = vpop.f32.mrf.mxu0
  %v1425 = vadd.f32 %v1330, %v1424
  %1426 = vdwg.mxu0
  %s1427 = scalar_lea.vmem %s0, 40
  %v1428 = vld [vmem:[%s1427] sm:$0xff]
  %v1429 = vld [vmem:[%s4] sm:$0xff]
  %v1430 = vld [vmem:[%s4 + $0x8] sm:$0xff]
  %v1431 = vld [vmem:[%s4 + $0x10] sm:$0xff]
  %v1432 = vld [vmem:[%s4 + $0x18] sm:$0xff]
  %v1433 = vld [vmem:[%s4 + $0x20] sm:$0xff]
  %v1434 = vld [vmem:[%s4 + $0x28] sm:$0xff]
  %v1435 = vld [vmem:[%s4 + $0x30] sm:$0xff]
  %v1436 = vld [vmem:[%s4 + $0x38] sm:$0xff]
  %v1437 = vld [vmem:[%s4 + $0x40] sm:$0xff]
  %v1438 = vld [vmem:[%s4 + $0x48] sm:$0xff]
  %v1439 = vld [vmem:[%s4 + $0x50] sm:$0xff]
  %v1440 = vld [vmem:[%s4 + $0x58] sm:$0xff]
  %v1441 = vld [vmem:[%s4 + $0x60] sm:$0xff]
  %v1442 = vld [vmem:[%s4 + $0x68] sm:$0xff]
  %v1443 = vld [vmem:[%s4 + $0x70] sm:$0xff]
  %v1444 = vld [vmem:[%s4 + $0x78] sm:$0xff]
  %v1445 = vld [vmem:[%s4 + $0x80] sm:$0xff]
  %v1446 = vld [vmem:[%s4 + $0x88] sm:$0xff]
  %v1447 = vld [vmem:[%s4 + $0x90] sm:$0xff]
  %v1448 = vld [vmem:[%s4 + $0x98] sm:$0xff]
  %v1449 = vld [vmem:[%s4 + $0xa0] sm:$0xff]
  %v1450 = vld [vmem:[%s4 + $0xa8] sm:$0xff]
  %v1451 = vld [vmem:[%s4 + $0xb0] sm:$0xff]
  %v1452 = vld [vmem:[%s4 + $0xb8] sm:$0xff]
  %v1453 = vld [vmem:[%s4 + $0xc0] sm:$0x3]
  %v1454 = vld [vmem:[%s4 + $0xc8] sm:$0x3]
  %v1455 = vld [vmem:[%s4 + $0xd0] sm:$0x3]
  %v1456 = vld [vmem:[%s4 + $0xd8] sm:$0x3]
  %v1458 = vsel %vm213, %v1428, 0
  %v1461 = vsel %vm217, %v1453, 0
  %v1464 = vsel %vm217, %v1454, 0
  %v1467 = vsel %vm217, %v1455, 0
  %v1470 = vsel %vm217, %v1456, 0
  %1472 = vmatpush.msra.mxu0 0.0
  %1473 = vmatpush.msra.mxu0 0.0
  %1474 = vmatpush.msra.mxu0 0.0
  %1475 = vmatpush.msra.mxu0 0.0
  %1476 = vmatpush.msra.mxu0 0.0
  %1477 = vmatpush.msra.mxu0 0.0
  %1478 = vmatpush.msra.mxu0 0.0
  %1479 = vmatpush.msra.mxu0 0.0
  %1480 = vmatpush.msra.mxu0 0.0
  %1481 = vmatpush.msra.mxu0 %v1461
  %1482 = vmatpush.msra.mxu0 %v1449
  %1483 = vmatpush.msra.mxu0 %v1445
  %1484 = vmatpush.msra.mxu0 %v1441
  %1485 = vmatpush.msra.mxu0 %v1437
  %1486 = vmatpush.msra.mxu0 %v1433
  %1487 = vmatpush.msra.mxu0 %v1429
  %1488 = vmatmul.f32.gmra.mxu0 %v1458
  %v1489 = vpop.f32.mrf.mxu0
  %v1490 = vadd.f32 0.0, %v1489
  %1491 = vdwg.mxu0
  %1492 = vmatpush.msra.mxu0 0.0
  %1493 = vmatpush.msra.mxu0 0.0
  %1494 = vmatpush.msra.mxu0 0.0
  %1495 = vmatpush.msra.mxu0 0.0
  %1496 = vmatpush.msra.mxu0 0.0
  %1497 = vmatpush.msra.mxu0 0.0
  %1498 = vmatpush.msra.mxu0 0.0
  %1499 = vmatpush.msra.mxu0 0.0
  %1500 = vmatpush.msra.mxu0 0.0
  %1501 = vmatpush.msra.mxu0 %v1464
  %1502 = vmatpush.msra.mxu0 %v1450
  %1503 = vmatpush.msra.mxu0 %v1446
  %1504 = vmatpush.msra.mxu0 %v1442
  %1505 = vmatpush.msra.mxu0 %v1438
  %1506 = vmatpush.msra.mxu0 %v1434
  %1507 = vmatpush.msra.mxu0 %v1430
  %1508 = vmatmul.f32.gmra.mxu0 %v1458
  %v1509 = vpop.f32.mrf.mxu0
  %v1510 = vadd.f32 0.0, %v1509
  %1511 = vdwg.mxu0
  %1512 = vmatpush.msra.mxu0 0.0
  %1513 = vmatpush.msra.mxu0 0.0
  %1514 = vmatpush.msra.mxu0 0.0
  %1515 = vmatpush.msra.mxu0 0.0
  %1516 = vmatpush.msra.mxu0 0.0
  %1517 = vmatpush.msra.mxu0 0.0
  %1518 = vmatpush.msra.mxu0 0.0
  %1519 = vmatpush.msra.mxu0 0.0
  %1520 = vmatpush.msra.mxu0 0.0
  %1521 = vmatpush.msra.mxu0 %v1467
  %1522 = vmatpush.msra.mxu0 %v1451
  %1523 = vmatpush.msra.mxu0 %v1447
  %1524 = vmatpush.msra.mxu0 %v1443
  %1525 = vmatpush.msra.mxu0 %v1439
  %1526 = vmatpush.msra.mxu0 %v1435
  %1527 = vmatpush.msra.mxu0 %v1431
  %1528 = vmatmul.f32.gmra.mxu0 %v1458
  %v1529 = vpop.f32.mrf.mxu0
  %v1530 = vadd.f32 0.0, %v1529
  %1531 = vdwg.mxu0
  %1532 = vmatpush.msra.mxu0 0.0
  %1533 = vmatpush.msra.mxu0 0.0
  %1534 = vmatpush.msra.mxu0 0.0
  %1535 = vmatpush.msra.mxu0 0.0
  %1536 = vmatpush.msra.mxu0 0.0
  %1537 = vmatpush.msra.mxu0 0.0
  %1538 = vmatpush.msra.mxu0 0.0
  %1539 = vmatpush.msra.mxu0 0.0
  %1540 = vmatpush.msra.mxu0 0.0
  %1541 = vmatpush.msra.mxu0 %v1470
  %1542 = vmatpush.msra.mxu0 %v1452
  %1543 = vmatpush.msra.mxu0 %v1448
  %1544 = vmatpush.msra.mxu0 %v1444
  %1545 = vmatpush.msra.mxu0 %v1440
  %1546 = vmatpush.msra.mxu0 %v1436
  %1547 = vmatpush.msra.mxu0 %v1432
  %1548 = vmatmul.f32.gmra.mxu0 %v1458
  %v1549 = vpop.f32.mrf.mxu0
  %v1550 = vadd.f32 0.0, %v1549
  %1551 = vdwg.mxu0
  %v1552 = vadd.f32 %v1365, %v1490
  %v1553 = vadd.f32 %v1385, %v1510
  %v1554 = vadd.f32 %v1405, %v1530
  %v1555 = vadd.f32 %v1425, %v1550
  %s1556 = scalar_lea.vmem %s1, 40
  %v1557 = vld [vmem:[%s1556] sm:$0xff]
  %v1558 = vld [vmem:[%s5] sm:$0xff]
  %v1559 = vld [vmem:[%s5 + $0x8] sm:$0xff]
  %v1560 = vld [vmem:[%s5 + $0x10] sm:$0xff]
  %v1561 = vld [vmem:[%s5 + $0x18] sm:$0xff]
  %v1562 = vld [vmem:[%s5 + $0x20] sm:$0xff]
  %v1563 = vld [vmem:[%s5 + $0x28] sm:$0xff]
  %v1564 = vld [vmem:[%s5 + $0x30] sm:$0xff]
  %v1565 = vld [vmem:[%s5 + $0x38] sm:$0xff]
  %v1566 = vld [vmem:[%s5 + $0x40] sm:$0xff]
  %v1567 = vld [vmem:[%s5 + $0x48] sm:$0xff]
  %v1568 = vld [vmem:[%s5 + $0x50] sm:$0xff]
  %v1569 = vld [vmem:[%s5 + $0x58] sm:$0xff]
  %v1570 = vld [vmem:[%s5 + $0x60] sm:$0xff]
  %v1571 = vld [vmem:[%s5 + $0x68] sm:$0xff]
  %v1572 = vld [vmem:[%s5 + $0x70] sm:$0xff]
  %v1573 = vld [vmem:[%s5 + $0x78] sm:$0xff]
  %v1574 = vld [vmem:[%s5 + $0x80] sm:$0xff]
  %v1575 = vld [vmem:[%s5 + $0x88] sm:$0xff]
  %v1576 = vld [vmem:[%s5 + $0x90] sm:$0xff]
  %v1577 = vld [vmem:[%s5 + $0x98] sm:$0xff]
  %v1578 = vld [vmem:[%s5 + $0xa0] sm:$0xff]
  %v1579 = vld [vmem:[%s5 + $0xa8] sm:$0xff]
  %v1580 = vld [vmem:[%s5 + $0xb0] sm:$0xff]
  %v1581 = vld [vmem:[%s5 + $0xb8] sm:$0xff]
  %v1582 = vld [vmem:[%s5 + $0xc0] sm:$0xff]
  %v1583 = vld [vmem:[%s5 + $0xc8] sm:$0xff]
  %v1584 = vld [vmem:[%s5 + $0xd0] sm:$0xff]
  %v1585 = vld [vmem:[%s5 + $0xd8] sm:$0xff]
  %v1586 = vld [vmem:[%s5 + $0xe0] sm:$0xff]
  %v1587 = vld [vmem:[%s5 + $0xe8] sm:$0xff]
  %v1588 = vld [vmem:[%s5 + $0xf0] sm:$0xff]
  %v1589 = vld [vmem:[%s5 + $0xf8] sm:$0xff]
  %v1590 = vld [vmem:[%s5 + $0x100] sm:$0xff]
  %v1591 = vld [vmem:[%s5 + $0x108] sm:$0xff]
  %v1592 = vld [vmem:[%s5 + $0x110] sm:$0xff]
  %v1593 = vld [vmem:[%s5 + $0x118] sm:$0xff]
  %v1594 = vld [vmem:[%s5 + $0x120] sm:$0xff]
  %v1595 = vld [vmem:[%s5 + $0x128] sm:$0xff]
  %v1596 = vld [vmem:[%s5 + $0x130] sm:$0xff]
  %v1597 = vld [vmem:[%s5 + $0x138] sm:$0xff]
  %v1598 = vld [vmem:[%s5 + $0x140] sm:$0xff]
  %v1599 = vld [vmem:[%s5 + $0x148] sm:$0xff]
  %v1600 = vld [vmem:[%s5 + $0x150] sm:$0xff]
  %v1601 = vld [vmem:[%s5 + $0x158] sm:$0xff]
  %v1602 = vld [vmem:[%s5 + $0x160] sm:$0xff]
  %v1603 = vld [vmem:[%s5 + $0x168] sm:$0xff]
  %v1604 = vld [vmem:[%s5 + $0x170] sm:$0xff]
  %v1605 = vld [vmem:[%s5 + $0x178] sm:$0xff]
  %v1606 = vld [vmem:[%s5 + $0x180] sm:$0xff]
  %v1607 = vld [vmem:[%s5 + $0x188] sm:$0xff]
  %v1608 = vld [vmem:[%s5 + $0x190] sm:$0xff]
  %v1609 = vld [vmem:[%s5 + $0x198] sm:$0xff]
  %v1610 = vld [vmem:[%s5 + $0x1a0] sm:$0xff]
  %v1611 = vld [vmem:[%s5 + $0x1a8] sm:$0xff]
  %v1612 = vld [vmem:[%s5 + $0x1b0] sm:$0xff]
  %v1613 = vld [vmem:[%s5 + $0x1b8] sm:$0xff]
  %v1614 = vld [vmem:[%s5 + $0x1c0] sm:$0xff]
  %v1615 = vld [vmem:[%s5 + $0x1c8] sm:$0xff]
  %v1616 = vld [vmem:[%s5 + $0x1d0] sm:$0xff]
  %v1617 = vld [vmem:[%s5 + $0x1d8] sm:$0xff]
  %v1618 = vld [vmem:[%s5 + $0x1e0] sm:$0xff]
  %v1619 = vld [vmem:[%s5 + $0x1e8] sm:$0xff]
  %v1620 = vld [vmem:[%s5 + $0x1f0] sm:$0xff]
  %v1621 = vld [vmem:[%s5 + $0x1f8] sm:$0xff]
  %1622 = vmatpush.msra.mxu0 %v1618
  %1623 = vmatpush.msra.mxu0 %v1614
  %1624 = vmatpush.msra.mxu0 %v1610
  %1625 = vmatpush.msra.mxu0 %v1606
  %1626 = vmatpush.msra.mxu0 %v1602
  %1627 = vmatpush.msra.mxu0 %v1598
  %1628 = vmatpush.msra.mxu0 %v1594
  %1629 = vmatpush.msra.mxu0 %v1590
  %1630 = vmatpush.msra.mxu0 %v1586
  %1631 = vmatpush.msra.mxu0 %v1582
  %1632 = vmatpush.msra.mxu0 %v1578
  %1633 = vmatpush.msra.mxu0 %v1574
  %1634 = vmatpush.msra.mxu0 %v1570
  %1635 = vmatpush.msra.mxu0 %v1566
  %1636 = vmatpush.msra.mxu0 %v1562
  %1637 = vmatpush.msra.mxu0 %v1558
  %1638 = vmatmul.f32.gmra.mxu0 %v1557
  %v1639 = vpop.f32.mrf.mxu0
  %v1640 = vadd.f32 0.0, %v1639
  %1641 = vdwg.mxu0
  %1642 = vmatpush.msra.mxu0 %v1619
  %1643 = vmatpush.msra.mxu0 %v1615
  %1644 = vmatpush.msra.mxu0 %v1611
  %1645 = vmatpush.msra.mxu0 %v1607
  %1646 = vmatpush.msra.mxu0 %v1603
  %1647 = vmatpush.msra.mxu0 %v1599
  %1648 = vmatpush.msra.mxu0 %v1595
  %1649 = vmatpush.msra.mxu0 %v1591
  %1650 = vmatpush.msra.mxu0 %v1587
  %1651 = vmatpush.msra.mxu0 %v1583
  %1652 = vmatpush.msra.mxu0 %v1579
  %1653 = vmatpush.msra.mxu0 %v1575
  %1654 = vmatpush.msra.mxu0 %v1571
  %1655 = vmatpush.msra.mxu0 %v1567
  %1656 = vmatpush.msra.mxu0 %v1563
  %1657 = vmatpush.msra.mxu0 %v1559
  %1658 = vmatmul.f32.gmra.mxu0 %v1557
  %v1659 = vpop.f32.mrf.mxu0
  %v1660 = vadd.f32 0.0, %v1659
  %1661 = vdwg.mxu0
  %1662 = vmatpush.msra.mxu0 %v1620
  %1663 = vmatpush.msra.mxu0 %v1616
  %1664 = vmatpush.msra.mxu0 %v1612
  %1665 = vmatpush.msra.mxu0 %v1608
  %1666 = vmatpush.msra.mxu0 %v1604
  %1667 = vmatpush.msra.mxu0 %v1600
  %1668 = vmatpush.msra.mxu0 %v1596
  %1669 = vmatpush.msra.mxu0 %v1592
  %1670 = vmatpush.msra.mxu0 %v1588
  %1671 = vmatpush.msra.mxu0 %v1584
  %1672 = vmatpush.msra.mxu0 %v1580
  %1673 = vmatpush.msra.mxu0 %v1576
  %1674 = vmatpush.msra.mxu0 %v1572
  %1675 = vmatpush.msra.mxu0 %v1568
  %1676 = vmatpush.msra.mxu0 %v1564
  %1677 = vmatpush.msra.mxu0 %v1560
  %1678 = vmatmul.f32.gmra.mxu0 %v1557
  %v1679 = vpop.f32.mrf.mxu0
  %v1680 = vadd.f32 0.0, %v1679
  %1681 = vdwg.mxu0
  %1682 = vmatpush.msra.mxu0 %v1621
  %1683 = vmatpush.msra.mxu0 %v1617
  %1684 = vmatpush.msra.mxu0 %v1613
  %1685 = vmatpush.msra.mxu0 %v1609
  %1686 = vmatpush.msra.mxu0 %v1605
  %1687 = vmatpush.msra.mxu0 %v1601
  %1688 = vmatpush.msra.mxu0 %v1597
  %1689 = vmatpush.msra.mxu0 %v1593
  %1690 = vmatpush.msra.mxu0 %v1589
  %1691 = vmatpush.msra.mxu0 %v1585
  %1692 = vmatpush.msra.mxu0 %v1581
  %1693 = vmatpush.msra.mxu0 %v1577
  %1694 = vmatpush.msra.mxu0 %v1573
  %1695 = vmatpush.msra.mxu0 %v1569
  %1696 = vmatpush.msra.mxu0 %v1565
  %1697 = vmatpush.msra.mxu0 %v1561
  %1698 = vmatmul.f32.gmra.mxu0 %v1557
  %v1699 = vpop.f32.mrf.mxu0
  %v1700 = vadd.f32 0.0, %v1699
  %1701 = vdwg.mxu0
  %v1702 = vadd.f32 %v1552, %v1640
  %v1703 = vadd.f32 %v1553, %v1660
  %v1704 = vadd.f32 %v1554, %v1680
  %v1705 = vadd.f32 %v1555, %v1700
  %v1706 = vadd.f32 %v1702, %v31
  %v1707 = vadd.f32 %v1703, %v32
  %v1708 = vadd.f32 %v1704, %v33
  %v1709 = vadd.f32 %v1705, %v34
  %s1710 = scalar_lea.vmem [#allocation2], 64
  %1711 = vst [vmem:[%s1710] sm:$0xff] %v1706
  %1712 = vst [vmem:[%s1710 + $0x8] sm:$0xff] %v1707
  %1713 = vst [vmem:[%s1710 + $0x10] sm:$0xff] %v1708
  %1714 = vst [vmem:[%s1710 + $0x18] sm:$0xff] %v1709
  %s1715 = scalar_lea.vmem %s0, 24
  %v1716 = vld [vmem:[%s1715] sm:$0xff]
  %v1717 = vld [vmem:[%s2] sm:$0xff]
  %v1718 = vld [vmem:[%s2 + $0x8] sm:$0xff]
  %v1719 = vld [vmem:[%s2 + $0x10] sm:$0xff]
  %v1720 = vld [vmem:[%s2 + $0x18] sm:$0xff]
  %v1721 = vld [vmem:[%s2 + $0x20] sm:$0xff]
  %v1722 = vld [vmem:[%s2 + $0x28] sm:$0xff]
  %v1723 = vld [vmem:[%s2 + $0x30] sm:$0xff]
  %v1724 = vld [vmem:[%s2 + $0x38] sm:$0xff]
  %v1725 = vld [vmem:[%s2 + $0x40] sm:$0xff]
  %v1726 = vld [vmem:[%s2 + $0x48] sm:$0xff]
  %v1727 = vld [vmem:[%s2 + $0x50] sm:$0xff]
  %v1728 = vld [vmem:[%s2 + $0x58] sm:$0xff]
  %v1729 = vld [vmem:[%s2 + $0x60] sm:$0xff]
  %v1730 = vld [vmem:[%s2 + $0x68] sm:$0xff]
  %v1731 = vld [vmem:[%s2 + $0x70] sm:$0xff]
  %v1732 = vld [vmem:[%s2 + $0x78] sm:$0xff]
  %v1733 = vld [vmem:[%s2 + $0x80] sm:$0xff]
  %v1734 = vld [vmem:[%s2 + $0x88] sm:$0xff]
  %v1735 = vld [vmem:[%s2 + $0x90] sm:$0xff]
  %v1736 = vld [vmem:[%s2 + $0x98] sm:$0xff]
  %v1737 = vld [vmem:[%s2 + $0xa0] sm:$0xff]
  %v1738 = vld [vmem:[%s2 + $0xa8] sm:$0xff]
  %v1739 = vld [vmem:[%s2 + $0xb0] sm:$0xff]
  %v1740 = vld [vmem:[%s2 + $0xb8] sm:$0xff]
  %v1741 = vld [vmem:[%s2 + $0xc0] sm:$0x3]
  %v1742 = vld [vmem:[%s2 + $0xc8] sm:$0x3]
  %v1743 = vld [vmem:[%s2 + $0xd0] sm:$0x3]
  %v1744 = vld [vmem:[%s2 + $0xd8] sm:$0x3]
  %s1745 = scalar_lea.vmem %s1, 24
  %v1746 = vld [vmem:[%s1745] sm:$0xff]
  %v1747 = vld [vmem:[%s3] sm:$0xff]
  %v1748 = vld [vmem:[%s3 + $0x8] sm:$0xff]
  %v1749 = vld [vmem:[%s3 + $0x10] sm:$0xff]
  %v1750 = vld [vmem:[%s3 + $0x18] sm:$0xff]
  %v1751 = vld [vmem:[%s3 + $0x20] sm:$0xff]
  %v1752 = vld [vmem:[%s3 + $0x28] sm:$0xff]
  %v1753 = vld [vmem:[%s3 + $0x30] sm:$0xff]
  %v1754 = vld [vmem:[%s3 + $0x38] sm:$0xff]
  %v1755 = vld [vmem:[%s3 + $0x40] sm:$0xff]
  %v1756 = vld [vmem:[%s3 + $0x48] sm:$0xff]
  %v1757 = vld [vmem:[%s3 + $0x50] sm:$0xff]
  %v1758 = vld [vmem:[%s3 + $0x58] sm:$0xff]
  %v1759 = vld [vmem:[%s3 + $0x60] sm:$0xff]
  %v1760 = vld [vmem:[%s3 + $0x68] sm:$0xff]
  %v1761 = vld [vmem:[%s3 + $0x70] sm:$0xff]
  %v1762 = vld [vmem:[%s3 + $0x78] sm:$0xff]
  %v1763 = vld [vmem:[%s3 + $0x80] sm:$0xff]
  %v1764 = vld [vmem:[%s3 + $0x88] sm:$0xff]
  %v1765 = vld [vmem:[%s3 + $0x90] sm:$0xff]
  %v1766 = vld [vmem:[%s3 + $0x98] sm:$0xff]
  %v1767 = vld [vmem:[%s3 + $0xa0] sm:$0xff]
  %v1768 = vld [vmem:[%s3 + $0xa8] sm:$0xff]
  %v1769 = vld [vmem:[%s3 + $0xb0] sm:$0xff]
  %v1770 = vld [vmem:[%s3 + $0xb8] sm:$0xff]
  %v1771 = vld [vmem:[%s3 + $0xc0] sm:$0xff]
  %v1772 = vld [vmem:[%s3 + $0xc8] sm:$0xff]
  %v1773 = vld [vmem:[%s3 + $0xd0] sm:$0xff]
  %v1774 = vld [vmem:[%s3 + $0xd8] sm:$0xff]
  %v1775 = vld [vmem:[%s3 + $0xe0] sm:$0xff]
  %v1776 = vld [vmem:[%s3 + $0xe8] sm:$0xff]
  %v1777 = vld [vmem:[%s3 + $0xf0] sm:$0xff]
  %v1778 = vld [vmem:[%s3 + $0xf8] sm:$0xff]
  %v1779 = vld [vmem:[%s3 + $0x100] sm:$0xff]
  %v1780 = vld [vmem:[%s3 + $0x108] sm:$0xff]
  %v1781 = vld [vmem:[%s3 + $0x110] sm:$0xff]
  %v1782 = vld [vmem:[%s3 + $0x118] sm:$0xff]
  %v1783 = vld [vmem:[%s3 + $0x120] sm:$0xff]
  %v1784 = vld [vmem:[%s3 + $0x128] sm:$0xff]
  %v1785 = vld [vmem:[%s3 + $0x130] sm:$0xff]
  %v1786 = vld [vmem:[%s3 + $0x138] sm:$0xff]
  %v1787 = vld [vmem:[%s3 + $0x140] sm:$0xff]
  %v1788 = vld [vmem:[%s3 + $0x148] sm:$0xff]
  %v1789 = vld [vmem:[%s3 + $0x150] sm:$0xff]
  %v1790 = vld [vmem:[%s3 + $0x158] sm:$0xff]
  %v1791 = vld [vmem:[%s3 + $0x160] sm:$0xff]
  %v1792 = vld [vmem:[%s3 + $0x168] sm:$0xff]
  %v1793 = vld [vmem:[%s3 + $0x170] sm:$0xff]
  %v1794 = vld [vmem:[%s3 + $0x178] sm:$0xff]
  %v1795 = vld [vmem:[%s3 + $0x180] sm:$0xff]
  %v1796 = vld [vmem:[%s3 + $0x188] sm:$0xff]
  %v1797 = vld [vmem:[%s3 + $0x190] sm:$0xff]
  %v1798 = vld [vmem:[%s3 + $0x198] sm:$0xff]
  %v1799 = vld [vmem:[%s3 + $0x1a0] sm:$0xff]
  %v1800 = vld [vmem:[%s3 + $0x1a8] sm:$0xff]
  %v1801 = vld [vmem:[%s3 + $0x1b0] sm:$0xff]
  %v1802 = vld [vmem:[%s3 + $0x1b8] sm:$0xff]
  %v1803 = vld [vmem:[%s3 + $0x1c0] sm:$0xff]
  %v1804 = vld [vmem:[%s3 + $0x1c8] sm:$0xff]
  %v1805 = vld [vmem:[%s3 + $0x1d0] sm:$0xff]
  %v1806 = vld [vmem:[%s3 + $0x1d8] sm:$0xff]
  %v1807 = vld [vmem:[%s3 + $0x1e0] sm:$0xff]
  %v1808 = vld [vmem:[%s3 + $0x1e8] sm:$0xff]
  %v1809 = vld [vmem:[%s3 + $0x1f0] sm:$0xff]
  %v1810 = vld [vmem:[%s3 + $0x1f8] sm:$0xff]
  %1811 = vmatpush.msra.mxu0 %v1807
  %1812 = vmatpush.msra.mxu0 %v1803
  %1813 = vmatpush.msra.mxu0 %v1799
  %1814 = vmatpush.msra.mxu0 %v1795
  %1815 = vmatpush.msra.mxu0 %v1791
  %1816 = vmatpush.msra.mxu0 %v1787
  %1817 = vmatpush.msra.mxu0 %v1783
  %1818 = vmatpush.msra.mxu0 %v1779
  %1819 = vmatpush.msra.mxu0 %v1775
  %1820 = vmatpush.msra.mxu0 %v1771
  %1821 = vmatpush.msra.mxu0 %v1767
  %1822 = vmatpush.msra.mxu0 %v1763
  %1823 = vmatpush.msra.mxu0 %v1759
  %1824 = vmatpush.msra.mxu0 %v1755
  %1825 = vmatpush.msra.mxu0 %v1751
  %1826 = vmatpush.msra.mxu0 %v1747
  %1827 = vmatmul.f32.gmra.mxu0 %v1746
  %v1828 = vpop.f32.mrf.mxu0
  %v1829 = vadd.f32 0.0, %v1828
  %1830 = vdwg.mxu0
  %1831 = vmatpush.msra.mxu0 %v1808
  %1832 = vmatpush.msra.mxu0 %v1804
  %1833 = vmatpush.msra.mxu0 %v1800
  %1834 = vmatpush.msra.mxu0 %v1796
  %1835 = vmatpush.msra.mxu0 %v1792
  %1836 = vmatpush.msra.mxu0 %v1788
  %1837 = vmatpush.msra.mxu0 %v1784
  %1838 = vmatpush.msra.mxu0 %v1780
  %1839 = vmatpush.msra.mxu0 %v1776
  %1840 = vmatpush.msra.mxu0 %v1772
  %1841 = vmatpush.msra.mxu0 %v1768
  %1842 = vmatpush.msra.mxu0 %v1764
  %1843 = vmatpush.msra.mxu0 %v1760
  %1844 = vmatpush.msra.mxu0 %v1756
  %1845 = vmatpush.msra.mxu0 %v1752
  %1846 = vmatpush.msra.mxu0 %v1748
  %1847 = vmatmul.f32.gmra.mxu0 %v1746
  %v1848 = vpop.f32.mrf.mxu0
  %v1849 = vadd.f32 0.0, %v1848
  %1850 = vdwg.mxu0
  %1851 = vmatpush.msra.mxu0 %v1809
  %1852 = vmatpush.msra.mxu0 %v1805
  %1853 = vmatpush.msra.mxu0 %v1801
  %1854 = vmatpush.msra.mxu0 %v1797
  %1855 = vmatpush.msra.mxu0 %v1793
  %1856 = vmatpush.msra.mxu0 %v1789
  %1857 = vmatpush.msra.mxu0 %v1785
  %1858 = vmatpush.msra.mxu0 %v1781
  %1859 = vmatpush.msra.mxu0 %v1777
  %1860 = vmatpush.msra.mxu0 %v1773
  %1861 = vmatpush.msra.mxu0 %v1769
  %1862 = vmatpush.msra.mxu0 %v1765
  %1863 = vmatpush.msra.mxu0 %v1761
  %1864 = vmatpush.msra.mxu0 %v1757
  %1865 = vmatpush.msra.mxu0 %v1753
  %1866 = vmatpush.msra.mxu0 %v1749
  %1867 = vmatmul.f32.gmra.mxu0 %v1746
  %v1868 = vpop.f32.mrf.mxu0
  %v1869 = vadd.f32 0.0, %v1868
  %1870 = vdwg.mxu0
  %1871 = vmatpush.msra.mxu0 %v1810
  %1872 = vmatpush.msra.mxu0 %v1806
  %1873 = vmatpush.msra.mxu0 %v1802
  %1874 = vmatpush.msra.mxu0 %v1798
  %1875 = vmatpush.msra.mxu0 %v1794
  %1876 = vmatpush.msra.mxu0 %v1790
  %1877 = vmatpush.msra.mxu0 %v1786
  %1878 = vmatpush.msra.mxu0 %v1782
  %1879 = vmatpush.msra.mxu0 %v1778
  %1880 = vmatpush.msra.mxu0 %v1774
  %1881 = vmatpush.msra.mxu0 %v1770
  %1882 = vmatpush.msra.mxu0 %v1766
  %1883 = vmatpush.msra.mxu0 %v1762
  %1884 = vmatpush.msra.mxu0 %v1758
  %1885 = vmatpush.msra.mxu0 %v1754
  %1886 = vmatpush.msra.mxu0 %v1750
  %1887 = vmatmul.f32.gmra.mxu0 %v1746
  %v1888 = vpop.f32.mrf.mxu0
  %v1889 = vadd.f32 0.0, %v1888
  %1890 = vdwg.mxu0
  %v1892 = vsel %vm213, %v1716, 0
  %v1895 = vsel %vm217, %v1741, 0
  %v1898 = vsel %vm217, %v1742, 0
  %v1901 = vsel %vm217, %v1743, 0
  %v1904 = vsel %vm217, %v1744, 0
  %1906 = vmatpush.msra.mxu0 0.0
  %1907 = vmatpush.msra.mxu0 0.0
  %1908 = vmatpush.msra.mxu0 0.0
  %1909 = vmatpush.msra.mxu0 0.0
  %1910 = vmatpush.msra.mxu0 0.0
  %1911 = vmatpush.msra.mxu0 0.0
  %1912 = vmatpush.msra.mxu0 0.0
  %1913 = vmatpush.msra.mxu0 0.0
  %1914 = vmatpush.msra.mxu0 0.0
  %1915 = vmatpush.msra.mxu0 %v1895
  %1916 = vmatpush.msra.mxu0 %v1737
  %1917 = vmatpush.msra.mxu0 %v1733
  %1918 = vmatpush.msra.mxu0 %v1729
  %1919 = vmatpush.msra.mxu0 %v1725
  %1920 = vmatpush.msra.mxu0 %v1721
  %1921 = vmatpush.msra.mxu0 %v1717
  %1922 = vmatmul.f32.gmra.mxu0 %v1892
  %v1923 = vpop.f32.mrf.mxu0
  %v1924 = vadd.f32 %v1829, %v1923
  %1925 = vdwg.mxu0
  %1926 = vmatpush.msra.mxu0 0.0
  %1927 = vmatpush.msra.mxu0 0.0
  %1928 = vmatpush.msra.mxu0 0.0
  %1929 = vmatpush.msra.mxu0 0.0
  %1930 = vmatpush.msra.mxu0 0.0
  %1931 = vmatpush.msra.mxu0 0.0
  %1932 = vmatpush.msra.mxu0 0.0
  %1933 = vmatpush.msra.mxu0 0.0
  %1934 = vmatpush.msra.mxu0 0.0
  %1935 = vmatpush.msra.mxu0 %v1898
  %1936 = vmatpush.msra.mxu0 %v1738
  %1937 = vmatpush.msra.mxu0 %v1734
  %1938 = vmatpush.msra.mxu0 %v1730
  %1939 = vmatpush.msra.mxu0 %v1726
  %1940 = vmatpush.msra.mxu0 %v1722
  %1941 = vmatpush.msra.mxu0 %v1718
  %1942 = vmatmul.f32.gmra.mxu0 %v1892
  %v1943 = vpop.f32.mrf.mxu0
  %v1944 = vadd.f32 %v1849, %v1943
  %1945 = vdwg.mxu0
  %1946 = vmatpush.msra.mxu0 0.0
  %1947 = vmatpush.msra.mxu0 0.0
  %1948 = vmatpush.msra.mxu0 0.0
  %1949 = vmatpush.msra.mxu0 0.0
  %1950 = vmatpush.msra.mxu0 0.0
  %1951 = vmatpush.msra.mxu0 0.0
  %1952 = vmatpush.msra.mxu0 0.0
  %1953 = vmatpush.msra.mxu0 0.0
  %1954 = vmatpush.msra.mxu0 0.0
  %1955 = vmatpush.msra.mxu0 %v1901
  %1956 = vmatpush.msra.mxu0 %v1739
  %1957 = vmatpush.msra.mxu0 %v1735
  %1958 = vmatpush.msra.mxu0 %v1731
  %1959 = vmatpush.msra.mxu0 %v1727
  %1960 = vmatpush.msra.mxu0 %v1723
  %1961 = vmatpush.msra.mxu0 %v1719
  %1962 = vmatmul.f32.gmra.mxu0 %v1892
  %v1963 = vpop.f32.mrf.mxu0
  %v1964 = vadd.f32 %v1869, %v1963
  %1965 = vdwg.mxu0
  %1966 = vmatpush.msra.mxu0 0.0
  %1967 = vmatpush.msra.mxu0 0.0
  %1968 = vmatpush.msra.mxu0 0.0
  %1969 = vmatpush.msra.mxu0 0.0
  %1970 = vmatpush.msra.mxu0 0.0
  %1971 = vmatpush.msra.mxu0 0.0
  %1972 = vmatpush.msra.mxu0 0.0
  %1973 = vmatpush.msra.mxu0 0.0
  %1974 = vmatpush.msra.mxu0 0.0
  %1975 = vmatpush.msra.mxu0 %v1904
  %1976 = vmatpush.msra.mxu0 %v1740
  %1977 = vmatpush.msra.mxu0 %v1736
  %1978 = vmatpush.msra.mxu0 %v1732
  %1979 = vmatpush.msra.mxu0 %v1728
  %1980 = vmatpush.msra.mxu0 %v1724
  %1981 = vmatpush.msra.mxu0 %v1720
  %1982 = vmatmul.f32.gmra.mxu0 %v1892
  %v1983 = vpop.f32.mrf.mxu0
  %v1984 = vadd.f32 %v1889, %v1983
  %1985 = vdwg.mxu0
  %s1986 = scalar_lea.vmem %s0, 32
  %v1987 = vld [vmem:[%s1986] sm:$0xff]
  %v1988 = vld [vmem:[%s4] sm:$0xff]
  %v1989 = vld [vmem:[%s4 + $0x8] sm:$0xff]
  %v1990 = vld [vmem:[%s4 + $0x10] sm:$0xff]
  %v1991 = vld [vmem:[%s4 + $0x18] sm:$0xff]
  %v1992 = vld [vmem:[%s4 + $0x20] sm:$0xff]
  %v1993 = vld [vmem:[%s4 + $0x28] sm:$0xff]
  %v1994 = vld [vmem:[%s4 + $0x30] sm:$0xff]
  %v1995 = vld [vmem:[%s4 + $0x38] sm:$0xff]
  %v1996 = vld [vmem:[%s4 + $0x40] sm:$0xff]
  %v1997 = vld [vmem:[%s4 + $0x48] sm:$0xff]
  %v1998 = vld [vmem:[%s4 + $0x50] sm:$0xff]
  %v1999 = vld [vmem:[%s4 + $0x58] sm:$0xff]
  %v2000 = vld [vmem:[%s4 + $0x60] sm:$0xff]
  %v2001 = vld [vmem:[%s4 + $0x68] sm:$0xff]
  %v2002 = vld [vmem:[%s4 + $0x70] sm:$0xff]
  %v2003 = vld [vmem:[%s4 + $0x78] sm:$0xff]
  %v2004 = vld [vmem:[%s4 + $0x80] sm:$0xff]
  %v2005 = vld [vmem:[%s4 + $0x88] sm:$0xff]
  %v2006 = vld [vmem:[%s4 + $0x90] sm:$0xff]
  %v2007 = vld [vmem:[%s4 + $0x98] sm:$0xff]
  %v2008 = vld [vmem:[%s4 + $0xa0] sm:$0xff]
  %v2009 = vld [vmem:[%s4 + $0xa8] sm:$0xff]
  %v2010 = vld [vmem:[%s4 + $0xb0] sm:$0xff]
  %v2011 = vld [vmem:[%s4 + $0xb8] sm:$0xff]
  %v2012 = vld [vmem:[%s4 + $0xc0] sm:$0x3]
  %v2013 = vld [vmem:[%s4 + $0xc8] sm:$0x3]
  %v2014 = vld [vmem:[%s4 + $0xd0] sm:$0x3]
  %v2015 = vld [vmem:[%s4 + $0xd8] sm:$0x3]
  %v2017 = vsel %vm213, %v1987, 0
  %v2020 = vsel %vm217, %v2012, 0
  %v2023 = vsel %vm217, %v2013, 0
  %v2026 = vsel %vm217, %v2014, 0
  %v2029 = vsel %vm217, %v2015, 0
  %2031 = vmatpush.msra.mxu0 0.0
  %2032 = vmatpush.msra.mxu0 0.0
  %2033 = vmatpush.msra.mxu0 0.0
  %2034 = vmatpush.msra.mxu0 0.0
  %2035 = vmatpush.msra.mxu0 0.0
  %2036 = vmatpush.msra.mxu0 0.0
  %2037 = vmatpush.msra.mxu0 0.0
  %2038 = vmatpush.msra.mxu0 0.0
  %2039 = vmatpush.msra.mxu0 0.0
  %2040 = vmatpush.msra.mxu0 %v2020
  %2041 = vmatpush.msra.mxu0 %v2008
  %2042 = vmatpush.msra.mxu0 %v2004
  %2043 = vmatpush.msra.mxu0 %v2000
  %2044 = vmatpush.msra.mxu0 %v1996
  %2045 = vmatpush.msra.mxu0 %v1992
  %2046 = vmatpush.msra.mxu0 %v1988
  %2047 = vmatmul.f32.gmra.mxu0 %v2017
  %v2048 = vpop.f32.mrf.mxu0
  %v2049 = vadd.f32 0.0, %v2048
  %2050 = vdwg.mxu0
  %2051 = vmatpush.msra.mxu0 0.0
  %2052 = vmatpush.msra.mxu0 0.0
  %2053 = vmatpush.msra.mxu0 0.0
  %2054 = vmatpush.msra.mxu0 0.0
  %2055 = vmatpush.msra.mxu0 0.0
  %2056 = vmatpush.msra.mxu0 0.0
  %2057 = vmatpush.msra.mxu0 0.0
  %2058 = vmatpush.msra.mxu0 0.0
  %2059 = vmatpush.msra.mxu0 0.0
  %2060 = vmatpush.msra.mxu0 %v2023
  %2061 = vmatpush.msra.mxu0 %v2009
  %2062 = vmatpush.msra.mxu0 %v2005
  %2063 = vmatpush.msra.mxu0 %v2001
  %2064 = vmatpush.msra.mxu0 %v1997
  %2065 = vmatpush.msra.mxu0 %v1993
  %2066 = vmatpush.msra.mxu0 %v1989
  %2067 = vmatmul.f32.gmra.mxu0 %v2017
  %v2068 = vpop.f32.mrf.mxu0
  %v2069 = vadd.f32 0.0, %v2068
  %2070 = vdwg.mxu0
  %2071 = vmatpush.msra.mxu0 0.0
  %2072 = vmatpush.msra.mxu0 0.0
  %2073 = vmatpush.msra.mxu0 0.0
  %2074 = vmatpush.msra.mxu0 0.0
  %2075 = vmatpush.msra.mxu0 0.0
  %2076 = vmatpush.msra.mxu0 0.0
  %2077 = vmatpush.msra.mxu0 0.0
  %2078 = vmatpush.msra.mxu0 0.0
  %2079 = vmatpush.msra.mxu0 0.0
  %2080 = vmatpush.msra.mxu0 %v2026
  %2081 = vmatpush.msra.mxu0 %v2010
  %2082 = vmatpush.msra.mxu0 %v2006
  %2083 = vmatpush.msra.mxu0 %v2002
  %2084 = vmatpush.msra.mxu0 %v1998
  %2085 = vmatpush.msra.mxu0 %v1994
  %2086 = vmatpush.msra.mxu0 %v1990
  %2087 = vmatmul.f32.gmra.mxu0 %v2017
  %v2088 = vpop.f32.mrf.mxu0
  %v2089 = vadd.f32 0.0, %v2088
  %2090 = vdwg.mxu0
  %2091 = vmatpush.msra.mxu0 0.0
  %2092 = vmatpush.msra.mxu0 0.0
  %2093 = vmatpush.msra.mxu0 0.0
  %2094 = vmatpush.msra.mxu0 0.0
  %2095 = vmatpush.msra.mxu0 0.0
  %2096 = vmatpush.msra.mxu0 0.0
  %2097 = vmatpush.msra.mxu0 0.0
  %2098 = vmatpush.msra.mxu0 0.0
  %2099 = vmatpush.msra.mxu0 0.0
  %2100 = vmatpush.msra.mxu0 %v2029
  %2101 = vmatpush.msra.mxu0 %v2011
  %2102 = vmatpush.msra.mxu0 %v2007
  %2103 = vmatpush.msra.mxu0 %v2003
  %2104 = vmatpush.msra.mxu0 %v1999
  %2105 = vmatpush.msra.mxu0 %v1995
  %2106 = vmatpush.msra.mxu0 %v1991
  %2107 = vmatmul.f32.gmra.mxu0 %v2017
  %v2108 = vpop.f32.mrf.mxu0
  %v2109 = vadd.f32 0.0, %v2108
  %2110 = vdwg.mxu0
  %v2111 = vadd.f32 %v1924, %v2049
  %v2112 = vadd.f32 %v1944, %v2069
  %v2113 = vadd.f32 %v1964, %v2089
  %v2114 = vadd.f32 %v1984, %v2109
  %s2115 = scalar_lea.vmem %s1, 32
  %v2116 = vld [vmem:[%s2115] sm:$0xff]
  %v2117 = vld [vmem:[%s5] sm:$0xff]
  %v2118 = vld [vmem:[%s5 + $0x8] sm:$0xff]
  %v2119 = vld [vmem:[%s5 + $0x10] sm:$0xff]
  %v2120 = vld [vmem:[%s5 + $0x18] sm:$0xff]
  %v2121 = vld [vmem:[%s5 + $0x20] sm:$0xff]
  %v2122 = vld [vmem:[%s5 + $0x28] sm:$0xff]
  %v2123 = vld [vmem:[%s5 + $0x30] sm:$0xff]
  %v2124 = vld [vmem:[%s5 + $0x38] sm:$0xff]
  %v2125 = vld [vmem:[%s5 + $0x40] sm:$0xff]
  %v2126 = vld [vmem:[%s5 + $0x48] sm:$0xff]
  %v2127 = vld [vmem:[%s5 + $0x50] sm:$0xff]
  %v2128 = vld [vmem:[%s5 + $0x58] sm:$0xff]
  %v2129 = vld [vmem:[%s5 + $0x60] sm:$0xff]
  %v2130 = vld [vmem:[%s5 + $0x68] sm:$0xff]
  %v2131 = vld [vmem:[%s5 + $0x70] sm:$0xff]
  %v2132 = vld [vmem:[%s5 + $0x78] sm:$0xff]
  %v2133 = vld [vmem:[%s5 + $0x80] sm:$0xff]
  %v2134 = vld [vmem:[%s5 + $0x88] sm:$0xff]
  %v2135 = vld [vmem:[%s5 + $0x90] sm:$0xff]
  %v2136 = vld [vmem:[%s5 + $0x98] sm:$0xff]
  %v2137 = vld [vmem:[%s5 + $0xa0] sm:$0xff]
  %v2138 = vld [vmem:[%s5 + $0xa8] sm:$0xff]
  %v2139 = vld [vmem:[%s5 + $0xb0] sm:$0xff]
  %v2140 = vld [vmem:[%s5 + $0xb8] sm:$0xff]
  %v2141 = vld [vmem:[%s5 + $0xc0] sm:$0xff]
  %v2142 = vld [vmem:[%s5 + $0xc8] sm:$0xff]
  %v2143 = vld [vmem:[%s5 + $0xd0] sm:$0xff]
  %v2144 = vld [vmem:[%s5 + $0xd8] sm:$0xff]
  %v2145 = vld [vmem:[%s5 + $0xe0] sm:$0xff]
  %v2146 = vld [vmem:[%s5 + $0xe8] sm:$0xff]
  %v2147 = vld [vmem:[%s5 + $0xf0] sm:$0xff]
  %v2148 = vld [vmem:[%s5 + $0xf8] sm:$0xff]
  %v2149 = vld [vmem:[%s5 + $0x100] sm:$0xff]
  %v2150 = vld [vmem:[%s5 + $0x108] sm:$0xff]
  %v2151 = vld [vmem:[%s5 + $0x110] sm:$0xff]
  %v2152 = vld [vmem:[%s5 + $0x118] sm:$0xff]
  %v2153 = vld [vmem:[%s5 + $0x120] sm:$0xff]
  %v2154 = vld [vmem:[%s5 + $0x128] sm:$0xff]
  %v2155 = vld [vmem:[%s5 + $0x130] sm:$0xff]
  %v2156 = vld [vmem:[%s5 + $0x138] sm:$0xff]
  %v2157 = vld [vmem:[%s5 + $0x140] sm:$0xff]
  %v2158 = vld [vmem:[%s5 + $0x148] sm:$0xff]
  %v2159 = vld [vmem:[%s5 + $0x150] sm:$0xff]
  %v2160 = vld [vmem:[%s5 + $0x158] sm:$0xff]
  %v2161 = vld [vmem:[%s5 + $0x160] sm:$0xff]
  %v2162 = vld [vmem:[%s5 + $0x168] sm:$0xff]
  %v2163 = vld [vmem:[%s5 + $0x170] sm:$0xff]
  %v2164 = vld [vmem:[%s5 + $0x178] sm:$0xff]
  %v2165 = vld [vmem:[%s5 + $0x180] sm:$0xff]
  %v2166 = vld [vmem:[%s5 + $0x188] sm:$0xff]
  %v2167 = vld [vmem:[%s5 + $0x190] sm:$0xff]
  %v2168 = vld [vmem:[%s5 + $0x198] sm:$0xff]
  %v2169 = vld [vmem:[%s5 + $0x1a0] sm:$0xff]
  %v2170 = vld [vmem:[%s5 + $0x1a8] sm:$0xff]
  %v2171 = vld [vmem:[%s5 + $0x1b0] sm:$0xff]
  %v2172 = vld [vmem:[%s5 + $0x1b8] sm:$0xff]
  %v2173 = vld [vmem:[%s5 + $0x1c0] sm:$0xff]
  %v2174 = vld [vmem:[%s5 + $0x1c8] sm:$0xff]
  %v2175 = vld [vmem:[%s5 + $0x1d0] sm:$0xff]
  %v2176 = vld [vmem:[%s5 + $0x1d8] sm:$0xff]
  %v2177 = vld [vmem:[%s5 + $0x1e0] sm:$0xff]
  %v2178 = vld [vmem:[%s5 + $0x1e8] sm:$0xff]
  %v2179 = vld [vmem:[%s5 + $0x1f0] sm:$0xff]
  %v2180 = vld [vmem:[%s5 + $0x1f8] sm:$0xff]
  %2181 = vmatpush.msra.mxu0 %v2177
  %2182 = vmatpush.msra.mxu0 %v2173
  %2183 = vmatpush.msra.mxu0 %v2169
  %2184 = vmatpush.msra.mxu0 %v2165
  %2185 = vmatpush.msra.mxu0 %v2161
  %2186 = vmatpush.msra.mxu0 %v2157
  %2187 = vmatpush.msra.mxu0 %v2153
  %2188 = vmatpush.msra.mxu0 %v2149
  %2189 = vmatpush.msra.mxu0 %v2145
  %2190 = vmatpush.msra.mxu0 %v2141
  %2191 = vmatpush.msra.mxu0 %v2137
  %2192 = vmatpush.msra.mxu0 %v2133
  %2193 = vmatpush.msra.mxu0 %v2129
  %2194 = vmatpush.msra.mxu0 %v2125
  %2195 = vmatpush.msra.mxu0 %v2121
  %2196 = vmatpush.msra.mxu0 %v2117
  %2197 = vmatmul.f32.gmra.mxu0 %v2116
  %v2198 = vpop.f32.mrf.mxu0
  %v2199 = vadd.f32 0.0, %v2198
  %2200 = vdwg.mxu0
  %2201 = vmatpush.msra.mxu0 %v2178
  %2202 = vmatpush.msra.mxu0 %v2174
  %2203 = vmatpush.msra.mxu0 %v2170
  %2204 = vmatpush.msra.mxu0 %v2166
  %2205 = vmatpush.msra.mxu0 %v2162
  %2206 = vmatpush.msra.mxu0 %v2158
  %2207 = vmatpush.msra.mxu0 %v2154
  %2208 = vmatpush.msra.mxu0 %v2150
  %2209 = vmatpush.msra.mxu0 %v2146
  %2210 = vmatpush.msra.mxu0 %v2142
  %2211 = vmatpush.msra.mxu0 %v2138
  %2212 = vmatpush.msra.mxu0 %v2134
  %2213 = vmatpush.msra.mxu0 %v2130
  %2214 = vmatpush.msra.mxu0 %v2126
  %2215 = vmatpush.msra.mxu0 %v2122
  %2216 = vmatpush.msra.mxu0 %v2118
  %2217 = vmatmul.f32.gmra.mxu0 %v2116
  %v2218 = vpop.f32.mrf.mxu0
  %v2219 = vadd.f32 0.0, %v2218
  %2220 = vdwg.mxu0
  %2221 = vmatpush.msra.mxu0 %v2179
  %2222 = vmatpush.msra.mxu0 %v2175
  %2223 = vmatpush.msra.mxu0 %v2171
  %2224 = vmatpush.msra.mxu0 %v2167
  %2225 = vmatpush.msra.mxu0 %v2163
  %2226 = vmatpush.msra.mxu0 %v2159
  %2227 = vmatpush.msra.mxu0 %v2155
  %2228 = vmatpush.msra.mxu0 %v2151
  %2229 = vmatpush.msra.mxu0 %v2147
  %2230 = vmatpush.msra.mxu0 %v2143
  %2231 = vmatpush.msra.mxu0 %v2139
  %2232 = vmatpush.msra.mxu0 %v2135
  %2233 = vmatpush.msra.mxu0 %v2131
  %2234 = vmatpush.msra.mxu0 %v2127
  %2235 = vmatpush.msra.mxu0 %v2123
  %2236 = vmatpush.msra.mxu0 %v2119
  %2237 = vmatmul.f32.gmra.mxu0 %v2116
  %v2238 = vpop.f32.mrf.mxu0
  %v2239 = vadd.f32 0.0, %v2238
  %2240 = vdwg.mxu0
  %2241 = vmatpush.msra.mxu0 %v2180
  %2242 = vmatpush.msra.mxu0 %v2176
  %2243 = vmatpush.msra.mxu0 %v2172
  %2244 = vmatpush.msra.mxu0 %v2168
  %2245 = vmatpush.msra.mxu0 %v2164
  %2246 = vmatpush.msra.mxu0 %v2160
  %2247 = vmatpush.msra.mxu0 %v2156
  %2248 = vmatpush.msra.mxu0 %v2152
  %2249 = vmatpush.msra.mxu0 %v2148
  %2250 = vmatpush.msra.mxu0 %v2144
  %2251 = vmatpush.msra.mxu0 %v2140
  %2252 = vmatpush.msra.mxu0 %v2136
  %2253 = vmatpush.msra.mxu0 %v2132
  %2254 = vmatpush.msra.mxu0 %v2128
  %2255 = vmatpush.msra.mxu0 %v2124
  %2256 = vmatpush.msra.mxu0 %v2120
  %2257 = vmatmul.f32.gmra.mxu0 %v2116
  %v2258 = vpop.f32.mrf.mxu0
  %v2259 = vadd.f32 0.0, %v2258
  %2260 = vdwg.mxu0
  %v2261 = vadd.f32 %v2111, %v2199
  %v2262 = vadd.f32 %v2112, %v2219
  %v2263 = vadd.f32 %v2113, %v2239
  %v2264 = vadd.f32 %v2114, %v2259
  %v2265 = vadd.f32 %v2261, %v31
  %v2266 = vadd.f32 %v2262, %v32
  %v2267 = vadd.f32 %v2263, %v33
  %v2268 = vadd.f32 %v2264, %v34
  %s2269 = scalar_lea.vmem [#allocation2], 96
  %2270 = vst [vmem:[%s2269] sm:$0xff] %v2265
  %2271 = vst [vmem:[%s2269 + $0x8] sm:$0xff] %v2266
  %2272 = vst [vmem:[%s2269 + $0x10] sm:$0xff] %v2267
  %2273 = vst [vmem:[%s2269 + $0x18] sm:$0xff] %v2268
  %v2274 = vld [vmem:[%s1986] sm:$0xff]
  %v2275 = vld [vmem:[%s2] sm:$0xff]
  %v2276 = vld [vmem:[%s2 + $0x8] sm:$0xff]
  %v2277 = vld [vmem:[%s2 + $0x10] sm:$0xff]
  %v2278 = vld [vmem:[%s2 + $0x18] sm:$0xff]
  %v2279 = vld [vmem:[%s2 + $0x20] sm:$0xff]
  %v2280 = vld [vmem:[%s2 + $0x28] sm:$0xff]
  %v2281 = vld [vmem:[%s2 + $0x30] sm:$0xff]
  %v2282 = vld [vmem:[%s2 + $0x38] sm:$0xff]
  %v2283 = vld [vmem:[%s2 + $0x40] sm:$0xff]
  %v2284 = vld [vmem:[%s2 + $0x48] sm:$0xff]
  %v2285 = vld [vmem:[%s2 + $0x50] sm:$0xff]
  %v2286 = vld [vmem:[%s2 + $0x58] sm:$0xff]
  %v2287 = vld [vmem:[%s2 + $0x60] sm:$0xff]
  %v2288 = vld [vmem:[%s2 + $0x68] sm:$0xff]
  %v2289 = vld [vmem:[%s2 + $0x70] sm:$0xff]
  %v2290 = vld [vmem:[%s2 + $0x78] sm:$0xff]
  %v2291 = vld [vmem:[%s2 + $0x80] sm:$0xff]
  %v2292 = vld [vmem:[%s2 + $0x88] sm:$0xff]
  %v2293 = vld [vmem:[%s2 + $0x90] sm:$0xff]
  %v2294 = vld [vmem:[%s2 + $0x98] sm:$0xff]
  %v2295 = vld [vmem:[%s2 + $0xa0] sm:$0xff]
  %v2296 = vld [vmem:[%s2 + $0xa8] sm:$0xff]
  %v2297 = vld [vmem:[%s2 + $0xb0] sm:$0xff]
  %v2298 = vld [vmem:[%s2 + $0xb8] sm:$0xff]
  %v2299 = vld [vmem:[%s2 + $0xc0] sm:$0x3]
  %v2300 = vld [vmem:[%s2 + $0xc8] sm:$0x3]
  %v2301 = vld [vmem:[%s2 + $0xd0] sm:$0x3]
  %v2302 = vld [vmem:[%s2 + $0xd8] sm:$0x3]
  %v2303 = vld [vmem:[%s2115] sm:$0xff]
  %v2304 = vld [vmem:[%s3] sm:$0xff]
  %v2305 = vld [vmem:[%s3 + $0x8] sm:$0xff]
  %v2306 = vld [vmem:[%s3 + $0x10] sm:$0xff]
  %v2307 = vld [vmem:[%s3 + $0x18] sm:$0xff]
  %v2308 = vld [vmem:[%s3 + $0x20] sm:$0xff]
  %v2309 = vld [vmem:[%s3 + $0x28] sm:$0xff]
  %v2310 = vld [vmem:[%s3 + $0x30] sm:$0xff]
  %v2311 = vld [vmem:[%s3 + $0x38] sm:$0xff]
  %v2312 = vld [vmem:[%s3 + $0x40] sm:$0xff]
  %v2313 = vld [vmem:[%s3 + $0x48] sm:$0xff]
  %v2314 = vld [vmem:[%s3 + $0x50] sm:$0xff]
  %v2315 = vld [vmem:[%s3 + $0x58] sm:$0xff]
  %v2316 = vld [vmem:[%s3 + $0x60] sm:$0xff]
  %v2317 = vld [vmem:[%s3 + $0x68] sm:$0xff]
  %v2318 = vld [vmem:[%s3 + $0x70] sm:$0xff]
  %v2319 = vld [vmem:[%s3 + $0x78] sm:$0xff]
  %v2320 = vld [vmem:[%s3 + $0x80] sm:$0xff]
  %v2321 = vld [vmem:[%s3 + $0x88] sm:$0xff]
  %v2322 = vld [vmem:[%s3 + $0x90] sm:$0xff]
  %v2323 = vld [vmem:[%s3 + $0x98] sm:$0xff]
  %v2324 = vld [vmem:[%s3 + $0xa0] sm:$0xff]
  %v2325 = vld [vmem:[%s3 + $0xa8] sm:$0xff]
  %v2326 = vld [vmem:[%s3 + $0xb0] sm:$0xff]
  %v2327 = vld [vmem:[%s3 + $0xb8] sm:$0xff]
  %v2328 = vld [vmem:[%s3 + $0xc0] sm:$0xff]
  %v2329 = vld [vmem:[%s3 + $0xc8] sm:$0xff]
  %v2330 = vld [vmem:[%s3 + $0xd0] sm:$0xff]
  %v2331 = vld [vmem:[%s3 + $0xd8] sm:$0xff]
  %v2332 = vld [vmem:[%s3 + $0xe0] sm:$0xff]
  %v2333 = vld [vmem:[%s3 + $0xe8] sm:$0xff]
  %v2334 = vld [vmem:[%s3 + $0xf0] sm:$0xff]
  %v2335 = vld [vmem:[%s3 + $0xf8] sm:$0xff]
  %v2336 = vld [vmem:[%s3 + $0x100] sm:$0xff]
  %v2337 = vld [vmem:[%s3 + $0x108] sm:$0xff]
  %v2338 = vld [vmem:[%s3 + $0x110] sm:$0xff]
  %v2339 = vld [vmem:[%s3 + $0x118] sm:$0xff]
  %v2340 = vld [vmem:[%s3 + $0x120] sm:$0xff]
  %v2341 = vld [vmem:[%s3 + $0x128] sm:$0xff]
  %v2342 = vld [vmem:[%s3 + $0x130] sm:$0xff]
  %v2343 = vld [vmem:[%s3 + $0x138] sm:$0xff]
  %v2344 = vld [vmem:[%s3 + $0x140] sm:$0xff]
  %v2345 = vld [vmem:[%s3 + $0x148] sm:$0xff]
  %v2346 = vld [vmem:[%s3 + $0x150] sm:$0xff]
  %v2347 = vld [vmem:[%s3 + $0x158] sm:$0xff]
  %v2348 = vld [vmem:[%s3 + $0x160] sm:$0xff]
  %v2349 = vld [vmem:[%s3 + $0x168] sm:$0xff]
  %v2350 = vld [vmem:[%s3 + $0x170] sm:$0xff]
  %v2351 = vld [vmem:[%s3 + $0x178] sm:$0xff]
  %v2352 = vld [vmem:[%s3 + $0x180] sm:$0xff]
  %v2353 = vld [vmem:[%s3 + $0x188] sm:$0xff]
  %v2354 = vld [vmem:[%s3 + $0x190] sm:$0xff]
  %v2355 = vld [vmem:[%s3 + $0x198] sm:$0xff]
  %v2356 = vld [vmem:[%s3 + $0x1a0] sm:$0xff]
  %v2357 = vld [vmem:[%s3 + $0x1a8] sm:$0xff]
  %v2358 = vld [vmem:[%s3 + $0x1b0] sm:$0xff]
  %v2359 = vld [vmem:[%s3 + $0x1b8] sm:$0xff]
  %v2360 = vld [vmem:[%s3 + $0x1c0] sm:$0xff]
  %v2361 = vld [vmem:[%s3 + $0x1c8] sm:$0xff]
  %v2362 = vld [vmem:[%s3 + $0x1d0] sm:$0xff]
  %v2363 = vld [vmem:[%s3 + $0x1d8] sm:$0xff]
  %v2364 = vld [vmem:[%s3 + $0x1e0] sm:$0xff]
  %v2365 = vld [vmem:[%s3 + $0x1e8] sm:$0xff]
  %v2366 = vld [vmem:[%s3 + $0x1f0] sm:$0xff]
  %v2367 = vld [vmem:[%s3 + $0x1f8] sm:$0xff]
  %2368 = vmatpush.msra.mxu0 %v2364
  %2369 = vmatpush.msra.mxu0 %v2360
  %2370 = vmatpush.msra.mxu0 %v2356
  %2371 = vmatpush.msra.mxu0 %v2352
  %2372 = vmatpush.msra.mxu0 %v2348
  %2373 = vmatpush.msra.mxu0 %v2344
  %2374 = vmatpush.msra.mxu0 %v2340
  %2375 = vmatpush.msra.mxu0 %v2336
  %2376 = vmatpush.msra.mxu0 %v2332
  %2377 = vmatpush.msra.mxu0 %v2328
  %2378 = vmatpush.msra.mxu0 %v2324
  %2379 = vmatpush.msra.mxu0 %v2320
  %2380 = vmatpush.msra.mxu0 %v2316
  %2381 = vmatpush.msra.mxu0 %v2312
  %2382 = vmatpush.msra.mxu0 %v2308
  %2383 = vmatpush.msra.mxu0 %v2304
  %2384 = vmatmul.f32.gmra.mxu0 %v2303
  %v2385 = vpop.f32.mrf.mxu0
  %v2386 = vadd.f32 0.0, %v2385
  %2387 = vdwg.mxu0
  %2388 = vmatpush.msra.mxu0 %v2365
  %2389 = vmatpush.msra.mxu0 %v2361
  %2390 = vmatpush.msra.mxu0 %v2357
  %2391 = vmatpush.msra.mxu0 %v2353
  %2392 = vmatpush.msra.mxu0 %v2349
  %2393 = vmatpush.msra.mxu0 %v2345
  %2394 = vmatpush.msra.mxu0 %v2341
  %2395 = vmatpush.msra.mxu0 %v2337
  %2396 = vmatpush.msra.mxu0 %v2333
  %2397 = vmatpush.msra.mxu0 %v2329
  %2398 = vmatpush.msra.mxu0 %v2325
  %2399 = vmatpush.msra.mxu0 %v2321
  %2400 = vmatpush.msra.mxu0 %v2317
  %2401 = vmatpush.msra.mxu0 %v2313
  %2402 = vmatpush.msra.mxu0 %v2309
  %2403 = vmatpush.msra.mxu0 %v2305
  %2404 = vmatmul.f32.gmra.mxu0 %v2303
  %v2405 = vpop.f32.mrf.mxu0
  %v2406 = vadd.f32 0.0, %v2405
  %2407 = vdwg.mxu0
  %2408 = vmatpush.msra.mxu0 %v2366
  %2409 = vmatpush.msra.mxu0 %v2362
  %2410 = vmatpush.msra.mxu0 %v2358
  %2411 = vmatpush.msra.mxu0 %v2354
  %2412 = vmatpush.msra.mxu0 %v2350
  %2413 = vmatpush.msra.mxu0 %v2346
  %2414 = vmatpush.msra.mxu0 %v2342
  %2415 = vmatpush.msra.mxu0 %v2338
  %2416 = vmatpush.msra.mxu0 %v2334
  %2417 = vmatpush.msra.mxu0 %v2330
  %2418 = vmatpush.msra.mxu0 %v2326
  %2419 = vmatpush.msra.mxu0 %v2322
  %2420 = vmatpush.msra.mxu0 %v2318
  %2421 = vmatpush.msra.mxu0 %v2314
  %2422 = vmatpush.msra.mxu0 %v2310
  %2423 = vmatpush.msra.mxu0 %v2306
  %2424 = vmatmul.f32.gmra.mxu0 %v2303
  %v2425 = vpop.f32.mrf.mxu0
  %v2426 = vadd.f32 0.0, %v2425
  %2427 = vdwg.mxu0
  %2428 = vmatpush.msra.mxu0 %v2367
  %2429 = vmatpush.msra.mxu0 %v2363
  %2430 = vmatpush.msra.mxu0 %v2359
  %2431 = vmatpush.msra.mxu0 %v2355
  %2432 = vmatpush.msra.mxu0 %v2351
  %2433 = vmatpush.msra.mxu0 %v2347
  %2434 = vmatpush.msra.mxu0 %v2343
  %2435 = vmatpush.msra.mxu0 %v2339
  %2436 = vmatpush.msra.mxu0 %v2335
  %2437 = vmatpush.msra.mxu0 %v2331
  %2438 = vmatpush.msra.mxu0 %v2327
  %2439 = vmatpush.msra.mxu0 %v2323
  %2440 = vmatpush.msra.mxu0 %v2319
  %2441 = vmatpush.msra.mxu0 %v2315
  %2442 = vmatpush.msra.mxu0 %v2311
  %2443 = vmatpush.msra.mxu0 %v2307
  %2444 = vmatmul.f32.gmra.mxu0 %v2303
  %v2445 = vpop.f32.mrf.mxu0
  %v2446 = vadd.f32 0.0, %v2445
  %2447 = vdwg.mxu0
  %v2449 = vsel %vm213, %v2274, 0
  %v2452 = vsel %vm217, %v2299, 0
  %v2455 = vsel %vm217, %v2300, 0
  %v2458 = vsel %vm217, %v2301, 0
  %v2461 = vsel %vm217, %v2302, 0
  %2463 = vmatpush.msra.mxu0 0.0
  %2464 = vmatpush.msra.mxu0 0.0
  %2465 = vmatpush.msra.mxu0 0.0
  %2466 = vmatpush.msra.mxu0 0.0
  %2467 = vmatpush.msra.mxu0 0.0
  %2468 = vmatpush.msra.mxu0 0.0
  %2469 = vmatpush.msra.mxu0 0.0
  %2470 = vmatpush.msra.mxu0 0.0
  %2471 = vmatpush.msra.mxu0 0.0
  %2472 = vmatpush.msra.mxu0 %v2452
  %2473 = vmatpush.msra.mxu0 %v2295
  %2474 = vmatpush.msra.mxu0 %v2291
  %2475 = vmatpush.msra.mxu0 %v2287
  %2476 = vmatpush.msra.mxu0 %v2283
  %2477 = vmatpush.msra.mxu0 %v2279
  %2478 = vmatpush.msra.mxu0 %v2275
  %2479 = vmatmul.f32.gmra.mxu0 %v2449
  %v2480 = vpop.f32.mrf.mxu0
  %v2481 = vadd.f32 %v2386, %v2480
  %2482 = vdwg.mxu0
  %2483 = vmatpush.msra.mxu0 0.0
  %2484 = vmatpush.msra.mxu0 0.0
  %2485 = vmatpush.msra.mxu0 0.0
  %2486 = vmatpush.msra.mxu0 0.0
  %2487 = vmatpush.msra.mxu0 0.0
  %2488 = vmatpush.msra.mxu0 0.0
  %2489 = vmatpush.msra.mxu0 0.0
  %2490 = vmatpush.msra.mxu0 0.0
  %2491 = vmatpush.msra.mxu0 0.0
  %2492 = vmatpush.msra.mxu0 %v2455
  %2493 = vmatpush.msra.mxu0 %v2296
  %2494 = vmatpush.msra.mxu0 %v2292
  %2495 = vmatpush.msra.mxu0 %v2288
  %2496 = vmatpush.msra.mxu0 %v2284
  %2497 = vmatpush.msra.mxu0 %v2280
  %2498 = vmatpush.msra.mxu0 %v2276
  %2499 = vmatmul.f32.gmra.mxu0 %v2449
  %v2500 = vpop.f32.mrf.mxu0
  %v2501 = vadd.f32 %v2406, %v2500
  %2502 = vdwg.mxu0
  %2503 = vmatpush.msra.mxu0 0.0
  %2504 = vmatpush.msra.mxu0 0.0
  %2505 = vmatpush.msra.mxu0 0.0
  %2506 = vmatpush.msra.mxu0 0.0
  %2507 = vmatpush.msra.mxu0 0.0
  %2508 = vmatpush.msra.mxu0 0.0
  %2509 = vmatpush.msra.mxu0 0.0
  %2510 = vmatpush.msra.mxu0 0.0
  %2511 = vmatpush.msra.mxu0 0.0
  %2512 = vmatpush.msra.mxu0 %v2458
  %2513 = vmatpush.msra.mxu0 %v2297
  %2514 = vmatpush.msra.mxu0 %v2293
  %2515 = vmatpush.msra.mxu0 %v2289
  %2516 = vmatpush.msra.mxu0 %v2285
  %2517 = vmatpush.msra.mxu0 %v2281
  %2518 = vmatpush.msra.mxu0 %v2277
  %2519 = vmatmul.f32.gmra.mxu0 %v2449
  %v2520 = vpop.f32.mrf.mxu0
  %v2521 = vadd.f32 %v2426, %v2520
  %2522 = vdwg.mxu0
  %2523 = vmatpush.msra.mxu0 0.0
  %2524 = vmatpush.msra.mxu0 0.0
  %2525 = vmatpush.msra.mxu0 0.0
  %2526 = vmatpush.msra.mxu0 0.0
  %2527 = vmatpush.msra.mxu0 0.0
  %2528 = vmatpush.msra.mxu0 0.0
  %2529 = vmatpush.msra.mxu0 0.0
  %2530 = vmatpush.msra.mxu0 0.0
  %2531 = vmatpush.msra.mxu0 0.0
  %2532 = vmatpush.msra.mxu0 %v2461
  %2533 = vmatpush.msra.mxu0 %v2298
  %2534 = vmatpush.msra.mxu0 %v2294
  %2535 = vmatpush.msra.mxu0 %v2290
  %2536 = vmatpush.msra.mxu0 %v2286
  %2537 = vmatpush.msra.mxu0 %v2282
  %2538 = vmatpush.msra.mxu0 %v2278
  %2539 = vmatmul.f32.gmra.mxu0 %v2449
  %v2540 = vpop.f32.mrf.mxu0
  %v2541 = vadd.f32 %v2446, %v2540
  %2542 = vdwg.mxu0
  %v2543 = vld [vmem:[%s1715] sm:$0xff]
  %v2544 = vld [vmem:[%s4] sm:$0xff]
  %v2545 = vld [vmem:[%s4 + $0x8] sm:$0xff]
  %v2546 = vld [vmem:[%s4 + $0x10] sm:$0xff]
  %v2547 = vld [vmem:[%s4 + $0x18] sm:$0xff]
  %v2548 = vld [vmem:[%s4 + $0x20] sm:$0xff]
  %v2549 = vld [vmem:[%s4 + $0x28] sm:$0xff]
  %v2550 = vld [vmem:[%s4 + $0x30] sm:$0xff]
  %v2551 = vld [vmem:[%s4 + $0x38] sm:$0xff]
  %v2552 = vld [vmem:[%s4 + $0x40] sm:$0xff]
  %v2553 = vld [vmem:[%s4 + $0x48] sm:$0xff]
  %v2554 = vld [vmem:[%s4 + $0x50] sm:$0xff]
  %v2555 = vld [vmem:[%s4 + $0x58] sm:$0xff]
  %v2556 = vld [vmem:[%s4 + $0x60] sm:$0xff]
  %v2557 = vld [vmem:[%s4 + $0x68] sm:$0xff]
  %v2558 = vld [vmem:[%s4 + $0x70] sm:$0xff]
  %v2559 = vld [vmem:[%s4 + $0x78] sm:$0xff]
  %v2560 = vld [vmem:[%s4 + $0x80] sm:$0xff]
  %v2561 = vld [vmem:[%s4 + $0x88] sm:$0xff]
  %v2562 = vld [vmem:[%s4 + $0x90] sm:$0xff]
  %v2563 = vld [vmem:[%s4 + $0x98] sm:$0xff]
  %v2564 = vld [vmem:[%s4 + $0xa0] sm:$0xff]
  %v2565 = vld [vmem:[%s4 + $0xa8] sm:$0xff]
  %v2566 = vld [vmem:[%s4 + $0xb0] sm:$0xff]
  %v2567 = vld [vmem:[%s4 + $0xb8] sm:$0xff]
  %v2568 = vld [vmem:[%s4 + $0xc0] sm:$0x3]
  %v2569 = vld [vmem:[%s4 + $0xc8] sm:$0x3]
  %v2570 = vld [vmem:[%s4 + $0xd0] sm:$0x3]
  %v2571 = vld [vmem:[%s4 + $0xd8] sm:$0x3]
  %v2573 = vsel %vm213, %v2543, 0
  %v2576 = vsel %vm217, %v2568, 0
  %v2579 = vsel %vm217, %v2569, 0
  %v2582 = vsel %vm217, %v2570, 0
  %v2585 = vsel %vm217, %v2571, 0
  %2587 = vmatpush.msra.mxu0 0.0
  %2588 = vmatpush.msra.mxu0 0.0
  %2589 = vmatpush.msra.mxu0 0.0
  %2590 = vmatpush.msra.mxu0 0.0
  %2591 = vmatpush.msra.mxu0 0.0
  %2592 = vmatpush.msra.mxu0 0.0
  %2593 = vmatpush.msra.mxu0 0.0
  %2594 = vmatpush.msra.mxu0 0.0
  %2595 = vmatpush.msra.mxu0 0.0
  %2596 = vmatpush.msra.mxu0 %v2576
  %2597 = vmatpush.msra.mxu0 %v2564
  %2598 = vmatpush.msra.mxu0 %v2560
  %2599 = vmatpush.msra.mxu0 %v2556
  %2600 = vmatpush.msra.mxu0 %v2552
  %2601 = vmatpush.msra.mxu0 %v2548
  %2602 = vmatpush.msra.mxu0 %v2544
  %2603 = vmatmul.f32.gmra.mxu0 %v2573
  %v2604 = vpop.f32.mrf.mxu0
  %v2605 = vadd.f32 0.0, %v2604
  %2606 = vdwg.mxu0
  %2607 = vmatpush.msra.mxu0 0.0
  %2608 = vmatpush.msra.mxu0 0.0
  %2609 = vmatpush.msra.mxu0 0.0
  %2610 = vmatpush.msra.mxu0 0.0
  %2611 = vmatpush.msra.mxu0 0.0
  %2612 = vmatpush.msra.mxu0 0.0
  %2613 = vmatpush.msra.mxu0 0.0
  %2614 = vmatpush.msra.mxu0 0.0
  %2615 = vmatpush.msra.mxu0 0.0
  %2616 = vmatpush.msra.mxu0 %v2579
  %2617 = vmatpush.msra.mxu0 %v2565
  %2618 = vmatpush.msra.mxu0 %v2561
  %2619 = vmatpush.msra.mxu0 %v2557
  %2620 = vmatpush.msra.mxu0 %v2553
  %2621 = vmatpush.msra.mxu0 %v2549
  %2622 = vmatpush.msra.mxu0 %v2545
  %2623 = vmatmul.f32.gmra.mxu0 %v2573
  %v2624 = vpop.f32.mrf.mxu0
  %v2625 = vadd.f32 0.0, %v2624
  %2626 = vdwg.mxu0
  %2627 = vmatpush.msra.mxu0 0.0
  %2628 = vmatpush.msra.mxu0 0.0
  %2629 = vmatpush.msra.mxu0 0.0
  %2630 = vmatpush.msra.mxu0 0.0
  %2631 = vmatpush.msra.mxu0 0.0
  %2632 = vmatpush.msra.mxu0 0.0
  %2633 = vmatpush.msra.mxu0 0.0
  %2634 = vmatpush.msra.mxu0 0.0
  %2635 = vmatpush.msra.mxu0 0.0
  %2636 = vmatpush.msra.mxu0 %v2582
  %2637 = vmatpush.msra.mxu0 %v2566
  %2638 = vmatpush.msra.mxu0 %v2562
  %2639 = vmatpush.msra.mxu0 %v2558
  %2640 = vmatpush.msra.mxu0 %v2554
  %2641 = vmatpush.msra.mxu0 %v2550
  %2642 = vmatpush.msra.mxu0 %v2546
  %2643 = vmatmul.f32.gmra.mxu0 %v2573
  %v2644 = vpop.f32.mrf.mxu0
  %v2645 = vadd.f32 0.0, %v2644
  %2646 = vdwg.mxu0
  %2647 = vmatpush.msra.mxu0 0.0
  %2648 = vmatpush.msra.mxu0 0.0
  %2649 = vmatpush.msra.mxu0 0.0
  %2650 = vmatpush.msra.mxu0 0.0
  %2651 = vmatpush.msra.mxu0 0.0
  %2652 = vmatpush.msra.mxu0 0.0
  %2653 = vmatpush.msra.mxu0 0.0
  %2654 = vmatpush.msra.mxu0 0.0
  %2655 = vmatpush.msra.mxu0 0.0
  %2656 = vmatpush.msra.mxu0 %v2585
  %2657 = vmatpush.msra.mxu0 %v2567
  %2658 = vmatpush.msra.mxu0 %v2563
  %2659 = vmatpush.msra.mxu0 %v2559
  %2660 = vmatpush.msra.mxu0 %v2555
  %2661 = vmatpush.msra.mxu0 %v2551
  %2662 = vmatpush.msra.mxu0 %v2547
  %2663 = vmatmul.f32.gmra.mxu0 %v2573
  %v2664 = vpop.f32.mrf.mxu0
  %v2665 = vadd.f32 0.0, %v2664
  %2666 = vdwg.mxu0
  %v2667 = vadd.f32 %v2481, %v2605
  %v2668 = vadd.f32 %v2501, %v2625
  %v2669 = vadd.f32 %v2521, %v2645
  %v2670 = vadd.f32 %v2541, %v2665
  %v2671 = vld [vmem:[%s1745] sm:$0xff]
  %v2672 = vld [vmem:[%s5] sm:$0xff]
  %v2673 = vld [vmem:[%s5 + $0x8] sm:$0xff]
  %v2674 = vld [vmem:[%s5 + $0x10] sm:$0xff]
  %v2675 = vld [vmem:[%s5 + $0x18] sm:$0xff]
  %v2676 = vld [vmem:[%s5 + $0x20] sm:$0xff]
  %v2677 = vld [vmem:[%s5 + $0x28] sm:$0xff]
  %v2678 = vld [vmem:[%s5 + $0x30] sm:$0xff]
  %v2679 = vld [vmem:[%s5 + $0x38] sm:$0xff]
  %v2680 = vld [vmem:[%s5 + $0x40] sm:$0xff]
  %v2681 = vld [vmem:[%s5 + $0x48] sm:$0xff]
  %v2682 = vld [vmem:[%s5 + $0x50] sm:$0xff]
  %v2683 = vld [vmem:[%s5 + $0x58] sm:$0xff]
  %v2684 = vld [vmem:[%s5 + $0x60] sm:$0xff]
  %v2685 = vld [vmem:[%s5 + $0x68] sm:$0xff]
  %v2686 = vld [vmem:[%s5 + $0x70] sm:$0xff]
  %v2687 = vld [vmem:[%s5 + $0x78] sm:$0xff]
  %v2688 = vld [vmem:[%s5 + $0x80] sm:$0xff]
  %v2689 = vld [vmem:[%s5 + $0x88] sm:$0xff]
  %v2690 = vld [vmem:[%s5 + $0x90] sm:$0xff]
  %v2691 = vld [vmem:[%s5 + $0x98] sm:$0xff]
  %v2692 = vld [vmem:[%s5 + $0xa0] sm:$0xff]
  %v2693 = vld [vmem:[%s5 + $0xa8] sm:$0xff]
  %v2694 = vld [vmem:[%s5 + $0xb0] sm:$0xff]
  %v2695 = vld [vmem:[%s5 + $0xb8] sm:$0xff]
  %v2696 = vld [vmem:[%s5 + $0xc0] sm:$0xff]
  %v2697 = vld [vmem:[%s5 + $0xc8] sm:$0xff]
  %v2698 = vld [vmem:[%s5 + $0xd0] sm:$0xff]
  %v2699 = vld [vmem:[%s5 + $0xd8] sm:$0xff]
  %v2700 = vld [vmem:[%s5 + $0xe0] sm:$0xff]
  %v2701 = vld [vmem:[%s5 + $0xe8] sm:$0xff]
  %v2702 = vld [vmem:[%s5 + $0xf0] sm:$0xff]
  %v2703 = vld [vmem:[%s5 + $0xf8] sm:$0xff]
  %v2704 = vld [vmem:[%s5 + $0x100] sm:$0xff]
  %v2705 = vld [vmem:[%s5 + $0x108] sm:$0xff]
  %v2706 = vld [vmem:[%s5 + $0x110] sm:$0xff]
  %v2707 = vld [vmem:[%s5 + $0x118] sm:$0xff]
  %v2708 = vld [vmem:[%s5 + $0x120] sm:$0xff]
  %v2709 = vld [vmem:[%s5 + $0x128] sm:$0xff]
  %v2710 = vld [vmem:[%s5 + $0x130] sm:$0xff]
  %v2711 = vld [vmem:[%s5 + $0x138] sm:$0xff]
  %v2712 = vld [vmem:[%s5 + $0x140] sm:$0xff]
  %v2713 = vld [vmem:[%s5 + $0x148] sm:$0xff]
  %v2714 = vld [vmem:[%s5 + $0x150] sm:$0xff]
  %v2715 = vld [vmem:[%s5 + $0x158] sm:$0xff]
  %v2716 = vld [vmem:[%s5 + $0x160] sm:$0xff]
  %v2717 = vld [vmem:[%s5 + $0x168] sm:$0xff]
  %v2718 = vld [vmem:[%s5 + $0x170] sm:$0xff]
  %v2719 = vld [vmem:[%s5 + $0x178] sm:$0xff]
  %v2720 = vld [vmem:[%s5 + $0x180] sm:$0xff]
  %v2721 = vld [vmem:[%s5 + $0x188] sm:$0xff]
  %v2722 = vld [vmem:[%s5 + $0x190] sm:$0xff]
  %v2723 = vld [vmem:[%s5 + $0x198] sm:$0xff]
  %v2724 = vld [vmem:[%s5 + $0x1a0] sm:$0xff]
  %v2725 = vld [vmem:[%s5 + $0x1a8] sm:$0xff]
  %v2726 = vld [vmem:[%s5 + $0x1b0] sm:$0xff]
  %v2727 = vld [vmem:[%s5 + $0x1b8] sm:$0xff]
  %v2728 = vld [vmem:[%s5 + $0x1c0] sm:$0xff]
  %v2729 = vld [vmem:[%s5 + $0x1c8] sm:$0xff]
  %v2730 = vld [vmem:[%s5 + $0x1d0] sm:$0xff]
  %v2731 = vld [vmem:[%s5 + $0x1d8] sm:$0xff]
  %v2732 = vld [vmem:[%s5 + $0x1e0] sm:$0xff]
  %v2733 = vld [vmem:[%s5 + $0x1e8] sm:$0xff]
  %v2734 = vld [vmem:[%s5 + $0x1f0] sm:$0xff]
  %v2735 = vld [vmem:[%s5 + $0x1f8] sm:$0xff]
  %2736 = vmatpush.msra.mxu0 %v2732
  %2737 = vmatpush.msra.mxu0 %v2728
  %2738 = vmatpush.msra.mxu0 %v2724
  %2739 = vmatpush.msra.mxu0 %v2720
  %2740 = vmatpush.msra.mxu0 %v2716
  %2741 = vmatpush.msra.mxu0 %v2712
  %2742 = vmatpush.msra.mxu0 %v2708
  %2743 = vmatpush.msra.mxu0 %v2704
  %2744 = vmatpush.msra.mxu0 %v2700
  %2745 = vmatpush.msra.mxu0 %v2696
  %2746 = vmatpush.msra.mxu0 %v2692
  %2747 = vmatpush.msra.mxu0 %v2688
  %2748 = vmatpush.msra.mxu0 %v2684
  %2749 = vmatpush.msra.mxu0 %v2680
  %2750 = vmatpush.msra.mxu0 %v2676
  %2751 = vmatpush.msra.mxu0 %v2672
  %2752 = vmatmul.f32.gmra.mxu0 %v2671
  %v2753 = vpop.f32.mrf.mxu0
  %v2754 = vadd.f32 0.0, %v2753
  %2755 = vdwg.mxu0
  %2756 = vmatpush.msra.mxu0 %v2733
  %2757 = vmatpush.msra.mxu0 %v2729
  %2758 = vmatpush.msra.mxu0 %v2725
  %2759 = vmatpush.msra.mxu0 %v2721
  %2760 = vmatpush.msra.mxu0 %v2717
  %2761 = vmatpush.msra.mxu0 %v2713
  %2762 = vmatpush.msra.mxu0 %v2709
  %2763 = vmatpush.msra.mxu0 %v2705
  %2764 = vmatpush.msra.mxu0 %v2701
  %2765 = vmatpush.msra.mxu0 %v2697
  %2766 = vmatpush.msra.mxu0 %v2693
  %2767 = vmatpush.msra.mxu0 %v2689
  %2768 = vmatpush.msra.mxu0 %v2685
  %2769 = vmatpush.msra.mxu0 %v2681
  %2770 = vmatpush.msra.mxu0 %v2677
  %2771 = vmatpush.msra.mxu0 %v2673
  %2772 = vmatmul.f32.gmra.mxu0 %v2671
  %v2773 = vpop.f32.mrf.mxu0
  %v2774 = vadd.f32 0.0, %v2773
  %2775 = vdwg.mxu0
  %2776 = vmatpush.msra.mxu0 %v2734
  %2777 = vmatpush.msra.mxu0 %v2730
  %2778 = vmatpush.msra.mxu0 %v2726
  %2779 = vmatpush.msra.mxu0 %v2722
  %2780 = vmatpush.msra.mxu0 %v2718
  %2781 = vmatpush.msra.mxu0 %v2714
  %2782 = vmatpush.msra.mxu0 %v2710
  %2783 = vmatpush.msra.mxu0 %v2706
  %2784 = vmatpush.msra.mxu0 %v2702
  %2785 = vmatpush.msra.mxu0 %v2698
  %2786 = vmatpush.msra.mxu0 %v2694
  %2787 = vmatpush.msra.mxu0 %v2690
  %2788 = vmatpush.msra.mxu0 %v2686
  %2789 = vmatpush.msra.mxu0 %v2682
  %2790 = vmatpush.msra.mxu0 %v2678
  %2791 = vmatpush.msra.mxu0 %v2674
  %2792 = vmatmul.f32.gmra.mxu0 %v2671
  %v2793 = vpop.f32.mrf.mxu0
  %v2794 = vadd.f32 0.0, %v2793
  %2795 = vdwg.mxu0
  %2796 = vmatpush.msra.mxu0 %v2735
  %2797 = vmatpush.msra.mxu0 %v2731
  %2798 = vmatpush.msra.mxu0 %v2727
  %2799 = vmatpush.msra.mxu0 %v2723
  %2800 = vmatpush.msra.mxu0 %v2719
  %2801 = vmatpush.msra.mxu0 %v2715
  %2802 = vmatpush.msra.mxu0 %v2711
  %2803 = vmatpush.msra.mxu0 %v2707
  %2804 = vmatpush.msra.mxu0 %v2703
  %2805 = vmatpush.msra.mxu0 %v2699
  %2806 = vmatpush.msra.mxu0 %v2695
  %2807 = vmatpush.msra.mxu0 %v2691
  %2808 = vmatpush.msra.mxu0 %v2687
  %2809 = vmatpush.msra.mxu0 %v2683
  %2810 = vmatpush.msra.mxu0 %v2679
  %2811 = vmatpush.msra.mxu0 %v2675
  %2812 = vmatmul.f32.gmra.mxu0 %v2671
  %v2813 = vpop.f32.mrf.mxu0
  %v2814 = vadd.f32 0.0, %v2813
  %2815 = vdwg.mxu0
  %v2816 = vadd.f32 %v2667, %v2754
  %v2817 = vadd.f32 %v2668, %v2774
  %v2818 = vadd.f32 %v2669, %v2794
  %v2819 = vadd.f32 %v2670, %v2814
  %v2820 = vadd.f32 %v2816, %v31
  %v2821 = vadd.f32 %v2817, %v32
  %v2822 = vadd.f32 %v2818, %v33
  %v2823 = vadd.f32 %v2819, %v34
  %s2824 = scalar_lea.vmem [#allocation2], 128
  %2825 = vst [vmem:[%s2824] sm:$0xff] %v2820
  %2826 = vst [vmem:[%s2824 + $0x8] sm:$0xff] %v2821
  %2827 = vst [vmem:[%s2824 + $0x10] sm:$0xff] %v2822
  %2828 = vst [vmem:[%s2824 + $0x18] sm:$0xff] %v2823
  %v2829 = vld [vmem:[%s1427] sm:$0xff]
  %v2830 = vld [vmem:[%s2] sm:$0xff]
  %v2831 = vld [vmem:[%s2 + $0x8] sm:$0xff]
  %v2832 = vld [vmem:[%s2 + $0x10] sm:$0xff]
  %v2833 = vld [vmem:[%s2 + $0x18] sm:$0xff]
  %v2834 = vld [vmem:[%s2 + $0x20] sm:$0xff]
  %v2835 = vld [vmem:[%s2 + $0x28] sm:$0xff]
  %v2836 = vld [vmem:[%s2 + $0x30] sm:$0xff]
  %v2837 = vld [vmem:[%s2 + $0x38] sm:$0xff]
  %v2838 = vld [vmem:[%s2 + $0x40] sm:$0xff]
  %v2839 = vld [vmem:[%s2 + $0x48] sm:$0xff]
  %v2840 = vld [vmem:[%s2 + $0x50] sm:$0xff]
  %v2841 = vld [vmem:[%s2 + $0x58] sm:$0xff]
  %v2842 = vld [vmem:[%s2 + $0x60] sm:$0xff]
  %v2843 = vld [vmem:[%s2 + $0x68] sm:$0xff]
  %v2844 = vld [vmem:[%s2 + $0x70] sm:$0xff]
  %v2845 = vld [vmem:[%s2 + $0x78] sm:$0xff]
  %v2846 = vld [vmem:[%s2 + $0x80] sm:$0xff]
  %v2847 = vld [vmem:[%s2 + $0x88] sm:$0xff]
  %v2848 = vld [vmem:[%s2 + $0x90] sm:$0xff]
  %v2849 = vld [vmem:[%s2 + $0x98] sm:$0xff]
  %v2850 = vld [vmem:[%s2 + $0xa0] sm:$0xff]
  %v2851 = vld [vmem:[%s2 + $0xa8] sm:$0xff]
  %v2852 = vld [vmem:[%s2 + $0xb0] sm:$0xff]
  %v2853 = vld [vmem:[%s2 + $0xb8] sm:$0xff]
  %v2854 = vld [vmem:[%s2 + $0xc0] sm:$0x3]
  %v2855 = vld [vmem:[%s2 + $0xc8] sm:$0x3]
  %v2856 = vld [vmem:[%s2 + $0xd0] sm:$0x3]
  %v2857 = vld [vmem:[%s2 + $0xd8] sm:$0x3]
  %v2858 = vld [vmem:[%s1556] sm:$0xff]
  %v2859 = vld [vmem:[%s3] sm:$0xff]
  %v2860 = vld [vmem:[%s3 + $0x8] sm:$0xff]
  %v2861 = vld [vmem:[%s3 + $0x10] sm:$0xff]
  %v2862 = vld [vmem:[%s3 + $0x18] sm:$0xff]
  %v2863 = vld [vmem:[%s3 + $0x20] sm:$0xff]
  %v2864 = vld [vmem:[%s3 + $0x28] sm:$0xff]
  %v2865 = vld [vmem:[%s3 + $0x30] sm:$0xff]
  %v2866 = vld [vmem:[%s3 + $0x38] sm:$0xff]
  %v2867 = vld [vmem:[%s3 + $0x40] sm:$0xff]
  %v2868 = vld [vmem:[%s3 + $0x48] sm:$0xff]
  %v2869 = vld [vmem:[%s3 + $0x50] sm:$0xff]
  %v2870 = vld [vmem:[%s3 + $0x58] sm:$0xff]
  %v2871 = vld [vmem:[%s3 + $0x60] sm:$0xff]
  %v2872 = vld [vmem:[%s3 + $0x68] sm:$0xff]
  %v2873 = vld [vmem:[%s3 + $0x70] sm:$0xff]
  %v2874 = vld [vmem:[%s3 + $0x78] sm:$0xff]
  %v2875 = vld [vmem:[%s3 + $0x80] sm:$0xff]
  %v2876 = vld [vmem:[%s3 + $0x88] sm:$0xff]
  %v2877 = vld [vmem:[%s3 + $0x90] sm:$0xff]
  %v2878 = vld [vmem:[%s3 + $0x98] sm:$0xff]
  %v2879 = vld [vmem:[%s3 + $0xa0] sm:$0xff]
  %v2880 = vld [vmem:[%s3 + $0xa8] sm:$0xff]
  %v2881 = vld [vmem:[%s3 + $0xb0] sm:$0xff]
  %v2882 = vld [vmem:[%s3 + $0xb8] sm:$0xff]
  %v2883 = vld [vmem:[%s3 + $0xc0] sm:$0xff]
  %v2884 = vld [vmem:[%s3 + $0xc8] sm:$0xff]
  %v2885 = vld [vmem:[%s3 + $0xd0] sm:$0xff]
  %v2886 = vld [vmem:[%s3 + $0xd8] sm:$0xff]
  %v2887 = vld [vmem:[%s3 + $0xe0] sm:$0xff]
  %v2888 = vld [vmem:[%s3 + $0xe8] sm:$0xff]
  %v2889 = vld [vmem:[%s3 + $0xf0] sm:$0xff]
  %v2890 = vld [vmem:[%s3 + $0xf8] sm:$0xff]
  %v2891 = vld [vmem:[%s3 + $0x100] sm:$0xff]
  %v2892 = vld [vmem:[%s3 + $0x108] sm:$0xff]
  %v2893 = vld [vmem:[%s3 + $0x110] sm:$0xff]
  %v2894 = vld [vmem:[%s3 + $0x118] sm:$0xff]
  %v2895 = vld [vmem:[%s3 + $0x120] sm:$0xff]
  %v2896 = vld [vmem:[%s3 + $0x128] sm:$0xff]
  %v2897 = vld [vmem:[%s3 + $0x130] sm:$0xff]
  %v2898 = vld [vmem:[%s3 + $0x138] sm:$0xff]
  %v2899 = vld [vmem:[%s3 + $0x140] sm:$0xff]
  %v2900 = vld [vmem:[%s3 + $0x148] sm:$0xff]
  %v2901 = vld [vmem:[%s3 + $0x150] sm:$0xff]
  %v2902 = vld [vmem:[%s3 + $0x158] sm:$0xff]
  %v2903 = vld [vmem:[%s3 + $0x160] sm:$0xff]
  %v2904 = vld [vmem:[%s3 + $0x168] sm:$0xff]
  %v2905 = vld [vmem:[%s3 + $0x170] sm:$0xff]
  %v2906 = vld [vmem:[%s3 + $0x178] sm:$0xff]
  %v2907 = vld [vmem:[%s3 + $0x180] sm:$0xff]
  %v2908 = vld [vmem:[%s3 + $0x188] sm:$0xff]
  %v2909 = vld [vmem:[%s3 + $0x190] sm:$0xff]
  %v2910 = vld [vmem:[%s3 + $0x198] sm:$0xff]
  %v2911 = vld [vmem:[%s3 + $0x1a0] sm:$0xff]
  %v2912 = vld [vmem:[%s3 + $0x1a8] sm:$0xff]
  %v2913 = vld [vmem:[%s3 + $0x1b0] sm:$0xff]
  %v2914 = vld [vmem:[%s3 + $0x1b8] sm:$0xff]
  %v2915 = vld [vmem:[%s3 + $0x1c0] sm:$0xff]
  %v2916 = vld [vmem:[%s3 + $0x1c8] sm:$0xff]
  %v2917 = vld [vmem:[%s3 + $0x1d0] sm:$0xff]
  %v2918 = vld [vmem:[%s3 + $0x1d8] sm:$0xff]
  %v2919 = vld [vmem:[%s3 + $0x1e0] sm:$0xff]
  %v2920 = vld [vmem:[%s3 + $0x1e8] sm:$0xff]
  %v2921 = vld [vmem:[%s3 + $0x1f0] sm:$0xff]
  %v2922 = vld [vmem:[%s3 + $0x1f8] sm:$0xff]
  %2923 = vmatpush.msra.mxu0 %v2919
  %2924 = vmatpush.msra.mxu0 %v2915
  %2925 = vmatpush.msra.mxu0 %v2911
  %2926 = vmatpush.msra.mxu0 %v2907
  %2927 = vmatpush.msra.mxu0 %v2903
  %2928 = vmatpush.msra.mxu0 %v2899
  %2929 = vmatpush.msra.mxu0 %v2895
  %2930 = vmatpush.msra.mxu0 %v2891
  %2931 = vmatpush.msra.mxu0 %v2887
  %2932 = vmatpush.msra.mxu0 %v2883
  %2933 = vmatpush.msra.mxu0 %v2879
  %2934 = vmatpush.msra.mxu0 %v2875
  %2935 = vmatpush.msra.mxu0 %v2871
  %2936 = vmatpush.msra.mxu0 %v2867
  %2937 = vmatpush.msra.mxu0 %v2863
  %2938 = vmatpush.msra.mxu0 %v2859
  %2939 = vmatmul.f32.gmra.mxu0 %v2858
  %v2940 = vpop.f32.mrf.mxu0
  %v2941 = vadd.f32 0.0, %v2940
  %2942 = vdwg.mxu0
  %2943 = vmatpush.msra.mxu0 %v2920
  %2944 = vmatpush.msra.mxu0 %v2916
  %2945 = vmatpush.msra.mxu0 %v2912
  %2946 = vmatpush.msra.mxu0 %v2908
  %2947 = vmatpush.msra.mxu0 %v2904
  %2948 = vmatpush.msra.mxu0 %v2900
  %2949 = vmatpush.msra.mxu0 %v2896
  %2950 = vmatpush.msra.mxu0 %v2892
  %2951 = vmatpush.msra.mxu0 %v2888
  %2952 = vmatpush.msra.mxu0 %v2884
  %2953 = vmatpush.msra.mxu0 %v2880
  %2954 = vmatpush.msra.mxu0 %v2876
  %2955 = vmatpush.msra.mxu0 %v2872
  %2956 = vmatpush.msra.mxu0 %v2868
  %2957 = vmatpush.msra.mxu0 %v2864
  %2958 = vmatpush.msra.mxu0 %v2860
  %2959 = vmatmul.f32.gmra.mxu0 %v2858
  %v2960 = vpop.f32.mrf.mxu0
  %v2961 = vadd.f32 0.0, %v2960
  %2962 = vdwg.mxu0
  %2963 = vmatpush.msra.mxu0 %v2921
  %2964 = vmatpush.msra.mxu0 %v2917
  %2965 = vmatpush.msra.mxu0 %v2913
  %2966 = vmatpush.msra.mxu0 %v2909
  %2967 = vmatpush.msra.mxu0 %v2905
  %2968 = vmatpush.msra.mxu0 %v2901
  %2969 = vmatpush.msra.mxu0 %v2897
  %2970 = vmatpush.msra.mxu0 %v2893
  %2971 = vmatpush.msra.mxu0 %v2889
  %2972 = vmatpush.msra.mxu0 %v2885
  %2973 = vmatpush.msra.mxu0 %v2881
  %2974 = vmatpush.msra.mxu0 %v2877
  %2975 = vmatpush.msra.mxu0 %v2873
  %2976 = vmatpush.msra.mxu0 %v2869
  %2977 = vmatpush.msra.mxu0 %v2865
  %2978 = vmatpush.msra.mxu0 %v2861
  %2979 = vmatmul.f32.gmra.mxu0 %v2858
  %v2980 = vpop.f32.mrf.mxu0
  %v2981 = vadd.f32 0.0, %v2980
  %2982 = vdwg.mxu0
  %2983 = vmatpush.msra.mxu0 %v2922
  %2984 = vmatpush.msra.mxu0 %v2918
  %2985 = vmatpush.msra.mxu0 %v2914
  %2986 = vmatpush.msra.mxu0 %v2910
  %2987 = vmatpush.msra.mxu0 %v2906
  %2988 = vmatpush.msra.mxu0 %v2902
  %2989 = vmatpush.msra.mxu0 %v2898
  %2990 = vmatpush.msra.mxu0 %v2894
  %2991 = vmatpush.msra.mxu0 %v2890
  %2992 = vmatpush.msra.mxu0 %v2886
  %2993 = vmatpush.msra.mxu0 %v2882
  %2994 = vmatpush.msra.mxu0 %v2878
  %2995 = vmatpush.msra.mxu0 %v2874
  %2996 = vmatpush.msra.mxu0 %v2870
  %2997 = vmatpush.msra.mxu0 %v2866
  %2998 = vmatpush.msra.mxu0 %v2862
  %2999 = vmatmul.f32.gmra.mxu0 %v2858
  %v3000 = vpop.f32.mrf.mxu0
  %v3001 = vadd.f32 0.0, %v3000
  %3002 = vdwg.mxu0
  %v3004 = vsel %vm213, %v2829, 0
  %v3007 = vsel %vm217, %v2854, 0
  %v3010 = vsel %vm217, %v2855, 0
  %v3013 = vsel %vm217, %v2856, 0
  %v3016 = vsel %vm217, %v2857, 0
  %3018 = vmatpush.msra.mxu0 0.0
  %3019 = vmatpush.msra.mxu0 0.0
  %3020 = vmatpush.msra.mxu0 0.0
  %3021 = vmatpush.msra.mxu0 0.0
  %3022 = vmatpush.msra.mxu0 0.0
  %3023 = vmatpush.msra.mxu0 0.0
  %3024 = vmatpush.msra.mxu0 0.0
  %3025 = vmatpush.msra.mxu0 0.0
  %3026 = vmatpush.msra.mxu0 0.0
  %3027 = vmatpush.msra.mxu0 %v3007
  %3028 = vmatpush.msra.mxu0 %v2850
  %3029 = vmatpush.msra.mxu0 %v2846
  %3030 = vmatpush.msra.mxu0 %v2842
  %3031 = vmatpush.msra.mxu0 %v2838
  %3032 = vmatpush.msra.mxu0 %v2834
  %3033 = vmatpush.msra.mxu0 %v2830
  %3034 = vmatmul.f32.gmra.mxu0 %v3004
  %v3035 = vpop.f32.mrf.mxu0
  %v3036 = vadd.f32 %v2941, %v3035
  %3037 = vdwg.mxu0
  %3038 = vmatpush.msra.mxu0 0.0
  %3039 = vmatpush.msra.mxu0 0.0
  %3040 = vmatpush.msra.mxu0 0.0
  %3041 = vmatpush.msra.mxu0 0.0
  %3042 = vmatpush.msra.mxu0 0.0
  %3043 = vmatpush.msra.mxu0 0.0
  %3044 = vmatpush.msra.mxu0 0.0
  %3045 = vmatpush.msra.mxu0 0.0
  %3046 = vmatpush.msra.mxu0 0.0
  %3047 = vmatpush.msra.mxu0 %v3010
  %3048 = vmatpush.msra.mxu0 %v2851
  %3049 = vmatpush.msra.mxu0 %v2847
  %3050 = vmatpush.msra.mxu0 %v2843
  %3051 = vmatpush.msra.mxu0 %v2839
  %3052 = vmatpush.msra.mxu0 %v2835
  %3053 = vmatpush.msra.mxu0 %v2831
  %3054 = vmatmul.f32.gmra.mxu0 %v3004
  %v3055 = vpop.f32.mrf.mxu0
  %v3056 = vadd.f32 %v2961, %v3055
  %3057 = vdwg.mxu0
  %3058 = vmatpush.msra.mxu0 0.0
  %3059 = vmatpush.msra.mxu0 0.0
  %3060 = vmatpush.msra.mxu0 0.0
  %3061 = vmatpush.msra.mxu0 0.0
  %3062 = vmatpush.msra.mxu0 0.0
  %3063 = vmatpush.msra.mxu0 0.0
  %3064 = vmatpush.msra.mxu0 0.0
  %3065 = vmatpush.msra.mxu0 0.0
  %3066 = vmatpush.msra.mxu0 0.0
  %3067 = vmatpush.msra.mxu0 %v3013
  %3068 = vmatpush.msra.mxu0 %v2852
  %3069 = vmatpush.msra.mxu0 %v2848
  %3070 = vmatpush.msra.mxu0 %v2844
  %3071 = vmatpush.msra.mxu0 %v2840
  %3072 = vmatpush.msra.mxu0 %v2836
  %3073 = vmatpush.msra.mxu0 %v2832
  %3074 = vmatmul.f32.gmra.mxu0 %v3004
  %v3075 = vpop.f32.mrf.mxu0
  %v3076 = vadd.f32 %v2981, %v3075
  %3077 = vdwg.mxu0
  %3078 = vmatpush.msra.mxu0 0.0
  %3079 = vmatpush.msra.mxu0 0.0
  %3080 = vmatpush.msra.mxu0 0.0
  %3081 = vmatpush.msra.mxu0 0.0
  %3082 = vmatpush.msra.mxu0 0.0
  %3083 = vmatpush.msra.mxu0 0.0
  %3084 = vmatpush.msra.mxu0 0.0
  %3085 = vmatpush.msra.mxu0 0.0
  %3086 = vmatpush.msra.mxu0 0.0
  %3087 = vmatpush.msra.mxu0 %v3016
  %3088 = vmatpush.msra.mxu0 %v2853
  %3089 = vmatpush.msra.mxu0 %v2849
  %3090 = vmatpush.msra.mxu0 %v2845
  %3091 = vmatpush.msra.mxu0 %v2841
  %3092 = vmatpush.msra.mxu0 %v2837
  %3093 = vmatpush.msra.mxu0 %v2833
  %3094 = vmatmul.f32.gmra.mxu0 %v3004
  %v3095 = vpop.f32.mrf.mxu0
  %v3096 = vadd.f32 %v3001, %v3095
  %3097 = vdwg.mxu0
  %v3098 = vld [vmem:[%s1156] sm:$0xff]
  %v3099 = vld [vmem:[%s4] sm:$0xff]
  %v3100 = vld [vmem:[%s4 + $0x8] sm:$0xff]
  %v3101 = vld [vmem:[%s4 + $0x10] sm:$0xff]
  %v3102 = vld [vmem:[%s4 + $0x18] sm:$0xff]
  %v3103 = vld [vmem:[%s4 + $0x20] sm:$0xff]
  %v3104 = vld [vmem:[%s4 + $0x28] sm:$0xff]
  %v3105 = vld [vmem:[%s4 + $0x30] sm:$0xff]
  %v3106 = vld [vmem:[%s4 + $0x38] sm:$0xff]
  %v3107 = vld [vmem:[%s4 + $0x40] sm:$0xff]
  %v3108 = vld [vmem:[%s4 + $0x48] sm:$0xff]
  %v3109 = vld [vmem:[%s4 + $0x50] sm:$0xff]
  %v3110 = vld [vmem:[%s4 + $0x58] sm:$0xff]
  %v3111 = vld [vmem:[%s4 + $0x60] sm:$0xff]
  %v3112 = vld [vmem:[%s4 + $0x68] sm:$0xff]
  %v3113 = vld [vmem:[%s4 + $0x70] sm:$0xff]
  %v3114 = vld [vmem:[%s4 + $0x78] sm:$0xff]
  %v3115 = vld [vmem:[%s4 + $0x80] sm:$0xff]
  %v3116 = vld [vmem:[%s4 + $0x88] sm:$0xff]
  %v3117 = vld [vmem:[%s4 + $0x90] sm:$0xff]
  %v3118 = vld [vmem:[%s4 + $0x98] sm:$0xff]
  %v3119 = vld [vmem:[%s4 + $0xa0] sm:$0xff]
  %v3120 = vld [vmem:[%s4 + $0xa8] sm:$0xff]
  %v3121 = vld [vmem:[%s4 + $0xb0] sm:$0xff]
  %v3122 = vld [vmem:[%s4 + $0xb8] sm:$0xff]
  %v3123 = vld [vmem:[%s4 + $0xc0] sm:$0x3]
  %v3124 = vld [vmem:[%s4 + $0xc8] sm:$0x3]
  %v3125 = vld [vmem:[%s4 + $0xd0] sm:$0x3]
  %v3126 = vld [vmem:[%s4 + $0xd8] sm:$0x3]
  %v3128 = vsel %vm213, %v3098, 0
  %v3131 = vsel %vm217, %v3123, 0
  %v3134 = vsel %vm217, %v3124, 0
  %v3137 = vsel %vm217, %v3125, 0
  %v3140 = vsel %vm217, %v3126, 0
  %3142 = vmatpush.msra.mxu0 0.0
  %3143 = vmatpush.msra.mxu0 0.0
  %3144 = vmatpush.msra.mxu0 0.0
  %3145 = vmatpush.msra.mxu0 0.0
  %3146 = vmatpush.msra.mxu0 0.0
  %3147 = vmatpush.msra.mxu0 0.0
  %3148 = vmatpush.msra.mxu0 0.0
  %3149 = vmatpush.msra.mxu0 0.0
  %3150 = vmatpush.msra.mxu0 0.0
  %3151 = vmatpush.msra.mxu0 %v3131
  %3152 = vmatpush.msra.mxu0 %v3119
  %3153 = vmatpush.msra.mxu0 %v3115
  %3154 = vmatpush.msra.mxu0 %v3111
  %3155 = vmatpush.msra.mxu0 %v3107
  %3156 = vmatpush.msra.mxu0 %v3103
  %3157 = vmatpush.msra.mxu0 %v3099
  %3158 = vmatmul.f32.gmra.mxu0 %v3128
  %v3159 = vpop.f32.mrf.mxu0
  %v3160 = vadd.f32 0.0, %v3159
  %3161 = vdwg.mxu0
  %3162 = vmatpush.msra.mxu0 0.0
  %3163 = vmatpush.msra.mxu0 0.0
  %3164 = vmatpush.msra.mxu0 0.0
  %3165 = vmatpush.msra.mxu0 0.0
  %3166 = vmatpush.msra.mxu0 0.0
  %3167 = vmatpush.msra.mxu0 0.0
  %3168 = vmatpush.msra.mxu0 0.0
  %3169 = vmatpush.msra.mxu0 0.0
  %3170 = vmatpush.msra.mxu0 0.0
  %3171 = vmatpush.msra.mxu0 %v3134
  %3172 = vmatpush.msra.mxu0 %v3120
  %3173 = vmatpush.msra.mxu0 %v3116
  %3174 = vmatpush.msra.mxu0 %v3112
  %3175 = vmatpush.msra.mxu0 %v3108
  %3176 = vmatpush.msra.mxu0 %v3104
  %3177 = vmatpush.msra.mxu0 %v3100
  %3178 = vmatmul.f32.gmra.mxu0 %v3128
  %v3179 = vpop.f32.mrf.mxu0
  %v3180 = vadd.f32 0.0, %v3179
  %3181 = vdwg.mxu0
  %3182 = vmatpush.msra.mxu0 0.0
  %3183 = vmatpush.msra.mxu0 0.0
  %3184 = vmatpush.msra.mxu0 0.0
  %3185 = vmatpush.msra.mxu0 0.0
  %3186 = vmatpush.msra.mxu0 0.0
  %3187 = vmatpush.msra.mxu0 0.0
  %3188 = vmatpush.msra.mxu0 0.0
  %3189 = vmatpush.msra.mxu0 0.0
  %3190 = vmatpush.msra.mxu0 0.0
  %3191 = vmatpush.msra.mxu0 %v3137
  %3192 = vmatpush.msra.mxu0 %v3121
  %3193 = vmatpush.msra.mxu0 %v3117
  %3194 = vmatpush.msra.mxu0 %v3113
  %3195 = vmatpush.msra.mxu0 %v3109
  %3196 = vmatpush.msra.mxu0 %v3105
  %3197 = vmatpush.msra.mxu0 %v3101
  %3198 = vmatmul.f32.gmra.mxu0 %v3128
  %v3199 = vpop.f32.mrf.mxu0
  %v3200 = vadd.f32 0.0, %v3199
  %3201 = vdwg.mxu0
  %3202 = vmatpush.msra.mxu0 0.0
  %3203 = vmatpush.msra.mxu0 0.0
  %3204 = vmatpush.msra.mxu0 0.0
  %3205 = vmatpush.msra.mxu0 0.0
  %3206 = vmatpush.msra.mxu0 0.0
  %3207 = vmatpush.msra.mxu0 0.0
  %3208 = vmatpush.msra.mxu0 0.0
  %3209 = vmatpush.msra.mxu0 0.0
  %3210 = vmatpush.msra.mxu0 0.0
  %3211 = vmatpush.msra.mxu0 %v3140
  %3212 = vmatpush.msra.mxu0 %v3122
  %3213 = vmatpush.msra.mxu0 %v3118
  %3214 = vmatpush.msra.mxu0 %v3114
  %3215 = vmatpush.msra.mxu0 %v3110
  %3216 = vmatpush.msra.mxu0 %v3106
  %3217 = vmatpush.msra.mxu0 %v3102
  %3218 = vmatmul.f32.gmra.mxu0 %v3128
  %v3219 = vpop.f32.mrf.mxu0
  %v3220 = vadd.f32 0.0, %v3219
  %3221 = vdwg.mxu0
  %v3222 = vadd.f32 %v3036, %v3160
  %v3223 = vadd.f32 %v3056, %v3180
  %v3224 = vadd.f32 %v3076, %v3200
  %v3225 = vadd.f32 %v3096, %v3220
  %v3226 = vld [vmem:[%s1186] sm:$0xff]
  %v3227 = vld [vmem:[%s5] sm:$0xff]
  %v3228 = vld [vmem:[%s5 + $0x8] sm:$0xff]
  %v3229 = vld [vmem:[%s5 + $0x10] sm:$0xff]
  %v3230 = vld [vmem:[%s5 + $0x18] sm:$0xff]
  %v3231 = vld [vmem:[%s5 + $0x20] sm:$0xff]
  %v3232 = vld [vmem:[%s5 + $0x28] sm:$0xff]
  %v3233 = vld [vmem:[%s5 + $0x30] sm:$0xff]
  %v3234 = vld [vmem:[%s5 + $0x38] sm:$0xff]
  %v3235 = vld [vmem:[%s5 + $0x40] sm:$0xff]
  %v3236 = vld [vmem:[%s5 + $0x48] sm:$0xff]
  %v3237 = vld [vmem:[%s5 + $0x50] sm:$0xff]
  %v3238 = vld [vmem:[%s5 + $0x58] sm:$0xff]
  %v3239 = vld [vmem:[%s5 + $0x60] sm:$0xff]
  %v3240 = vld [vmem:[%s5 + $0x68] sm:$0xff]
  %v3241 = vld [vmem:[%s5 + $0x70] sm:$0xff]
  %v3242 = vld [vmem:[%s5 + $0x78] sm:$0xff]
  %v3243 = vld [vmem:[%s5 + $0x80] sm:$0xff]
  %v3244 = vld [vmem:[%s5 + $0x88] sm:$0xff]
  %v3245 = vld [vmem:[%s5 + $0x90] sm:$0xff]
  %v3246 = vld [vmem:[%s5 + $0x98] sm:$0xff]
  %v3247 = vld [vmem:[%s5 + $0xa0] sm:$0xff]
  %v3248 = vld [vmem:[%s5 + $0xa8] sm:$0xff]
  %v3249 = vld [vmem:[%s5 + $0xb0] sm:$0xff]
  %v3250 = vld [vmem:[%s5 + $0xb8] sm:$0xff]
  %v3251 = vld [vmem:[%s5 + $0xc0] sm:$0xff]
  %v3252 = vld [vmem:[%s5 + $0xc8] sm:$0xff]
  %v3253 = vld [vmem:[%s5 + $0xd0] sm:$0xff]
  %v3254 = vld [vmem:[%s5 + $0xd8] sm:$0xff]
  %v3255 = vld [vmem:[%s5 + $0xe0] sm:$0xff]
  %v3256 = vld [vmem:[%s5 + $0xe8] sm:$0xff]
  %v3257 = vld [vmem:[%s5 + $0xf0] sm:$0xff]
  %v3258 = vld [vmem:[%s5 + $0xf8] sm:$0xff]
  %v3259 = vld [vmem:[%s5 + $0x100] sm:$0xff]
  %v3260 = vld [vmem:[%s5 + $0x108] sm:$0xff]
  %v3261 = vld [vmem:[%s5 + $0x110] sm:$0xff]
  %v3262 = vld [vmem:[%s5 + $0x118] sm:$0xff]
  %v3263 = vld [vmem:[%s5 + $0x120] sm:$0xff]
  %v3264 = vld [vmem:[%s5 + $0x128] sm:$0xff]
  %v3265 = vld [vmem:[%s5 + $0x130] sm:$0xff]
  %v3266 = vld [vmem:[%s5 + $0x138] sm:$0xff]
  %v3267 = vld [vmem:[%s5 + $0x140] sm:$0xff]
  %v3268 = vld [vmem:[%s5 + $0x148] sm:$0xff]
  %v3269 = vld [vmem:[%s5 + $0x150] sm:$0xff]
  %v3270 = vld [vmem:[%s5 + $0x158] sm:$0xff]
  %v3271 = vld [vmem:[%s5 + $0x160] sm:$0xff]
  %v3272 = vld [vmem:[%s5 + $0x168] sm:$0xff]
  %v3273 = vld [vmem:[%s5 + $0x170] sm:$0xff]
  %v3274 = vld [vmem:[%s5 + $0x178] sm:$0xff]
  %v3275 = vld [vmem:[%s5 + $0x180] sm:$0xff]
  %v3276 = vld [vmem:[%s5 + $0x188] sm:$0xff]
  %v3277 = vld [vmem:[%s5 + $0x190] sm:$0xff]
  %v3278 = vld [vmem:[%s5 + $0x198] sm:$0xff]
  %v3279 = vld [vmem:[%s5 + $0x1a0] sm:$0xff]
  %v3280 = vld [vmem:[%s5 + $0x1a8] sm:$0xff]
  %v3281 = vld [vmem:[%s5 + $0x1b0] sm:$0xff]
  %v3282 = vld [vmem:[%s5 + $0x1b8] sm:$0xff]
  %v3283 = vld [vmem:[%s5 + $0x1c0] sm:$0xff]
  %v3284 = vld [vmem:[%s5 + $0x1c8] sm:$0xff]
  %v3285 = vld [vmem:[%s5 + $0x1d0] sm:$0xff]
  %v3286 = vld [vmem:[%s5 + $0x1d8] sm:$0xff]
  %v3287 = vld [vmem:[%s5 + $0x1e0] sm:$0xff]
  %v3288 = vld [vmem:[%s5 + $0x1e8] sm:$0xff]
  %v3289 = vld [vmem:[%s5 + $0x1f0] sm:$0xff]
  %v3290 = vld [vmem:[%s5 + $0x1f8] sm:$0xff]
  %3291 = vmatpush.msra.mxu0 %v3287
  %3292 = vmatpush.msra.mxu0 %v3283
  %3293 = vmatpush.msra.mxu0 %v3279
  %3294 = vmatpush.msra.mxu0 %v3275
  %3295 = vmatpush.msra.mxu0 %v3271
  %3296 = vmatpush.msra.mxu0 %v3267
  %3297 = vmatpush.msra.mxu0 %v3263
  %3298 = vmatpush.msra.mxu0 %v3259
  %3299 = vmatpush.msra.mxu0 %v3255
  %3300 = vmatpush.msra.mxu0 %v3251
  %3301 = vmatpush.msra.mxu0 %v3247
  %3302 = vmatpush.msra.mxu0 %v3243
  %3303 = vmatpush.msra.mxu0 %v3239
  %3304 = vmatpush.msra.mxu0 %v3235
  %3305 = vmatpush.msra.mxu0 %v3231
  %3306 = vmatpush.msra.mxu0 %v3227
  %3307 = vmatmul.f32.gmra.mxu0 %v3226
  %v3308 = vpop.f32.mrf.mxu0
  %v3309 = vadd.f32 0.0, %v3308
  %3310 = vdwg.mxu0
  %3311 = vmatpush.msra.mxu0 %v3288
  %3312 = vmatpush.msra.mxu0 %v3284
  %3313 = vmatpush.msra.mxu0 %v3280
  %3314 = vmatpush.msra.mxu0 %v3276
  %3315 = vmatpush.msra.mxu0 %v3272
  %3316 = vmatpush.msra.mxu0 %v3268
  %3317 = vmatpush.msra.mxu0 %v3264
  %3318 = vmatpush.msra.mxu0 %v3260
  %3319 = vmatpush.msra.mxu0 %v3256
  %3320 = vmatpush.msra.mxu0 %v3252
  %3321 = vmatpush.msra.mxu0 %v3248
  %3322 = vmatpush.msra.mxu0 %v3244
  %3323 = vmatpush.msra.mxu0 %v3240
  %3324 = vmatpush.msra.mxu0 %v3236
  %3325 = vmatpush.msra.mxu0 %v3232
  %3326 = vmatpush.msra.mxu0 %v3228
  %3327 = vmatmul.f32.gmra.mxu0 %v3226
  %v3328 = vpop.f32.mrf.mxu0
  %v3329 = vadd.f32 0.0, %v3328
  %3330 = vdwg.mxu0
  %3331 = vmatpush.msra.mxu0 %v3289
  %3332 = vmatpush.msra.mxu0 %v3285
  %3333 = vmatpush.msra.mxu0 %v3281
  %3334 = vmatpush.msra.mxu0 %v3277
  %3335 = vmatpush.msra.mxu0 %v3273
  %3336 = vmatpush.msra.mxu0 %v3269
  %3337 = vmatpush.msra.mxu0 %v3265
  %3338 = vmatpush.msra.mxu0 %v3261
  %3339 = vmatpush.msra.mxu0 %v3257
  %3340 = vmatpush.msra.mxu0 %v3253
  %3341 = vmatpush.msra.mxu0 %v3249
  %3342 = vmatpush.msra.mxu0 %v3245
  %3343 = vmatpush.msra.mxu0 %v3241
  %3344 = vmatpush.msra.mxu0 %v3237
  %3345 = vmatpush.msra.mxu0 %v3233
  %3346 = vmatpush.msra.mxu0 %v3229
  %3347 = vmatmul.f32.gmra.mxu0 %v3226
  %v3348 = vpop.f32.mrf.mxu0
  %v3349 = vadd.f32 0.0, %v3348
  %3350 = vdwg.mxu0
  %3351 = vmatpush.msra.mxu0 %v3290
  %3352 = vmatpush.msra.mxu0 %v3286
  %3353 = vmatpush.msra.mxu0 %v3282
  %3354 = vmatpush.msra.mxu0 %v3278
  %3355 = vmatpush.msra.mxu0 %v3274
  %3356 = vmatpush.msra.mxu0 %v3270
  %3357 = vmatpush.msra.mxu0 %v3266
  %3358 = vmatpush.msra.mxu0 %v3262
  %3359 = vmatpush.msra.mxu0 %v3258
  %3360 = vmatpush.msra.mxu0 %v3254
  %3361 = vmatpush.msra.mxu0 %v3250
  %3362 = vmatpush.msra.mxu0 %v3246
  %3363 = vmatpush.msra.mxu0 %v3242
  %3364 = vmatpush.msra.mxu0 %v3238
  %3365 = vmatpush.msra.mxu0 %v3234
  %3366 = vmatpush.msra.mxu0 %v3230
  %3367 = vmatmul.f32.gmra.mxu0 %v3226
  %v3368 = vpop.f32.mrf.mxu0
  %v3369 = vadd.f32 0.0, %v3368
  %3370 = vdwg.mxu0
  %v3371 = vadd.f32 %v3222, %v3309
  %v3372 = vadd.f32 %v3223, %v3329
  %v3373 = vadd.f32 %v3224, %v3349
  %v3374 = vadd.f32 %v3225, %v3369
  %v3375 = vadd.f32 %v3371, %v31
  %v3376 = vadd.f32 %v3372, %v32
  %v3377 = vadd.f32 %v3373, %v33
  %v3378 = vadd.f32 %v3374, %v34
  %s3379 = scalar_lea.vmem [#allocation2], 160
  %3380 = vst [vmem:[%s3379] sm:$0xff] %v3375
  %3381 = vst [vmem:[%s3379 + $0x8] sm:$0xff] %v3376
  %3382 = vst [vmem:[%s3379 + $0x10] sm:$0xff] %v3377
  %3383 = vst [vmem:[%s3379 + $0x18] sm:$0xff] %v3378
  %v3384 = vld [vmem:[%s868] sm:$0xff]
  %v3385 = vld [vmem:[%s2] sm:$0xff]
  %v3386 = vld [vmem:[%s2 + $0x8] sm:$0xff]
  %v3387 = vld [vmem:[%s2 + $0x10] sm:$0xff]
  %v3388 = vld [vmem:[%s2 + $0x18] sm:$0xff]
  %v3389 = vld [vmem:[%s2 + $0x20] sm:$0xff]
  %v3390 = vld [vmem:[%s2 + $0x28] sm:$0xff]
  %v3391 = vld [vmem:[%s2 + $0x30] sm:$0xff]
  %v3392 = vld [vmem:[%s2 + $0x38] sm:$0xff]
  %v3393 = vld [vmem:[%s2 + $0x40] sm:$0xff]
  %v3394 = vld [vmem:[%s2 + $0x48] sm:$0xff]
  %v3395 = vld [vmem:[%s2 + $0x50] sm:$0xff]
  %v3396 = vld [vmem:[%s2 + $0x58] sm:$0xff]
  %v3397 = vld [vmem:[%s2 + $0x60] sm:$0xff]
  %v3398 = vld [vmem:[%s2 + $0x68] sm:$0xff]
  %v3399 = vld [vmem:[%s2 + $0x70] sm:$0xff]
  %v3400 = vld [vmem:[%s2 + $0x78] sm:$0xff]
  %v3401 = vld [vmem:[%s2 + $0x80] sm:$0xff]
  %v3402 = vld [vmem:[%s2 + $0x88] sm:$0xff]
  %v3403 = vld [vmem:[%s2 + $0x90] sm:$0xff]
  %v3404 = vld [vmem:[%s2 + $0x98] sm:$0xff]
  %v3405 = vld [vmem:[%s2 + $0xa0] sm:$0xff]
  %v3406 = vld [vmem:[%s2 + $0xa8] sm:$0xff]
  %v3407 = vld [vmem:[%s2 + $0xb0] sm:$0xff]
  %v3408 = vld [vmem:[%s2 + $0xb8] sm:$0xff]
  %v3409 = vld [vmem:[%s2 + $0xc0] sm:$0x3]
  %v3410 = vld [vmem:[%s2 + $0xc8] sm:$0x3]
  %v3411 = vld [vmem:[%s2 + $0xd0] sm:$0x3]
  %v3412 = vld [vmem:[%s2 + $0xd8] sm:$0x3]
  %v3413 = vld [vmem:[%s997] sm:$0xff]
  %v3414 = vld [vmem:[%s3] sm:$0xff]
  %v3415 = vld [vmem:[%s3 + $0x8] sm:$0xff]
  %v3416 = vld [vmem:[%s3 + $0x10] sm:$0xff]
  %v3417 = vld [vmem:[%s3 + $0x18] sm:$0xff]
  %v3418 = vld [vmem:[%s3 + $0x20] sm:$0xff]
  %v3419 = vld [vmem:[%s3 + $0x28] sm:$0xff]
  %v3420 = vld [vmem:[%s3 + $0x30] sm:$0xff]
  %v3421 = vld [vmem:[%s3 + $0x38] sm:$0xff]
  %v3422 = vld [vmem:[%s3 + $0x40] sm:$0xff]
  %v3423 = vld [vmem:[%s3 + $0x48] sm:$0xff]
  %v3424 = vld [vmem:[%s3 + $0x50] sm:$0xff]
  %v3425 = vld [vmem:[%s3 + $0x58] sm:$0xff]
  %v3426 = vld [vmem:[%s3 + $0x60] sm:$0xff]
  %v3427 = vld [vmem:[%s3 + $0x68] sm:$0xff]
  %v3428 = vld [vmem:[%s3 + $0x70] sm:$0xff]
  %v3429 = vld [vmem:[%s3 + $0x78] sm:$0xff]
  %v3430 = vld [vmem:[%s3 + $0x80] sm:$0xff]
  %v3431 = vld [vmem:[%s3 + $0x88] sm:$0xff]
  %v3432 = vld [vmem:[%s3 + $0x90] sm:$0xff]
  %v3433 = vld [vmem:[%s3 + $0x98] sm:$0xff]
  %v3434 = vld [vmem:[%s3 + $0xa0] sm:$0xff]
  %v3435 = vld [vmem:[%s3 + $0xa8] sm:$0xff]
  %v3436 = vld [vmem:[%s3 + $0xb0] sm:$0xff]
  %v3437 = vld [vmem:[%s3 + $0xb8] sm:$0xff]
  %v3438 = vld [vmem:[%s3 + $0xc0] sm:$0xff]
  %v3439 = vld [vmem:[%s3 + $0xc8] sm:$0xff]
  %v3440 = vld [vmem:[%s3 + $0xd0] sm:$0xff]
  %v3441 = vld [vmem:[%s3 + $0xd8] sm:$0xff]
  %v3442 = vld [vmem:[%s3 + $0xe0] sm:$0xff]
  %v3443 = vld [vmem:[%s3 + $0xe8] sm:$0xff]
  %v3444 = vld [vmem:[%s3 + $0xf0] sm:$0xff]
  %v3445 = vld [vmem:[%s3 + $0xf8] sm:$0xff]
  %v3446 = vld [vmem:[%s3 + $0x100] sm:$0xff]
  %v3447 = vld [vmem:[%s3 + $0x108] sm:$0xff]
  %v3448 = vld [vmem:[%s3 + $0x110] sm:$0xff]
  %v3449 = vld [vmem:[%s3 + $0x118] sm:$0xff]
  %v3450 = vld [vmem:[%s3 + $0x120] sm:$0xff]
  %v3451 = vld [vmem:[%s3 + $0x128] sm:$0xff]
  %v3452 = vld [vmem:[%s3 + $0x130] sm:$0xff]
  %v3453 = vld [vmem:[%s3 + $0x138] sm:$0xff]
  %v3454 = vld [vmem:[%s3 + $0x140] sm:$0xff]
  %v3455 = vld [vmem:[%s3 + $0x148] sm:$0xff]
  %v3456 = vld [vmem:[%s3 + $0x150] sm:$0xff]
  %v3457 = vld [vmem:[%s3 + $0x158] sm:$0xff]
  %v3458 = vld [vmem:[%s3 + $0x160] sm:$0xff]
  %v3459 = vld [vmem:[%s3 + $0x168] sm:$0xff]
  %v3460 = vld [vmem:[%s3 + $0x170] sm:$0xff]
  %v3461 = vld [vmem:[%s3 + $0x178] sm:$0xff]
  %v3462 = vld [vmem:[%s3 + $0x180] sm:$0xff]
  %v3463 = vld [vmem:[%s3 + $0x188] sm:$0xff]
  %v3464 = vld [vmem:[%s3 + $0x190] sm:$0xff]
  %v3465 = vld [vmem:[%s3 + $0x198] sm:$0xff]
  %v3466 = vld [vmem:[%s3 + $0x1a0] sm:$0xff]
  %v3467 = vld [vmem:[%s3 + $0x1a8] sm:$0xff]
  %v3468 = vld [vmem:[%s3 + $0x1b0] sm:$0xff]
  %v3469 = vld [vmem:[%s3 + $0x1b8] sm:$0xff]
  %v3470 = vld [vmem:[%s3 + $0x1c0] sm:$0xff]
  %v3471 = vld [vmem:[%s3 + $0x1c8] sm:$0xff]
  %v3472 = vld [vmem:[%s3 + $0x1d0] sm:$0xff]
  %v3473 = vld [vmem:[%s3 + $0x1d8] sm:$0xff]
  %v3474 = vld [vmem:[%s3 + $0x1e0] sm:$0xff]
  %v3475 = vld [vmem:[%s3 + $0x1e8] sm:$0xff]
  %v3476 = vld [vmem:[%s3 + $0x1f0] sm:$0xff]
  %v3477 = vld [vmem:[%s3 + $0x1f8] sm:$0xff]
  %3478 = vmatpush.msra.mxu0 %v3474
  %3479 = vmatpush.msra.mxu0 %v3470
  %3480 = vmatpush.msra.mxu0 %v3466
  %3481 = vmatpush.msra.mxu0 %v3462
  %3482 = vmatpush.msra.mxu0 %v3458
  %3483 = vmatpush.msra.mxu0 %v3454
  %3484 = vmatpush.msra.mxu0 %v3450
  %3485 = vmatpush.msra.mxu0 %v3446
  %3486 = vmatpush.msra.mxu0 %v3442
  %3487 = vmatpush.msra.mxu0 %v3438
  %3488 = vmatpush.msra.mxu0 %v3434
  %3489 = vmatpush.msra.mxu0 %v3430
  %3490 = vmatpush.msra.mxu0 %v3426
  %3491 = vmatpush.msra.mxu0 %v3422
  %3492 = vmatpush.msra.mxu0 %v3418
  %3493 = vmatpush.msra.mxu0 %v3414
  %3494 = vmatmul.f32.gmra.mxu0 %v3413
  %v3495 = vpop.f32.mrf.mxu0
  %v3496 = vadd.f32 0.0, %v3495
  %3497 = vdwg.mxu0
  %3498 = vmatpush.msra.mxu0 %v3475
  %3499 = vmatpush.msra.mxu0 %v3471
  %3500 = vmatpush.msra.mxu0 %v3467
  %3501 = vmatpush.msra.mxu0 %v3463
  %3502 = vmatpush.msra.mxu0 %v3459
  %3503 = vmatpush.msra.mxu0 %v3455
  %3504 = vmatpush.msra.mxu0 %v3451
  %3505 = vmatpush.msra.mxu0 %v3447
  %3506 = vmatpush.msra.mxu0 %v3443
  %3507 = vmatpush.msra.mxu0 %v3439
  %3508 = vmatpush.msra.mxu0 %v3435
  %3509 = vmatpush.msra.mxu0 %v3431
  %3510 = vmatpush.msra.mxu0 %v3427
  %3511 = vmatpush.msra.mxu0 %v3423
  %3512 = vmatpush.msra.mxu0 %v3419
  %3513 = vmatpush.msra.mxu0 %v3415
  %3514 = vmatmul.f32.gmra.mxu0 %v3413
  %v3515 = vpop.f32.mrf.mxu0
  %v3516 = vadd.f32 0.0, %v3515
  %3517 = vdwg.mxu0
  %3518 = vmatpush.msra.mxu0 %v3476
  %3519 = vmatpush.msra.mxu0 %v3472
  %3520 = vmatpush.msra.mxu0 %v3468
  %3521 = vmatpush.msra.mxu0 %v3464
  %3522 = vmatpush.msra.mxu0 %v3460
  %3523 = vmatpush.msra.mxu0 %v3456
  %3524 = vmatpush.msra.mxu0 %v3452
  %3525 = vmatpush.msra.mxu0 %v3448
  %3526 = vmatpush.msra.mxu0 %v3444
  %3527 = vmatpush.msra.mxu0 %v3440
  %3528 = vmatpush.msra.mxu0 %v3436
  %3529 = vmatpush.msra.mxu0 %v3432
  %3530 = vmatpush.msra.mxu0 %v3428
  %3531 = vmatpush.msra.mxu0 %v3424
  %3532 = vmatpush.msra.mxu0 %v3420
  %3533 = vmatpush.msra.mxu0 %v3416
  %3534 = vmatmul.f32.gmra.mxu0 %v3413
  %v3535 = vpop.f32.mrf.mxu0
  %v3536 = vadd.f32 0.0, %v3535
  %3537 = vdwg.mxu0
  %3538 = vmatpush.msra.mxu0 %v3477
  %3539 = vmatpush.msra.mxu0 %v3473
  %3540 = vmatpush.msra.mxu0 %v3469
  %3541 = vmatpush.msra.mxu0 %v3465
  %3542 = vmatpush.msra.mxu0 %v3461
  %3543 = vmatpush.msra.mxu0 %v3457
  %3544 = vmatpush.msra.mxu0 %v3453
  %3545 = vmatpush.msra.mxu0 %v3449
  %3546 = vmatpush.msra.mxu0 %v3445
  %3547 = vmatpush.msra.mxu0 %v3441
  %3548 = vmatpush.msra.mxu0 %v3437
  %3549 = vmatpush.msra.mxu0 %v3433
  %3550 = vmatpush.msra.mxu0 %v3429
  %3551 = vmatpush.msra.mxu0 %v3425
  %3552 = vmatpush.msra.mxu0 %v3421
  %3553 = vmatpush.msra.mxu0 %v3417
  %3554 = vmatmul.f32.gmra.mxu0 %v3413
  %v3555 = vpop.f32.mrf.mxu0
  %v3556 = vadd.f32 0.0, %v3555
  %3557 = vdwg.mxu0
  %v3559 = vsel %vm213, %v3384, 0
  %v3562 = vsel %vm217, %v3409, 0
  %v3565 = vsel %vm217, %v3410, 0
  %v3568 = vsel %vm217, %v3411, 0
  %v3571 = vsel %vm217, %v3412, 0
  %3573 = vmatpush.msra.mxu0 0.0
  %3574 = vmatpush.msra.mxu0 0.0
  %3575 = vmatpush.msra.mxu0 0.0
  %3576 = vmatpush.msra.mxu0 0.0
  %3577 = vmatpush.msra.mxu0 0.0
  %3578 = vmatpush.msra.mxu0 0.0
  %3579 = vmatpush.msra.mxu0 0.0
  %3580 = vmatpush.msra.mxu0 0.0
  %3581 = vmatpush.msra.mxu0 0.0
  %3582 = vmatpush.msra.mxu0 %v3562
  %3583 = vmatpush.msra.mxu0 %v3405
  %3584 = vmatpush.msra.mxu0 %v3401
  %3585 = vmatpush.msra.mxu0 %v3397
  %3586 = vmatpush.msra.mxu0 %v3393
  %3587 = vmatpush.msra.mxu0 %v3389
  %3588 = vmatpush.msra.mxu0 %v3385
  %3589 = vmatmul.f32.gmra.mxu0 %v3559
  %v3590 = vpop.f32.mrf.mxu0
  %v3591 = vadd.f32 %v3496, %v3590
  %3592 = vdwg.mxu0
  %3593 = vmatpush.msra.mxu0 0.0
  %3594 = vmatpush.msra.mxu0 0.0
  %3595 = vmatpush.msra.mxu0 0.0
  %3596 = vmatpush.msra.mxu0 0.0
  %3597 = vmatpush.msra.mxu0 0.0
  %3598 = vmatpush.msra.mxu0 0.0
  %3599 = vmatpush.msra.mxu0 0.0
  %3600 = vmatpush.msra.mxu0 0.0
  %3601 = vmatpush.msra.mxu0 0.0
  %3602 = vmatpush.msra.mxu0 %v3565
  %3603 = vmatpush.msra.mxu0 %v3406
  %3604 = vmatpush.msra.mxu0 %v3402
  %3605 = vmatpush.msra.mxu0 %v3398
  %3606 = vmatpush.msra.mxu0 %v3394
  %3607 = vmatpush.msra.mxu0 %v3390
  %3608 = vmatpush.msra.mxu0 %v3386
  %3609 = vmatmul.f32.gmra.mxu0 %v3559
  %v3610 = vpop.f32.mrf.mxu0
  %v3611 = vadd.f32 %v3516, %v3610
  %3612 = vdwg.mxu0
  %3613 = vmatpush.msra.mxu0 0.0
  %3614 = vmatpush.msra.mxu0 0.0
  %3615 = vmatpush.msra.mxu0 0.0
  %3616 = vmatpush.msra.mxu0 0.0
  %3617 = vmatpush.msra.mxu0 0.0
  %3618 = vmatpush.msra.mxu0 0.0
  %3619 = vmatpush.msra.mxu0 0.0
  %3620 = vmatpush.msra.mxu0 0.0
  %3621 = vmatpush.msra.mxu0 0.0
  %3622 = vmatpush.msra.mxu0 %v3568
  %3623 = vmatpush.msra.mxu0 %v3407
  %3624 = vmatpush.msra.mxu0 %v3403
  %3625 = vmatpush.msra.mxu0 %v3399
  %3626 = vmatpush.msra.mxu0 %v3395
  %3627 = vmatpush.msra.mxu0 %v3391
  %3628 = vmatpush.msra.mxu0 %v3387
  %3629 = vmatmul.f32.gmra.mxu0 %v3559
  %v3630 = vpop.f32.mrf.mxu0
  %v3631 = vadd.f32 %v3536, %v3630
  %3632 = vdwg.mxu0
  %3633 = vmatpush.msra.mxu0 0.0
  %3634 = vmatpush.msra.mxu0 0.0
  %3635 = vmatpush.msra.mxu0 0.0
  %3636 = vmatpush.msra.mxu0 0.0
  %3637 = vmatpush.msra.mxu0 0.0
  %3638 = vmatpush.msra.mxu0 0.0
  %3639 = vmatpush.msra.mxu0 0.0
  %3640 = vmatpush.msra.mxu0 0.0
  %3641 = vmatpush.msra.mxu0 0.0
  %3642 = vmatpush.msra.mxu0 %v3571
  %3643 = vmatpush.msra.mxu0 %v3408
  %3644 = vmatpush.msra.mxu0 %v3404
  %3645 = vmatpush.msra.mxu0 %v3400
  %3646 = vmatpush.msra.mxu0 %v3396
  %3647 = vmatpush.msra.mxu0 %v3392
  %3648 = vmatpush.msra.mxu0 %v3388
  %3649 = vmatmul.f32.gmra.mxu0 %v3559
  %v3650 = vpop.f32.mrf.mxu0
  %v3651 = vadd.f32 %v3556, %v3650
  %3652 = vdwg.mxu0
  %v3653 = vld [vmem:[%s597] sm:$0xff]
  %v3654 = vld [vmem:[%s4] sm:$0xff]
  %v3655 = vld [vmem:[%s4 + $0x8] sm:$0xff]
  %v3656 = vld [vmem:[%s4 + $0x10] sm:$0xff]
  %v3657 = vld [vmem:[%s4 + $0x18] sm:$0xff]
  %v3658 = vld [vmem:[%s4 + $0x20] sm:$0xff]
  %v3659 = vld [vmem:[%s4 + $0x28] sm:$0xff]
  %v3660 = vld [vmem:[%s4 + $0x30] sm:$0xff]
  %v3661 = vld [vmem:[%s4 + $0x38] sm:$0xff]
  %v3662 = vld [vmem:[%s4 + $0x40] sm:$0xff]
  %v3663 = vld [vmem:[%s4 + $0x48] sm:$0xff]
  %v3664 = vld [vmem:[%s4 + $0x50] sm:$0xff]
  %v3665 = vld [vmem:[%s4 + $0x58] sm:$0xff]
  %v3666 = vld [vmem:[%s4 + $0x60] sm:$0xff]
  %v3667 = vld [vmem:[%s4 + $0x68] sm:$0xff]
  %v3668 = vld [vmem:[%s4 + $0x70] sm:$0xff]
  %v3669 = vld [vmem:[%s4 + $0x78] sm:$0xff]
  %v3670 = vld [vmem:[%s4 + $0x80] sm:$0xff]
  %v3671 = vld [vmem:[%s4 + $0x88] sm:$0xff]
  %v3672 = vld [vmem:[%s4 + $0x90] sm:$0xff]
  %v3673 = vld [vmem:[%s4 + $0x98] sm:$0xff]
  %v3674 = vld [vmem:[%s4 + $0xa0] sm:$0xff]
  %v3675 = vld [vmem:[%s4 + $0xa8] sm:$0xff]
  %v3676 = vld [vmem:[%s4 + $0xb0] sm:$0xff]
  %v3677 = vld [vmem:[%s4 + $0xb8] sm:$0xff]
  %v3678 = vld [vmem:[%s4 + $0xc0] sm:$0x3]
  %v3679 = vld [vmem:[%s4 + $0xc8] sm:$0x3]
  %v3680 = vld [vmem:[%s4 + $0xd0] sm:$0x3]
  %v3681 = vld [vmem:[%s4 + $0xd8] sm:$0x3]
  %v3683 = vsel %vm213, %v3653, 0
  %v3686 = vsel %vm217, %v3678, 0
  %v3689 = vsel %vm217, %v3679, 0
  %v3692 = vsel %vm217, %v3680, 0
  %v3695 = vsel %vm217, %v3681, 0
  %3697 = vmatpush.msra.mxu0 0.0
  %3698 = vmatpush.msra.mxu0 0.0
  %3699 = vmatpush.msra.mxu0 0.0
  %3700 = vmatpush.msra.mxu0 0.0
  %3701 = vmatpush.msra.mxu0 0.0
  %3702 = vmatpush.msra.mxu0 0.0
  %3703 = vmatpush.msra.mxu0 0.0
  %3704 = vmatpush.msra.mxu0 0.0
  %3705 = vmatpush.msra.mxu0 0.0
  %3706 = vmatpush.msra.mxu0 %v3686
  %3707 = vmatpush.msra.mxu0 %v3674
  %3708 = vmatpush.msra.mxu0 %v3670
  %3709 = vmatpush.msra.mxu0 %v3666
  %3710 = vmatpush.msra.mxu0 %v3662
  %3711 = vmatpush.msra.mxu0 %v3658
  %3712 = vmatpush.msra.mxu0 %v3654
  %3713 = vmatmul.f32.gmra.mxu0 %v3683
  %v3714 = vpop.f32.mrf.mxu0
  %v3715 = vadd.f32 0.0, %v3714
  %3716 = vdwg.mxu0
  %3717 = vmatpush.msra.mxu0 0.0
  %3718 = vmatpush.msra.mxu0 0.0
  %3719 = vmatpush.msra.mxu0 0.0
  %3720 = vmatpush.msra.mxu0 0.0
  %3721 = vmatpush.msra.mxu0 0.0
  %3722 = vmatpush.msra.mxu0 0.0
  %3723 = vmatpush.msra.mxu0 0.0
  %3724 = vmatpush.msra.mxu0 0.0
  %3725 = vmatpush.msra.mxu0 0.0
  %3726 = vmatpush.msra.mxu0 %v3689
  %3727 = vmatpush.msra.mxu0 %v3675
  %3728 = vmatpush.msra.mxu0 %v3671
  %3729 = vmatpush.msra.mxu0 %v3667
  %3730 = vmatpush.msra.mxu0 %v3663
  %3731 = vmatpush.msra.mxu0 %v3659
  %3732 = vmatpush.msra.mxu0 %v3655
  %3733 = vmatmul.f32.gmra.mxu0 %v3683
  %v3734 = vpop.f32.mrf.mxu0
  %v3735 = vadd.f32 0.0, %v3734
  %3736 = vdwg.mxu0
  %3737 = vmatpush.msra.mxu0 0.0
  %3738 = vmatpush.msra.mxu0 0.0
  %3739 = vmatpush.msra.mxu0 0.0
  %3740 = vmatpush.msra.mxu0 0.0
  %3741 = vmatpush.msra.mxu0 0.0
  %3742 = vmatpush.msra.mxu0 0.0
  %3743 = vmatpush.msra.mxu0 0.0
  %3744 = vmatpush.msra.mxu0 0.0
  %3745 = vmatpush.msra.mxu0 0.0
  %3746 = vmatpush.msra.mxu0 %v3692
  %3747 = vmatpush.msra.mxu0 %v3676
  %3748 = vmatpush.msra.mxu0 %v3672
  %3749 = vmatpush.msra.mxu0 %v3668
  %3750 = vmatpush.msra.mxu0 %v3664
  %3751 = vmatpush.msra.mxu0 %v3660
  %3752 = vmatpush.msra.mxu0 %v3656
  %3753 = vmatmul.f32.gmra.mxu0 %v3683
  %v3754 = vpop.f32.mrf.mxu0
  %v3755 = vadd.f32 0.0, %v3754
  %3756 = vdwg.mxu0
  %3757 = vmatpush.msra.mxu0 0.0
  %3758 = vmatpush.msra.mxu0 0.0
  %3759 = vmatpush.msra.mxu0 0.0
  %3760 = vmatpush.msra.mxu0 0.0
  %3761 = vmatpush.msra.mxu0 0.0
  %3762 = vmatpush.msra.mxu0 0.0
  %3763 = vmatpush.msra.mxu0 0.0
  %3764 = vmatpush.msra.mxu0 0.0
  %3765 = vmatpush.msra.mxu0 0.0
  %3766 = vmatpush.msra.mxu0 %v3695
  %3767 = vmatpush.msra.mxu0 %v3677
  %3768 = vmatpush.msra.mxu0 %v3673
  %3769 = vmatpush.msra.mxu0 %v3669
  %3770 = vmatpush.msra.mxu0 %v3665
  %3771 = vmatpush.msra.mxu0 %v3661
  %3772 = vmatpush.msra.mxu0 %v3657
  %3773 = vmatmul.f32.gmra.mxu0 %v3683
  %v3774 = vpop.f32.mrf.mxu0
  %v3775 = vadd.f32 0.0, %v3774
  %3776 = vdwg.mxu0
  %v3777 = vadd.f32 %v3591, %v3715
  %v3778 = vadd.f32 %v3611, %v3735
  %v3779 = vadd.f32 %v3631, %v3755
  %v3780 = vadd.f32 %v3651, %v3775
  %v3781 = vld [vmem:[%s627] sm:$0xff]
  %v3782 = vld [vmem:[%s5] sm:$0xff]
  %v3783 = vld [vmem:[%s5 + $0x8] sm:$0xff]
  %v3784 = vld [vmem:[%s5 + $0x10] sm:$0xff]
  %v3785 = vld [vmem:[%s5 + $0x18] sm:$0xff]
  %v3786 = vld [vmem:[%s5 + $0x20] sm:$0xff]
  %v3787 = vld [vmem:[%s5 + $0x28] sm:$0xff]
  %v3788 = vld [vmem:[%s5 + $0x30] sm:$0xff]
  %v3789 = vld [vmem:[%s5 + $0x38] sm:$0xff]
  %v3790 = vld [vmem:[%s5 + $0x40] sm:$0xff]
  %v3791 = vld [vmem:[%s5 + $0x48] sm:$0xff]
  %v3792 = vld [vmem:[%s5 + $0x50] sm:$0xff]
  %v3793 = vld [vmem:[%s5 + $0x58] sm:$0xff]
  %v3794 = vld [vmem:[%s5 + $0x60] sm:$0xff]
  %v3795 = vld [vmem:[%s5 + $0x68] sm:$0xff]
  %v3796 = vld [vmem:[%s5 + $0x70] sm:$0xff]
  %v3797 = vld [vmem:[%s5 + $0x78] sm:$0xff]
  %v3798 = vld [vmem:[%s5 + $0x80] sm:$0xff]
  %v3799 = vld [vmem:[%s5 + $0x88] sm:$0xff]
  %v3800 = vld [vmem:[%s5 + $0x90] sm:$0xff]
  %v3801 = vld [vmem:[%s5 + $0x98] sm:$0xff]
  %v3802 = vld [vmem:[%s5 + $0xa0] sm:$0xff]
  %v3803 = vld [vmem:[%s5 + $0xa8] sm:$0xff]
  %v3804 = vld [vmem:[%s5 + $0xb0] sm:$0xff]
  %v3805 = vld [vmem:[%s5 + $0xb8] sm:$0xff]
  %v3806 = vld [vmem:[%s5 + $0xc0] sm:$0xff]
  %v3807 = vld [vmem:[%s5 + $0xc8] sm:$0xff]
  %v3808 = vld [vmem:[%s5 + $0xd0] sm:$0xff]
  %v3809 = vld [vmem:[%s5 + $0xd8] sm:$0xff]
  %v3810 = vld [vmem:[%s5 + $0xe0] sm:$0xff]
  %v3811 = vld [vmem:[%s5 + $0xe8] sm:$0xff]
  %v3812 = vld [vmem:[%s5 + $0xf0] sm:$0xff]
  %v3813 = vld [vmem:[%s5 + $0xf8] sm:$0xff]
  %v3814 = vld [vmem:[%s5 + $0x100] sm:$0xff]
  %v3815 = vld [vmem:[%s5 + $0x108] sm:$0xff]
  %v3816 = vld [vmem:[%s5 + $0x110] sm:$0xff]
  %v3817 = vld [vmem:[%s5 + $0x118] sm:$0xff]
  %v3818 = vld [vmem:[%s5 + $0x120] sm:$0xff]
  %v3819 = vld [vmem:[%s5 + $0x128] sm:$0xff]
  %v3820 = vld [vmem:[%s5 + $0x130] sm:$0xff]
  %v3821 = vld [vmem:[%s5 + $0x138] sm:$0xff]
  %v3822 = vld [vmem:[%s5 + $0x140] sm:$0xff]
  %v3823 = vld [vmem:[%s5 + $0x148] sm:$0xff]
  %v3824 = vld [vmem:[%s5 + $0x150] sm:$0xff]
  %v3825 = vld [vmem:[%s5 + $0x158] sm:$0xff]
  %v3826 = vld [vmem:[%s5 + $0x160] sm:$0xff]
  %v3827 = vld [vmem:[%s5 + $0x168] sm:$0xff]
  %v3828 = vld [vmem:[%s5 + $0x170] sm:$0xff]
  %v3829 = vld [vmem:[%s5 + $0x178] sm:$0xff]
  %v3830 = vld [vmem:[%s5 + $0x180] sm:$0xff]
  %v3831 = vld [vmem:[%s5 + $0x188] sm:$0xff]
  %v3832 = vld [vmem:[%s5 + $0x190] sm:$0xff]
  %v3833 = vld [vmem:[%s5 + $0x198] sm:$0xff]
  %v3834 = vld [vmem:[%s5 + $0x1a0] sm:$0xff]
  %v3835 = vld [vmem:[%s5 + $0x1a8] sm:$0xff]
  %v3836 = vld [vmem:[%s5 + $0x1b0] sm:$0xff]
  %v3837 = vld [vmem:[%s5 + $0x1b8] sm:$0xff]
  %v3838 = vld [vmem:[%s5 + $0x1c0] sm:$0xff]
  %v3839 = vld [vmem:[%s5 + $0x1c8] sm:$0xff]
  %v3840 = vld [vmem:[%s5 + $0x1d0] sm:$0xff]
  %v3841 = vld [vmem:[%s5 + $0x1d8] sm:$0xff]
  %v3842 = vld [vmem:[%s5 + $0x1e0] sm:$0xff]
  %v3843 = vld [vmem:[%s5 + $0x1e8] sm:$0xff]
  %v3844 = vld [vmem:[%s5 + $0x1f0] sm:$0xff]
  %v3845 = vld [vmem:[%s5 + $0x1f8] sm:$0xff]
  %3846 = vmatpush.msra.mxu0 %v3842
  %3847 = vmatpush.msra.mxu0 %v3838
  %3848 = vmatpush.msra.mxu0 %v3834
  %3849 = vmatpush.msra.mxu0 %v3830
  %3850 = vmatpush.msra.mxu0 %v3826
  %3851 = vmatpush.msra.mxu0 %v3822
  %3852 = vmatpush.msra.mxu0 %v3818
  %3853 = vmatpush.msra.mxu0 %v3814
  %3854 = vmatpush.msra.mxu0 %v3810
  %3855 = vmatpush.msra.mxu0 %v3806
  %3856 = vmatpush.msra.mxu0 %v3802
  %3857 = vmatpush.msra.mxu0 %v3798
  %3858 = vmatpush.msra.mxu0 %v3794
  %3859 = vmatpush.msra.mxu0 %v3790
  %3860 = vmatpush.msra.mxu0 %v3786
  %3861 = vmatpush.msra.mxu0 %v3782
  %3862 = vmatmul.f32.gmra.mxu0 %v3781
  %v3863 = vpop.f32.mrf.mxu0
  %v3864 = vadd.f32 0.0, %v3863
  %3865 = vdwg.mxu0
  %3866 = vmatpush.msra.mxu0 %v3843
  %3867 = vmatpush.msra.mxu0 %v3839
  %3868 = vmatpush.msra.mxu0 %v3835
  %3869 = vmatpush.msra.mxu0 %v3831
  %3870 = vmatpush.msra.mxu0 %v3827
  %3871 = vmatpush.msra.mxu0 %v3823
  %3872 = vmatpush.msra.mxu0 %v3819
  %3873 = vmatpush.msra.mxu0 %v3815
  %3874 = vmatpush.msra.mxu0 %v3811
  %3875 = vmatpush.msra.mxu0 %v3807
  %3876 = vmatpush.msra.mxu0 %v3803
  %3877 = vmatpush.msra.mxu0 %v3799
  %3878 = vmatpush.msra.mxu0 %v3795
  %3879 = vmatpush.msra.mxu0 %v3791
  %3880 = vmatpush.msra.mxu0 %v3787
  %3881 = vmatpush.msra.mxu0 %v3783
  %3882 = vmatmul.f32.gmra.mxu0 %v3781
  %v3883 = vpop.f32.mrf.mxu0
  %v3884 = vadd.f32 0.0, %v3883
  %3885 = vdwg.mxu0
  %3886 = vmatpush.msra.mxu0 %v3844
  %3887 = vmatpush.msra.mxu0 %v3840
  %3888 = vmatpush.msra.mxu0 %v3836
  %3889 = vmatpush.msra.mxu0 %v3832
  %3890 = vmatpush.msra.mxu0 %v3828
  %3891 = vmatpush.msra.mxu0 %v3824
  %3892 = vmatpush.msra.mxu0 %v3820
  %3893 = vmatpush.msra.mxu0 %v3816
  %3894 = vmatpush.msra.mxu0 %v3812
  %3895 = vmatpush.msra.mxu0 %v3808
  %3896 = vmatpush.msra.mxu0 %v3804
  %3897 = vmatpush.msra.mxu0 %v3800
  %3898 = vmatpush.msra.mxu0 %v3796
  %3899 = vmatpush.msra.mxu0 %v3792
  %3900 = vmatpush.msra.mxu0 %v3788
  %3901 = vmatpush.msra.mxu0 %v3784
  %3902 = vmatmul.f32.gmra.mxu0 %v3781
  %v3903 = vpop.f32.mrf.mxu0
  %v3904 = vadd.f32 0.0, %v3903
  %3905 = vdwg.mxu0
  %3906 = vmatpush.msra.mxu0 %v3845
  %3907 = vmatpush.msra.mxu0 %v3841
  %3908 = vmatpush.msra.mxu0 %v3837
  %3909 = vmatpush.msra.mxu0 %v3833
  %3910 = vmatpush.msra.mxu0 %v3829
  %3911 = vmatpush.msra.mxu0 %v3825
  %3912 = vmatpush.msra.mxu0 %v3821
  %3913 = vmatpush.msra.mxu0 %v3817
  %3914 = vmatpush.msra.mxu0 %v3813
  %3915 = vmatpush.msra.mxu0 %v3809
  %3916 = vmatpush.msra.mxu0 %v3805
  %3917 = vmatpush.msra.mxu0 %v3801
  %3918 = vmatpush.msra.mxu0 %v3797
  %3919 = vmatpush.msra.mxu0 %v3793
  %3920 = vmatpush.msra.mxu0 %v3789
  %3921 = vmatpush.msra.mxu0 %v3785
  %3922 = vmatmul.f32.gmra.mxu0 %v3781
  %v3923 = vpop.f32.mrf.mxu0
  %v3924 = vadd.f32 0.0, %v3923
  %3925 = vdwg.mxu0
  %v3926 = vadd.f32 %v3777, %v3864
  %v3927 = vadd.f32 %v3778, %v3884
  %v3928 = vadd.f32 %v3779, %v3904
  %v3929 = vadd.f32 %v3780, %v3924
  %v3930 = vadd.f32 %v3926, %v31
  %v3931 = vadd.f32 %v3927, %v32
  %v3932 = vadd.f32 %v3928, %v33
  %v3933 = vadd.f32 %v3929, %v34
  %s3934 = scalar_lea.vmem [#allocation2], 192
  %3935 = vst [vmem:[%s3934] sm:$0xff] %v3930
  %3936 = vst [vmem:[%s3934 + $0x8] sm:$0xff] %v3931
  %3937 = vst [vmem:[%s3934 + $0x10] sm:$0xff] %v3932
  %3938 = vst [vmem:[%s3934 + $0x18] sm:$0xff] %v3933
  %v3939 = vld [vmem:[%s310] sm:$0xff]
  %v3940 = vld [vmem:[%s2] sm:$0xff]
  %v3941 = vld [vmem:[%s2 + $0x8] sm:$0xff]
  %v3942 = vld [vmem:[%s2 + $0x10] sm:$0xff]
  %v3943 = vld [vmem:[%s2 + $0x18] sm:$0xff]
  %v3944 = vld [vmem:[%s2 + $0x20] sm:$0xff]
  %v3945 = vld [vmem:[%s2 + $0x28] sm:$0xff]
  %v3946 = vld [vmem:[%s2 + $0x30] sm:$0xff]
  %v3947 = vld [vmem:[%s2 + $0x38] sm:$0xff]
  %v3948 = vld [vmem:[%s2 + $0x40] sm:$0xff]
  %v3949 = vld [vmem:[%s2 + $0x48] sm:$0xff]
  %v3950 = vld [vmem:[%s2 + $0x50] sm:$0xff]
  %v3951 = vld [vmem:[%s2 + $0x58] sm:$0xff]
  %v3952 = vld [vmem:[%s2 + $0x60] sm:$0xff]
  %v3953 = vld [vmem:[%s2 + $0x68] sm:$0xff]
  %v3954 = vld [vmem:[%s2 + $0x70] sm:$0xff]
  %v3955 = vld [vmem:[%s2 + $0x78] sm:$0xff]
  %v3956 = vld [vmem:[%s2 + $0x80] sm:$0xff]
  %v3957 = vld [vmem:[%s2 + $0x88] sm:$0xff]
  %v3958 = vld [vmem:[%s2 + $0x90] sm:$0xff]
  %v3959 = vld [vmem:[%s2 + $0x98] sm:$0xff]
  %v3960 = vld [vmem:[%s2 + $0xa0] sm:$0xff]
  %v3961 = vld [vmem:[%s2 + $0xa8] sm:$0xff]
  %v3962 = vld [vmem:[%s2 + $0xb0] sm:$0xff]
  %v3963 = vld [vmem:[%s2 + $0xb8] sm:$0xff]
  %v3964 = vld [vmem:[%s2 + $0xc0] sm:$0x3]
  %v3965 = vld [vmem:[%s2 + $0xc8] sm:$0x3]
  %v3966 = vld [vmem:[%s2 + $0xd0] sm:$0x3]
  %v3967 = vld [vmem:[%s2 + $0xd8] sm:$0x3]
  %v3968 = vld [vmem:[%s439] sm:$0xff]
  %v3969 = vld [vmem:[%s3] sm:$0xff]
  %v3970 = vld [vmem:[%s3 + $0x8] sm:$0xff]
  %v3971 = vld [vmem:[%s3 + $0x10] sm:$0xff]
  %v3972 = vld [vmem:[%s3 + $0x18] sm:$0xff]
  %v3973 = vld [vmem:[%s3 + $0x20] sm:$0xff]
  %v3974 = vld [vmem:[%s3 + $0x28] sm:$0xff]
  %v3975 = vld [vmem:[%s3 + $0x30] sm:$0xff]
  %v3976 = vld [vmem:[%s3 + $0x38] sm:$0xff]
  %v3977 = vld [vmem:[%s3 + $0x40] sm:$0xff]
  %v3978 = vld [vmem:[%s3 + $0x48] sm:$0xff]
  %v3979 = vld [vmem:[%s3 + $0x50] sm:$0xff]
  %v3980 = vld [vmem:[%s3 + $0x58] sm:$0xff]
  %v3981 = vld [vmem:[%s3 + $0x60] sm:$0xff]
  %v3982 = vld [vmem:[%s3 + $0x68] sm:$0xff]
  %v3983 = vld [vmem:[%s3 + $0x70] sm:$0xff]
  %v3984 = vld [vmem:[%s3 + $0x78] sm:$0xff]
  %v3985 = vld [vmem:[%s3 + $0x80] sm:$0xff]
  %v3986 = vld [vmem:[%s3 + $0x88] sm:$0xff]
  %v3987 = vld [vmem:[%s3 + $0x90] sm:$0xff]
  %v3988 = vld [vmem:[%s3 + $0x98] sm:$0xff]
  %v3989 = vld [vmem:[%s3 + $0xa0] sm:$0xff]
  %v3990 = vld [vmem:[%s3 + $0xa8] sm:$0xff]
  %v3991 = vld [vmem:[%s3 + $0xb0] sm:$0xff]
  %v3992 = vld [vmem:[%s3 + $0xb8] sm:$0xff]
  %v3993 = vld [vmem:[%s3 + $0xc0] sm:$0xff]
  %v3994 = vld [vmem:[%s3 + $0xc8] sm:$0xff]
  %v3995 = vld [vmem:[%s3 + $0xd0] sm:$0xff]
  %v3996 = vld [vmem:[%s3 + $0xd8] sm:$0xff]
  %v3997 = vld [vmem:[%s3 + $0xe0] sm:$0xff]
  %v3998 = vld [vmem:[%s3 + $0xe8] sm:$0xff]
  %v3999 = vld [vmem:[%s3 + $0xf0] sm:$0xff]
  %v4000 = vld [vmem:[%s3 + $0xf8] sm:$0xff]
  %v4001 = vld [vmem:[%s3 + $0x100] sm:$0xff]
  %v4002 = vld [vmem:[%s3 + $0x108] sm:$0xff]
  %v4003 = vld [vmem:[%s3 + $0x110] sm:$0xff]
  %v4004 = vld [vmem:[%s3 + $0x118] sm:$0xff]
  %v4005 = vld [vmem:[%s3 + $0x120] sm:$0xff]
  %v4006 = vld [vmem:[%s3 + $0x128] sm:$0xff]
  %v4007 = vld [vmem:[%s3 + $0x130] sm:$0xff]
  %v4008 = vld [vmem:[%s3 + $0x138] sm:$0xff]
  %v4009 = vld [vmem:[%s3 + $0x140] sm:$0xff]
  %v4010 = vld [vmem:[%s3 + $0x148] sm:$0xff]
  %v4011 = vld [vmem:[%s3 + $0x150] sm:$0xff]
  %v4012 = vld [vmem:[%s3 + $0x158] sm:$0xff]
  %v4013 = vld [vmem:[%s3 + $0x160] sm:$0xff]
  %v4014 = vld [vmem:[%s3 + $0x168] sm:$0xff]
  %v4015 = vld [vmem:[%s3 + $0x170] sm:$0xff]
  %v4016 = vld [vmem:[%s3 + $0x178] sm:$0xff]
  %v4017 = vld [vmem:[%s3 + $0x180] sm:$0xff]
  %v4018 = vld [vmem:[%s3 + $0x188] sm:$0xff]
  %v4019 = vld [vmem:[%s3 + $0x190] sm:$0xff]
  %v4020 = vld [vmem:[%s3 + $0x198] sm:$0xff]
  %v4021 = vld [vmem:[%s3 + $0x1a0] sm:$0xff]
  %v4022 = vld [vmem:[%s3 + $0x1a8] sm:$0xff]
  %v4023 = vld [vmem:[%s3 + $0x1b0] sm:$0xff]
  %v4024 = vld [vmem:[%s3 + $0x1b8] sm:$0xff]
  %v4025 = vld [vmem:[%s3 + $0x1c0] sm:$0xff]
  %v4026 = vld [vmem:[%s3 + $0x1c8] sm:$0xff]
  %v4027 = vld [vmem:[%s3 + $0x1d0] sm:$0xff]
  %v4028 = vld [vmem:[%s3 + $0x1d8] sm:$0xff]
  %v4029 = vld [vmem:[%s3 + $0x1e0] sm:$0xff]
  %v4030 = vld [vmem:[%s3 + $0x1e8] sm:$0xff]
  %v4031 = vld [vmem:[%s3 + $0x1f0] sm:$0xff]
  %v4032 = vld [vmem:[%s3 + $0x1f8] sm:$0xff]
  %4033 = vmatpush.msra.mxu0 %v4029
  %4034 = vmatpush.msra.mxu0 %v4025
  %4035 = vmatpush.msra.mxu0 %v4021
  %4036 = vmatpush.msra.mxu0 %v4017
  %4037 = vmatpush.msra.mxu0 %v4013
  %4038 = vmatpush.msra.mxu0 %v4009
  %4039 = vmatpush.msra.mxu0 %v4005
  %4040 = vmatpush.msra.mxu0 %v4001
  %4041 = vmatpush.msra.mxu0 %v3997
  %4042 = vmatpush.msra.mxu0 %v3993
  %4043 = vmatpush.msra.mxu0 %v3989
  %4044 = vmatpush.msra.mxu0 %v3985
  %4045 = vmatpush.msra.mxu0 %v3981
  %4046 = vmatpush.msra.mxu0 %v3977
  %4047 = vmatpush.msra.mxu0 %v3973
  %4048 = vmatpush.msra.mxu0 %v3969
  %4049 = vmatmul.f32.gmra.mxu0 %v3968
  %v4050 = vpop.f32.mrf.mxu0
  %v4051 = vadd.f32 0.0, %v4050
  %4052 = vdwg.mxu0
  %4053 = vmatpush.msra.mxu0 %v4030
  %4054 = vmatpush.msra.mxu0 %v4026
  %4055 = vmatpush.msra.mxu0 %v4022
  %4056 = vmatpush.msra.mxu0 %v4018
  %4057 = vmatpush.msra.mxu0 %v4014
  %4058 = vmatpush.msra.mxu0 %v4010
  %4059 = vmatpush.msra.mxu0 %v4006
  %4060 = vmatpush.msra.mxu0 %v4002
  %4061 = vmatpush.msra.mxu0 %v3998
  %4062 = vmatpush.msra.mxu0 %v3994
  %4063 = vmatpush.msra.mxu0 %v3990
  %4064 = vmatpush.msra.mxu0 %v3986
  %4065 = vmatpush.msra.mxu0 %v3982
  %4066 = vmatpush.msra.mxu0 %v3978
  %4067 = vmatpush.msra.mxu0 %v3974
  %4068 = vmatpush.msra.mxu0 %v3970
  %4069 = vmatmul.f32.gmra.mxu0 %v3968
  %v4070 = vpop.f32.mrf.mxu0
  %v4071 = vadd.f32 0.0, %v4070
  %4072 = vdwg.mxu0
  %4073 = vmatpush.msra.mxu0 %v4031
  %4074 = vmatpush.msra.mxu0 %v4027
  %4075 = vmatpush.msra.mxu0 %v4023
  %4076 = vmatpush.msra.mxu0 %v4019
  %4077 = vmatpush.msra.mxu0 %v4015
  %4078 = vmatpush.msra.mxu0 %v4011
  %4079 = vmatpush.msra.mxu0 %v4007
  %4080 = vmatpush.msra.mxu0 %v4003
  %4081 = vmatpush.msra.mxu0 %v3999
  %4082 = vmatpush.msra.mxu0 %v3995
  %4083 = vmatpush.msra.mxu0 %v3991
  %4084 = vmatpush.msra.mxu0 %v3987
  %4085 = vmatpush.msra.mxu0 %v3983
  %4086 = vmatpush.msra.mxu0 %v3979
  %4087 = vmatpush.msra.mxu0 %v3975
  %4088 = vmatpush.msra.mxu0 %v3971
  %4089 = vmatmul.f32.gmra.mxu0 %v3968
  %v4090 = vpop.f32.mrf.mxu0
  %v4091 = vadd.f32 0.0, %v4090
  %4092 = vdwg.mxu0
  %4093 = vmatpush.msra.mxu0 %v4032
  %4094 = vmatpush.msra.mxu0 %v4028
  %4095 = vmatpush.msra.mxu0 %v4024
  %4096 = vmatpush.msra.mxu0 %v4020
  %4097 = vmatpush.msra.mxu0 %v4016
  %4098 = vmatpush.msra.mxu0 %v4012
  %4099 = vmatpush.msra.mxu0 %v4008
  %4100 = vmatpush.msra.mxu0 %v4004
  %4101 = vmatpush.msra.mxu0 %v4000
  %4102 = vmatpush.msra.mxu0 %v3996
  %4103 = vmatpush.msra.mxu0 %v3992
  %4104 = vmatpush.msra.mxu0 %v3988
  %4105 = vmatpush.msra.mxu0 %v3984
  %4106 = vmatpush.msra.mxu0 %v3980
  %4107 = vmatpush.msra.mxu0 %v3976
  %4108 = vmatpush.msra.mxu0 %v3972
  %4109 = vmatmul.f32.gmra.mxu0 %v3968
  %v4110 = vpop.f32.mrf.mxu0
  %v4111 = vadd.f32 0.0, %v4110
  %4112 = vdwg.mxu0
  %v4114 = vsel %vm213, %v3939, 0
  %v4117 = vsel %vm217, %v3964, 0
  %v4120 = vsel %vm217, %v3965, 0
  %v4123 = vsel %vm217, %v3966, 0
  %v4126 = vsel %vm217, %v3967, 0
  %4128 = vmatpush.msra.mxu0 0.0
  %4129 = vmatpush.msra.mxu0 0.0
  %4130 = vmatpush.msra.mxu0 0.0
  %4131 = vmatpush.msra.mxu0 0.0
  %4132 = vmatpush.msra.mxu0 0.0
  %4133 = vmatpush.msra.mxu0 0.0
  %4134 = vmatpush.msra.mxu0 0.0
  %4135 = vmatpush.msra.mxu0 0.0
  %4136 = vmatpush.msra.mxu0 0.0
  %4137 = vmatpush.msra.mxu0 %v4117
  %4138 = vmatpush.msra.mxu0 %v3960
  %4139 = vmatpush.msra.mxu0 %v3956
  %4140 = vmatpush.msra.mxu0 %v3952
  %4141 = vmatpush.msra.mxu0 %v3948
  %4142 = vmatpush.msra.mxu0 %v3944
  %4143 = vmatpush.msra.mxu0 %v3940
  %4144 = vmatmul.f32.gmra.mxu0 %v4114
  %v4145 = vpop.f32.mrf.mxu0
  %v4146 = vadd.f32 %v4051, %v4145
  %4147 = vdwg.mxu0
  %4148 = vmatpush.msra.mxu0 0.0
  %4149 = vmatpush.msra.mxu0 0.0
  %4150 = vmatpush.msra.mxu0 0.0
  %4151 = vmatpush.msra.mxu0 0.0
  %4152 = vmatpush.msra.mxu0 0.0
  %4153 = vmatpush.msra.mxu0 0.0
  %4154 = vmatpush.msra.mxu0 0.0
  %4155 = vmatpush.msra.mxu0 0.0
  %4156 = vmatpush.msra.mxu0 0.0
  %4157 = vmatpush.msra.mxu0 %v4120
  %4158 = vmatpush.msra.mxu0 %v3961
  %4159 = vmatpush.msra.mxu0 %v3957
  %4160 = vmatpush.msra.mxu0 %v3953
  %4161 = vmatpush.msra.mxu0 %v3949
  %4162 = vmatpush.msra.mxu0 %v3945
  %4163 = vmatpush.msra.mxu0 %v3941
  %4164 = vmatmul.f32.gmra.mxu0 %v4114
  %v4165 = vpop.f32.mrf.mxu0
  %v4166 = vadd.f32 %v4071, %v4165
  %4167 = vdwg.mxu0
  %4168 = vmatpush.msra.mxu0 0.0
  %4169 = vmatpush.msra.mxu0 0.0
  %4170 = vmatpush.msra.mxu0 0.0
  %4171 = vmatpush.msra.mxu0 0.0
  %4172 = vmatpush.msra.mxu0 0.0
  %4173 = vmatpush.msra.mxu0 0.0
  %4174 = vmatpush.msra.mxu0 0.0
  %4175 = vmatpush.msra.mxu0 0.0
  %4176 = vmatpush.msra.mxu0 0.0
  %4177 = vmatpush.msra.mxu0 %v4123
  %4178 = vmatpush.msra.mxu0 %v3962
  %4179 = vmatpush.msra.mxu0 %v3958
  %4180 = vmatpush.msra.mxu0 %v3954
  %4181 = vmatpush.msra.mxu0 %v3950
  %4182 = vmatpush.msra.mxu0 %v3946
  %4183 = vmatpush.msra.mxu0 %v3942
  %4184 = vmatmul.f32.gmra.mxu0 %v4114
  %v4185 = vpop.f32.mrf.mxu0
  %v4186 = vadd.f32 %v4091, %v4185
  %4187 = vdwg.mxu0
  %4188 = vmatpush.msra.mxu0 0.0
  %4189 = vmatpush.msra.mxu0 0.0
  %4190 = vmatpush.msra.mxu0 0.0
  %4191 = vmatpush.msra.mxu0 0.0
  %4192 = vmatpush.msra.mxu0 0.0
  %4193 = vmatpush.msra.mxu0 0.0
  %4194 = vmatpush.msra.mxu0 0.0
  %4195 = vmatpush.msra.mxu0 0.0
  %4196 = vmatpush.msra.mxu0 0.0
  %4197 = vmatpush.msra.mxu0 %v4126
  %4198 = vmatpush.msra.mxu0 %v3963
  %4199 = vmatpush.msra.mxu0 %v3959
  %4200 = vmatpush.msra.mxu0 %v3955
  %4201 = vmatpush.msra.mxu0 %v3951
  %4202 = vmatpush.msra.mxu0 %v3947
  %4203 = vmatpush.msra.mxu0 %v3943
  %4204 = vmatmul.f32.gmra.mxu0 %v4114
  %v4205 = vpop.f32.mrf.mxu0
  %v4206 = vadd.f32 %v4111, %v4205
  %4207 = vdwg.mxu0
  %v4208 = vld [vmem:[%s0] sm:$0xff]
  %v4209 = vld [vmem:[%s4] sm:$0xff]
  %v4210 = vld [vmem:[%s4 + $0x8] sm:$0xff]
  %v4211 = vld [vmem:[%s4 + $0x10] sm:$0xff]
  %v4212 = vld [vmem:[%s4 + $0x18] sm:$0xff]
  %v4213 = vld [vmem:[%s4 + $0x20] sm:$0xff]
  %v4214 = vld [vmem:[%s4 + $0x28] sm:$0xff]
  %v4215 = vld [vmem:[%s4 + $0x30] sm:$0xff]
  %v4216 = vld [vmem:[%s4 + $0x38] sm:$0xff]
  %v4217 = vld [vmem:[%s4 + $0x40] sm:$0xff]
  %v4218 = vld [vmem:[%s4 + $0x48] sm:$0xff]
  %v4219 = vld [vmem:[%s4 + $0x50] sm:$0xff]
  %v4220 = vld [vmem:[%s4 + $0x58] sm:$0xff]
  %v4221 = vld [vmem:[%s4 + $0x60] sm:$0xff]
  %v4222 = vld [vmem:[%s4 + $0x68] sm:$0xff]
  %v4223 = vld [vmem:[%s4 + $0x70] sm:$0xff]
  %v4224 = vld [vmem:[%s4 + $0x78] sm:$0xff]
  %v4225 = vld [vmem:[%s4 + $0x80] sm:$0xff]
  %v4226 = vld [vmem:[%s4 + $0x88] sm:$0xff]
  %v4227 = vld [vmem:[%s4 + $0x90] sm:$0xff]
  %v4228 = vld [vmem:[%s4 + $0x98] sm:$0xff]
  %v4229 = vld [vmem:[%s4 + $0xa0] sm:$0xff]
  %v4230 = vld [vmem:[%s4 + $0xa8] sm:$0xff]
  %v4231 = vld [vmem:[%s4 + $0xb0] sm:$0xff]
  %v4232 = vld [vmem:[%s4 + $0xb8] sm:$0xff]
  %v4233 = vld [vmem:[%s4 + $0xc0] sm:$0x3]
  %v4234 = vld [vmem:[%s4 + $0xc8] sm:$0x3]
  %v4235 = vld [vmem:[%s4 + $0xd0] sm:$0x3]
  %v4236 = vld [vmem:[%s4 + $0xd8] sm:$0x3]
  %v4238 = vsel %vm213, %v4208, 0
  %v4241 = vsel %vm217, %v4233, 0
  %v4244 = vsel %vm217, %v4234, 0
  %v4247 = vsel %vm217, %v4235, 0
  %v4250 = vsel %vm217, %v4236, 0
  %4252 = vmatpush.msra.mxu0 0.0
  %4253 = vmatpush.msra.mxu0 0.0
  %4254 = vmatpush.msra.mxu0 0.0
  %4255 = vmatpush.msra.mxu0 0.0
  %4256 = vmatpush.msra.mxu0 0.0
  %4257 = vmatpush.msra.mxu0 0.0
  %4258 = vmatpush.msra.mxu0 0.0
  %4259 = vmatpush.msra.mxu0 0.0
  %4260 = vmatpush.msra.mxu0 0.0
  %4261 = vmatpush.msra.mxu0 %v4241
  %4262 = vmatpush.msra.mxu0 %v4229
  %4263 = vmatpush.msra.mxu0 %v4225
  %4264 = vmatpush.msra.mxu0 %v4221
  %4265 = vmatpush.msra.mxu0 %v4217
  %4266 = vmatpush.msra.mxu0 %v4213
  %4267 = vmatpush.msra.mxu0 %v4209
  %4268 = vmatmul.f32.gmra.mxu0 %v4238
  %v4269 = vpop.f32.mrf.mxu0
  %v4270 = vadd.f32 0.0, %v4269
  %4271 = vdwg.mxu0
  %4272 = vmatpush.msra.mxu0 0.0
  %4273 = vmatpush.msra.mxu0 0.0
  %4274 = vmatpush.msra.mxu0 0.0
  %4275 = vmatpush.msra.mxu0 0.0
  %4276 = vmatpush.msra.mxu0 0.0
  %4277 = vmatpush.msra.mxu0 0.0
  %4278 = vmatpush.msra.mxu0 0.0
  %4279 = vmatpush.msra.mxu0 0.0
  %4280 = vmatpush.msra.mxu0 0.0
  %4281 = vmatpush.msra.mxu0 %v4244
  %4282 = vmatpush.msra.mxu0 %v4230
  %4283 = vmatpush.msra.mxu0 %v4226
  %4284 = vmatpush.msra.mxu0 %v4222
  %4285 = vmatpush.msra.mxu0 %v4218
  %4286 = vmatpush.msra.mxu0 %v4214
  %4287 = vmatpush.msra.mxu0 %v4210
  %4288 = vmatmul.f32.gmra.mxu0 %v4238
  %v4289 = vpop.f32.mrf.mxu0
  %v4290 = vadd.f32 0.0, %v4289
  %4291 = vdwg.mxu0
  %4292 = vmatpush.msra.mxu0 0.0
  %4293 = vmatpush.msra.mxu0 0.0
  %4294 = vmatpush.msra.mxu0 0.0
  %4295 = vmatpush.msra.mxu0 0.0
  %4296 = vmatpush.msra.mxu0 0.0
  %4297 = vmatpush.msra.mxu0 0.0
  %4298 = vmatpush.msra.mxu0 0.0
  %4299 = vmatpush.msra.mxu0 0.0
  %4300 = vmatpush.msra.mxu0 0.0
  %4301 = vmatpush.msra.mxu0 %v4247
  %4302 = vmatpush.msra.mxu0 %v4231
  %4303 = vmatpush.msra.mxu0 %v4227
  %4304 = vmatpush.msra.mxu0 %v4223
  %4305 = vmatpush.msra.mxu0 %v4219
  %4306 = vmatpush.msra.mxu0 %v4215
  %4307 = vmatpush.msra.mxu0 %v4211
  %4308 = vmatmul.f32.gmra.mxu0 %v4238
  %v4309 = vpop.f32.mrf.mxu0
  %v4310 = vadd.f32 0.0, %v4309
  %4311 = vdwg.mxu0
  %4312 = vmatpush.msra.mxu0 0.0
  %4313 = vmatpush.msra.mxu0 0.0
  %4314 = vmatpush.msra.mxu0 0.0
  %4315 = vmatpush.msra.mxu0 0.0
  %4316 = vmatpush.msra.mxu0 0.0
  %4317 = vmatpush.msra.mxu0 0.0
  %4318 = vmatpush.msra.mxu0 0.0
  %4319 = vmatpush.msra.mxu0 0.0
  %4320 = vmatpush.msra.mxu0 0.0
  %4321 = vmatpush.msra.mxu0 %v4250
  %4322 = vmatpush.msra.mxu0 %v4232
  %4323 = vmatpush.msra.mxu0 %v4228
  %4324 = vmatpush.msra.mxu0 %v4224
  %4325 = vmatpush.msra.mxu0 %v4220
  %4326 = vmatpush.msra.mxu0 %v4216
  %4327 = vmatpush.msra.mxu0 %v4212
  %4328 = vmatmul.f32.gmra.mxu0 %v4238
  %v4329 = vpop.f32.mrf.mxu0
  %v4330 = vadd.f32 0.0, %v4329
  %4331 = vdwg.mxu0
  %v4332 = vadd.f32 %v4146, %v4270
  %v4333 = vadd.f32 %v4166, %v4290
  %v4334 = vadd.f32 %v4186, %v4310
  %v4335 = vadd.f32 %v4206, %v4330
  %v4336 = vld [vmem:[%s1] sm:$0xff]
  %v4337 = vld [vmem:[%s5] sm:$0xff]
  %v4338 = vld [vmem:[%s5 + $0x8] sm:$0xff]
  %v4339 = vld [vmem:[%s5 + $0x10] sm:$0xff]
  %v4340 = vld [vmem:[%s5 + $0x18] sm:$0xff]
  %v4341 = vld [vmem:[%s5 + $0x20] sm:$0xff]
  %v4342 = vld [vmem:[%s5 + $0x28] sm:$0xff]
  %v4343 = vld [vmem:[%s5 + $0x30] sm:$0xff]
  %v4344 = vld [vmem:[%s5 + $0x38] sm:$0xff]
  %v4345 = vld [vmem:[%s5 + $0x40] sm:$0xff]
  %v4346 = vld [vmem:[%s5 + $0x48] sm:$0xff]
  %v4347 = vld [vmem:[%s5 + $0x50] sm:$0xff]
  %v4348 = vld [vmem:[%s5 + $0x58] sm:$0xff]
  %v4349 = vld [vmem:[%s5 + $0x60] sm:$0xff]
  %v4350 = vld [vmem:[%s5 + $0x68] sm:$0xff]
  %v4351 = vld [vmem:[%s5 + $0x70] sm:$0xff]
  %v4352 = vld [vmem:[%s5 + $0x78] sm:$0xff]
  %v4353 = vld [vmem:[%s5 + $0x80] sm:$0xff]
  %v4354 = vld [vmem:[%s5 + $0x88] sm:$0xff]
  %v4355 = vld [vmem:[%s5 + $0x90] sm:$0xff]
  %v4356 = vld [vmem:[%s5 + $0x98] sm:$0xff]
  %v4357 = vld [vmem:[%s5 + $0xa0] sm:$0xff]
  %v4358 = vld [vmem:[%s5 + $0xa8] sm:$0xff]
  %v4359 = vld [vmem:[%s5 + $0xb0] sm:$0xff]
  %v4360 = vld [vmem:[%s5 + $0xb8] sm:$0xff]
  %v4361 = vld [vmem:[%s5 + $0xc0] sm:$0xff]
  %v4362 = vld [vmem:[%s5 + $0xc8] sm:$0xff]
  %v4363 = vld [vmem:[%s5 + $0xd0] sm:$0xff]
  %v4364 = vld [vmem:[%s5 + $0xd8] sm:$0xff]
  %v4365 = vld [vmem:[%s5 + $0xe0] sm:$0xff]
  %v4366 = vld [vmem:[%s5 + $0xe8] sm:$0xff]
  %v4367 = vld [vmem:[%s5 + $0xf0] sm:$0xff]
  %v4368 = vld [vmem:[%s5 + $0xf8] sm:$0xff]
  %v4369 = vld [vmem:[%s5 + $0x100] sm:$0xff]
  %v4370 = vld [vmem:[%s5 + $0x108] sm:$0xff]
  %v4371 = vld [vmem:[%s5 + $0x110] sm:$0xff]
  %v4372 = vld [vmem:[%s5 + $0x118] sm:$0xff]
  %v4373 = vld [vmem:[%s5 + $0x120] sm:$0xff]
  %v4374 = vld [vmem:[%s5 + $0x128] sm:$0xff]
  %v4375 = vld [vmem:[%s5 + $0x130] sm:$0xff]
  %v4376 = vld [vmem:[%s5 + $0x138] sm:$0xff]
  %v4377 = vld [vmem:[%s5 + $0x140] sm:$0xff]
  %v4378 = vld [vmem:[%s5 + $0x148] sm:$0xff]
  %v4379 = vld [vmem:[%s5 + $0x150] sm:$0xff]
  %v4380 = vld [vmem:[%s5 + $0x158] sm:$0xff]
  %v4381 = vld [vmem:[%s5 + $0x160] sm:$0xff]
  %v4382 = vld [vmem:[%s5 + $0x168] sm:$0xff]
  %v4383 = vld [vmem:[%s5 + $0x170] sm:$0xff]
  %v4384 = vld [vmem:[%s5 + $0x178] sm:$0xff]
  %v4385 = vld [vmem:[%s5 + $0x180] sm:$0xff]
  %v4386 = vld [vmem:[%s5 + $0x188] sm:$0xff]
  %v4387 = vld [vmem:[%s5 + $0x190] sm:$0xff]
  %v4388 = vld [vmem:[%s5 + $0x198] sm:$0xff]
  %v4389 = vld [vmem:[%s5 + $0x1a0] sm:$0xff]
  %v4390 = vld [vmem:[%s5 + $0x1a8] sm:$0xff]
  %v4391 = vld [vmem:[%s5 + $0x1b0] sm:$0xff]
  %v4392 = vld [vmem:[%s5 + $0x1b8] sm:$0xff]
  %v4393 = vld [vmem:[%s5 + $0x1c0] sm:$0xff]
  %v4394 = vld [vmem:[%s5 + $0x1c8] sm:$0xff]
  %v4395 = vld [vmem:[%s5 + $0x1d0] sm:$0xff]
  %v4396 = vld [vmem:[%s5 + $0x1d8] sm:$0xff]
  %v4397 = vld [vmem:[%s5 + $0x1e0] sm:$0xff]
  %v4398 = vld [vmem:[%s5 + $0x1e8] sm:$0xff]
  %v4399 = vld [vmem:[%s5 + $0x1f0] sm:$0xff]
  %v4400 = vld [vmem:[%s5 + $0x1f8] sm:$0xff]
  %4401 = vmatpush.msra.mxu0 %v4397
  %4402 = vmatpush.msra.mxu0 %v4393
  %4403 = vmatpush.msra.mxu0 %v4389
  %4404 = vmatpush.msra.mxu0 %v4385
  %4405 = vmatpush.msra.mxu0 %v4381
  %4406 = vmatpush.msra.mxu0 %v4377
  %4407 = vmatpush.msra.mxu0 %v4373
  %4408 = vmatpush.msra.mxu0 %v4369
  %4409 = vmatpush.msra.mxu0 %v4365
  %4410 = vmatpush.msra.mxu0 %v4361
  %4411 = vmatpush.msra.mxu0 %v4357
  %4412 = vmatpush.msra.mxu0 %v4353
  %4413 = vmatpush.msra.mxu0 %v4349
  %4414 = vmatpush.msra.mxu0 %v4345
  %4415 = vmatpush.msra.mxu0 %v4341
  %4416 = vmatpush.msra.mxu0 %v4337
  %4417 = vmatmul.f32.gmra.mxu0 %v4336
  %v4418 = vpop.f32.mrf.mxu0
  %v4419 = vadd.f32 0.0, %v4418
  %4420 = vdwg.mxu0
  %4421 = vmatpush.msra.mxu0 %v4398
  %4422 = vmatpush.msra.mxu0 %v4394
  %4423 = vmatpush.msra.mxu0 %v4390
  %4424 = vmatpush.msra.mxu0 %v4386
  %4425 = vmatpush.msra.mxu0 %v4382
  %4426 = vmatpush.msra.mxu0 %v4378
  %4427 = vmatpush.msra.mxu0 %v4374
  %4428 = vmatpush.msra.mxu0 %v4370
  %4429 = vmatpush.msra.mxu0 %v4366
  %4430 = vmatpush.msra.mxu0 %v4362
  %4431 = vmatpush.msra.mxu0 %v4358
  %4432 = vmatpush.msra.mxu0 %v4354
  %4433 = vmatpush.msra.mxu0 %v4350
  %4434 = vmatpush.msra.mxu0 %v4346
  %4435 = vmatpush.msra.mxu0 %v4342
  %4436 = vmatpush.msra.mxu0 %v4338
  %4437 = vmatmul.f32.gmra.mxu0 %v4336
  %v4438 = vpop.f32.mrf.mxu0
  %v4439 = vadd.f32 0.0, %v4438
  %4440 = vdwg.mxu0
  %4441 = vmatpush.msra.mxu0 %v4399
  %4442 = vmatpush.msra.mxu0 %v4395
  %4443 = vmatpush.msra.mxu0 %v4391
  %4444 = vmatpush.msra.mxu0 %v4387
  %4445 = vmatpush.msra.mxu0 %v4383
  %4446 = vmatpush.msra.mxu0 %v4379
  %4447 = vmatpush.msra.mxu0 %v4375
  %4448 = vmatpush.msra.mxu0 %v4371
  %4449 = vmatpush.msra.mxu0 %v4367
  %4450 = vmatpush.msra.mxu0 %v4363
  %4451 = vmatpush.msra.mxu0 %v4359
  %4452 = vmatpush.msra.mxu0 %v4355
  %4453 = vmatpush.msra.mxu0 %v4351
  %4454 = vmatpush.msra.mxu0 %v4347
  %4455 = vmatpush.msra.mxu0 %v4343
  %4456 = vmatpush.msra.mxu0 %v4339
  %4457 = vmatmul.f32.gmra.mxu0 %v4336
  %v4458 = vpop.f32.mrf.mxu0
  %v4459 = vadd.f32 0.0, %v4458
  %4460 = vdwg.mxu0
  %4461 = vmatpush.msra.mxu0 %v4400
  %4462 = vmatpush.msra.mxu0 %v4396
  %4463 = vmatpush.msra.mxu0 %v4392
  %4464 = vmatpush.msra.mxu0 %v4388
  %4465 = vmatpush.msra.mxu0 %v4384
  %4466 = vmatpush.msra.mxu0 %v4380
  %4467 = vmatpush.msra.mxu0 %v4376
  %4468 = vmatpush.msra.mxu0 %v4372
  %4469 = vmatpush.msra.mxu0 %v4368
  %4470 = vmatpush.msra.mxu0 %v4364
  %4471 = vmatpush.msra.mxu0 %v4360
  %4472 = vmatpush.msra.mxu0 %v4356
  %4473 = vmatpush.msra.mxu0 %v4352
  %4474 = vmatpush.msra.mxu0 %v4348
  %4475 = vmatpush.msra.mxu0 %v4344
  %4476 = vmatpush.msra.mxu0 %v4340
  %4477 = vmatmul.f32.gmra.mxu0 %v4336
  %v4478 = vpop.f32.mrf.mxu0
  %v4479 = vadd.f32 0.0, %v4478
  %4480 = vdwg.mxu0
  %v4481 = vadd.f32 %v4332, %v4419
  %v4482 = vadd.f32 %v4333, %v4439
  %v4483 = vadd.f32 %v4334, %v4459
  %v4484 = vadd.f32 %v4335, %v4479
  %v4485 = vadd.f32 %v4481, %v31
  %v4486 = vadd.f32 %v4482, %v32
  %v4487 = vadd.f32 %v4483, %v33
  %v4488 = vadd.f32 %v4484, %v34
  %s4489 = scalar_lea.vmem [#allocation2], 224
  %4490 = vst [vmem:[%s4489] sm:$0xff] %v4485
  %4491 = vst [vmem:[%s4489 + $0x8] sm:$0xff] %v4486
  %4492 = vst [vmem:[%s4489 + $0x10] sm:$0xff] %v4487
  %4493 = vst [vmem:[%s4489 + $0x18] sm:$0xff] %v4488
  %v4494 = vld [vmem:[%s6] sm:$0xff]
  %v4495 = vld [vmem:[%s6 + $0x8] sm:$0xff]
  %v4496 = vld [vmem:[%s6 + $0x10] sm:$0xff]
  %v4497 = vld [vmem:[%s6 + $0x18] sm:$0xff]
  %v4498 = vld [vmem:[%s6 + $0x20] sm:$0xff]
  %v4499 = vld [vmem:[%s6 + $0x28] sm:$0xff]
  %v4500 = vld [vmem:[%s6 + $0x30] sm:$0xff]
  %v4501 = vld [vmem:[%s6 + $0x38] sm:$0xff]
  %v4502 = vld [vmem:[%s6 + $0x40] sm:$0xff]
  %v4503 = vld [vmem:[%s6 + $0x48] sm:$0xff]
  %v4504 = vld [vmem:[%s6 + $0x50] sm:$0xff]
  %v4505 = vld [vmem:[%s6 + $0x58] sm:$0xff]
  %v4506 = vld [vmem:[%s6 + $0x60] sm:$0xff]
  %v4507 = vld [vmem:[%s6 + $0x68] sm:$0xff]
  %v4508 = vld [vmem:[%s6 + $0x70] sm:$0xff]
  %v4509 = vld [vmem:[%s6 + $0x78] sm:$0xff]
  %v4510 = vld [vmem:[%s6 + $0x80] sm:$0xff]
  %v4511 = vld [vmem:[%s6 + $0x88] sm:$0xff]
  %v4512 = vld [vmem:[%s6 + $0x90] sm:$0xff]
  %v4513 = vld [vmem:[%s6 + $0x98] sm:$0xff]
  %v4514 = vld [vmem:[%s6 + $0xa0] sm:$0xff]
  %v4515 = vld [vmem:[%s6 + $0xa8] sm:$0xff]
  %v4516 = vld [vmem:[%s6 + $0xb0] sm:$0xff]
  %v4517 = vld [vmem:[%s6 + $0xb8] sm:$0xff]
  %v4518 = vld [vmem:[%s6 + $0xc0] sm:$0xff]
  %v4519 = vld [vmem:[%s6 + $0xc8] sm:$0xff]
  %v4520 = vld [vmem:[%s6 + $0xd0] sm:$0xff]
  %v4521 = vld [vmem:[%s6 + $0xd8] sm:$0xff]
  %v4522 = vld [vmem:[%s6 + $0xe0] sm:$0xff]
  %v4523 = vld [vmem:[%s6 + $0xe8] sm:$0xff]
  %v4524 = vld [vmem:[%s6 + $0xf0] sm:$0xff]
  %v4525 = vld [vmem:[%s6 + $0xf8] sm:$0xff]
  %v4526 = vld [vmem:[%s6 + $0x100] sm:$0xff]
  %v4527 = vld [vmem:[%s6 + $0x108] sm:$0xff]
  %v4528 = vld [vmem:[%s6 + $0x110] sm:$0xff]
  %v4529 = vld [vmem:[%s6 + $0x118] sm:$0xff]
  %v4530 = vld [vmem:[%s6 + $0x120] sm:$0xff]
  %v4531 = vld [vmem:[%s6 + $0x128] sm:$0xff]
  %v4532 = vld [vmem:[%s6 + $0x130] sm:$0xff]
  %v4533 = vld [vmem:[%s6 + $0x138] sm:$0xff]
  %v4534 = vld [vmem:[%s6 + $0x140] sm:$0xff]
  %v4535 = vld [vmem:[%s6 + $0x148] sm:$0xff]
  %v4536 = vld [vmem:[%s6 + $0x150] sm:$0xff]
  %v4537 = vld [vmem:[%s6 + $0x158] sm:$0xff]
  %v4538 = vld [vmem:[%s6 + $0x160] sm:$0xff]
  %v4539 = vld [vmem:[%s6 + $0x168] sm:$0xff]
  %v4540 = vld [vmem:[%s6 + $0x170] sm:$0xff]
  %v4541 = vld [vmem:[%s6 + $0x178] sm:$0xff]
  %v4542 = vld [vmem:[%s6 + $0x180] sm:$0xff]
  %v4543 = vld [vmem:[%s6 + $0x188] sm:$0xff]
  %v4544 = vld [vmem:[%s6 + $0x190] sm:$0xff]
  %v4545 = vld [vmem:[%s6 + $0x198] sm:$0xff]
  %v4546 = vld [vmem:[%s6 + $0x1a0] sm:$0xff]
  %v4547 = vld [vmem:[%s6 + $0x1a8] sm:$0xff]
  %v4548 = vld [vmem:[%s6 + $0x1b0] sm:$0xff]
  %v4549 = vld [vmem:[%s6 + $0x1b8] sm:$0xff]
  %v4550 = vld [vmem:[%s6 + $0x1c0] sm:$0xff]
  %v4551 = vld [vmem:[%s6 + $0x1c8] sm:$0xff]
  %v4552 = vld [vmem:[%s6 + $0x1d0] sm:$0xff]
  %v4553 = vld [vmem:[%s6 + $0x1d8] sm:$0xff]
  %v4554 = vld [vmem:[%s6 + $0x1e0] sm:$0xff]
  %v4555 = vld [vmem:[%s6 + $0x1e8] sm:$0xff]
  %v4556 = vld [vmem:[%s6 + $0x1f0] sm:$0xff]
  %v4557 = vld [vmem:[%s6 + $0x1f8] sm:$0xff]
  %v4558 = vld [vmem:[#allocation2] sm:$0xff]
  %v4559 = vld [vmem:[#allocation2 + $0x8] sm:$0xff]
  %v4560 = vld [vmem:[#allocation2 + $0x10] sm:$0xff]
  %v4561 = vld [vmem:[#allocation2 + $0x18] sm:$0xff]
  %4562 = vmatpush.msra.mxu0 %v4554
  %4563 = vmatpush.msra.mxu0 %v4550
  %4564 = vmatpush.msra.mxu0 %v4546
  %4565 = vmatpush.msra.mxu0 %v4542
  %4566 = vmatpush.msra.mxu0 %v4538
  %4567 = vmatpush.msra.mxu0 %v4534
  %4568 = vmatpush.msra.mxu0 %v4530
  %4569 = vmatpush.msra.mxu0 %v4526
  %4570 = vmatpush.msra.mxu0 %v4522
  %4571 = vmatpush.msra.mxu0 %v4518
  %4572 = vmatpush.msra.mxu0 %v4514
  %4573 = vmatpush.msra.mxu0 %v4510
  %4574 = vmatpush.msra.mxu0 %v4506
  %4575 = vmatpush.msra.mxu0 %v4502
  %4576 = vmatpush.msra.mxu0 %v4498
  %4577 = vmatpush.msra.mxu0 %v4494
  %4578 = vmatmul.f32.gmra.mxu0 0.0
  %v4579 = vpop.f32.mrf.mxu0
  %v4580 = vadd.f32 0.0, %v4579
  %4581 = vdwg.mxu0
  %4582 = vmatpush.msra.mxu0 %v4555
  %4583 = vmatpush.msra.mxu0 %v4551
  %4584 = vmatpush.msra.mxu0 %v4547
  %4585 = vmatpush.msra.mxu0 %v4543
  %4586 = vmatpush.msra.mxu0 %v4539
  %4587 = vmatpush.msra.mxu0 %v4535
  %4588 = vmatpush.msra.mxu0 %v4531
  %4589 = vmatpush.msra.mxu0 %v4527
  %4590 = vmatpush.msra.mxu0 %v4523
  %4591 = vmatpush.msra.mxu0 %v4519
  %4592 = vmatpush.msra.mxu0 %v4515
  %4593 = vmatpush.msra.mxu0 %v4511
  %4594 = vmatpush.msra.mxu0 %v4507
  %4595 = vmatpush.msra.mxu0 %v4503
  %4596 = vmatpush.msra.mxu0 %v4499
  %4597 = vmatpush.msra.mxu0 %v4495
  %4598 = vmatmul.f32.gmra.mxu0 0.0
  %v4599 = vpop.f32.mrf.mxu0
  %v4600 = vadd.f32 0.0, %v4599
  %4601 = vdwg.mxu0
  %4602 = vmatpush.msra.mxu0 %v4556
  %4603 = vmatpush.msra.mxu0 %v4552
  %4604 = vmatpush.msra.mxu0 %v4548
  %4605 = vmatpush.msra.mxu0 %v4544
  %4606 = vmatpush.msra.mxu0 %v4540
  %4607 = vmatpush.msra.mxu0 %v4536
  %4608 = vmatpush.msra.mxu0 %v4532
  %4609 = vmatpush.msra.mxu0 %v4528
  %4610 = vmatpush.msra.mxu0 %v4524
  %4611 = vmatpush.msra.mxu0 %v4520
  %4612 = vmatpush.msra.mxu0 %v4516
  %4613 = vmatpush.msra.mxu0 %v4512
  %4614 = vmatpush.msra.mxu0 %v4508
  %4615 = vmatpush.msra.mxu0 %v4504
  %4616 = vmatpush.msra.mxu0 %v4500
  %4617 = vmatpush.msra.mxu0 %v4496
  %4618 = vmatmul.f32.gmra.mxu0 0.0
  %v4619 = vpop.f32.mrf.mxu0
  %v4620 = vadd.f32 0.0, %v4619
  %4621 = vdwg.mxu0
  %4622 = vmatpush.msra.mxu0 %v4557
  %4623 = vmatpush.msra.mxu0 %v4553
  %4624 = vmatpush.msra.mxu0 %v4549
  %4625 = vmatpush.msra.mxu0 %v4545
  %4626 = vmatpush.msra.mxu0 %v4541
  %4627 = vmatpush.msra.mxu0 %v4537
  %4628 = vmatpush.msra.mxu0 %v4533
  %4629 = vmatpush.msra.mxu0 %v4529
  %4630 = vmatpush.msra.mxu0 %v4525
  %4631 = vmatpush.msra.mxu0 %v4521
  %4632 = vmatpush.msra.mxu0 %v4517
  %4633 = vmatpush.msra.mxu0 %v4513
  %4634 = vmatpush.msra.mxu0 %v4509
  %4635 = vmatpush.msra.mxu0 %v4505
  %4636 = vmatpush.msra.mxu0 %v4501
  %4637 = vmatpush.msra.mxu0 %v4497
  %4638 = vmatmul.f32.gmra.mxu0 0.0
  %v4639 = vpop.f32.mrf.mxu0
  %v4640 = vadd.f32 0.0, %v4639
  %4641 = vdwg.mxu0
  %v4642 = vadd.f32 %v4558, %v4580
  %v4643 = vadd.f32 %v4559, %v4600
  %v4644 = vadd.f32 %v4560, %v4620
  %v4645 = vadd.f32 %v4561, %v4640
  %v4646 = vxor.u32 %v4642, 2147483648
  %v4647 = vmul.f32 %v4646, 1.442695
  %v4648 = vpow.pop %v4647
  %v4649 = vadd.f32 %v4648, 1.0
  %v4650 = vrcp.pop %v4649
  %v4651 = vmul.f32 %v4649, %v4650
  %v4652 = vsub.f32 1.0, %v4651
  %v4653 = vmul.f32 %v4650, %v4652
  %v4654 = vadd.f32 %v4650, %v4653
  %vm4655 = vweird.f32 %v4649
  %vm4656 = vweird.f32 %v4650
  %vm4657 = vmor %vm4655, %vm4656
  %v4658 = vsel %vm4657, %v4650, %v4654
  %v4659 = vand.u32 2147483647, %v4649
  %vm4660 = vcmp.eq.f32.partialorder %v4659, 8.507059e+37
  %v4661 = vand.u32 %v4649, 2147483648
  %v4662 = vor.u32 1.1754944e-38, %v4661
  %v4663 = vsel %vm4660, %v4662, %v4658
  %v4664 = vmul.f32 1.0, %v4663
  %v4665 = vxor.u32 %v4643, 2147483648
  %v4666 = vmul.f32 %v4665, 1.442695
  %v4667 = vpow.pop %v4666
  %v4668 = vadd.f32 %v4667, 1.0
  %v4669 = vrcp.pop %v4668
  %v4670 = vmul.f32 %v4668, %v4669
  %v4671 = vsub.f32 1.0, %v4670
  %v4672 = vmul.f32 %v4669, %v4671
  %v4673 = vadd.f32 %v4669, %v4672
  %vm4674 = vweird.f32 %v4668
  %vm4675 = vweird.f32 %v4669
  %vm4676 = vmor %vm4674, %vm4675
  %v4677 = vsel %vm4676, %v4669, %v4673
  %v4678 = vand.u32 2147483647, %v4668
  %vm4679 = vcmp.eq.f32.partialorder %v4678, 8.507059e+37
  %v4680 = vand.u32 %v4668, 2147483648
  %v4681 = vor.u32 1.1754944e-38, %v4680
  %v4682 = vsel %vm4679, %v4681, %v4677
  %v4683 = vmul.f32 1.0, %v4682
  %v4684 = vtanh.pop %v4644
  %v4685 = vxor.u32 %v4645, 2147483648
  %v4686 = vmul.f32 %v4685, 1.442695
  %v4687 = vpow.pop %v4686
  %v4688 = vadd.f32 %v4687, 1.0
  %v4689 = vrcp.pop %v4688
  %v4690 = vmul.f32 %v4688, %v4689
  %v4691 = vsub.f32 1.0, %v4690
  %v4692 = vmul.f32 %v4689, %v4691
  %v4693 = vadd.f32 %v4689, %v4692
  %vm4694 = vweird.f32 %v4688
  %vm4695 = vweird.f32 %v4689
  %vm4696 = vmor %vm4694, %vm4695
  %v4697 = vsel %vm4696, %v4689, %v4693
  %v4698 = vand.u32 2147483647, %v4688
  %vm4699 = vcmp.eq.f32.partialorder %v4698, 8.507059e+37
  %v4700 = vand.u32 %v4688, 2147483648
  %v4701 = vor.u32 1.1754944e-38, %v4700
  %v4702 = vsel %vm4699, %v4701, %v4697
  %v4703 = vmul.f32 1.0, %v4702
  %v4704 = vmul.f32 %v4683, 0.0
  %v4705 = vmul.f32 %v4664, %v4684
  %v4706 = vadd.f32 %v4704, %v4705
  %v4707 = vtanh.pop %v4706
  %v4708 = vmul.f32 %v4703, %v4707
  %v4709 = vld [vmem:[%s1151] sm:$0xff]
  %v4710 = vld [vmem:[%s1151 + $0x8] sm:$0xff]
  %v4711 = vld [vmem:[%s1151 + $0x10] sm:$0xff]
  %v4712 = vld [vmem:[%s1151 + $0x18] sm:$0xff]
  %4713 = vmatpush.msra.mxu0 %v4554
  %4714 = vmatpush.msra.mxu0 %v4550
  %4715 = vmatpush.msra.mxu0 %v4546
  %4716 = vmatpush.msra.mxu0 %v4542
  %4717 = vmatpush.msra.mxu0 %v4538
  %4718 = vmatpush.msra.mxu0 %v4534
  %4719 = vmatpush.msra.mxu0 %v4530
  %4720 = vmatpush.msra.mxu0 %v4526
  %4721 = vmatpush.msra.mxu0 %v4522
  %4722 = vmatpush.msra.mxu0 %v4518
  %4723 = vmatpush.msra.mxu0 %v4514
  %4724 = vmatpush.msra.mxu0 %v4510
  %4725 = vmatpush.msra.mxu0 %v4506
  %4726 = vmatpush.msra.mxu0 %v4502
  %4727 = vmatpush.msra.mxu0 %v4498
  %4728 = vmatpush.msra.mxu0 %v4494
  %4729 = vmatmul.f32.gmra.mxu0 %v4708
  %v4730 = vpop.f32.mrf.mxu0
  %v4731 = vadd.f32 0.0, %v4730
  %4732 = vdwg.mxu0
  %4733 = vmatpush.msra.mxu0 %v4555
  %4734 = vmatpush.msra.mxu0 %v4551
  %4735 = vmatpush.msra.mxu0 %v4547
  %4736 = vmatpush.msra.mxu0 %v4543
  %4737 = vmatpush.msra.mxu0 %v4539
  %4738 = vmatpush.msra.mxu0 %v4535
  %4739 = vmatpush.msra.mxu0 %v4531
  %4740 = vmatpush.msra.mxu0 %v4527
  %4741 = vmatpush.msra.mxu0 %v4523
  %4742 = vmatpush.msra.mxu0 %v4519
  %4743 = vmatpush.msra.mxu0 %v4515
  %4744 = vmatpush.msra.mxu0 %v4511
  %4745 = vmatpush.msra.mxu0 %v4507
  %4746 = vmatpush.msra.mxu0 %v4503
  %4747 = vmatpush.msra.mxu0 %v4499
  %4748 = vmatpush.msra.mxu0 %v4495
  %4749 = vmatmul.f32.gmra.mxu0 %v4708
  %v4750 = vpop.f32.mrf.mxu0
  %v4751 = vadd.f32 0.0, %v4750
  %4752 = vdwg.mxu0
  %4753 = vmatpush.msra.mxu0 %v4556
  %4754 = vmatpush.msra.mxu0 %v4552
  %4755 = vmatpush.msra.mxu0 %v4548
  %4756 = vmatpush.msra.mxu0 %v4544
  %4757 = vmatpush.msra.mxu0 %v4540
  %4758 = vmatpush.msra.mxu0 %v4536
  %4759 = vmatpush.msra.mxu0 %v4532
  %4760 = vmatpush.msra.mxu0 %v4528
  %4761 = vmatpush.msra.mxu0 %v4524
  %4762 = vmatpush.msra.mxu0 %v4520
  %4763 = vmatpush.msra.mxu0 %v4516
  %4764 = vmatpush.msra.mxu0 %v4512
  %4765 = vmatpush.msra.mxu0 %v4508
  %4766 = vmatpush.msra.mxu0 %v4504
  %4767 = vmatpush.msra.mxu0 %v4500
  %4768 = vmatpush.msra.mxu0 %v4496
  %4769 = vmatmul.f32.gmra.mxu0 %v4708
  %v4770 = vpop.f32.mrf.mxu0
  %v4771 = vadd.f32 0.0, %v4770
  %4772 = vdwg.mxu0
  %4773 = vmatpush.msra.mxu0 %v4557
  %4774 = vmatpush.msra.mxu0 %v4553
  %4775 = vmatpush.msra.mxu0 %v4549
  %4776 = vmatpush.msra.mxu0 %v4545
  %4777 = vmatpush.msra.mxu0 %v4541
  %4778 = vmatpush.msra.mxu0 %v4537
  %4779 = vmatpush.msra.mxu0 %v4533
  %4780 = vmatpush.msra.mxu0 %v4529
  %4781 = vmatpush.msra.mxu0 %v4525
  %4782 = vmatpush.msra.mxu0 %v4521
  %4783 = vmatpush.msra.mxu0 %v4517
  %4784 = vmatpush.msra.mxu0 %v4513
  %4785 = vmatpush.msra.mxu0 %v4509
  %4786 = vmatpush.msra.mxu0 %v4505
  %4787 = vmatpush.msra.mxu0 %v4501
  %4788 = vmatpush.msra.mxu0 %v4497
  %4789 = vmatmul.f32.gmra.mxu0 %v4708
  %v4790 = vpop.f32.mrf.mxu0
  %v4791 = vadd.f32 0.0, %v4790
  %4792 = vdwg.mxu0
  %v4793 = vadd.f32 %v4709, %v4731
  %v4794 = vadd.f32 %v4710, %v4751
  %v4795 = vadd.f32 %v4711, %v4771
  %v4796 = vadd.f32 %v4712, %v4791
  %v4797 = vxor.u32 %v4793, 2147483648
  %v4798 = vmul.f32 %v4797, 1.442695
  %v4799 = vpow.pop %v4798
  %v4800 = vadd.f32 %v4799, 1.0
  %v4801 = vrcp.pop %v4800
  %v4802 = vmul.f32 %v4800, %v4801
  %v4803 = vsub.f32 1.0, %v4802
  %v4804 = vmul.f32 %v4801, %v4803
  %v4805 = vadd.f32 %v4801, %v4804
  %vm4806 = vweird.f32 %v4800
  %vm4807 = vweird.f32 %v4801
  %vm4808 = vmor %vm4806, %vm4807
  %v4809 = vsel %vm4808, %v4801, %v4805
  %v4810 = vand.u32 2147483647, %v4800
  %vm4811 = vcmp.eq.f32.partialorder %v4810, 8.507059e+37
  %v4812 = vand.u32 %v4800, 2147483648
  %v4813 = vor.u32 1.1754944e-38, %v4812
  %v4814 = vsel %vm4811, %v4813, %v4809
  %v4815 = vmul.f32 1.0, %v4814
  %v4816 = vxor.u32 %v4794, 2147483648
  %v4817 = vmul.f32 %v4816, 1.442695
  %v4818 = vpow.pop %v4817
  %v4819 = vadd.f32 %v4818, 1.0
  %v4820 = vrcp.pop %v4819
  %v4821 = vmul.f32 %v4819, %v4820
  %v4822 = vsub.f32 1.0, %v4821
  %v4823 = vmul.f32 %v4820, %v4822
  %v4824 = vadd.f32 %v4820, %v4823
  %vm4825 = vweird.f32 %v4819
  %vm4826 = vweird.f32 %v4820
  %vm4827 = vmor %vm4825, %vm4826
  %v4828 = vsel %vm4827, %v4820, %v4824
  %v4829 = vand.u32 2147483647, %v4819
  %vm4830 = vcmp.eq.f32.partialorder %v4829, 8.507059e+37
  %v4831 = vand.u32 %v4819, 2147483648
  %v4832 = vor.u32 1.1754944e-38, %v4831
  %v4833 = vsel %vm4830, %v4832, %v4828
  %v4834 = vmul.f32 1.0, %v4833
  %v4835 = vtanh.pop %v4795
  %v4836 = vxor.u32 %v4796, 2147483648
  %v4837 = vmul.f32 %v4836, 1.442695
  %v4838 = vpow.pop %v4837
  %v4839 = vadd.f32 %v4838, 1.0
  %v4840 = vrcp.pop %v4839
  %v4841 = vmul.f32 %v4839, %v4840
  %v4842 = vsub.f32 1.0, %v4841
  %v4843 = vmul.f32 %v4840, %v4842
  %v4844 = vadd.f32 %v4840, %v4843
  %vm4845 = vweird.f32 %v4839
  %vm4846 = vweird.f32 %v4840
  %vm4847 = vmor %vm4845, %vm4846
  %v4848 = vsel %vm4847, %v4840, %v4844
  %v4849 = vand.u32 2147483647, %v4839
  %vm4850 = vcmp.eq.f32.partialorder %v4849, 8.507059e+37
  %v4851 = vand.u32 %v4839, 2147483648
  %v4852 = vor.u32 1.1754944e-38, %v4851
  %v4853 = vsel %vm4850, %v4852, %v4848
  %v4854 = vmul.f32 1.0, %v4853
  %v4855 = vmul.f32 %v4834, %v4706
  %v4856 = vmul.f32 %v4815, %v4835
  %v4857 = vadd.f32 %v4855, %v4856
  %v4858 = vtanh.pop %v4857
  %v4859 = vmul.f32 %v4854, %v4858
  %v4860 = vld [vmem:[%s1710] sm:$0xff]
  %v4861 = vld [vmem:[%s1710 + $0x8] sm:$0xff]
  %v4862 = vld [vmem:[%s1710 + $0x10] sm:$0xff]
  %v4863 = vld [vmem:[%s1710 + $0x18] sm:$0xff]
  %4864 = vmatpush.msra.mxu0 %v4554
  %4865 = vmatpush.msra.mxu0 %v4550
  %4866 = vmatpush.msra.mxu0 %v4546
  %4867 = vmatpush.msra.mxu0 %v4542
  %4868 = vmatpush.msra.mxu0 %v4538
  %4869 = vmatpush.msra.mxu0 %v4534
  %4870 = vmatpush.msra.mxu0 %v4530
  %4871 = vmatpush.msra.mxu0 %v4526
  %4872 = vmatpush.msra.mxu0 %v4522
  %4873 = vmatpush.msra.mxu0 %v4518
  %4874 = vmatpush.msra.mxu0 %v4514
  %4875 = vmatpush.msra.mxu0 %v4510
  %4876 = vmatpush.msra.mxu0 %v4506
  %4877 = vmatpush.msra.mxu0 %v4502
  %4878 = vmatpush.msra.mxu0 %v4498
  %4879 = vmatpush.msra.mxu0 %v4494
  %4880 = vmatmul.f32.gmra.mxu0 %v4859
  %v4881 = vpop.f32.mrf.mxu0
  %v4882 = vadd.f32 0.0, %v4881
  %4883 = vdwg.mxu0
  %4884 = vmatpush.msra.mxu0 %v4555
  %4885 = vmatpush.msra.mxu0 %v4551
  %4886 = vmatpush.msra.mxu0 %v4547
  %4887 = vmatpush.msra.mxu0 %v4543
  %4888 = vmatpush.msra.mxu0 %v4539
  %4889 = vmatpush.msra.mxu0 %v4535
  %4890 = vmatpush.msra.mxu0 %v4531
  %4891 = vmatpush.msra.mxu0 %v4527
  %4892 = vmatpush.msra.mxu0 %v4523
  %4893 = vmatpush.msra.mxu0 %v4519
  %4894 = vmatpush.msra.mxu0 %v4515
  %4895 = vmatpush.msra.mxu0 %v4511
  %4896 = vmatpush.msra.mxu0 %v4507
  %4897 = vmatpush.msra.mxu0 %v4503
  %4898 = vmatpush.msra.mxu0 %v4499
  %4899 = vmatpush.msra.mxu0 %v4495
  %4900 = vmatmul.f32.gmra.mxu0 %v4859
  %v4901 = vpop.f32.mrf.mxu0
  %v4902 = vadd.f32 0.0, %v4901
  %4903 = vdwg.mxu0
  %4904 = vmatpush.msra.mxu0 %v4556
  %4905 = vmatpush.msra.mxu0 %v4552
  %4906 = vmatpush.msra.mxu0 %v4548
  %4907 = vmatpush.msra.mxu0 %v4544
  %4908 = vmatpush.msra.mxu0 %v4540
  %4909 = vmatpush.msra.mxu0 %v4536
  %4910 = vmatpush.msra.mxu0 %v4532
  %4911 = vmatpush.msra.mxu0 %v4528
  %4912 = vmatpush.msra.mxu0 %v4524
  %4913 = vmatpush.msra.mxu0 %v4520
  %4914 = vmatpush.msra.mxu0 %v4516
  %4915 = vmatpush.msra.mxu0 %v4512
  %4916 = vmatpush.msra.mxu0 %v4508
  %4917 = vmatpush.msra.mxu0 %v4504
  %4918 = vmatpush.msra.mxu0 %v4500
  %4919 = vmatpush.msra.mxu0 %v4496
  %4920 = vmatmul.f32.gmra.mxu0 %v4859
  %v4921 = vpop.f32.mrf.mxu0
  %v4922 = vadd.f32 0.0, %v4921
  %4923 = vdwg.mxu0
  %4924 = vmatpush.msra.mxu0 %v4557
  %4925 = vmatpush.msra.mxu0 %v4553
  %4926 = vmatpush.msra.mxu0 %v4549
  %4927 = vmatpush.msra.mxu0 %v4545
  %4928 = vmatpush.msra.mxu0 %v4541
  %4929 = vmatpush.msra.mxu0 %v4537
  %4930 = vmatpush.msra.mxu0 %v4533
  %4931 = vmatpush.msra.mxu0 %v4529
  %4932 = vmatpush.msra.mxu0 %v4525
  %4933 = vmatpush.msra.mxu0 %v4521
  %4934 = vmatpush.msra.mxu0 %v4517
  %4935 = vmatpush.msra.mxu0 %v4513
  %4936 = vmatpush.msra.mxu0 %v4509
  %4937 = vmatpush.msra.mxu0 %v4505
  %4938 = vmatpush.msra.mxu0 %v4501
  %4939 = vmatpush.msra.mxu0 %v4497
  %4940 = vmatmul.f32.gmra.mxu0 %v4859
  %v4941 = vpop.f32.mrf.mxu0
  %v4942 = vadd.f32 0.0, %v4941
  %4943 = vdwg.mxu0
  %v4944 = vadd.f32 %v4860, %v4882
  %v4945 = vadd.f32 %v4861, %v4902
  %v4946 = vadd.f32 %v4862, %v4922
  %v4947 = vadd.f32 %v4863, %v4942
  %v4948 = vxor.u32 %v4944, 2147483648
  %v4949 = vmul.f32 %v4948, 1.442695
  %v4950 = vpow.pop %v4949
  %v4951 = vadd.f32 %v4950, 1.0
  %v4952 = vrcp.pop %v4951
  %v4953 = vmul.f32 %v4951, %v4952
  %v4954 = vsub.f32 1.0, %v4953
  %v4955 = vmul.f32 %v4952, %v4954
  %v4956 = vadd.f32 %v4952, %v4955
  %vm4957 = vweird.f32 %v4951
  %vm4958 = vweird.f32 %v4952
  %vm4959 = vmor %vm4957, %vm4958
  %v4960 = vsel %vm4959, %v4952, %v4956
  %v4961 = vand.u32 2147483647, %v4951
  %vm4962 = vcmp.eq.f32.partialorder %v4961, 8.507059e+37
  %v4963 = vand.u32 %v4951, 2147483648
  %v4964 = vor.u32 1.1754944e-38, %v4963
  %v4965 = vsel %vm4962, %v4964, %v4960
  %v4966 = vmul.f32 1.0, %v4965
  %v4967 = vxor.u32 %v4945, 2147483648
  %v4968 = vmul.f32 %v4967, 1.442695
  %v4969 = vpow.pop %v4968
  %v4970 = vadd.f32 %v4969, 1.0
  %v4971 = vrcp.pop %v4970
  %v4972 = vmul.f32 %v4970, %v4971
  %v4973 = vsub.f32 1.0, %v4972
  %v4974 = vmul.f32 %v4971, %v4973
  %v4975 = vadd.f32 %v4971, %v4974
  %vm4976 = vweird.f32 %v4970
  %vm4977 = vweird.f32 %v4971
  %vm4978 = vmor %vm4976, %vm4977
  %v4979 = vsel %vm4978, %v4971, %v4975
  %v4980 = vand.u32 2147483647, %v4970
  %vm4981 = vcmp.eq.f32.partialorder %v4980, 8.507059e+37
  %v4982 = vand.u32 %v4970, 2147483648
  %v4983 = vor.u32 1.1754944e-38, %v4982
  %v4984 = vsel %vm4981, %v4983, %v4979
  %v4985 = vmul.f32 1.0, %v4984
  %v4986 = vtanh.pop %v4946
  %v4987 = vxor.u32 %v4947, 2147483648
  %v4988 = vmul.f32 %v4987, 1.442695
  %v4989 = vpow.pop %v4988
  %v4990 = vadd.f32 %v4989, 1.0
  %v4991 = vrcp.pop %v4990
  %v4992 = vmul.f32 %v4990, %v4991
  %v4993 = vsub.f32 1.0, %v4992
  %v4994 = vmul.f32 %v4991, %v4993
  %v4995 = vadd.f32 %v4991, %v4994
  %vm4996 = vweird.f32 %v4990
  %vm4997 = vweird.f32 %v4991
  %vm4998 = vmor %vm4996, %vm4997
  %v4999 = vsel %vm4998, %v4991, %v4995
  %v5000 = vand.u32 2147483647, %v4990
  %vm5001 = vcmp.eq.f32.partialorder %v5000, 8.507059e+37
  %v5002 = vand.u32 %v4990, 2147483648
  %v5003 = vor.u32 1.1754944e-38, %v5002
  %v5004 = vsel %vm5001, %v5003, %v4999
  %v5005 = vmul.f32 1.0, %v5004
  %v5006 = vmul.f32 %v4985, %v4857
  %v5007 = vmul.f32 %v4966, %v4986
  %v5008 = vadd.f32 %v5006, %v5007
  %v5009 = vtanh.pop %v5008
  %v5010 = vmul.f32 %v5005, %v5009
  %v5011 = vld [vmem:[%s2269] sm:$0xff]
  %v5012 = vld [vmem:[%s2269 + $0x8] sm:$0xff]
  %v5013 = vld [vmem:[%s2269 + $0x10] sm:$0xff]
  %v5014 = vld [vmem:[%s2269 + $0x18] sm:$0xff]
  %5015 = vmatpush.msra.mxu0 %v4554
  %5016 = vmatpush.msra.mxu0 %v4550
  %5017 = vmatpush.msra.mxu0 %v4546
  %5018 = vmatpush.msra.mxu0 %v4542
  %5019 = vmatpush.msra.mxu0 %v4538
  %5020 = vmatpush.msra.mxu0 %v4534
  %5021 = vmatpush.msra.mxu0 %v4530
  %5022 = vmatpush.msra.mxu0 %v4526
  %5023 = vmatpush.msra.mxu0 %v4522
  %5024 = vmatpush.msra.mxu0 %v4518
  %5025 = vmatpush.msra.mxu0 %v4514
  %5026 = vmatpush.msra.mxu0 %v4510
  %5027 = vmatpush.msra.mxu0 %v4506
  %5028 = vmatpush.msra.mxu0 %v4502
  %5029 = vmatpush.msra.mxu0 %v4498
  %5030 = vmatpush.msra.mxu0 %v4494
  %5031 = vmatmul.f32.gmra.mxu0 %v5010
  %v5032 = vpop.f32.mrf.mxu0
  %v5033 = vadd.f32 0.0, %v5032
  %5034 = vdwg.mxu0
  %5035 = vmatpush.msra.mxu0 %v4555
  %5036 = vmatpush.msra.mxu0 %v4551
  %5037 = vmatpush.msra.mxu0 %v4547
  %5038 = vmatpush.msra.mxu0 %v4543
  %5039 = vmatpush.msra.mxu0 %v4539
  %5040 = vmatpush.msra.mxu0 %v4535
  %5041 = vmatpush.msra.mxu0 %v4531
  %5042 = vmatpush.msra.mxu0 %v4527
  %5043 = vmatpush.msra.mxu0 %v4523
  %5044 = vmatpush.msra.mxu0 %v4519
  %5045 = vmatpush.msra.mxu0 %v4515
  %5046 = vmatpush.msra.mxu0 %v4511
  %5047 = vmatpush.msra.mxu0 %v4507
  %5048 = vmatpush.msra.mxu0 %v4503
  %5049 = vmatpush.msra.mxu0 %v4499
  %5050 = vmatpush.msra.mxu0 %v4495
  %5051 = vmatmul.f32.gmra.mxu0 %v5010
  %v5052 = vpop.f32.mrf.mxu0
  %v5053 = vadd.f32 0.0, %v5052
  %5054 = vdwg.mxu0
  %5055 = vmatpush.msra.mxu0 %v4556
  %5056 = vmatpush.msra.mxu0 %v4552
  %5057 = vmatpush.msra.mxu0 %v4548
  %5058 = vmatpush.msra.mxu0 %v4544
  %5059 = vmatpush.msra.mxu0 %v4540
  %5060 = vmatpush.msra.mxu0 %v4536
  %5061 = vmatpush.msra.mxu0 %v4532
  %5062 = vmatpush.msra.mxu0 %v4528
  %5063 = vmatpush.msra.mxu0 %v4524
  %5064 = vmatpush.msra.mxu0 %v4520
  %5065 = vmatpush.msra.mxu0 %v4516
  %5066 = vmatpush.msra.mxu0 %v4512
  %5067 = vmatpush.msra.mxu0 %v4508
  %5068 = vmatpush.msra.mxu0 %v4504
  %5069 = vmatpush.msra.mxu0 %v4500
  %5070 = vmatpush.msra.mxu0 %v4496
  %5071 = vmatmul.f32.gmra.mxu0 %v5010
  %v5072 = vpop.f32.mrf.mxu0
  %v5073 = vadd.f32 0.0, %v5072
  %5074 = vdwg.mxu0
  %5075 = vmatpush.msra.mxu0 %v4557
  %5076 = vmatpush.msra.mxu0 %v4553
  %5077 = vmatpush.msra.mxu0 %v4549
  %5078 = vmatpush.msra.mxu0 %v4545
  %5079 = vmatpush.msra.mxu0 %v4541
  %5080 = vmatpush.msra.mxu0 %v4537
  %5081 = vmatpush.msra.mxu0 %v4533
  %5082 = vmatpush.msra.mxu0 %v4529
  %5083 = vmatpush.msra.mxu0 %v4525
  %5084 = vmatpush.msra.mxu0 %v4521
  %5085 = vmatpush.msra.mxu0 %v4517
  %5086 = vmatpush.msra.mxu0 %v4513
  %5087 = vmatpush.msra.mxu0 %v4509
  %5088 = vmatpush.msra.mxu0 %v4505
  %5089 = vmatpush.msra.mxu0 %v4501
  %5090 = vmatpush.msra.mxu0 %v4497
  %5091 = vmatmul.f32.gmra.mxu0 %v5010
  %v5092 = vpop.f32.mrf.mxu0
  %v5093 = vadd.f32 0.0, %v5092
  %5094 = vdwg.mxu0
  %v5095 = vadd.f32 %v5011, %v5033
  %v5096 = vadd.f32 %v5012, %v5053
  %v5097 = vadd.f32 %v5013, %v5073
  %v5098 = vadd.f32 %v5014, %v5093
  %v5099 = vxor.u32 %v5095, 2147483648
  %v5100 = vmul.f32 %v5099, 1.442695
  %v5101 = vpow.pop %v5100
  %v5102 = vadd.f32 %v5101, 1.0
  %v5103 = vrcp.pop %v5102
  %v5104 = vmul.f32 %v5102, %v5103
  %v5105 = vsub.f32 1.0, %v5104
  %v5106 = vmul.f32 %v5103, %v5105
  %v5107 = vadd.f32 %v5103, %v5106
  %vm5108 = vweird.f32 %v5102
  %vm5109 = vweird.f32 %v5103
  %vm5110 = vmor %vm5108, %vm5109
  %v5111 = vsel %vm5110, %v5103, %v5107
  %v5112 = vand.u32 2147483647, %v5102
  %vm5113 = vcmp.eq.f32.partialorder %v5112, 8.507059e+37
  %v5114 = vand.u32 %v5102, 2147483648
  %v5115 = vor.u32 1.1754944e-38, %v5114
  %v5116 = vsel %vm5113, %v5115, %v5111
  %v5117 = vmul.f32 1.0, %v5116
  %v5118 = vxor.u32 %v5096, 2147483648
  %v5119 = vmul.f32 %v5118, 1.442695
  %v5120 = vpow.pop %v5119
  %v5121 = vadd.f32 %v5120, 1.0
  %v5122 = vrcp.pop %v5121
  %v5123 = vmul.f32 %v5121, %v5122
  %v5124 = vsub.f32 1.0, %v5123
  %v5125 = vmul.f32 %v5122, %v5124
  %v5126 = vadd.f32 %v5122, %v5125
  %vm5127 = vweird.f32 %v5121
  %vm5128 = vweird.f32 %v5122
  %vm5129 = vmor %vm5127, %vm5128
  %v5130 = vsel %vm5129, %v5122, %v5126
  %v5131 = vand.u32 2147483647, %v5121
  %vm5132 = vcmp.eq.f32.partialorder %v5131, 8.507059e+37
  %v5133 = vand.u32 %v5121, 2147483648
  %v5134 = vor.u32 1.1754944e-38, %v5133
  %v5135 = vsel %vm5132, %v5134, %v5130
  %v5136 = vmul.f32 1.0, %v5135
  %v5137 = vtanh.pop %v5097
  %v5138 = vxor.u32 %v5098, 2147483648
  %v5139 = vmul.f32 %v5138, 1.442695
  %v5140 = vpow.pop %v5139
  %v5141 = vadd.f32 %v5140, 1.0
  %v5142 = vrcp.pop %v5141
  %v5143 = vmul.f32 %v5141, %v5142
  %v5144 = vsub.f32 1.0, %v5143
  %v5145 = vmul.f32 %v5142, %v5144
  %v5146 = vadd.f32 %v5142, %v5145
  %vm5147 = vweird.f32 %v5141
  %vm5148 = vweird.f32 %v5142
  %vm5149 = vmor %vm5147, %vm5148
  %v5150 = vsel %vm5149, %v5142, %v5146
  %v5151 = vand.u32 2147483647, %v5141
  %vm5152 = vcmp.eq.f32.partialorder %v5151, 8.507059e+37
  %v5153 = vand.u32 %v5141, 2147483648
  %v5154 = vor.u32 1.1754944e-38, %v5153
  %v5155 = vsel %vm5152, %v5154, %v5150
  %v5156 = vmul.f32 1.0, %v5155
  %v5157 = vmul.f32 %v5136, %v5008
  %v5158 = vmul.f32 %v5117, %v5137
  %v5159 = vadd.f32 %v5157, %v5158
  %v5160 = vtanh.pop %v5159
  %v5161 = vmul.f32 %v5156, %v5160
  %v5162 = vld [vmem:[%s2824] sm:$0xff]
  %v5163 = vld [vmem:[%s2824 + $0x8] sm:$0xff]
  %v5164 = vld [vmem:[%s2824 + $0x10] sm:$0xff]
  %v5165 = vld [vmem:[%s2824 + $0x18] sm:$0xff]
  %5166 = vmatpush.msra.mxu0 %v4554
  %5167 = vmatpush.msra.mxu0 %v4550
  %5168 = vmatpush.msra.mxu0 %v4546
  %5169 = vmatpush.msra.mxu0 %v4542
  %5170 = vmatpush.msra.mxu0 %v4538
  %5171 = vmatpush.msra.mxu0 %v4534
  %5172 = vmatpush.msra.mxu0 %v4530
  %5173 = vmatpush.msra.mxu0 %v4526
  %5174 = vmatpush.msra.mxu0 %v4522
  %5175 = vmatpush.msra.mxu0 %v4518
  %5176 = vmatpush.msra.mxu0 %v4514
  %5177 = vmatpush.msra.mxu0 %v4510
  %5178 = vmatpush.msra.mxu0 %v4506
  %5179 = vmatpush.msra.mxu0 %v4502
  %5180 = vmatpush.msra.mxu0 %v4498
  %5181 = vmatpush.msra.mxu0 %v4494
  %5182 = vmatmul.f32.gmra.mxu0 %v5161
  %v5183 = vpop.f32.mrf.mxu0
  %v5184 = vadd.f32 0.0, %v5183
  %5185 = vdwg.mxu0
  %5186 = vmatpush.msra.mxu0 %v4555
  %5187 = vmatpush.msra.mxu0 %v4551
  %5188 = vmatpush.msra.mxu0 %v4547
  %5189 = vmatpush.msra.mxu0 %v4543
  %5190 = vmatpush.msra.mxu0 %v4539
  %5191 = vmatpush.msra.mxu0 %v4535
  %5192 = vmatpush.msra.mxu0 %v4531
  %5193 = vmatpush.msra.mxu0 %v4527
  %5194 = vmatpush.msra.mxu0 %v4523
  %5195 = vmatpush.msra.mxu0 %v4519
  %5196 = vmatpush.msra.mxu0 %v4515
  %5197 = vmatpush.msra.mxu0 %v4511
  %5198 = vmatpush.msra.mxu0 %v4507
  %5199 = vmatpush.msra.mxu0 %v4503
  %5200 = vmatpush.msra.mxu0 %v4499
  %5201 = vmatpush.msra.mxu0 %v4495
  %5202 = vmatmul.f32.gmra.mxu0 %v5161
  %v5203 = vpop.f32.mrf.mxu0
  %v5204 = vadd.f32 0.0, %v5203
  %5205 = vdwg.mxu0
  %5206 = vmatpush.msra.mxu0 %v4556
  %5207 = vmatpush.msra.mxu0 %v4552
  %5208 = vmatpush.msra.mxu0 %v4548
  %5209 = vmatpush.msra.mxu0 %v4544
  %5210 = vmatpush.msra.mxu0 %v4540
  %5211 = vmatpush.msra.mxu0 %v4536
  %5212 = vmatpush.msra.mxu0 %v4532
  %5213 = vmatpush.msra.mxu0 %v4528
  %5214 = vmatpush.msra.mxu0 %v4524
  %5215 = vmatpush.msra.mxu0 %v4520
  %5216 = vmatpush.msra.mxu0 %v4516
  %5217 = vmatpush.msra.mxu0 %v4512
  %5218 = vmatpush.msra.mxu0 %v4508
  %5219 = vmatpush.msra.mxu0 %v4504
  %5220 = vmatpush.msra.mxu0 %v4500
  %5221 = vmatpush.msra.mxu0 %v4496
  %5222 = vmatmul.f32.gmra.mxu0 %v5161
  %v5223 = vpop.f32.mrf.mxu0
  %v5224 = vadd.f32 0.0, %v5223
  %5225 = vdwg.mxu0
  %5226 = vmatpush.msra.mxu0 %v4557
  %5227 = vmatpush.msra.mxu0 %v4553
  %5228 = vmatpush.msra.mxu0 %v4549
  %5229 = vmatpush.msra.mxu0 %v4545
  %5230 = vmatpush.msra.mxu0 %v4541
  %5231 = vmatpush.msra.mxu0 %v4537
  %5232 = vmatpush.msra.mxu0 %v4533
  %5233 = vmatpush.msra.mxu0 %v4529
  %5234 = vmatpush.msra.mxu0 %v4525
  %5235 = vmatpush.msra.mxu0 %v4521
  %5236 = vmatpush.msra.mxu0 %v4517
  %5237 = vmatpush.msra.mxu0 %v4513
  %5238 = vmatpush.msra.mxu0 %v4509
  %5239 = vmatpush.msra.mxu0 %v4505
  %5240 = vmatpush.msra.mxu0 %v4501
  %5241 = vmatpush.msra.mxu0 %v4497
  %5242 = vmatmul.f32.gmra.mxu0 %v5161
  %v5243 = vpop.f32.mrf.mxu0
  %v5244 = vadd.f32 0.0, %v5243
  %5245 = vdwg.mxu0
  %v5246 = vadd.f32 %v5162, %v5184
  %v5247 = vadd.f32 %v5163, %v5204
  %v5248 = vadd.f32 %v5164, %v5224
  %v5249 = vadd.f32 %v5165, %v5244
  %v5250 = vxor.u32 %v5246, 2147483648
  %v5251 = vmul.f32 %v5250, 1.442695
  %v5252 = vpow.pop %v5251
  %v5253 = vadd.f32 %v5252, 1.0
  %v5254 = vrcp.pop %v5253
  %v5255 = vmul.f32 %v5253, %v5254
  %v5256 = vsub.f32 1.0, %v5255
  %v5257 = vmul.f32 %v5254, %v5256
  %v5258 = vadd.f32 %v5254, %v5257
  %vm5259 = vweird.f32 %v5253
  %vm5260 = vweird.f32 %v5254
  %vm5261 = vmor %vm5259, %vm5260
  %v5262 = vsel %vm5261, %v5254, %v5258
  %v5263 = vand.u32 2147483647, %v5253
  %vm5264 = vcmp.eq.f32.partialorder %v5263, 8.507059e+37
  %v5265 = vand.u32 %v5253, 2147483648
  %v5266 = vor.u32 1.1754944e-38, %v5265
  %v5267 = vsel %vm5264, %v5266, %v5262
  %v5268 = vmul.f32 1.0, %v5267
  %v5269 = vxor.u32 %v5247, 2147483648
  %v5270 = vmul.f32 %v5269, 1.442695
  %v5271 = vpow.pop %v5270
  %v5272 = vadd.f32 %v5271, 1.0
  %v5273 = vrcp.pop %v5272
  %v5274 = vmul.f32 %v5272, %v5273
  %v5275 = vsub.f32 1.0, %v5274
  %v5276 = vmul.f32 %v5273, %v5275
  %v5277 = vadd.f32 %v5273, %v5276
  %vm5278 = vweird.f32 %v5272
  %vm5279 = vweird.f32 %v5273
  %vm5280 = vmor %vm5278, %vm5279
  %v5281 = vsel %vm5280, %v5273, %v5277
  %v5282 = vand.u32 2147483647, %v5272
  %vm5283 = vcmp.eq.f32.partialorder %v5282, 8.507059e+37
  %v5284 = vand.u32 %v5272, 2147483648
  %v5285 = vor.u32 1.1754944e-38, %v5284
  %v5286 = vsel %vm5283, %v5285, %v5281
  %v5287 = vmul.f32 1.0, %v5286
  %v5288 = vtanh.pop %v5248
  %v5289 = vxor.u32 %v5249, 2147483648
  %v5290 = vmul.f32 %v5289, 1.442695
  %v5291 = vpow.pop %v5290
  %v5292 = vadd.f32 %v5291, 1.0
  %v5293 = vrcp.pop %v5292
  %v5294 = vmul.f32 %v5292, %v5293
  %v5295 = vsub.f32 1.0, %v5294
  %v5296 = vmul.f32 %v5293, %v5295
  %v5297 = vadd.f32 %v5293, %v5296
  %vm5298 = vweird.f32 %v5292
  %vm5299 = vweird.f32 %v5293
  %vm5300 = vmor %vm5298, %vm5299
  %v5301 = vsel %vm5300, %v5293, %v5297
  %v5302 = vand.u32 2147483647, %v5292
  %vm5303 = vcmp.eq.f32.partialorder %v5302, 8.507059e+37
  %v5304 = vand.u32 %v5292, 2147483648
  %v5305 = vor.u32 1.1754944e-38, %v5304
  %v5306 = vsel %vm5303, %v5305, %v5301
  %v5307 = vmul.f32 1.0, %v5306
  %v5308 = vmul.f32 %v5287, %v5159
  %v5309 = vmul.f32 %v5268, %v5288
  %v5310 = vadd.f32 %v5308, %v5309
  %v5311 = vtanh.pop %v5310
  %v5312 = vmul.f32 %v5307, %v5311
  %v5313 = vld [vmem:[%s3379] sm:$0xff]
  %v5314 = vld [vmem:[%s3379 + $0x8] sm:$0xff]
  %v5315 = vld [vmem:[%s3379 + $0x10] sm:$0xff]
  %v5316 = vld [vmem:[%s3379 + $0x18] sm:$0xff]
  %5317 = vmatpush.msra.mxu0 %v4554
  %5318 = vmatpush.msra.mxu0 %v4550
  %5319 = vmatpush.msra.mxu0 %v4546
  %5320 = vmatpush.msra.mxu0 %v4542
  %5321 = vmatpush.msra.mxu0 %v4538
  %5322 = vmatpush.msra.mxu0 %v4534
  %5323 = vmatpush.msra.mxu0 %v4530
  %5324 = vmatpush.msra.mxu0 %v4526
  %5325 = vmatpush.msra.mxu0 %v4522
  %5326 = vmatpush.msra.mxu0 %v4518
  %5327 = vmatpush.msra.mxu0 %v4514
  %5328 = vmatpush.msra.mxu0 %v4510
  %5329 = vmatpush.msra.mxu0 %v4506
  %5330 = vmatpush.msra.mxu0 %v4502
  %5331 = vmatpush.msra.mxu0 %v4498
  %5332 = vmatpush.msra.mxu0 %v4494
  %5333 = vmatmul.f32.gmra.mxu0 %v5312
  %v5334 = vpop.f32.mrf.mxu0
  %v5335 = vadd.f32 0.0, %v5334
  %5336 = vdwg.mxu0
  %5337 = vmatpush.msra.mxu0 %v4555
  %5338 = vmatpush.msra.mxu0 %v4551
  %5339 = vmatpush.msra.mxu0 %v4547
  %5340 = vmatpush.msra.mxu0 %v4543
  %5341 = vmatpush.msra.mxu0 %v4539
  %5342 = vmatpush.msra.mxu0 %v4535
  %5343 = vmatpush.msra.mxu0 %v4531
  %5344 = vmatpush.msra.mxu0 %v4527
  %5345 = vmatpush.msra.mxu0 %v4523
  %5346 = vmatpush.msra.mxu0 %v4519
  %5347 = vmatpush.msra.mxu0 %v4515
  %5348 = vmatpush.msra.mxu0 %v4511
  %5349 = vmatpush.msra.mxu0 %v4507
  %5350 = vmatpush.msra.mxu0 %v4503
  %5351 = vmatpush.msra.mxu0 %v4499
  %5352 = vmatpush.msra.mxu0 %v4495
  %5353 = vmatmul.f32.gmra.mxu0 %v5312
  %v5354 = vpop.f32.mrf.mxu0
  %v5355 = vadd.f32 0.0, %v5354
  %5356 = vdwg.mxu0
  %5357 = vmatpush.msra.mxu0 %v4556
  %5358 = vmatpush.msra.mxu0 %v4552
  %5359 = vmatpush.msra.mxu0 %v4548
  %5360 = vmatpush.msra.mxu0 %v4544
  %5361 = vmatpush.msra.mxu0 %v4540
  %5362 = vmatpush.msra.mxu0 %v4536
  %5363 = vmatpush.msra.mxu0 %v4532
  %5364 = vmatpush.msra.mxu0 %v4528
  %5365 = vmatpush.msra.mxu0 %v4524
  %5366 = vmatpush.msra.mxu0 %v4520
  %5367 = vmatpush.msra.mxu0 %v4516
  %5368 = vmatpush.msra.mxu0 %v4512
  %5369 = vmatpush.msra.mxu0 %v4508
  %5370 = vmatpush.msra.mxu0 %v4504
  %5371 = vmatpush.msra.mxu0 %v4500
  %5372 = vmatpush.msra.mxu0 %v4496
  %5373 = vmatmul.f32.gmra.mxu0 %v5312
  %v5374 = vpop.f32.mrf.mxu0
  %v5375 = vadd.f32 0.0, %v5374
  %5376 = vdwg.mxu0
  %5377 = vmatpush.msra.mxu0 %v4557
  %5378 = vmatpush.msra.mxu0 %v4553
  %5379 = vmatpush.msra.mxu0 %v4549
  %5380 = vmatpush.msra.mxu0 %v4545
  %5381 = vmatpush.msra.mxu0 %v4541
  %5382 = vmatpush.msra.mxu0 %v4537
  %5383 = vmatpush.msra.mxu0 %v4533
  %5384 = vmatpush.msra.mxu0 %v4529
  %5385 = vmatpush.msra.mxu0 %v4525
  %5386 = vmatpush.msra.mxu0 %v4521
  %5387 = vmatpush.msra.mxu0 %v4517
  %5388 = vmatpush.msra.mxu0 %v4513
  %5389 = vmatpush.msra.mxu0 %v4509
  %5390 = vmatpush.msra.mxu0 %v4505
  %5391 = vmatpush.msra.mxu0 %v4501
  %5392 = vmatpush.msra.mxu0 %v4497
  %5393 = vmatmul.f32.gmra.mxu0 %v5312
  %v5394 = vpop.f32.mrf.mxu0
  %v5395 = vadd.f32 0.0, %v5394
  %5396 = vdwg.mxu0
  %v5397 = vadd.f32 %v5313, %v5335
  %v5398 = vadd.f32 %v5314, %v5355
  %v5399 = vadd.f32 %v5315, %v5375
  %v5400 = vadd.f32 %v5316, %v5395
  %v5401 = vxor.u32 %v5397, 2147483648
  %v5402 = vmul.f32 %v5401, 1.442695
  %v5403 = vpow.pop %v5402
  %v5404 = vadd.f32 %v5403, 1.0
  %v5405 = vrcp.pop %v5404
  %v5406 = vmul.f32 %v5404, %v5405
  %v5407 = vsub.f32 1.0, %v5406
  %v5408 = vmul.f32 %v5405, %v5407
  %v5409 = vadd.f32 %v5405, %v5408
  %vm5410 = vweird.f32 %v5404
  %vm5411 = vweird.f32 %v5405
  %vm5412 = vmor %vm5410, %vm5411
  %v5413 = vsel %vm5412, %v5405, %v5409
  %v5414 = vand.u32 2147483647, %v5404
  %vm5415 = vcmp.eq.f32.partialorder %v5414, 8.507059e+37
  %v5416 = vand.u32 %v5404, 2147483648
  %v5417 = vor.u32 1.1754944e-38, %v5416
  %v5418 = vsel %vm5415, %v5417, %v5413
  %v5419 = vmul.f32 1.0, %v5418
  %v5420 = vxor.u32 %v5398, 2147483648
  %v5421 = vmul.f32 %v5420, 1.442695
  %v5422 = vpow.pop %v5421
  %v5423 = vadd.f32 %v5422, 1.0
  %v5424 = vrcp.pop %v5423
  %v5425 = vmul.f32 %v5423, %v5424
  %v5426 = vsub.f32 1.0, %v5425
  %v5427 = vmul.f32 %v5424, %v5426
  %v5428 = vadd.f32 %v5424, %v5427
  %vm5429 = vweird.f32 %v5423
  %vm5430 = vweird.f32 %v5424
  %vm5431 = vmor %vm5429, %vm5430
  %v5432 = vsel %vm5431, %v5424, %v5428
  %v5433 = vand.u32 2147483647, %v5423
  %vm5434 = vcmp.eq.f32.partialorder %v5433, 8.507059e+37
  %v5435 = vand.u32 %v5423, 2147483648
  %v5436 = vor.u32 1.1754944e-38, %v5435
  %v5437 = vsel %vm5434, %v5436, %v5432
  %v5438 = vmul.f32 1.0, %v5437
  %v5439 = vtanh.pop %v5399
  %v5440 = vxor.u32 %v5400, 2147483648
  %v5441 = vmul.f32 %v5440, 1.442695
  %v5442 = vpow.pop %v5441
  %v5443 = vadd.f32 %v5442, 1.0
  %v5444 = vrcp.pop %v5443
  %v5445 = vmul.f32 %v5443, %v5444
  %v5446 = vsub.f32 1.0, %v5445
  %v5447 = vmul.f32 %v5444, %v5446
  %v5448 = vadd.f32 %v5444, %v5447
  %vm5449 = vweird.f32 %v5443
  %vm5450 = vweird.f32 %v5444
  %vm5451 = vmor %vm5449, %vm5450
  %v5452 = vsel %vm5451, %v5444, %v5448
  %v5453 = vand.u32 2147483647, %v5443
  %vm5454 = vcmp.eq.f32.partialorder %v5453, 8.507059e+37
  %v5455 = vand.u32 %v5443, 2147483648
  %v5456 = vor.u32 1.1754944e-38, %v5455
  %v5457 = vsel %vm5454, %v5456, %v5452
  %v5458 = vmul.f32 1.0, %v5457
  %v5459 = vmul.f32 %v5438, %v5310
  %v5460 = vmul.f32 %v5419, %v5439
  %v5461 = vadd.f32 %v5459, %v5460
  %v5462 = vtanh.pop %v5461
  %v5463 = vmul.f32 %v5458, %v5462
  %v5464 = vld [vmem:[%s3934] sm:$0xff]
  %v5465 = vld [vmem:[%s3934 + $0x8] sm:$0xff]
  %v5466 = vld [vmem:[%s3934 + $0x10] sm:$0xff]
  %v5467 = vld [vmem:[%s3934 + $0x18] sm:$0xff]
  %5468 = vmatpush.msra.mxu0 %v4554
  %5469 = vmatpush.msra.mxu0 %v4550
  %5470 = vmatpush.msra.mxu0 %v4546
  %5471 = vmatpush.msra.mxu0 %v4542
  %5472 = vmatpush.msra.mxu0 %v4538
  %5473 = vmatpush.msra.mxu0 %v4534
  %5474 = vmatpush.msra.mxu0 %v4530
  %5475 = vmatpush.msra.mxu0 %v4526
  %5476 = vmatpush.msra.mxu0 %v4522
  %5477 = vmatpush.msra.mxu0 %v4518
  %5478 = vmatpush.msra.mxu0 %v4514
  %5479 = vmatpush.msra.mxu0 %v4510
  %5480 = vmatpush.msra.mxu0 %v4506
  %5481 = vmatpush.msra.mxu0 %v4502
  %5482 = vmatpush.msra.mxu0 %v4498
  %5483 = vmatpush.msra.mxu0 %v4494
  %5484 = vmatmul.f32.gmra.mxu0 %v5463
  %v5485 = vpop.f32.mrf.mxu0
  %v5486 = vadd.f32 0.0, %v5485
  %5487 = vdwg.mxu0
  %5488 = vmatpush.msra.mxu0 %v4555
  %5489 = vmatpush.msra.mxu0 %v4551
  %5490 = vmatpush.msra.mxu0 %v4547
  %5491 = vmatpush.msra.mxu0 %v4543
  %5492 = vmatpush.msra.mxu0 %v4539
  %5493 = vmatpush.msra.mxu0 %v4535
  %5494 = vmatpush.msra.mxu0 %v4531
  %5495 = vmatpush.msra.mxu0 %v4527
  %5496 = vmatpush.msra.mxu0 %v4523
  %5497 = vmatpush.msra.mxu0 %v4519
  %5498 = vmatpush.msra.mxu0 %v4515
  %5499 = vmatpush.msra.mxu0 %v4511
  %5500 = vmatpush.msra.mxu0 %v4507
  %5501 = vmatpush.msra.mxu0 %v4503
  %5502 = vmatpush.msra.mxu0 %v4499
  %5503 = vmatpush.msra.mxu0 %v4495
  %5504 = vmatmul.f32.gmra.mxu0 %v5463
  %v5505 = vpop.f32.mrf.mxu0
  %v5506 = vadd.f32 0.0, %v5505
  %5507 = vdwg.mxu0
  %5508 = vmatpush.msra.mxu0 %v4556
  %5509 = vmatpush.msra.mxu0 %v4552
  %5510 = vmatpush.msra.mxu0 %v4548
  %5511 = vmatpush.msra.mxu0 %v4544
  %5512 = vmatpush.msra.mxu0 %v4540
  %5513 = vmatpush.msra.mxu0 %v4536
  %5514 = vmatpush.msra.mxu0 %v4532
  %5515 = vmatpush.msra.mxu0 %v4528
  %5516 = vmatpush.msra.mxu0 %v4524
  %5517 = vmatpush.msra.mxu0 %v4520
  %5518 = vmatpush.msra.mxu0 %v4516
  %5519 = vmatpush.msra.mxu0 %v4512
  %5520 = vmatpush.msra.mxu0 %v4508
  %5521 = vmatpush.msra.mxu0 %v4504
  %5522 = vmatpush.msra.mxu0 %v4500
  %5523 = vmatpush.msra.mxu0 %v4496
  %5524 = vmatmul.f32.gmra.mxu0 %v5463
  %v5525 = vpop.f32.mrf.mxu0
  %v5526 = vadd.f32 0.0, %v5525
  %5527 = vdwg.mxu0
  %5528 = vmatpush.msra.mxu0 %v4557
  %5529 = vmatpush.msra.mxu0 %v4553
  %5530 = vmatpush.msra.mxu0 %v4549
  %5531 = vmatpush.msra.mxu0 %v4545
  %5532 = vmatpush.msra.mxu0 %v4541
  %5533 = vmatpush.msra.mxu0 %v4537
  %5534 = vmatpush.msra.mxu0 %v4533
  %5535 = vmatpush.msra.mxu0 %v4529
  %5536 = vmatpush.msra.mxu0 %v4525
  %5537 = vmatpush.msra.mxu0 %v4521
  %5538 = vmatpush.msra.mxu0 %v4517
  %5539 = vmatpush.msra.mxu0 %v4513
  %5540 = vmatpush.msra.mxu0 %v4509
  %5541 = vmatpush.msra.mxu0 %v4505
  %5542 = vmatpush.msra.mxu0 %v4501
  %5543 = vmatpush.msra.mxu0 %v4497
  %5544 = vmatmul.f32.gmra.mxu0 %v5463
  %v5545 = vpop.f32.mrf.mxu0
  %v5546 = vadd.f32 0.0, %v5545
  %5547 = vdwg.mxu0
  %v5548 = vadd.f32 %v5464, %v5486
  %v5549 = vadd.f32 %v5465, %v5506
  %v5550 = vadd.f32 %v5466, %v5526
  %v5551 = vadd.f32 %v5467, %v5546
  %v5552 = vxor.u32 %v5548, 2147483648
  %v5553 = vmul.f32 %v5552, 1.442695
  %v5554 = vpow.pop %v5553
  %v5555 = vadd.f32 %v5554, 1.0
  %v5556 = vrcp.pop %v5555
  %v5557 = vmul.f32 %v5555, %v5556
  %v5558 = vsub.f32 1.0, %v5557
  %v5559 = vmul.f32 %v5556, %v5558
  %v5560 = vadd.f32 %v5556, %v5559
  %vm5561 = vweird.f32 %v5555
  %vm5562 = vweird.f32 %v5556
  %vm5563 = vmor %vm5561, %vm5562
  %v5564 = vsel %vm5563, %v5556, %v5560
  %v5565 = vand.u32 2147483647, %v5555
  %vm5566 = vcmp.eq.f32.partialorder %v5565, 8.507059e+37
  %v5567 = vand.u32 %v5555, 2147483648
  %v5568 = vor.u32 1.1754944e-38, %v5567
  %v5569 = vsel %vm5566, %v5568, %v5564
  %v5570 = vmul.f32 1.0, %v5569
  %v5571 = vxor.u32 %v5549, 2147483648
  %v5572 = vmul.f32 %v5571, 1.442695
  %v5573 = vpow.pop %v5572
  %v5574 = vadd.f32 %v5573, 1.0
  %v5575 = vrcp.pop %v5574
  %v5576 = vmul.f32 %v5574, %v5575
  %v5577 = vsub.f32 1.0, %v5576
  %v5578 = vmul.f32 %v5575, %v5577
  %v5579 = vadd.f32 %v5575, %v5578
  %vm5580 = vweird.f32 %v5574
  %vm5581 = vweird.f32 %v5575
  %vm5582 = vmor %vm5580, %vm5581
  %v5583 = vsel %vm5582, %v5575, %v5579
  %v5584 = vand.u32 2147483647, %v5574
  %vm5585 = vcmp.eq.f32.partialorder %v5584, 8.507059e+37
  %v5586 = vand.u32 %v5574, 2147483648
  %v5587 = vor.u32 1.1754944e-38, %v5586
  %v5588 = vsel %vm5585, %v5587, %v5583
  %v5589 = vmul.f32 1.0, %v5588
  %v5590 = vtanh.pop %v5550
  %v5591 = vxor.u32 %v5551, 2147483648
  %v5592 = vmul.f32 %v5591, 1.442695
  %v5593 = vpow.pop %v5592
  %v5594 = vadd.f32 %v5593, 1.0
  %v5595 = vrcp.pop %v5594
  %v5596 = vmul.f32 %v5594, %v5595
  %v5597 = vsub.f32 1.0, %v5596
  %v5598 = vmul.f32 %v5595, %v5597
  %v5599 = vadd.f32 %v5595, %v5598
  %vm5600 = vweird.f32 %v5594
  %vm5601 = vweird.f32 %v5595
  %vm5602 = vmor %vm5600, %vm5601
  %v5603 = vsel %vm5602, %v5595, %v5599
  %v5604 = vand.u32 2147483647, %v5594
  %vm5605 = vcmp.eq.f32.partialorder %v5604, 8.507059e+37
  %v5606 = vand.u32 %v5594, 2147483648
  %v5607 = vor.u32 1.1754944e-38, %v5606
  %v5608 = vsel %vm5605, %v5607, %v5603
  %v5609 = vmul.f32 1.0, %v5608
  %v5610 = vmul.f32 %v5589, %v5461
  %v5611 = vmul.f32 %v5570, %v5590
  %v5612 = vadd.f32 %v5610, %v5611
  %v5613 = vtanh.pop %v5612
  %v5614 = vmul.f32 %v5609, %v5613
  %v5615 = vld [vmem:[%s4489] sm:$0xff]
  %v5616 = vld [vmem:[%s4489 + $0x8] sm:$0xff]
  %v5617 = vld [vmem:[%s4489 + $0x10] sm:$0xff]
  %v5618 = vld [vmem:[%s4489 + $0x18] sm:$0xff]
  %5619 = vmatpush.msra.mxu0 %v4554
  %5620 = vmatpush.msra.mxu0 %v4550
  %5621 = vmatpush.msra.mxu0 %v4546
  %5622 = vmatpush.msra.mxu0 %v4542
  %5623 = vmatpush.msra.mxu0 %v4538
  %5624 = vmatpush.msra.mxu0 %v4534
  %5625 = vmatpush.msra.mxu0 %v4530
  %5626 = vmatpush.msra.mxu0 %v4526
  %5627 = vmatpush.msra.mxu0 %v4522
  %5628 = vmatpush.msra.mxu0 %v4518
  %5629 = vmatpush.msra.mxu0 %v4514
  %5630 = vmatpush.msra.mxu0 %v4510
  %5631 = vmatpush.msra.mxu0 %v4506
  %5632 = vmatpush.msra.mxu0 %v4502
  %5633 = vmatpush.msra.mxu0 %v4498
  %5634 = vmatpush.msra.mxu0 %v4494
  %5635 = vmatmul.f32.gmra.mxu0 %v5614
  %v5636 = vpop.f32.mrf.mxu0
  %v5637 = vadd.f32 0.0, %v5636
  %5638 = vdwg.mxu0
  %5639 = vmatpush.msra.mxu0 %v4555
  %5640 = vmatpush.msra.mxu0 %v4551
  %5641 = vmatpush.msra.mxu0 %v4547
  %5642 = vmatpush.msra.mxu0 %v4543
  %5643 = vmatpush.msra.mxu0 %v4539
  %5644 = vmatpush.msra.mxu0 %v4535
  %5645 = vmatpush.msra.mxu0 %v4531
  %5646 = vmatpush.msra.mxu0 %v4527
  %5647 = vmatpush.msra.mxu0 %v4523
  %5648 = vmatpush.msra.mxu0 %v4519
  %5649 = vmatpush.msra.mxu0 %v4515
  %5650 = vmatpush.msra.mxu0 %v4511
  %5651 = vmatpush.msra.mxu0 %v4507
  %5652 = vmatpush.msra.mxu0 %v4503
  %5653 = vmatpush.msra.mxu0 %v4499
  %5654 = vmatpush.msra.mxu0 %v4495
  %5655 = vmatmul.f32.gmra.mxu0 %v5614
  %v5656 = vpop.f32.mrf.mxu0
  %v5657 = vadd.f32 0.0, %v5656
  %5658 = vdwg.mxu0
  %5659 = vmatpush.msra.mxu0 %v4556
  %5660 = vmatpush.msra.mxu0 %v4552
  %5661 = vmatpush.msra.mxu0 %v4548
  %5662 = vmatpush.msra.mxu0 %v4544
  %5663 = vmatpush.msra.mxu0 %v4540
  %5664 = vmatpush.msra.mxu0 %v4536
  %5665 = vmatpush.msra.mxu0 %v4532
  %5666 = vmatpush.msra.mxu0 %v4528
  %5667 = vmatpush.msra.mxu0 %v4524
  %5668 = vmatpush.msra.mxu0 %v4520
  %5669 = vmatpush.msra.mxu0 %v4516
  %5670 = vmatpush.msra.mxu0 %v4512
  %5671 = vmatpush.msra.mxu0 %v4508
  %5672 = vmatpush.msra.mxu0 %v4504
  %5673 = vmatpush.msra.mxu0 %v4500
  %5674 = vmatpush.msra.mxu0 %v4496
  %5675 = vmatmul.f32.gmra.mxu0 %v5614
  %v5676 = vpop.f32.mrf.mxu0
  %v5677 = vadd.f32 0.0, %v5676
  %5678 = vdwg.mxu0
  %5679 = vmatpush.msra.mxu0 %v4557
  %5680 = vmatpush.msra.mxu0 %v4553
  %5681 = vmatpush.msra.mxu0 %v4549
  %5682 = vmatpush.msra.mxu0 %v4545
  %5683 = vmatpush.msra.mxu0 %v4541
  %5684 = vmatpush.msra.mxu0 %v4537
  %5685 = vmatpush.msra.mxu0 %v4533
  %5686 = vmatpush.msra.mxu0 %v4529
  %5687 = vmatpush.msra.mxu0 %v4525
  %5688 = vmatpush.msra.mxu0 %v4521
  %5689 = vmatpush.msra.mxu0 %v4517
  %5690 = vmatpush.msra.mxu0 %v4513
  %5691 = vmatpush.msra.mxu0 %v4509
  %5692 = vmatpush.msra.mxu0 %v4505
  %5693 = vmatpush.msra.mxu0 %v4501
  %5694 = vmatpush.msra.mxu0 %v4497
  %5695 = vmatmul.f32.gmra.mxu0 %v5614
  %v5696 = vpop.f32.mrf.mxu0
  %v5697 = vadd.f32 0.0, %v5696
  %5698 = vdwg.mxu0
  %v5699 = vadd.f32 %v5615, %v5637
  %v5700 = vadd.f32 %v5616, %v5657
  %v5701 = vadd.f32 %v5617, %v5677
  %v5702 = vadd.f32 %v5618, %v5697
  %v5703 = vxor.u32 %v5699, 2147483648
  %v5704 = vmul.f32 %v5703, 1.442695
  %v5705 = vpow.pop %v5704
  %v5706 = vadd.f32 %v5705, 1.0
  %v5707 = vrcp.pop %v5706
  %v5708 = vmul.f32 %v5706, %v5707
  %v5709 = vsub.f32 1.0, %v5708
  %v5710 = vmul.f32 %v5707, %v5709
  %v5711 = vadd.f32 %v5707, %v5710
  %vm5712 = vweird.f32 %v5706
  %vm5713 = vweird.f32 %v5707
  %vm5714 = vmor %vm5712, %vm5713
  %v5715 = vsel %vm5714, %v5707, %v5711
  %v5716 = vand.u32 2147483647, %v5706
  %vm5717 = vcmp.eq.f32.partialorder %v5716, 8.507059e+37
  %v5718 = vand.u32 %v5706, 2147483648
  %v5719 = vor.u32 1.1754944e-38, %v5718
  %v5720 = vsel %vm5717, %v5719, %v5715
  %v5721 = vmul.f32 1.0, %v5720
  %v5722 = vxor.u32 %v5700, 2147483648
  %v5723 = vmul.f32 %v5722, 1.442695
  %v5724 = vpow.pop %v5723
  %v5725 = vadd.f32 %v5724, 1.0
  %v5726 = vrcp.pop %v5725
  %v5727 = vmul.f32 %v5725, %v5726
  %v5728 = vsub.f32 1.0, %v5727
  %v5729 = vmul.f32 %v5726, %v5728
  %v5730 = vadd.f32 %v5726, %v5729
  %vm5731 = vweird.f32 %v5725
  %vm5732 = vweird.f32 %v5726
  %vm5733 = vmor %vm5731, %vm5732
  %v5734 = vsel %vm5733, %v5726, %v5730
  %v5735 = vand.u32 2147483647, %v5725
  %vm5736 = vcmp.eq.f32.partialorder %v5735, 8.507059e+37
  %v5737 = vand.u32 %v5725, 2147483648
  %v5738 = vor.u32 1.1754944e-38, %v5737
  %v5739 = vsel %vm5736, %v5738, %v5734
  %v5740 = vmul.f32 1.0, %v5739
  %v5741 = vtanh.pop %v5701
  %v5742 = vxor.u32 %v5702, 2147483648
  %v5743 = vmul.f32 %v5742, 1.442695
  %v5744 = vpow.pop %v5743
  %v5745 = vadd.f32 %v5744, 1.0
  %v5746 = vrcp.pop %v5745
  %v5747 = vmul.f32 %v5745, %v5746
  %v5748 = vsub.f32 1.0, %v5747
  %v5749 = vmul.f32 %v5746, %v5748
  %v5750 = vadd.f32 %v5746, %v5749
  %vm5751 = vweird.f32 %v5745
  %vm5752 = vweird.f32 %v5746
  %vm5753 = vmor %vm5751, %vm5752
  %v5754 = vsel %vm5753, %v5746, %v5750
  %v5755 = vand.u32 2147483647, %v5745
  %vm5756 = vcmp.eq.f32.partialorder %v5755, 8.507059e+37
  %v5757 = vand.u32 %v5745, 2147483648
  %v5758 = vor.u32 1.1754944e-38, %v5757
  %v5759 = vsel %vm5756, %v5758, %v5754
  %v5760 = vmul.f32 1.0, %v5759
  %v5761 = vmul.f32 %v5740, %v5612
  %v5762 = vmul.f32 %v5721, %v5741
  %v5763 = vadd.f32 %v5761, %v5762
  %v5764 = vtanh.pop %v5763
  %v5765 = vmul.f32 %v5760, %v5764
  %5766 = vst [vmem:[%s8] sm:$0xff] %v5765
  // Predicated region
  $region34: #{trm_cell_embedder_forward.4} parent=0 // pred_check
    _
  $region35: #{trm_cell_embedder_forward.4} parent=0 // pred_check_branch
    %5768 = sbr.rel (0) target = $region37
  $region36: #{trm_cell_embedder_forward.4} parent=0 // pred_region
    _
  $region37: #{trm_cell_embedder_forward.4} parent=0 // pred_fallthru
    _
  // Predicated region
  $region38: #{trm_cell_embedder_forward.4} parent=0 // pred_check
    _
  $region39: #{trm_cell_embedder_forward.4} parent=0 // pred_check_branch
    %5770 = sbr.rel (0) target = $region41
  $region40: #{trm_cell_embedder_forward.4} parent=0 // pred_region
    _
  $region41: #{trm_cell_embedder_forward.4} parent=0 // pred_fallthru
    _

</llo_original>
